<compile_context>
chip_gen: v6e
topology: v6e:2x2x1
jax: 0.10.0
libtpu: 0.0.40
codegen_flags: <defaults>
</compile_context>

<pallas_src>
import functools

import jax
import jax.numpy as jnp
from jax.experimental import pallas as pl
from jax.experimental.pallas import tpu as pltpu

VMEM_SPEC = pl.BlockSpec(memory_space=pltpu.MemorySpace.VMEM)

# Geometry implied by the module (Fashion-MNIST style 1x28x28 input).
IN_H = IN_W = 28
S_IMG = IN_H * IN_W            # 784 flat pixels per image
K = 5                          # conv kernel size
C1_OUT, C2_OUT = 6, 12
OH1 = IN_H - K + 1             # 24  conv1 output side
PH1 = OH1 // 2                 # 12  pool1 output side
OH2 = PH1 - K + 1              # 8   conv2 output side
PH2 = OH2 // 2                 # 4   pool2 output side
FC1_OUT, FC2_OUT, N_CLS = 84, 42, 3


# ------------------------------ fused kernel --------------------------------

def _fused_kernel(x_ref, w1_ref, b1_ref, w2_ref, b2_ref,
                  wf1_ref, bf1_ref, wf2_ref, bf2_ref, wf3_ref, bf3_ref,
                  out_ref, p1_ref, p2_ref, p3_ref,
                  *, batch, m1, l1, m2, l2, m3):
    # Zero the patch scratches once: unwritten pad rows in each 8/16-row tap
    # slot must contribute exactly 0 to the matmuls (and must never be NaN).
    p1_ref[...] = jnp.zeros_like(p1_ref)
    p2_ref[...] = jnp.zeros_like(p2_ref)
    p3_ref[...] = jnp.zeros_like(p3_ref)

    x = x_ref[...]                                        # [1, batch*784]

    # -------- conv1 (1->6, 5x5, valid); output column m == flat input pixel m
    # (valid iff m = b*784 + oh*28 + ow, oh/ow < 24; other columns are junk).
    for t in range(K * K):
        kh, kw = divmod(t, K)
        off = kh * IN_W + kw
        p1_ref[pl.ds(8 * t, 1), :] = x[:, off:off + m1]
    a1 = jnp.dot(w1_ref[...], p1_ref[...],
                 preferred_element_type=jnp.float32) + b1_ref[...]    # [6, m1]

    # -------- maxpool 2x2 stride 2 + relu (relu commutes with max)
    v1 = jnp.maximum(jnp.maximum(a1[:, 0:l1], a1[:, 1:1 + l1]),
                     jnp.maximum(a1[:, IN_W:IN_W + l1],
                                 a1[:, IN_W + 1:IN_W + 1 + l1]))
    v1 = jnp.maximum(v1, 0.0)                             # [6, l1]

    # -------- conv2 (6->12, 5x5, valid); pooled coords have strides (56, 2)
    for t in range(K * K):
        kh, kw = divmod(t, K)
        off = 2 * IN_W * kh + 2 * kw
        p2_ref[pl.ds(8 * t, C1_OUT), :] = v1[:, off:off + m2]
    a2 = jnp.dot(w2_ref[...], p2_ref[...],
                 preferred_element_type=jnp.float32) + b2_ref[...]    # [12, m2]

    # -------- maxpool 2x2 stride 2 + relu; conv2 coords have strides (56, 2)
    v2 = jnp.maximum(jnp.maximum(a2[:, 0:l2], a2[:, 2:2 + l2]),
                     jnp.maximum(a2[:, 2 * IN_W:2 * IN_W + l2],
                                 a2[:, 2 * IN_W + 2:2 * IN_W + 2 + l2]))
    v2 = jnp.maximum(v2, 0.0)                             # [12, l2]

    # -------- fc1 (192->84) expressed as a 4x4 "conv" over the flat coords
    # (pool2 coords have strides (112, 4); only column m = b*784 is a sample).
    for s in range(PH2 * PH2):
        i2, j2 = divmod(s, PH2)
        off = 4 * IN_W * i2 + 4 * j2
        p3_ref[pl.ds(16 * s, C2_OUT), :] = v2[:, off:off + m3]
    h1 = jnp.maximum(
        jnp.dot(wf1_ref[...], p3_ref[...],
                preferred_element_type=jnp.float32) + bf1_ref[...], 0.0)  # [84, m3]

    # -------- fc2 + relu, fc3
    h2 = jnp.maximum(
        jnp.dot(wf2_ref[...], h1, preferred_element_type=jnp.float32)
        + bf2_ref[...], 0.0)                              # [42, m3]
    lg = (jnp.dot(wf3_ref[...], h2, preferred_element_type=jnp.float32)
          + bf3_ref[...])                                 # [3, m3]

    # -------- softmax over the 3 class rows (explicit, max-stabilized)
    mx = jnp.maximum(jnp.maximum(lg[0:1, :], lg[1:2, :]), lg[2:3, :])
    e = jnp.exp(lg - mx)
    den = e[0:1, :] + e[1:2, :] + e[2:3, :]
    pr = e / den                                          # [3, m3]

    # Only columns m = b*784 are real samples; emit [3, batch].
    for b in range(batch):
        out_ref[:, pl.ds(b, 1)] = pr[:, b * S_IMG:b * S_IMG + 1]


# -------------------------------- wrapper ------------------------------------

def gate_cnn_fashion_softmax(kparams, x):
    """x: [B, 1, 28, 28] float32 (NCHW) -> softmax probabilities [B, 3]."""
    batch = x.shape[0]
    # Flat-coordinate extents: (largest column still read by the next stage)+1.
    m1 = (batch - 1) * S_IMG + (OH1 - 1) * IN_W + (OH1 - 1) + 1          # conv1
    l1 = (batch - 1) * S_IMG + 2 * (PH1 - 1) * IN_W + 2 * (PH1 - 1) + 1  # pool1
    m2 = (batch - 1) * S_IMG + 2 * (OH2 - 1) * IN_W + 2 * (OH2 - 1) + 1  # conv2
    l2 = (batch - 1) * S_IMG + 4 * (PH2 - 1) * IN_W + 4 * (PH2 - 1) + 1  # pool2
    m3 = (batch - 1) * S_IMG + 1                                         # fc1

    xf = x.astype(jnp.float32).reshape(1, batch * S_IMG)   # layout-only glue

    kernel = functools.partial(_fused_kernel, batch=batch,
                               m1=m1, l1=l1, m2=m2, l2=l2, m3=m3)
    out = pl.pallas_call(
        kernel,
        out_shape=jax.ShapeDtypeStruct((N_CLS, batch), jnp.float32),
        in_specs=[VMEM_SPEC] * 11,
        out_specs=VMEM_SPEC,
        scratch_shapes=[
            pltpu.VMEM((K * K * 8, m1), jnp.float32),        # conv1 patches
            pltpu.VMEM((K * K * 8, m2), jnp.float32),        # conv2 patches
            pltpu.VMEM((PH2 * PH2 * 16, m3), jnp.float32),   # fc1 patches
        ],
        # TODO(synk): on v7x a parallel grid over the flat M axis could engage
        # the 2nd TensorCore; at <1 MFLOP a single grid-less call is fine.
    )(xf,
      kparams["w1"], kparams["b1"], kparams["w2"], kparams["b2"],
      kparams["wf1"], kparams["bf1"], kparams["wf2"], kparams["bf2"],
      kparams["wf3"], kparams["bf3"])
    return out.T                                            # [B, 3]


# ------------------------------ parameters -----------------------------------

def _uniform(key, shape, fan_in):
    bound = 1.0 / jnp.sqrt(jnp.asarray(fan_in, jnp.float32))
    return jax.random.uniform(key, shape, jnp.float32, -bound, bound)


def init_params(key):
    """Torch-convention parameters (OIHW conv weights, [out,in] linear)."""
    ks = jax.random.split(key, 10)
    return {
        "w_c1": _uniform(ks[0], (6, 1, 5, 5), 1 * 5 * 5),
        "b_c1": _uniform(ks[1], (6,), 1 * 5 * 5),
        "w_c2": _uniform(ks[2], (12, 6, 5, 5), 6 * 5 * 5),
        "b_c2": _uniform(ks[3], (12,), 6 * 5 * 5),
        "w_fc1": _uniform(ks[4], (84, 192), 192),
        "b_fc1": _uniform(ks[5], (84,), 192),
        "w_fc2": _uniform(ks[6], (42, 84), 84),
        "b_fc2": _uniform(ks[7], (42,), 84),
        "w_fc3": _uniform(ks[8], (3, 42), 42),
        "b_fc3": _uniform(ks[9], (3,), 42),
    }


def prepare_params(p):
    """One-time (init-time) weight re-layout for the fused kernel.

    Conv/fc1 weights become [Cout, n_slots*slot] matrices whose K ordering
    matches the 8/16-row tap slots the kernel writes into its VMEM patch
    scratch; pad columns are zero.  Done once, never inside the hot forward.
    """
    f32 = jnp.float32
    # conv1: slot t=(kh,kw) (stride 8), row 0 inside the slot.
    w1 = p["w_c1"].reshape(C1_OUT, K * K).astype(f32)
    w1p = jnp.zeros((C1_OUT, K * K, 8), f32).at[:, :, 0].set(w1)
    w1p = w1p.reshape(C1_OUT, K * K * 8)
    # conv2: slot t=(kh,kw) (stride 8), row ci inside the slot.
    w2 = jnp.transpose(p["w_c2"].astype(f32), (0, 2, 3, 1)).reshape(
        C2_OUT, K * K, C1_OUT)
    w2p = jnp.zeros((C2_OUT, K * K, 8), f32).at[:, :, :C1_OUT].set(w2)
    w2p = w2p.reshape(C2_OUT, K * K * 8)
    # fc1: slot s=(i2,j2) (stride 16), row c inside the slot.  torch flattens
    # the pooled map in (c, i2, j2) order, so reorder columns to (i2, j2, c).
    wf1 = p["w_fc1"].astype(f32).reshape(FC1_OUT, C2_OUT, PH2 * PH2)
    wf1 = jnp.transpose(wf1, (0, 2, 1))                     # [84, 16, 12]
    wf1p = jnp.zeros((FC1_OUT, PH2 * PH2, 16), f32).at[:, :, :C2_OUT].set(wf1)
    wf1p = wf1p.reshape(FC1_OUT, PH2 * PH2 * 16)
    return {
        "w1": w1p, "b1": p["b_c1"].astype(f32).reshape(C1_OUT, 1),
        "w2": w2p, "b2": p["b_c2"].astype(f32).reshape(C2_OUT, 1),
        "wf1": wf1p, "bf1": p["b_fc1"].astype(f32).reshape(FC1_OUT, 1),
        "wf2": p["w_fc2"].astype(f32),
        "bf2": p["b_fc2"].astype(f32).reshape(FC2_OUT, 1),
        "wf3": p["w_fc3"].astype(f32),
        "bf3": p["b_fc3"].astype(f32).reshape(N_CLS, 1),
    }


# ------------------------------ pure-JAX ref ---------------------------------

def reference(params, x):
    def conv(x, w, b):
        out = jax.lax.conv_general_dilated(
            x, w, (1, 1), "VALID", dimension_numbers=("NCHW", "OIHW", "NCHW"))
        return jax.nn.relu(out + b.reshape(1, -1, 1, 1))

    def pool(x):
        return jax.lax.reduce_window(x, -jnp.inf, jax.lax.max,
                                     (1, 1, 2, 2), (1, 1, 2, 2), "VALID")

    h = pool(conv(x, params["w_c1"], params["b_c1"]))
    h = pool(conv(h, params["w_c2"], params["b_c2"]))
    # TODO(synk): original forward does x.view(-1, 16*5*5)=400, inconsistent
    # with fc1 (12*4*4=192) and unrunnable even in PyTorch; flatten to 192.
    h = h.reshape(h.shape[0], -1)
    h = jax.nn.relu(h @ params["w_fc1"].T + params["b_fc1"])
    h = jax.nn.relu(h @ params["w_fc2"].T + params["b_fc2"])
    logits = h @ params["w_fc3"].T + params["b_fc3"]
    # nn.Softmax() with implicit dim -> dim=1 for 2D input.  conv2_drop
    # (Dropout2d) is defined in __init__ but never used in forward.
    return jax.nn.softmax(logits, axis=-1)


# --------------------------------- main --------------------------------------

if __name__ == "__main__":
    key = jax.random.PRNGKey(0)
    k_x, k_p = jax.random.split(key)
    x = jax.random.normal(k_x, (2, 1, 28, 28), jnp.float32)  # NCHW input
    params = init_params(k_p)
    kparams = prepare_params(params)          # one-time weight re-layout

    fwd = jax.jit(gate_cnn_fashion_softmax)
    out = jax.block_until_ready(fwd(kparams, x))

    ref = reference(params, x)
    assert out.shape == (2, 3), out.shape
    assert jnp.allclose(jnp.sum(out, axis=-1), 1.0, atol=1e-5)
    assert jnp.allclose(out, ref, atol=1e-4, rtol=1e-4), (out, ref)

    print("KERNEL_OK")
</pallas_src>

<mosaic_0001>
module attributes {stable_mosaic.version = 11 : i64} {
  func.func @_fused_kernel(%arg0: memref<1x1568xf32, #tpu.memory_space<vmem>>, %arg1: memref<6x200xf32, #tpu.memory_space<vmem>>, %arg2: memref<6x1xf32, #tpu.memory_space<vmem>>, %arg3: memref<12x200xf32, #tpu.memory_space<vmem>>, %arg4: memref<12x1xf32, #tpu.memory_space<vmem>>, %arg5: memref<84x256xf32, #tpu.memory_space<vmem>>, %arg6: memref<84x1xf32, #tpu.memory_space<vmem>>, %arg7: memref<42x84xf32, #tpu.memory_space<vmem>>, %arg8: memref<42x1xf32, #tpu.memory_space<vmem>>, %arg9: memref<3x42xf32, #tpu.memory_space<vmem>>, %arg10: memref<3x1xf32, #tpu.memory_space<vmem>>, %arg11: memref<3x2xf32, #tpu.memory_space<vmem>>, %arg12: memref<200x1452xf32, #tpu.memory_space<vmem>>, %arg13: memref<200x1191xf32, #tpu.memory_space<vmem>>, %arg14: memref<256x785xf32, #tpu.memory_space<vmem>>) attributes {dimension_semantics = [], scalar_prefetch = 0 : i64, scratch_operands = 3 : i64, tpu.core_type = #tpu.core_type<tc>} {
    %cst = arith.constant 0.000000e+00 : f32
    %0 = vector.broadcast %cst : f32 to vector<200x1452xf32>
    %c0 = arith.constant 0 : index
    %c0_0 = arith.constant 0 : index
    %1 = vector.load %arg12[%c0, %c0_0] : memref<200x1452xf32, #tpu.memory_space<vmem>>, vector<200x1452xf32>
    tpu.vector_store %arg12[%c0, %c0_0], %0 {strides = array<i32>} : memref<200x1452xf32, #tpu.memory_space<vmem>>, vector<200x1452xf32>,
    %cst_1 = arith.constant 0.000000e+00 : f32
    %2 = vector.broadcast %cst_1 : f32 to vector<200x1191xf32>
    %c0_2 = arith.constant 0 : index
    %c0_3 = arith.constant 0 : index
    %3 = vector.load %arg13[%c0_2, %c0_3] : memref<200x1191xf32, #tpu.memory_space<vmem>>, vector<200x1191xf32>
    tpu.vector_store %arg13[%c0_2, %c0_3], %2 {strides = array<i32>} : memref<200x1191xf32, #tpu.memory_space<vmem>>, vector<200x1191xf32>,
    %cst_4 = arith.constant 0.000000e+00 : f32
    %4 = vector.broadcast %cst_4 : f32 to vector<256x785xf32>
    %c0_5 = arith.constant 0 : index
    %c0_6 = arith.constant 0 : index
    %5 = vector.load %arg14[%c0_5, %c0_6] : memref<256x785xf32, #tpu.memory_space<vmem>>, vector<256x785xf32>
    tpu.vector_store %arg14[%c0_5, %c0_6], %4 {strides = array<i32>} : memref<256x785xf32, #tpu.memory_space<vmem>>, vector<256x785xf32>,
    %c0_7 = arith.constant 0 : index
    %c0_8 = arith.constant 0 : index
    %6 = vector.load %arg0[%c0_7, %c0_8] : memref<1x1568xf32, #tpu.memory_space<vmem>>, vector<1x1568xf32>
    %7 = vector.extract_strided_slice %6 {offsets = [0, 0], sizes = [1, 1452], strides = [1, 1]} : vector<1x1568xf32> to vector<1x1452xf32>
    %c0_9 = arith.constant 0 : index
    %c0_10 = arith.constant 0 : index
    %8 = vector.load %arg12[%c0_9, %c0_10] : memref<200x1452xf32, #tpu.memory_space<vmem>>, vector<1x1452xf32>
    tpu.vector_store %arg12[%c0_9, %c0_10], %7 {strides = array<i32>} : memref<200x1452xf32, #tpu.memory_space<vmem>>, vector<1x1452xf32>,
    %9 = vector.extract_strided_slice %6 {offsets = [0, 1], sizes = [1, 1452], strides = [1, 1]} : vector<1x1568xf32> to vector<1x1452xf32>
    %c8 = arith.constant 8 : index
    %c0_11 = arith.constant 0 : index
    %10 = vector.load %arg12[%c8, %c0_11] : memref<200x1452xf32, #tpu.memory_space<vmem>>, vector<1x1452xf32>
    tpu.vector_store %arg12[%c8, %c0_11], %9 {strides = array<i32>} : memref<200x1452xf32, #tpu.memory_space<vmem>>, vector<1x1452xf32>,
    %11 = vector.extract_strided_slice %6 {offsets = [0, 2], sizes = [1, 1452], strides = [1, 1]} : vector<1x1568xf32> to vector<1x1452xf32>
    %c16 = arith.constant 16 : index
    %c0_12 = arith.constant 0 : index
    %12 = vector.load %arg12[%c16, %c0_12] : memref<200x1452xf32, #tpu.memory_space<vmem>>, vector<1x1452xf32>
    tpu.vector_store %arg12[%c16, %c0_12], %11 {strides = array<i32>} : memref<200x1452xf32, #tpu.memory_space<vmem>>, vector<1x1452xf32>,
    %13 = vector.extract_strided_slice %6 {offsets = [0, 3], sizes = [1, 1452], strides = [1, 1]} : vector<1x1568xf32> to vector<1x1452xf32>
    %c24 = arith.constant 24 : index
    %c0_13 = arith.constant 0 : index
    %14 = vector.load %arg12[%c24, %c0_13] : memref<200x1452xf32, #tpu.memory_space<vmem>>, vector<1x1452xf32>
    tpu.vector_store %arg12[%c24, %c0_13], %13 {strides = array<i32>} : memref<200x1452xf32, #tpu.memory_space<vmem>>, vector<1x1452xf32>,
    %15 = vector.extract_strided_slice %6 {offsets = [0, 4], sizes = [1, 1452], strides = [1, 1]} : vector<1x1568xf32> to vector<1x1452xf32>
    %c32 = arith.constant 32 : index
    %c0_14 = arith.constant 0 : index
    %16 = vector.load %arg12[%c32, %c0_14] : memref<200x1452xf32, #tpu.memory_space<vmem>>, vector<1x1452xf32>
    tpu.vector_store %arg12[%c32, %c0_14], %15 {strides = array<i32>} : memref<200x1452xf32, #tpu.memory_space<vmem>>, vector<1x1452xf32>,
    %17 = vector.extract_strided_slice %6 {offsets = [0, 28], sizes = [1, 1452], strides = [1, 1]} : vector<1x1568xf32> to vector<1x1452xf32>
    %c40 = arith.constant 40 : index
    %c0_15 = arith.constant 0 : index
    %18 = vector.load %arg12[%c40, %c0_15] : memref<200x1452xf32, #tpu.memory_space<vmem>>, vector<1x1452xf32>
    tpu.vector_store %arg12[%c40, %c0_15], %17 {strides = array<i32>} : memref<200x1452xf32, #tpu.memory_space<vmem>>, vector<1x1452xf32>,
    %19 = vector.extract_strided_slice %6 {offsets = [0, 29], sizes = [1, 1452], strides = [1, 1]} : vector<1x1568xf32> to vector<1x1452xf32>
    %c48 = arith.constant 48 : index
    %c0_16 = arith.constant 0 : index
    %20 = vector.load %arg12[%c48, %c0_16] : memref<200x1452xf32, #tpu.memory_space<vmem>>, vector<1x1452xf32>
    tpu.vector_store %arg12[%c48, %c0_16], %19 {strides = array<i32>} : memref<200x1452xf32, #tpu.memory_space<vmem>>, vector<1x1452xf32>,
    %21 = vector.extract_strided_slice %6 {offsets = [0, 30], sizes = [1, 1452], strides = [1, 1]} : vector<1x1568xf32> to vector<1x1452xf32>
    %c56 = arith.constant 56 : index
    %c0_17 = arith.constant 0 : index
    %22 = vector.load %arg12[%c56, %c0_17] : memref<200x1452xf32, #tpu.memory_space<vmem>>, vector<1x1452xf32>
    tpu.vector_store %arg12[%c56, %c0_17], %21 {strides = array<i32>} : memref<200x1452xf32, #tpu.memory_space<vmem>>, vector<1x1452xf32>,
    %23 = vector.extract_strided_slice %6 {offsets = [0, 31], sizes = [1, 1452], strides = [1, 1]} : vector<1x1568xf32> to vector<1x1452xf32>
    %c64 = arith.constant 64 : index
    %c0_18 = arith.constant 0 : index
    %24 = vector.load %arg12[%c64, %c0_18] : memref<200x1452xf32, #tpu.memory_space<vmem>>, vector<1x1452xf32>
    tpu.vector_store %arg12[%c64, %c0_18], %23 {strides = array<i32>} : memref<200x1452xf32, #tpu.memory_space<vmem>>, vector<1x1452xf32>,
    %25 = vector.extract_strided_slice %6 {offsets = [0, 32], sizes = [1, 1452], strides = [1, 1]} : vector<1x1568xf32> to vector<1x1452xf32>
    %c72 = arith.constant 72 : index
    %c0_19 = arith.constant 0 : index
    %26 = vector.load %arg12[%c72, %c0_19] : memref<200x1452xf32, #tpu.memory_space<vmem>>, vector<1x1452xf32>
    tpu.vector_store %arg12[%c72, %c0_19], %25 {strides = array<i32>} : memref<200x1452xf32, #tpu.memory_space<vmem>>, vector<1x1452xf32>,
    %27 = vector.extract_strided_slice %6 {offsets = [0, 56], sizes = [1, 1452], strides = [1, 1]} : vector<1x1568xf32> to vector<1x1452xf32>
    %c80 = arith.constant 80 : index
    %c0_20 = arith.constant 0 : index
    %28 = vector.load %arg12[%c80, %c0_20] : memref<200x1452xf32, #tpu.memory_space<vmem>>, vector<1x1452xf32>
    tpu.vector_store %arg12[%c80, %c0_20], %27 {strides = array<i32>} : memref<200x1452xf32, #tpu.memory_space<vmem>>, vector<1x1452xf32>,
    %29 = vector.extract_strided_slice %6 {offsets = [0, 57], sizes = [1, 1452], strides = [1, 1]} : vector<1x1568xf32> to vector<1x1452xf32>
    %c88 = arith.constant 88 : index
    %c0_21 = arith.constant 0 : index
    %30 = vector.load %arg12[%c88, %c0_21] : memref<200x1452xf32, #tpu.memory_space<vmem>>, vector<1x1452xf32>
    tpu.vector_store %arg12[%c88, %c0_21], %29 {strides = array<i32>} : memref<200x1452xf32, #tpu.memory_space<vmem>>, vector<1x1452xf32>,
    %31 = vector.extract_strided_slice %6 {offsets = [0, 58], sizes = [1, 1452], strides = [1, 1]} : vector<1x1568xf32> to vector<1x1452xf32>
    %c96 = arith.constant 96 : index
    %c0_22 = arith.constant 0 : index
    %32 = vector.load %arg12[%c96, %c0_22] : memref<200x1452xf32, #tpu.memory_space<vmem>>, vector<1x1452xf32>
    tpu.vector_store %arg12[%c96, %c0_22], %31 {strides = array<i32>} : memref<200x1452xf32, #tpu.memory_space<vmem>>, vector<1x1452xf32>,
    %33 = vector.extract_strided_slice %6 {offsets = [0, 59], sizes = [1, 1452], strides = [1, 1]} : vector<1x1568xf32> to vector<1x1452xf32>
    %c104 = arith.constant 104 : index
    %c0_23 = arith.constant 0 : index
    %34 = vector.load %arg12[%c104, %c0_23] : memref<200x1452xf32, #tpu.memory_space<vmem>>, vector<1x1452xf32>
    tpu.vector_store %arg12[%c104, %c0_23], %33 {strides = array<i32>} : memref<200x1452xf32, #tpu.memory_space<vmem>>, vector<1x1452xf32>,
    %35 = vector.extract_strided_slice %6 {offsets = [0, 60], sizes = [1, 1452], strides = [1, 1]} : vector<1x1568xf32> to vector<1x1452xf32>
    %c112 = arith.constant 112 : index
    %c0_24 = arith.constant 0 : index
    %36 = vector.load %arg12[%c112, %c0_24] : memref<200x1452xf32, #tpu.memory_space<vmem>>, vector<1x1452xf32>
    tpu.vector_store %arg12[%c112, %c0_24], %35 {strides = array<i32>} : memref<200x1452xf32, #tpu.memory_space<vmem>>, vector<1x1452xf32>,
    %37 = vector.extract_strided_slice %6 {offsets = [0, 84], sizes = [1, 1452], strides = [1, 1]} : vector<1x1568xf32> to vector<1x1452xf32>
    %c120 = arith.constant 120 : index
    %c0_25 = arith.constant 0 : index
    %38 = vector.load %arg12[%c120, %c0_25] : memref<200x1452xf32, #tpu.memory_space<vmem>>, vector<1x1452xf32>
    tpu.vector_store %arg12[%c120, %c0_25], %37 {strides = array<i32>} : memref<200x1452xf32, #tpu.memory_space<vmem>>, vector<1x1452xf32>,
    %39 = vector.extract_strided_slice %6 {offsets = [0, 85], sizes = [1, 1452], strides = [1, 1]} : vector<1x1568xf32> to vector<1x1452xf32>
    %c128 = arith.constant 128 : index
    %c0_26 = arith.constant 0 : index
    %40 = vector.load %arg12[%c128, %c0_26] : memref<200x1452xf32, #tpu.memory_space<vmem>>, vector<1x1452xf32>
    tpu.vector_store %arg12[%c128, %c0_26], %39 {strides = array<i32>} : memref<200x1452xf32, #tpu.memory_space<vmem>>, vector<1x1452xf32>,
    %41 = vector.extract_strided_slice %6 {offsets = [0, 86], sizes = [1, 1452], strides = [1, 1]} : vector<1x1568xf32> to vector<1x1452xf32>
    %c136 = arith.constant 136 : index
    %c0_27 = arith.constant 0 : index
    %42 = vector.load %arg12[%c136, %c0_27] : memref<200x1452xf32, #tpu.memory_space<vmem>>, vector<1x1452xf32>
    tpu.vector_store %arg12[%c136, %c0_27], %41 {strides = array<i32>} : memref<200x1452xf32, #tpu.memory_space<vmem>>, vector<1x1452xf32>,
    %43 = vector.extract_strided_slice %6 {offsets = [0, 87], sizes = [1, 1452], strides = [1, 1]} : vector<1x1568xf32> to vector<1x1452xf32>
    %c144 = arith.constant 144 : index
    %c0_28 = arith.constant 0 : index
    %44 = vector.load %arg12[%c144, %c0_28] : memref<200x1452xf32, #tpu.memory_space<vmem>>, vector<1x1452xf32>
    tpu.vector_store %arg12[%c144, %c0_28], %43 {strides = array<i32>} : memref<200x1452xf32, #tpu.memory_space<vmem>>, vector<1x1452xf32>,
    %45 = vector.extract_strided_slice %6 {offsets = [0, 88], sizes = [1, 1452], strides = [1, 1]} : vector<1x1568xf32> to vector<1x1452xf32>
    %c152 = arith.constant 152 : index
    %c0_29 = arith.constant 0 : index
    %46 = vector.load %arg12[%c152, %c0_29] : memref<200x1452xf32, #tpu.memory_space<vmem>>, vector<1x1452xf32>
    tpu.vector_store %arg12[%c152, %c0_29], %45 {strides = array<i32>} : memref<200x1452xf32, #tpu.memory_space<vmem>>, vector<1x1452xf32>,
    %47 = vector.extract_strided_slice %6 {offsets = [0, 112], sizes = [1, 1452], strides = [1, 1]} : vector<1x1568xf32> to vector<1x1452xf32>
    %c160 = arith.constant 160 : index
    %c0_30 = arith.constant 0 : index
    %48 = vector.load %arg12[%c160, %c0_30] : memref<200x1452xf32, #tpu.memory_space<vmem>>, vector<1x1452xf32>
    tpu.vector_store %arg12[%c160, %c0_30], %47 {strides = array<i32>} : memref<200x1452xf32, #tpu.memory_space<vmem>>, vector<1x1452xf32>,
    %49 = vector.extract_strided_slice %6 {offsets = [0, 113], sizes = [1, 1452], strides = [1, 1]} : vector<1x1568xf32> to vector<1x1452xf32>
    %c168 = arith.constant 168 : index
    %c0_31 = arith.constant 0 : index
    %50 = vector.load %arg12[%c168, %c0_31] : memref<200x1452xf32, #tpu.memory_space<vmem>>, vector<1x1452xf32>
    tpu.vector_store %arg12[%c168, %c0_31], %49 {strides = array<i32>} : memref<200x1452xf32, #tpu.memory_space<vmem>>, vector<1x1452xf32>,
    %51 = vector.extract_strided_slice %6 {offsets = [0, 114], sizes = [1, 1452], strides = [1, 1]} : vector<1x1568xf32> to vector<1x1452xf32>
    %c176 = arith.constant 176 : index
    %c0_32 = arith.constant 0 : index
    %52 = vector.load %arg12[%c176, %c0_32] : memref<200x1452xf32, #tpu.memory_space<vmem>>, vector<1x1452xf32>
    tpu.vector_store %arg12[%c176, %c0_32], %51 {strides = array<i32>} : memref<200x1452xf32, #tpu.memory_space<vmem>>, vector<1x1452xf32>,
    %53 = vector.extract_strided_slice %6 {offsets = [0, 115], sizes = [1, 1452], strides = [1, 1]} : vector<1x1568xf32> to vector<1x1452xf32>
    %c184 = arith.constant 184 : index
    %c0_33 = arith.constant 0 : index
    %54 = vector.load %arg12[%c184, %c0_33] : memref<200x1452xf32, #tpu.memory_space<vmem>>, vector<1x1452xf32>
    tpu.vector_store %arg12[%c184, %c0_33], %53 {strides = array<i32>} : memref<200x1452xf32, #tpu.memory_space<vmem>>, vector<1x1452xf32>,
    %55 = vector.extract_strided_slice %6 {offsets = [0, 116], sizes = [1, 1452], strides = [1, 1]} : vector<1x1568xf32> to vector<1x1452xf32>
    %c192 = arith.constant 192 : index
    %c0_34 = arith.constant 0 : index
    %56 = vector.load %arg12[%c192, %c0_34] : memref<200x1452xf32, #tpu.memory_space<vmem>>, vector<1x1452xf32>
    tpu.vector_store %arg12[%c192, %c0_34], %55 {strides = array<i32>} : memref<200x1452xf32, #tpu.memory_space<vmem>>, vector<1x1452xf32>,
    %c0_35 = arith.constant 0 : index
    %c0_36 = arith.constant 0 : index
    %57 = vector.load %arg1[%c0_35, %c0_36] : memref<6x200xf32, #tpu.memory_space<vmem>>, vector<6x200xf32>
    %c0_37 = arith.constant 0 : index
    %c0_38 = arith.constant 0 : index
    %58 = vector.load %arg12[%c0_37, %c0_38] : memref<200x1452xf32, #tpu.memory_space<vmem>>, vector<200x1452xf32>
    %cst_39 = arith.constant dense<0.000000e+00> : vector<6x1452xf32>
    %59 = tpu.matmul %57, %58, %cst_39 {dimension_numbers = #tpu.dot_dimension_numbers<[1], [0], [0], [1], [0, 0, 1, 1], [], []>} : vector<6x200xf32>, vector<200x1452xf32>, vector<6x1452xf32> -> vector<6x1452xf32>
    %c0_40 = arith.constant 0 : index
    %c0_41 = arith.constant 0 : index
    %60 = vector.load %arg2[%c0_40, %c0_41] : memref<6x1xf32, #tpu.memory_space<vmem>>, vector<6x1xf32>
    %61 = vector.broadcast %60 : vector<6x1xf32> to vector<6x1452xf32>
    %62 = arith.addf %59, %61 : vector<6x1452xf32>
    %63 = vector.extract_strided_slice %62 {offsets = [0, 0], sizes = [6, 1423], strides = [1, 1]} : vector<6x1452xf32> to vector<6x1423xf32>
    %64 = vector.extract_strided_slice %62 {offsets = [0, 1], sizes = [6, 1423], strides = [1, 1]} : vector<6x1452xf32> to vector<6x1423xf32>
    %65 = arith.maximumf %63, %64 : vector<6x1423xf32>
    %66 = vector.extract_strided_slice %62 {offsets = [0, 28], sizes = [6, 1423], strides = [1, 1]} : vector<6x1452xf32> to vector<6x1423xf32>
    %67 = vector.extract_strided_slice %62 {offsets = [0, 29], sizes = [6, 1423], strides = [1, 1]} : vector<6x1452xf32> to vector<6x1423xf32>
    %68 = arith.maximumf %66, %67 : vector<6x1423xf32>
    %69 = arith.maximumf %65, %68 : vector<6x1423xf32>
    %cst_42 = arith.constant 0.000000e+00 : f32
    %70 = vector.broadcast %cst_42 : f32 to vector<6x1423xf32>
    %71 = arith.maximumf %69, %70 : vector<6x1423xf32>
    %72 = vector.extract_strided_slice %71 {offsets = [0, 0], sizes = [6, 1191], strides = [1, 1]} : vector<6x1423xf32> to vector<6x1191xf32>
    %c0_43 = arith.constant 0 : index
    %c0_44 = arith.constant 0 : index
    %73 = vector.load %arg13[%c0_43, %c0_44] : memref<200x1191xf32, #tpu.memory_space<vmem>>, vector<6x1191xf32>
    tpu.vector_store %arg13[%c0_43, %c0_44], %72 {strides = array<i32>} : memref<200x1191xf32, #tpu.memory_space<vmem>>, vector<6x1191xf32>,
    %74 = vector.extract_strided_slice %71 {offsets = [0, 2], sizes = [6, 1191], strides = [1, 1]} : vector<6x1423xf32> to vector<6x1191xf32>
    %c8_45 = arith.constant 8 : index
    %c0_46 = arith.constant 0 : index
    %75 = vector.load %arg13[%c8_45, %c0_46] : memref<200x1191xf32, #tpu.memory_space<vmem>>, vector<6x1191xf32>
    tpu.vector_store %arg13[%c8_45, %c0_46], %74 {strides = array<i32>} : memref<200x1191xf32, #tpu.memory_space<vmem>>, vector<6x1191xf32>,
    %76 = vector.extract_strided_slice %71 {offsets = [0, 4], sizes = [6, 1191], strides = [1, 1]} : vector<6x1423xf32> to vector<6x1191xf32>
    %c16_47 = arith.constant 16 : index
    %c0_48 = arith.constant 0 : index
    %77 = vector.load %arg13[%c16_47, %c0_48] : memref<200x1191xf32, #tpu.memory_space<vmem>>, vector<6x1191xf32>
    tpu.vector_store %arg13[%c16_47, %c0_48], %76 {strides = array<i32>} : memref<200x1191xf32, #tpu.memory_space<vmem>>, vector<6x1191xf32>,
    %78 = vector.extract_strided_slice %71 {offsets = [0, 6], sizes = [6, 1191], strides = [1, 1]} : vector<6x1423xf32> to vector<6x1191xf32>
    %c24_49 = arith.constant 24 : index
    %c0_50 = arith.constant 0 : index
    %79 = vector.load %arg13[%c24_49, %c0_50] : memref<200x1191xf32, #tpu.memory_space<vmem>>, vector<6x1191xf32>
    tpu.vector_store %arg13[%c24_49, %c0_50], %78 {strides = array<i32>} : memref<200x1191xf32, #tpu.memory_space<vmem>>, vector<6x1191xf32>,
    %80 = vector.extract_strided_slice %71 {offsets = [0, 8], sizes = [6, 1191], strides = [1, 1]} : vector<6x1423xf32> to vector<6x1191xf32>
    %c32_51 = arith.constant 32 : index
    %c0_52 = arith.constant 0 : index
    %81 = vector.load %arg13[%c32_51, %c0_52] : memref<200x1191xf32, #tpu.memory_space<vmem>>, vector<6x1191xf32>
    tpu.vector_store %arg13[%c32_51, %c0_52], %80 {strides = array<i32>} : memref<200x1191xf32, #tpu.memory_space<vmem>>, vector<6x1191xf32>,
    %82 = vector.extract_strided_slice %71 {offsets = [0, 56], sizes = [6, 1191], strides = [1, 1]} : vector<6x1423xf32> to vector<6x1191xf32>
    %c40_53 = arith.constant 40 : index
    %c0_54 = arith.constant 0 : index
    %83 = vector.load %arg13[%c40_53, %c0_54] : memref<200x1191xf32, #tpu.memory_space<vmem>>, vector<6x1191xf32>
    tpu.vector_store %arg13[%c40_53, %c0_54], %82 {strides = array<i32>} : memref<200x1191xf32, #tpu.memory_space<vmem>>, vector<6x1191xf32>,
    %84 = vector.extract_strided_slice %71 {offsets = [0, 58], sizes = [6, 1191], strides = [1, 1]} : vector<6x1423xf32> to vector<6x1191xf32>
    %c48_55 = arith.constant 48 : index
    %c0_56 = arith.constant 0 : index
    %85 = vector.load %arg13[%c48_55, %c0_56] : memref<200x1191xf32, #tpu.memory_space<vmem>>, vector<6x1191xf32>
    tpu.vector_store %arg13[%c48_55, %c0_56], %84 {strides = array<i32>} : memref<200x1191xf32, #tpu.memory_space<vmem>>, vector<6x1191xf32>,
    %86 = vector.extract_strided_slice %71 {offsets = [0, 60], sizes = [6, 1191], strides = [1, 1]} : vector<6x1423xf32> to vector<6x1191xf32>
    %c56_57 = arith.constant 56 : index
    %c0_58 = arith.constant 0 : index
    %87 = vector.load %arg13[%c56_57, %c0_58] : memref<200x1191xf32, #tpu.memory_space<vmem>>, vector<6x1191xf32>
    tpu.vector_store %arg13[%c56_57, %c0_58], %86 {strides = array<i32>} : memref<200x1191xf32, #tpu.memory_space<vmem>>, vector<6x1191xf32>,
    %88 = vector.extract_strided_slice %71 {offsets = [0, 62], sizes = [6, 1191], strides = [1, 1]} : vector<6x1423xf32> to vector<6x1191xf32>
    %c64_59 = arith.constant 64 : index
    %c0_60 = arith.constant 0 : index
    %89 = vector.load %arg13[%c64_59, %c0_60] : memref<200x1191xf32, #tpu.memory_space<vmem>>, vector<6x1191xf32>
    tpu.vector_store %arg13[%c64_59, %c0_60], %88 {strides = array<i32>} : memref<200x1191xf32, #tpu.memory_space<vmem>>, vector<6x1191xf32>,
    %90 = vector.extract_strided_slice %71 {offsets = [0, 64], sizes = [6, 1191], strides = [1, 1]} : vector<6x1423xf32> to vector<6x1191xf32>
    %c72_61 = arith.constant 72 : index
    %c0_62 = arith.constant 0 : index
    %91 = vector.load %arg13[%c72_61, %c0_62] : memref<200x1191xf32, #tpu.memory_space<vmem>>, vector<6x1191xf32>
    tpu.vector_store %arg13[%c72_61, %c0_62], %90 {strides = array<i32>} : memref<200x1191xf32, #tpu.memory_space<vmem>>, vector<6x1191xf32>,
    %92 = vector.extract_strided_slice %71 {offsets = [0, 112], sizes = [6, 1191], strides = [1, 1]} : vector<6x1423xf32> to vector<6x1191xf32>
    %c80_63 = arith.constant 80 : index
    %c0_64 = arith.constant 0 : index
    %93 = vector.load %arg13[%c80_63, %c0_64] : memref<200x1191xf32, #tpu.memory_space<vmem>>, vector<6x1191xf32>
    tpu.vector_store %arg13[%c80_63, %c0_64], %92 {strides = array<i32>} : memref<200x1191xf32, #tpu.memory_space<vmem>>, vector<6x1191xf32>,
    %94 = vector.extract_strided_slice %71 {offsets = [0, 114], sizes = [6, 1191], strides = [1, 1]} : vector<6x1423xf32> to vector<6x1191xf32>
    %c88_65 = arith.constant 88 : index
    %c0_66 = arith.constant 0 : index
    %95 = vector.load %arg13[%c88_65, %c0_66] : memref<200x1191xf32, #tpu.memory_space<vmem>>, vector<6x1191xf32>
    tpu.vector_store %arg13[%c88_65, %c0_66], %94 {strides = array<i32>} : memref<200x1191xf32, #tpu.memory_space<vmem>>, vector<6x1191xf32>,
    %96 = vector.extract_strided_slice %71 {offsets = [0, 116], sizes = [6, 1191], strides = [1, 1]} : vector<6x1423xf32> to vector<6x1191xf32>
    %c96_67 = arith.constant 96 : index
    %c0_68 = arith.constant 0 : index
    %97 = vector.load %arg13[%c96_67, %c0_68] : memref<200x1191xf32, #tpu.memory_space<vmem>>, vector<6x1191xf32>
    tpu.vector_store %arg13[%c96_67, %c0_68], %96 {strides = array<i32>} : memref<200x1191xf32, #tpu.memory_space<vmem>>, vector<6x1191xf32>,
    %98 = vector.extract_strided_slice %71 {offsets = [0, 118], sizes = [6, 1191], strides = [1, 1]} : vector<6x1423xf32> to vector<6x1191xf32>
    %c104_69 = arith.constant 104 : index
    %c0_70 = arith.constant 0 : index
    %99 = vector.load %arg13[%c104_69, %c0_70] : memref<200x1191xf32, #tpu.memory_space<vmem>>, vector<6x1191xf32>
    tpu.vector_store %arg13[%c104_69, %c0_70], %98 {strides = array<i32>} : memref<200x1191xf32, #tpu.memory_space<vmem>>, vector<6x1191xf32>,
    %100 = vector.extract_strided_slice %71 {offsets = [0, 120], sizes = [6, 1191], strides = [1, 1]} : vector<6x1423xf32> to vector<6x1191xf32>
    %c112_71 = arith.constant 112 : index
    %c0_72 = arith.constant 0 : index
    %101 = vector.load %arg13[%c112_71, %c0_72] : memref<200x1191xf32, #tpu.memory_space<vmem>>, vector<6x1191xf32>
    tpu.vector_store %arg13[%c112_71, %c0_72], %100 {strides = array<i32>} : memref<200x1191xf32, #tpu.memory_space<vmem>>, vector<6x1191xf32>,
    %102 = vector.extract_strided_slice %71 {offsets = [0, 168], sizes = [6, 1191], strides = [1, 1]} : vector<6x1423xf32> to vector<6x1191xf32>
    %c120_73 = arith.constant 120 : index
    %c0_74 = arith.constant 0 : index
    %103 = vector.load %arg13[%c120_73, %c0_74] : memref<200x1191xf32, #tpu.memory_space<vmem>>, vector<6x1191xf32>
    tpu.vector_store %arg13[%c120_73, %c0_74], %102 {strides = array<i32>} : memref<200x1191xf32, #tpu.memory_space<vmem>>, vector<6x1191xf32>,
    %104 = vector.extract_strided_slice %71 {offsets = [0, 170], sizes = [6, 1191], strides = [1, 1]} : vector<6x1423xf32> to vector<6x1191xf32>
    %c128_75 = arith.constant 128 : index
    %c0_76 = arith.constant 0 : index
    %105 = vector.load %arg13[%c128_75, %c0_76] : memref<200x1191xf32, #tpu.memory_space<vmem>>, vector<6x1191xf32>
    tpu.vector_store %arg13[%c128_75, %c0_76], %104 {strides = array<i32>} : memref<200x1191xf32, #tpu.memory_space<vmem>>, vector<6x1191xf32>,
    %106 = vector.extract_strided_slice %71 {offsets = [0, 172], sizes = [6, 1191], strides = [1, 1]} : vector<6x1423xf32> to vector<6x1191xf32>
    %c136_77 = arith.constant 136 : index
    %c0_78 = arith.constant 0 : index
    %107 = vector.load %arg13[%c136_77, %c0_78] : memref<200x1191xf32, #tpu.memory_space<vmem>>, vector<6x1191xf32>
    tpu.vector_store %arg13[%c136_77, %c0_78], %106 {strides = array<i32>} : memref<200x1191xf32, #tpu.memory_space<vmem>>, vector<6x1191xf32>,
    %108 = vector.extract_strided_slice %71 {offsets = [0, 174], sizes = [6, 1191], strides = [1, 1]} : vector<6x1423xf32> to vector<6x1191xf32>
    %c144_79 = arith.constant 144 : index
    %c0_80 = arith.constant 0 : index
    %109 = vector.load %arg13[%c144_79, %c0_80] : memref<200x1191xf32, #tpu.memory_space<vmem>>, vector<6x1191xf32>
    tpu.vector_store %arg13[%c144_79, %c0_80], %108 {strides = array<i32>} : memref<200x1191xf32, #tpu.memory_space<vmem>>, vector<6x1191xf32>,
    %110 = vector.extract_strided_slice %71 {offsets = [0, 176], sizes = [6, 1191], strides = [1, 1]} : vector<6x1423xf32> to vector<6x1191xf32>
    %c152_81 = arith.constant 152 : index
    %c0_82 = arith.constant 0 : index
    %111 = vector.load %arg13[%c152_81, %c0_82] : memref<200x1191xf32, #tpu.memory_space<vmem>>, vector<6x1191xf32>
    tpu.vector_store %arg13[%c152_81, %c0_82], %110 {strides = array<i32>} : memref<200x1191xf32, #tpu.memory_space<vmem>>, vector<6x1191xf32>,
    %112 = vector.extract_strided_slice %71 {offsets = [0, 224], sizes = [6, 1191], strides = [1, 1]} : vector<6x1423xf32> to vector<6x1191xf32>
    %c160_83 = arith.constant 160 : index
    %c0_84 = arith.constant 0 : index
    %113 = vector.load %arg13[%c160_83, %c0_84] : memref<200x1191xf32, #tpu.memory_space<vmem>>, vector<6x1191xf32>
    tpu.vector_store %arg13[%c160_83, %c0_84], %112 {strides = array<i32>} : memref<200x1191xf32, #tpu.memory_space<vmem>>, vector<6x1191xf32>,
    %114 = vector.extract_strided_slice %71 {offsets = [0, 226], sizes = [6, 1191], strides = [1, 1]} : vector<6x1423xf32> to vector<6x1191xf32>
    %c168_85 = arith.constant 168 : index
    %c0_86 = arith.constant 0 : index
    %115 = vector.load %arg13[%c168_85, %c0_86] : memref<200x1191xf32, #tpu.memory_space<vmem>>, vector<6x1191xf32>
    tpu.vector_store %arg13[%c168_85, %c0_86], %114 {strides = array<i32>} : memref<200x1191xf32, #tpu.memory_space<vmem>>, vector<6x1191xf32>,
    %116 = vector.extract_strided_slice %71 {offsets = [0, 228], sizes = [6, 1191], strides = [1, 1]} : vector<6x1423xf32> to vector<6x1191xf32>
    %c176_87 = arith.constant 176 : index
    %c0_88 = arith.constant 0 : index
    %117 = vector.load %arg13[%c176_87, %c0_88] : memref<200x1191xf32, #tpu.memory_space<vmem>>, vector<6x1191xf32>
    tpu.vector_store %arg13[%c176_87, %c0_88], %116 {strides = array<i32>} : memref<200x1191xf32, #tpu.memory_space<vmem>>, vector<6x1191xf32>,
    %118 = vector.extract_strided_slice %71 {offsets = [0, 230], sizes = [6, 1191], strides = [1, 1]} : vector<6x1423xf32> to vector<6x1191xf32>
    %c184_89 = arith.constant 184 : index
    %c0_90 = arith.constant 0 : index
    %119 = vector.load %arg13[%c184_89, %c0_90] : memref<200x1191xf32, #tpu.memory_space<vmem>>, vector<6x1191xf32>
    tpu.vector_store %arg13[%c184_89, %c0_90], %118 {strides = array<i32>} : memref<200x1191xf32, #tpu.memory_space<vmem>>, vector<6x1191xf32>,
    %120 = vector.extract_strided_slice %71 {offsets = [0, 232], sizes = [6, 1191], strides = [1, 1]} : vector<6x1423xf32> to vector<6x1191xf32>
    %c192_91 = arith.constant 192 : index
    %c0_92 = arith.constant 0 : index
    %121 = vector.load %arg13[%c192_91, %c0_92] : memref<200x1191xf32, #tpu.memory_space<vmem>>, vector<6x1191xf32>
    tpu.vector_store %arg13[%c192_91, %c0_92], %120 {strides = array<i32>} : memref<200x1191xf32, #tpu.memory_space<vmem>>, vector<6x1191xf32>,
    %c0_93 = arith.constant 0 : index
    %c0_94 = arith.constant 0 : index
    %122 = vector.load %arg3[%c0_93, %c0_94] : memref<12x200xf32, #tpu.memory_space<vmem>>, vector<12x200xf32>
    %c0_95 = arith.constant 0 : index
    %c0_96 = arith.constant 0 : index
    %123 = vector.load %arg13[%c0_95, %c0_96] : memref<200x1191xf32, #tpu.memory_space<vmem>>, vector<200x1191xf32>
    %cst_97 = arith.constant dense<0.000000e+00> : vector<12x1191xf32>
    %124 = tpu.matmul %122, %123, %cst_97 {dimension_numbers = #tpu.dot_dimension_numbers<[1], [0], [0], [1], [0, 0, 1, 1], [], []>} : vector<12x200xf32>, vector<200x1191xf32>, vector<12x1191xf32> -> vector<12x1191xf32>
    %c0_98 = arith.constant 0 : index
    %c0_99 = arith.constant 0 : index
    %125 = vector.load %arg4[%c0_98, %c0_99] : memref<12x1xf32, #tpu.memory_space<vmem>>, vector<12x1xf32>
    %126 = vector.broadcast %125 : vector<12x1xf32> to vector<12x1191xf32>
    %127 = arith.addf %124, %126 : vector<12x1191xf32>
    %128 = vector.extract_strided_slice %127 {offsets = [0, 0], sizes = [12, 1133], strides = [1, 1]} : vector<12x1191xf32> to vector<12x1133xf32>
    %129 = vector.extract_strided_slice %127 {offsets = [0, 2], sizes = [12, 1133], strides = [1, 1]} : vector<12x1191xf32> to vector<12x1133xf32>
    %130 = arith.maximumf %128, %129 : vector<12x1133xf32>
    %131 = vector.extract_strided_slice %127 {offsets = [0, 56], sizes = [12, 1133], strides = [1, 1]} : vector<12x1191xf32> to vector<12x1133xf32>
    %132 = vector.extract_strided_slice %127 {offsets = [0, 58], sizes = [12, 1133], strides = [1, 1]} : vector<12x1191xf32> to vector<12x1133xf32>
    %133 = arith.maximumf %131, %132 : vector<12x1133xf32>
    %134 = arith.maximumf %130, %133 : vector<12x1133xf32>
    %cst_100 = arith.constant 0.000000e+00 : f32
    %135 = vector.broadcast %cst_100 : f32 to vector<12x1133xf32>
    %136 = arith.maximumf %134, %135 : vector<12x1133xf32>
    %137 = vector.extract_strided_slice %136 {offsets = [0, 0], sizes = [12, 785], strides = [1, 1]} : vector<12x1133xf32> to vector<12x785xf32>
    %c0_101 = arith.constant 0 : index
    %c0_102 = arith.constant 0 : index
    %138 = vector.load %arg14[%c0_101, %c0_102] : memref<256x785xf32, #tpu.memory_space<vmem>>, vector<12x785xf32>
    tpu.vector_store %arg14[%c0_101, %c0_102], %137 {strides = array<i32>} : memref<256x785xf32, #tpu.memory_space<vmem>>, vector<12x785xf32>,
    %139 = vector.extract_strided_slice %136 {offsets = [0, 4], sizes = [12, 785], strides = [1, 1]} : vector<12x1133xf32> to vector<12x785xf32>
    %c16_103 = arith.constant 16 : index
    %c0_104 = arith.constant 0 : index
    %140 = vector.load %arg14[%c16_103, %c0_104] : memref<256x785xf32, #tpu.memory_space<vmem>>, vector<12x785xf32>
    tpu.vector_store %arg14[%c16_103, %c0_104], %139 {strides = array<i32>} : memref<256x785xf32, #tpu.memory_space<vmem>>, vector<12x785xf32>,
    %141 = vector.extract_strided_slice %136 {offsets = [0, 8], sizes = [12, 785], strides = [1, 1]} : vector<12x1133xf32> to vector<12x785xf32>
    %c32_105 = arith.constant 32 : index
    %c0_106 = arith.constant 0 : index
    %142 = vector.load %arg14[%c32_105, %c0_106] : memref<256x785xf32, #tpu.memory_space<vmem>>, vector<12x785xf32>
    tpu.vector_store %arg14[%c32_105, %c0_106], %141 {strides = array<i32>} : memref<256x785xf32, #tpu.memory_space<vmem>>, vector<12x785xf32>,
    %143 = vector.extract_strided_slice %136 {offsets = [0, 12], sizes = [12, 785], strides = [1, 1]} : vector<12x1133xf32> to vector<12x785xf32>
    %c48_107 = arith.constant 48 : index
    %c0_108 = arith.constant 0 : index
    %144 = vector.load %arg14[%c48_107, %c0_108] : memref<256x785xf32, #tpu.memory_space<vmem>>, vector<12x785xf32>
    tpu.vector_store %arg14[%c48_107, %c0_108], %143 {strides = array<i32>} : memref<256x785xf32, #tpu.memory_space<vmem>>, vector<12x785xf32>,
    %145 = vector.extract_strided_slice %136 {offsets = [0, 112], sizes = [12, 785], strides = [1, 1]} : vector<12x1133xf32> to vector<12x785xf32>
    %c64_109 = arith.constant 64 : index
    %c0_110 = arith.constant 0 : index
    %146 = vector.load %arg14[%c64_109, %c0_110] : memref<256x785xf32, #tpu.memory_space<vmem>>, vector<12x785xf32>
    tpu.vector_store %arg14[%c64_109, %c0_110], %145 {strides = array<i32>} : memref<256x785xf32, #tpu.memory_space<vmem>>, vector<12x785xf32>,
    %147 = vector.extract_strided_slice %136 {offsets = [0, 116], sizes = [12, 785], strides = [1, 1]} : vector<12x1133xf32> to vector<12x785xf32>
    %c80_111 = arith.constant 80 : index
    %c0_112 = arith.constant 0 : index
    %148 = vector.load %arg14[%c80_111, %c0_112] : memref<256x785xf32, #tpu.memory_space<vmem>>, vector<12x785xf32>
    tpu.vector_store %arg14[%c80_111, %c0_112], %147 {strides = array<i32>} : memref<256x785xf32, #tpu.memory_space<vmem>>, vector<12x785xf32>,
    %149 = vector.extract_strided_slice %136 {offsets = [0, 120], sizes = [12, 785], strides = [1, 1]} : vector<12x1133xf32> to vector<12x785xf32>
    %c96_113 = arith.constant 96 : index
    %c0_114 = arith.constant 0 : index
    %150 = vector.load %arg14[%c96_113, %c0_114] : memref<256x785xf32, #tpu.memory_space<vmem>>, vector<12x785xf32>
    tpu.vector_store %arg14[%c96_113, %c0_114], %149 {strides = array<i32>} : memref<256x785xf32, #tpu.memory_space<vmem>>, vector<12x785xf32>,
    %151 = vector.extract_strided_slice %136 {offsets = [0, 124], sizes = [12, 785], strides = [1, 1]} : vector<12x1133xf32> to vector<12x785xf32>
    %c112_115 = arith.constant 112 : index
    %c0_116 = arith.constant 0 : index
    %152 = vector.load %arg14[%c112_115, %c0_116] : memref<256x785xf32, #tpu.memory_space<vmem>>, vector<12x785xf32>
    tpu.vector_store %arg14[%c112_115, %c0_116], %151 {strides = array<i32>} : memref<256x785xf32, #tpu.memory_space<vmem>>, vector<12x785xf32>,
    %153 = vector.extract_strided_slice %136 {offsets = [0, 224], sizes = [12, 785], strides = [1, 1]} : vector<12x1133xf32> to vector<12x785xf32>
    %c128_117 = arith.constant 128 : index
    %c0_118 = arith.constant 0 : index
    %154 = vector.load %arg14[%c128_117, %c0_118] : memref<256x785xf32, #tpu.memory_space<vmem>>, vector<12x785xf32>
    tpu.vector_store %arg14[%c128_117, %c0_118], %153 {strides = array<i32>} : memref<256x785xf32, #tpu.memory_space<vmem>>, vector<12x785xf32>,
    %155 = vector.extract_strided_slice %136 {offsets = [0, 228], sizes = [12, 785], strides = [1, 1]} : vector<12x1133xf32> to vector<12x785xf32>
    %c144_119 = arith.constant 144 : index
    %c0_120 = arith.constant 0 : index
    %156 = vector.load %arg14[%c144_119, %c0_120] : memref<256x785xf32, #tpu.memory_space<vmem>>, vector<12x785xf32>
    tpu.vector_store %arg14[%c144_119, %c0_120], %155 {strides = array<i32>} : memref<256x785xf32, #tpu.memory_space<vmem>>, vector<12x785xf32>,
    %157 = vector.extract_strided_slice %136 {offsets = [0, 232], sizes = [12, 785], strides = [1, 1]} : vector<12x1133xf32> to vector<12x785xf32>
    %c160_121 = arith.constant 160 : index
    %c0_122 = arith.constant 0 : index
    %158 = vector.load %arg14[%c160_121, %c0_122] : memref<256x785xf32, #tpu.memory_space<vmem>>, vector<12x785xf32>
    tpu.vector_store %arg14[%c160_121, %c0_122], %157 {strides = array<i32>} : memref<256x785xf32, #tpu.memory_space<vmem>>, vector<12x785xf32>,
    %159 = vector.extract_strided_slice %136 {offsets = [0, 236], sizes = [12, 785], strides = [1, 1]} : vector<12x1133xf32> to vector<12x785xf32>
    %c176_123 = arith.constant 176 : index
    %c0_124 = arith.constant 0 : index
    %160 = vector.load %arg14[%c176_123, %c0_124] : memref<256x785xf32, #tpu.memory_space<vmem>>, vector<12x785xf32>
    tpu.vector_store %arg14[%c176_123, %c0_124], %159 {strides = array<i32>} : memref<256x785xf32, #tpu.memory_space<vmem>>, vector<12x785xf32>,
    %161 = vector.extract_strided_slice %136 {offsets = [0, 336], sizes = [12, 785], strides = [1, 1]} : vector<12x1133xf32> to vector<12x785xf32>
    %c192_125 = arith.constant 192 : index
    %c0_126 = arith.constant 0 : index
    %162 = vector.load %arg14[%c192_125, %c0_126] : memref<256x785xf32, #tpu.memory_space<vmem>>, vector<12x785xf32>
    tpu.vector_store %arg14[%c192_125, %c0_126], %161 {strides = array<i32>} : memref<256x785xf32, #tpu.memory_space<vmem>>, vector<12x785xf32>,
    %163 = vector.extract_strided_slice %136 {offsets = [0, 340], sizes = [12, 785], strides = [1, 1]} : vector<12x1133xf32> to vector<12x785xf32>
    %c208 = arith.constant 208 : index
    %c0_127 = arith.constant 0 : index
    %164 = vector.load %arg14[%c208, %c0_127] : memref<256x785xf32, #tpu.memory_space<vmem>>, vector<12x785xf32>
    tpu.vector_store %arg14[%c208, %c0_127], %163 {strides = array<i32>} : memref<256x785xf32, #tpu.memory_space<vmem>>, vector<12x785xf32>,
    %165 = vector.extract_strided_slice %136 {offsets = [0, 344], sizes = [12, 785], strides = [1, 1]} : vector<12x1133xf32> to vector<12x785xf32>
    %c224 = arith.constant 224 : index
    %c0_128 = arith.constant 0 : index
    %166 = vector.load %arg14[%c224, %c0_128] : memref<256x785xf32, #tpu.memory_space<vmem>>, vector<12x785xf32>
    tpu.vector_store %arg14[%c224, %c0_128], %165 {strides = array<i32>} : memref<256x785xf32, #tpu.memory_space<vmem>>, vector<12x785xf32>,
    %167 = vector.extract_strided_slice %136 {offsets = [0, 348], sizes = [12, 785], strides = [1, 1]} : vector<12x1133xf32> to vector<12x785xf32>
    %c240 = arith.constant 240 : index
    %c0_129 = arith.constant 0 : index
    %168 = vector.load %arg14[%c240, %c0_129] : memref<256x785xf32, #tpu.memory_space<vmem>>, vector<12x785xf32>
    tpu.vector_store %arg14[%c240, %c0_129], %167 {strides = array<i32>} : memref<256x785xf32, #tpu.memory_space<vmem>>, vector<12x785xf32>,
    %c0_130 = arith.constant 0 : index
    %c0_131 = arith.constant 0 : index
    %169 = vector.load %arg5[%c0_130, %c0_131] : memref<84x256xf32, #tpu.memory_space<vmem>>, vector<84x256xf32>
    %c0_132 = arith.constant 0 : index
    %c0_133 = arith.constant 0 : index
    %170 = vector.load %arg14[%c0_132, %c0_133] : memref<256x785xf32, #tpu.memory_space<vmem>>, vector<256x785xf32>
    %cst_134 = arith.constant dense<0.000000e+00> : vector<84x785xf32>
    %171 = tpu.matmul %169, %170, %cst_134 {dimension_numbers = #tpu.dot_dimension_numbers<[1], [0], [0], [1], [0, 0, 1, 1], [], []>} : vector<84x256xf32>, vector<256x785xf32>, vector<84x785xf32> -> vector<84x785xf32>
    %c0_135 = arith.constant 0 : index
    %c0_136 = arith.constant 0 : index
    %172 = vector.load %arg6[%c0_135, %c0_136] : memref<84x1xf32, #tpu.memory_space<vmem>>, vector<84x1xf32>
    %173 = vector.broadcast %172 : vector<84x1xf32> to vector<84x785xf32>
    %174 = arith.addf %171, %173 : vector<84x785xf32>
    %cst_137 = arith.constant 0.000000e+00 : f32
    %175 = vector.broadcast %cst_137 : f32 to vector<84x785xf32>
    %176 = arith.maximumf %174, %175 : vector<84x785xf32>
    %c0_138 = arith.constant 0 : index
    %c0_139 = arith.constant 0 : index
    %177 = vector.load %arg7[%c0_138, %c0_139] : memref<42x84xf32, #tpu.memory_space<vmem>>, vector<42x84xf32>
    %cst_140 = arith.constant dense<0.000000e+00> : vector<42x785xf32>
    %178 = tpu.matmul %177, %176, %cst_140 {dimension_numbers = #tpu.dot_dimension_numbers<[1], [0], [0], [1], [0, 0, 1, 1], [], []>} : vector<42x84xf32>, vector<84x785xf32>, vector<42x785xf32> -> vector<42x785xf32>
    %c0_141 = arith.constant 0 : index
    %c0_142 = arith.constant 0 : index
    %179 = vector.load %arg8[%c0_141, %c0_142] : memref<42x1xf32, #tpu.memory_space<vmem>>, vector<42x1xf32>
    %180 = vector.broadcast %179 : vector<42x1xf32> to vector<42x785xf32>
    %181 = arith.addf %178, %180 : vector<42x785xf32>
    %cst_143 = arith.constant 0.000000e+00 : f32
    %182 = vector.broadcast %cst_143 : f32 to vector<42x785xf32>
    %183 = arith.maximumf %181, %182 : vector<42x785xf32>
    %c0_144 = arith.constant 0 : index
    %c0_145 = arith.constant 0 : index
    %184 = vector.load %arg9[%c0_144, %c0_145] : memref<3x42xf32, #tpu.memory_space<vmem>>, vector<3x42xf32>
    %cst_146 = arith.constant dense<0.000000e+00> : vector<3x785xf32>
    %185 = tpu.matmul %184, %183, %cst_146 {dimension_numbers = #tpu.dot_dimension_numbers<[1], [0], [0], [1], [0, 0, 1, 1], [], []>} : vector<3x42xf32>, vector<42x785xf32>, vector<3x785xf32> -> vector<3x785xf32>
    %c0_147 = arith.constant 0 : index
    %c0_148 = arith.constant 0 : index
    %186 = vector.load %arg10[%c0_147, %c0_148] : memref<3x1xf32, #tpu.memory_space<vmem>>, vector<3x1xf32>
    %187 = vector.broadcast %186 : vector<3x1xf32> to vector<3x785xf32>
    %188 = arith.addf %185, %187 : vector<3x785xf32>
    %189 = vector.extract_strided_slice %188 {offsets = [0, 0], sizes = [1, 785], strides = [1, 1]} : vector<3x785xf32> to vector<1x785xf32>
    %190 = vector.extract_strided_slice %188 {offsets = [1, 0], sizes = [1, 785], strides = [1, 1]} : vector<3x785xf32> to vector<1x785xf32>
    %191 = arith.maximumf %189, %190 : vector<1x785xf32>
    %192 = vector.extract_strided_slice %188 {offsets = [2, 0], sizes = [1, 785], strides = [1, 1]} : vector<3x785xf32> to vector<1x785xf32>
    %193 = arith.maximumf %191, %192 : vector<1x785xf32>
    %194 = vector.broadcast %193 : vector<1x785xf32> to vector<3x785xf32>
    %195 = arith.subf %188, %194 : vector<3x785xf32>
    %196 = math.exp %195 : vector<3x785xf32>
    %197 = vector.extract_strided_slice %196 {offsets = [0, 0], sizes = [1, 785], strides = [1, 1]} : vector<3x785xf32> to vector<1x785xf32>
    %198 = vector.extract_strided_slice %196 {offsets = [1, 0], sizes = [1, 785], strides = [1, 1]} : vector<3x785xf32> to vector<1x785xf32>
    %199 = arith.addf %197, %198 : vector<1x785xf32>
    %200 = vector.extract_strided_slice %196 {offsets = [2, 0], sizes = [1, 785], strides = [1, 1]} : vector<3x785xf32> to vector<1x785xf32>
    %201 = arith.addf %199, %200 : vector<1x785xf32>
    %202 = vector.broadcast %201 : vector<1x785xf32> to vector<3x785xf32>
    %203 = arith.divf %196, %202 : vector<3x785xf32>
    %204 = vector.extract_strided_slice %203 {offsets = [0, 0], sizes = [3, 1], strides = [1, 1]} : vector<3x785xf32> to vector<3x1xf32>
    %c0_149 = arith.constant 0 : index
    %c0_150 = arith.constant 0 : index
    %205 = vector.load %arg11[%c0_149, %c0_150] : memref<3x2xf32, #tpu.memory_space<vmem>>, vector<3x1xf32>
    tpu.vector_store %arg11[%c0_149, %c0_150], %204 {strides = array<i32>} : memref<3x2xf32, #tpu.memory_space<vmem>>, vector<3x1xf32>,
    %206 = vector.extract_strided_slice %203 {offsets = [0, 784], sizes = [3, 1], strides = [1, 1]} : vector<3x785xf32> to vector<3x1xf32>
    %c0_151 = arith.constant 0 : index
    %c1 = arith.constant 1 : index
    %207 = vector.load %arg11[%c0_151, %c1] : memref<3x2xf32, #tpu.memory_space<vmem>>, vector<3x1xf32>
    tpu.vector_store %arg11[%c0_151, %c1], %206 {strides = array<i32>} : memref<3x2xf32, #tpu.memory_space<vmem>>, vector<3x1xf32>,
    return
  }
}

</mosaic_0001>

<llo_original>
// kernel: gate_cnn_fashion_softmax.1
$region0: #{gate_cnn_fashion_softmax.1}
  #allocation0 [shape = 'u32[]', space=smem, size = 0x4, offset = 0x4, fixed_abs, tag = 'smem constant byte address 0x4 - core index']
  #allocation1 [shape = 'u32[144,128]{1,0:T(1,128)}', space=vmem, size = 0x12000, scoped, tag = 'internal scratch']
  #allocation2 [shape = 'f32[200,1452]{1,0:T(8,128)}', space=vmem, size = 0x12c000, scoped, tag = 'scratch operand']
  #allocation3 [shape = 'f32[200,1191]{1,0:T(8,128)}', space=vmem, size = 0xfa000, scoped, tag = 'scratch operand']
  #allocation4 [shape = 'f32[256,785]{1,0:T(8,128)}', space=vmem, size = 0xe0000, scoped, tag = 'scratch operand']
  %s0 = inlined_call_operand.vmem [shape: f32[1,1568], index: 0, kind: input, shape index: {}]
  %s1 = inlined_call_operand.vmem [shape: f32[6,200], index: 1, kind: input, shape index: {}]
  %s2 = inlined_call_operand.vmem [shape: f32[6,1], index: 2, kind: input, shape index: {}]
  %s3 = inlined_call_operand.vmem [shape: f32[12,200], index: 3, kind: input, shape index: {}]
  %s4 = inlined_call_operand.vmem [shape: f32[12,1], index: 4, kind: input, shape index: {}]
  %s5 = inlined_call_operand.vmem [shape: f32[84,256], index: 5, kind: input, shape index: {}]
  %s6 = inlined_call_operand.vmem [shape: f32[84,1], index: 6, kind: input, shape index: {}]
  %s7 = inlined_call_operand.vmem [shape: f32[42,84], index: 7, kind: input, shape index: {}]
  %s8 = inlined_call_operand.vmem [shape: f32[42,1], index: 8, kind: input, shape index: {}]
  %s9 = inlined_call_operand.vmem [shape: f32[3,42], index: 9, kind: input, shape index: {}]
  %s10 = inlined_call_operand.vmem [shape: f32[3,1], index: 10, kind: input, shape index: {}]
  %s11 = inlined_call_operand.vmem [shape: f32[3,2], index: 11, kind: output, shape index: {}]
  %s12 = sld [smem:[#allocation0]]
  $region54: #{gate_cnn_fashion_softmax.1} parent=0
    _
  %s14 = ssub.s32 1, %s12
  %s15 = scalar_select 0, %s14, %s12
  // Predicated region
  $region2: #{gate_cnn_fashion_softmax.1} parent=0 // pred_check
    _
  $region3: #{gate_cnn_fashion_softmax.1} parent=0 // pred_check_branch
    %17 = sbr.rel (0) target = $region5
  $region4: #{gate_cnn_fashion_softmax.1} parent=0 // pred_region
    _
  $region5: #{gate_cnn_fashion_softmax.1} parent=0 // pred_fallthru
    _
  // Predicated region
  $region6: #{gate_cnn_fashion_softmax.1} parent=0 // pred_check
    _
  $region7: #{gate_cnn_fashion_softmax.1} parent=0 // pred_check_branch
    %19 = sbr.rel (0) target = $region9
  $region8: #{gate_cnn_fashion_softmax.1} parent=0 // pred_region
    _
  $region9: #{gate_cnn_fashion_softmax.1} parent=0 // pred_fallthru
    _
  // Predicated region
  $region10: #{gate_cnn_fashion_softmax.1} parent=0 // pred_check
    _
  $region11: #{gate_cnn_fashion_softmax.1} parent=0 // pred_check_branch
    %21 = sbr.rel (0) target = $region13
  $region12: #{gate_cnn_fashion_softmax.1} parent=0 // pred_region
    _
  $region13: #{gate_cnn_fashion_softmax.1} parent=0 // pred_fallthru
    _
  // Predicated region
  $region14: #{gate_cnn_fashion_softmax.1} parent=0 // pred_check
    _
  $region15: #{gate_cnn_fashion_softmax.1} parent=0 // pred_check_branch
    %23 = sbr.rel (0) target = $region17
  $region16: #{gate_cnn_fashion_softmax.1} parent=0 // pred_region
    _
  $region17: #{gate_cnn_fashion_softmax.1} parent=0 // pred_fallthru
    _
  // Predicated region
  $region18: #{gate_cnn_fashion_softmax.1} parent=0 // pred_check
    _
  $region19: #{gate_cnn_fashion_softmax.1} parent=0 // pred_check_branch
    %25 = sbr.rel (0) target = $region21
  $region20: #{gate_cnn_fashion_softmax.1} parent=0 // pred_region
    _
  $region21: #{gate_cnn_fashion_softmax.1} parent=0 // pred_fallthru
    _
  // Predicated region
  $region22: #{gate_cnn_fashion_softmax.1} parent=0 // pred_check
    _
  $region23: #{gate_cnn_fashion_softmax.1} parent=0 // pred_check_branch
    %27 = sbr.rel (0) target = $region25
  $region24: #{gate_cnn_fashion_softmax.1} parent=0 // pred_region
    _
  $region25: #{gate_cnn_fashion_softmax.1} parent=0 // pred_fallthru
    _
  // Predicated region
  $region26: #{gate_cnn_fashion_softmax.1} parent=0 // pred_check
    _
  $region27: #{gate_cnn_fashion_softmax.1} parent=0 // pred_check_branch
    %29 = sbr.rel (0) target = $region29
  $region28: #{gate_cnn_fashion_softmax.1} parent=0 // pred_region
    _
  $region29: #{gate_cnn_fashion_softmax.1} parent=0 // pred_fallthru
    _
  // Predicated region
  $region30: #{gate_cnn_fashion_softmax.1} parent=0 // pred_check
    _
  $region31: #{gate_cnn_fashion_softmax.1} parent=0 // pred_check_branch
    %31 = sbr.rel (0) target = $region33
  $region32: #{gate_cnn_fashion_softmax.1} parent=0 // pred_region
    _
  $region33: #{gate_cnn_fashion_softmax.1} parent=0 // pred_fallthru
    _
  // Predicated region
  $region34: #{gate_cnn_fashion_softmax.1} parent=0 // pred_check
    _
  $region35: #{gate_cnn_fashion_softmax.1} parent=0 // pred_check_branch
    %33 = sbr.rel (0) target = $region37
  $region36: #{gate_cnn_fashion_softmax.1} parent=0 // pred_region
    _
  $region37: #{gate_cnn_fashion_softmax.1} parent=0 // pred_fallthru
    _
  // Predicated region
  $region38: #{gate_cnn_fashion_softmax.1} parent=0 // pred_check
    _
  $region39: #{gate_cnn_fashion_softmax.1} parent=0 // pred_check_branch
    %35 = sbr.rel (0) target = $region41
  $region40: #{gate_cnn_fashion_softmax.1} parent=0 // pred_region
    _
  $region41: #{gate_cnn_fashion_softmax.1} parent=0 // pred_fallthru
    _
  // Predicated region
  $region42: #{gate_cnn_fashion_softmax.1} parent=0 // pred_check
    _
  $region43: #{gate_cnn_fashion_softmax.1} parent=0 // pred_check_branch
    %37 = sbr.rel (0) target = $region45
  $region44: #{gate_cnn_fashion_softmax.1} parent=0 // pred_region
    _
  $region45: #{gate_cnn_fashion_softmax.1} parent=0 // pred_fallthru
    _
  %38 = vst [vmem:[#allocation2] sm:$0xff] 0.0
  %39 = vst [vmem:[#allocation2 + $0x8] sm:$0xff] 0.0
  %40 = vst [vmem:[#allocation2 + $0x10] sm:$0xff] 0.0
  %41 = vst [vmem:[#allocation2 + $0x18] sm:$0xff] 0.0
  %42 = vst [vmem:[#allocation2 + $0x20] sm:$0xff] 0.0
  %43 = vst [vmem:[#allocation2 + $0x28] sm:$0xff] 0.0
  %44 = vst [vmem:[#allocation2 + $0x30] sm:$0xff] 0.0
  %45 = vst [vmem:[#allocation2 + $0x38] sm:$0xff] 0.0
  %46 = vst [vmem:[#allocation2 + $0x40] sm:$0xff] 0.0
  %47 = vst [vmem:[#allocation2 + $0x48] sm:$0xff] 0.0
  %48 = vst [vmem:[#allocation2 + $0x50] sm:$0xff] 0.0
  %vm49 = vcmask 359424
  %50 = vst.msk [vmem:[#allocation2 + $0x58] sm:$0xff] %vm49, 0.0
  %51 = vst [vmem:[#allocation2 + $0x60] sm:$0xff] 0.0
  %52 = vst [vmem:[#allocation2 + $0x68] sm:$0xff] 0.0
  %53 = vst [vmem:[#allocation2 + $0x70] sm:$0xff] 0.0
  %54 = vst [vmem:[#allocation2 + $0x78] sm:$0xff] 0.0
  %55 = vst [vmem:[#allocation2 + $0x80] sm:$0xff] 0.0
  %56 = vst [vmem:[#allocation2 + $0x88] sm:$0xff] 0.0
  %57 = vst [vmem:[#allocation2 + $0x90] sm:$0xff] 0.0
  %58 = vst [vmem:[#allocation2 + $0x98] sm:$0xff] 0.0
  %59 = vst [vmem:[#allocation2 + $0xa0] sm:$0xff] 0.0
  %60 = vst [vmem:[#allocation2 + $0xa8] sm:$0xff] 0.0
  %61 = vst [vmem:[#allocation2 + $0xb0] sm:$0xff] 0.0
  %62 = vst.msk [vmem:[#allocation2 + $0xb8] sm:$0xff] %vm49, 0.0
  %63 = vst [vmem:[#allocation2 + $0xc0] sm:$0xff] 0.0
  %64 = vst [vmem:[#allocation2 + $0xc8] sm:$0xff] 0.0
  %65 = vst [vmem:[#allocation2 + $0xd0] sm:$0xff] 0.0
  %66 = vst [vmem:[#allocation2 + $0xd8] sm:$0xff] 0.0
  %67 = vst [vmem:[#allocation2 + $0xe0] sm:$0xff] 0.0
  %68 = vst [vmem:[#allocation2 + $0xe8] sm:$0xff] 0.0
  %69 = vst [vmem:[#allocation2 + $0xf0] sm:$0xff] 0.0
  %70 = vst [vmem:[#allocation2 + $0xf8] sm:$0xff] 0.0
  %71 = vst [vmem:[#allocation2 + $0x100] sm:$0xff] 0.0
  %72 = vst [vmem:[#allocation2 + $0x108] sm:$0xff] 0.0
  %73 = vst [vmem:[#allocation2 + $0x110] sm:$0xff] 0.0
  %74 = vst.msk [vmem:[#allocation2 + $0x118] sm:$0xff] %vm49, 0.0
  %75 = vst [vmem:[#allocation2 + $0x120] sm:$0xff] 0.0
  %76 = vst [vmem:[#allocation2 + $0x128] sm:$0xff] 0.0
  %77 = vst [vmem:[#allocation2 + $0x130] sm:$0xff] 0.0
  %78 = vst [vmem:[#allocation2 + $0x138] sm:$0xff] 0.0
  %79 = vst [vmem:[#allocation2 + $0x140] sm:$0xff] 0.0
  %80 = vst [vmem:[#allocation2 + $0x148] sm:$0xff] 0.0
  %81 = vst [vmem:[#allocation2 + $0x150] sm:$0xff] 0.0
  %82 = vst [vmem:[#allocation2 + $0x158] sm:$0xff] 0.0
  %83 = vst [vmem:[#allocation2 + $0x160] sm:$0xff] 0.0
  %84 = vst [vmem:[#allocation2 + $0x168] sm:$0xff] 0.0
  %85 = vst [vmem:[#allocation2 + $0x170] sm:$0xff] 0.0
  %86 = vst.msk [vmem:[#allocation2 + $0x178] sm:$0xff] %vm49, 0.0
  %87 = vst [vmem:[#allocation2 + $0x180] sm:$0xff] 0.0
  %88 = vst [vmem:[#allocation2 + $0x188] sm:$0xff] 0.0
  %89 = vst [vmem:[#allocation2 + $0x190] sm:$0xff] 0.0
  %90 = vst [vmem:[#allocation2 + $0x198] sm:$0xff] 0.0
  %91 = vst [vmem:[#allocation2 + $0x1a0] sm:$0xff] 0.0
  %92 = vst [vmem:[#allocation2 + $0x1a8] sm:$0xff] 0.0
  %93 = vst [vmem:[#allocation2 + $0x1b0] sm:$0xff] 0.0
  %94 = vst [vmem:[#allocation2 + $0x1b8] sm:$0xff] 0.0
  %95 = vst [vmem:[#allocation2 + $0x1c0] sm:$0xff] 0.0
  %96 = vst [vmem:[#allocation2 + $0x1c8] sm:$0xff] 0.0
  %97 = vst [vmem:[#allocation2 + $0x1d0] sm:$0xff] 0.0
  %98 = vst.msk [vmem:[#allocation2 + $0x1d8] sm:$0xff] %vm49, 0.0
  %99 = vst [vmem:[#allocation2 + $0x1e0] sm:$0xff] 0.0
  %100 = vst [vmem:[#allocation2 + $0x1e8] sm:$0xff] 0.0
  %101 = vst [vmem:[#allocation2 + $0x1f0] sm:$0xff] 0.0
  %102 = vst [vmem:[#allocation2 + $0x1f8] sm:$0xff] 0.0
  %103 = vst [vmem:[#allocation2 + $0x200] sm:$0xff] 0.0
  %104 = vst [vmem:[#allocation2 + $0x208] sm:$0xff] 0.0
  %105 = vst [vmem:[#allocation2 + $0x210] sm:$0xff] 0.0
  %106 = vst [vmem:[#allocation2 + $0x218] sm:$0xff] 0.0
  %107 = vst [vmem:[#allocation2 + $0x220] sm:$0xff] 0.0
  %108 = vst [vmem:[#allocation2 + $0x228] sm:$0xff] 0.0
  %109 = vst [vmem:[#allocation2 + $0x230] sm:$0xff] 0.0
  %110 = vst.msk [vmem:[#allocation2 + $0x238] sm:$0xff] %vm49, 0.0
  %111 = vst [vmem:[#allocation2 + $0x240] sm:$0xff] 0.0
  %112 = vst [vmem:[#allocation2 + $0x248] sm:$0xff] 0.0
  %113 = vst [vmem:[#allocation2 + $0x250] sm:$0xff] 0.0
  %114 = vst [vmem:[#allocation2 + $0x258] sm:$0xff] 0.0
  %115 = vst [vmem:[#allocation2 + $0x260] sm:$0xff] 0.0
  %116 = vst [vmem:[#allocation2 + $0x268] sm:$0xff] 0.0
  %117 = vst [vmem:[#allocation2 + $0x270] sm:$0xff] 0.0
  %118 = vst [vmem:[#allocation2 + $0x278] sm:$0xff] 0.0
  %119 = vst [vmem:[#allocation2 + $0x280] sm:$0xff] 0.0
  %120 = vst [vmem:[#allocation2 + $0x288] sm:$0xff] 0.0
  %121 = vst [vmem:[#allocation2 + $0x290] sm:$0xff] 0.0
  %122 = vst.msk [vmem:[#allocation2 + $0x298] sm:$0xff] %vm49, 0.0
  %123 = vst [vmem:[#allocation2 + $0x2a0] sm:$0xff] 0.0
  %124 = vst [vmem:[#allocation2 + $0x2a8] sm:$0xff] 0.0
  %125 = vst [vmem:[#allocation2 + $0x2b0] sm:$0xff] 0.0
  %126 = vst [vmem:[#allocation2 + $0x2b8] sm:$0xff] 0.0
  %127 = vst [vmem:[#allocation2 + $0x2c0] sm:$0xff] 0.0
  %128 = vst [vmem:[#allocation2 + $0x2c8] sm:$0xff] 0.0
  %129 = vst [vmem:[#allocation2 + $0x2d0] sm:$0xff] 0.0
  %130 = vst [vmem:[#allocation2 + $0x2d8] sm:$0xff] 0.0
  %131 = vst [vmem:[#allocation2 + $0x2e0] sm:$0xff] 0.0
  %132 = vst [vmem:[#allocation2 + $0x2e8] sm:$0xff] 0.0
  %133 = vst [vmem:[#allocation2 + $0x2f0] sm:$0xff] 0.0
  %134 = vst.msk [vmem:[#allocation2 + $0x2f8] sm:$0xff] %vm49, 0.0
  %135 = vst [vmem:[#allocation2 + $0x300] sm:$0xff] 0.0
  %136 = vst [vmem:[#allocation2 + $0x308] sm:$0xff] 0.0
  %137 = vst [vmem:[#allocation2 + $0x310] sm:$0xff] 0.0
  %138 = vst [vmem:[#allocation2 + $0x318] sm:$0xff] 0.0
  %139 = vst [vmem:[#allocation2 + $0x320] sm:$0xff] 0.0
  %140 = vst [vmem:[#allocation2 + $0x328] sm:$0xff] 0.0
  %141 = vst [vmem:[#allocation2 + $0x330] sm:$0xff] 0.0
  %142 = vst [vmem:[#allocation2 + $0x338] sm:$0xff] 0.0
  %143 = vst [vmem:[#allocation2 + $0x340] sm:$0xff] 0.0
  %144 = vst [vmem:[#allocation2 + $0x348] sm:$0xff] 0.0
  %145 = vst [vmem:[#allocation2 + $0x350] sm:$0xff] 0.0
  %146 = vst.msk [vmem:[#allocation2 + $0x358] sm:$0xff] %vm49, 0.0
  %147 = vst [vmem:[#allocation2 + $0x360] sm:$0xff] 0.0
  %148 = vst [vmem:[#allocation2 + $0x368] sm:$0xff] 0.0
  %149 = vst [vmem:[#allocation2 + $0x370] sm:$0xff] 0.0
  %150 = vst [vmem:[#allocation2 + $0x378] sm:$0xff] 0.0
  %151 = vst [vmem:[#allocation2 + $0x380] sm:$0xff] 0.0
  %152 = vst [vmem:[#allocation2 + $0x388] sm:$0xff] 0.0
  %153 = vst [vmem:[#allocation2 + $0x390] sm:$0xff] 0.0
  %154 = vst [vmem:[#allocation2 + $0x398] sm:$0xff] 0.0
  %155 = vst [vmem:[#allocation2 + $0x3a0] sm:$0xff] 0.0
  %156 = vst [vmem:[#allocation2 + $0x3a8] sm:$0xff] 0.0
  %157 = vst [vmem:[#allocation2 + $0x3b0] sm:$0xff] 0.0
  %158 = vst.msk [vmem:[#allocation2 + $0x3b8] sm:$0xff] %vm49, 0.0
  %159 = vst [vmem:[#allocation2 + $0x3c0] sm:$0xff] 0.0
  %160 = vst [vmem:[#allocation2 + $0x3c8] sm:$0xff] 0.0
  %161 = vst [vmem:[#allocation2 + $0x3d0] sm:$0xff] 0.0
  %162 = vst [vmem:[#allocation2 + $0x3d8] sm:$0xff] 0.0
  %163 = vst [vmem:[#allocation2 + $0x3e0] sm:$0xff] 0.0
  %164 = vst [vmem:[#allocation2 + $0x3e8] sm:$0xff] 0.0
  %165 = vst [vmem:[#allocation2 + $0x3f0] sm:$0xff] 0.0
  %166 = vst [vmem:[#allocation2 + $0x3f8] sm:$0xff] 0.0
  %167 = vst [vmem:[#allocation2 + $0x400] sm:$0xff] 0.0
  %168 = vst [vmem:[#allocation2 + $0x408] sm:$0xff] 0.0
  %169 = vst [vmem:[#allocation2 + $0x410] sm:$0xff] 0.0
  %170 = vst.msk [vmem:[#allocation2 + $0x418] sm:$0xff] %vm49, 0.0
  %171 = vst [vmem:[#allocation2 + $0x420] sm:$0xff] 0.0
  %172 = vst [vmem:[#allocation2 + $0x428] sm:$0xff] 0.0
  %173 = vst [vmem:[#allocation2 + $0x430] sm:$0xff] 0.0
  %174 = vst [vmem:[#allocation2 + $0x438] sm:$0xff] 0.0
  %175 = vst [vmem:[#allocation2 + $0x440] sm:$0xff] 0.0
  %176 = vst [vmem:[#allocation2 + $0x448] sm:$0xff] 0.0
  %177 = vst [vmem:[#allocation2 + $0x450] sm:$0xff] 0.0
  %178 = vst [vmem:[#allocation2 + $0x458] sm:$0xff] 0.0
  %179 = vst [vmem:[#allocation2 + $0x460] sm:$0xff] 0.0
  %180 = vst [vmem:[#allocation2 + $0x468] sm:$0xff] 0.0
  %181 = vst [vmem:[#allocation2 + $0x470] sm:$0xff] 0.0
  %182 = vst.msk [vmem:[#allocation2 + $0x478] sm:$0xff] %vm49, 0.0
  %183 = vst [vmem:[#allocation2 + $0x480] sm:$0xff] 0.0
  %184 = vst [vmem:[#allocation2 + $0x488] sm:$0xff] 0.0
  %185 = vst [vmem:[#allocation2 + $0x490] sm:$0xff] 0.0
  %186 = vst [vmem:[#allocation2 + $0x498] sm:$0xff] 0.0
  %187 = vst [vmem:[#allocation2 + $0x4a0] sm:$0xff] 0.0
  %188 = vst [vmem:[#allocation2 + $0x4a8] sm:$0xff] 0.0
  %189 = vst [vmem:[#allocation2 + $0x4b0] sm:$0xff] 0.0
  %190 = vst [vmem:[#allocation2 + $0x4b8] sm:$0xff] 0.0
  %191 = vst [vmem:[#allocation2 + $0x4c0] sm:$0xff] 0.0
  %192 = vst [vmem:[#allocation2 + $0x4c8] sm:$0xff] 0.0
  %193 = vst [vmem:[#allocation2 + $0x4d0] sm:$0xff] 0.0
  %194 = vst.msk [vmem:[#allocation2 + $0x4d8] sm:$0xff] %vm49, 0.0
  %195 = vst [vmem:[#allocation2 + $0x4e0] sm:$0xff] 0.0
  %196 = vst [vmem:[#allocation2 + $0x4e8] sm:$0xff] 0.0
  %197 = vst [vmem:[#allocation2 + $0x4f0] sm:$0xff] 0.0
  %198 = vst [vmem:[#allocation2 + $0x4f8] sm:$0xff] 0.0
  %199 = vst [vmem:[#allocation2 + $0x500] sm:$0xff] 0.0
  %200 = vst [vmem:[#allocation2 + $0x508] sm:$0xff] 0.0
  %201 = vst [vmem:[#allocation2 + $0x510] sm:$0xff] 0.0
  %202 = vst [vmem:[#allocation2 + $0x518] sm:$0xff] 0.0
  %203 = vst [vmem:[#allocation2 + $0x520] sm:$0xff] 0.0
  %204 = vst [vmem:[#allocation2 + $0x528] sm:$0xff] 0.0
  %205 = vst [vmem:[#allocation2 + $0x530] sm:$0xff] 0.0
  %206 = vst.msk [vmem:[#allocation2 + $0x538] sm:$0xff] %vm49, 0.0
  %207 = vst [vmem:[#allocation2 + $0x540] sm:$0xff] 0.0
  %208 = vst [vmem:[#allocation2 + $0x548] sm:$0xff] 0.0
  %209 = vst [vmem:[#allocation2 + $0x550] sm:$0xff] 0.0
  %210 = vst [vmem:[#allocation2 + $0x558] sm:$0xff] 0.0
  %211 = vst [vmem:[#allocation2 + $0x560] sm:$0xff] 0.0
  %212 = vst [vmem:[#allocation2 + $0x568] sm:$0xff] 0.0
  %213 = vst [vmem:[#allocation2 + $0x570] sm:$0xff] 0.0
  %214 = vst [vmem:[#allocation2 + $0x578] sm:$0xff] 0.0
  %215 = vst [vmem:[#allocation2 + $0x580] sm:$0xff] 0.0
  %216 = vst [vmem:[#allocation2 + $0x588] sm:$0xff] 0.0
  %217 = vst [vmem:[#allocation2 + $0x590] sm:$0xff] 0.0
  %218 = vst.msk [vmem:[#allocation2 + $0x598] sm:$0xff] %vm49, 0.0
  %219 = vst [vmem:[#allocation2 + $0x5a0] sm:$0xff] 0.0
  %220 = vst [vmem:[#allocation2 + $0x5a8] sm:$0xff] 0.0
  %221 = vst [vmem:[#allocation2 + $0x5b0] sm:$0xff] 0.0
  %222 = vst [vmem:[#allocation2 + $0x5b8] sm:$0xff] 0.0
  %223 = vst [vmem:[#allocation2 + $0x5c0] sm:$0xff] 0.0
  %224 = vst [vmem:[#allocation2 + $0x5c8] sm:$0xff] 0.0
  %225 = vst [vmem:[#allocation2 + $0x5d0] sm:$0xff] 0.0
  %226 = vst [vmem:[#allocation2 + $0x5d8] sm:$0xff] 0.0
  %227 = vst [vmem:[#allocation2 + $0x5e0] sm:$0xff] 0.0
  %228 = vst [vmem:[#allocation2 + $0x5e8] sm:$0xff] 0.0
  %229 = vst [vmem:[#allocation2 + $0x5f0] sm:$0xff] 0.0
  %230 = vst.msk [vmem:[#allocation2 + $0x5f8] sm:$0xff] %vm49, 0.0
  %231 = vst [vmem:[#allocation2 + $0x600] sm:$0xff] 0.0
  %232 = vst [vmem:[#allocation2 + $0x608] sm:$0xff] 0.0
  %233 = vst [vmem:[#allocation2 + $0x610] sm:$0xff] 0.0
  %234 = vst [vmem:[#allocation2 + $0x618] sm:$0xff] 0.0
  %235 = vst [vmem:[#allocation2 + $0x620] sm:$0xff] 0.0
  %236 = vst [vmem:[#allocation2 + $0x628] sm:$0xff] 0.0
  %237 = vst [vmem:[#allocation2 + $0x630] sm:$0xff] 0.0
  %238 = vst [vmem:[#allocation2 + $0x638] sm:$0xff] 0.0
  %239 = vst [vmem:[#allocation2 + $0x640] sm:$0xff] 0.0
  %240 = vst [vmem:[#allocation2 + $0x648] sm:$0xff] 0.0
  %241 = vst [vmem:[#allocation2 + $0x650] sm:$0xff] 0.0
  %242 = vst.msk [vmem:[#allocation2 + $0x658] sm:$0xff] %vm49, 0.0
  %243 = vst [vmem:[#allocation2 + $0x660] sm:$0xff] 0.0
  %244 = vst [vmem:[#allocation2 + $0x668] sm:$0xff] 0.0
  %245 = vst [vmem:[#allocation2 + $0x670] sm:$0xff] 0.0
  %246 = vst [vmem:[#allocation2 + $0x678] sm:$0xff] 0.0
  %247 = vst [vmem:[#allocation2 + $0x680] sm:$0xff] 0.0
  %248 = vst [vmem:[#allocation2 + $0x688] sm:$0xff] 0.0
  %249 = vst [vmem:[#allocation2 + $0x690] sm:$0xff] 0.0
  %250 = vst [vmem:[#allocation2 + $0x698] sm:$0xff] 0.0
  %251 = vst [vmem:[#allocation2 + $0x6a0] sm:$0xff] 0.0
  %252 = vst [vmem:[#allocation2 + $0x6a8] sm:$0xff] 0.0
  %253 = vst [vmem:[#allocation2 + $0x6b0] sm:$0xff] 0.0
  %254 = vst.msk [vmem:[#allocation2 + $0x6b8] sm:$0xff] %vm49, 0.0
  %255 = vst [vmem:[#allocation2 + $0x6c0] sm:$0xff] 0.0
  %256 = vst [vmem:[#allocation2 + $0x6c8] sm:$0xff] 0.0
  %257 = vst [vmem:[#allocation2 + $0x6d0] sm:$0xff] 0.0
  %258 = vst [vmem:[#allocation2 + $0x6d8] sm:$0xff] 0.0
  %259 = vst [vmem:[#allocation2 + $0x6e0] sm:$0xff] 0.0
  %260 = vst [vmem:[#allocation2 + $0x6e8] sm:$0xff] 0.0
  %261 = vst [vmem:[#allocation2 + $0x6f0] sm:$0xff] 0.0
  %262 = vst [vmem:[#allocation2 + $0x6f8] sm:$0xff] 0.0
  %263 = vst [vmem:[#allocation2 + $0x700] sm:$0xff] 0.0
  %264 = vst [vmem:[#allocation2 + $0x708] sm:$0xff] 0.0
  %265 = vst [vmem:[#allocation2 + $0x710] sm:$0xff] 0.0
  %266 = vst.msk [vmem:[#allocation2 + $0x718] sm:$0xff] %vm49, 0.0
  %267 = vst [vmem:[#allocation2 + $0x720] sm:$0xff] 0.0
  %268 = vst [vmem:[#allocation2 + $0x728] sm:$0xff] 0.0
  %269 = vst [vmem:[#allocation2 + $0x730] sm:$0xff] 0.0
  %270 = vst [vmem:[#allocation2 + $0x738] sm:$0xff] 0.0
  %271 = vst [vmem:[#allocation2 + $0x740] sm:$0xff] 0.0
  %272 = vst [vmem:[#allocation2 + $0x748] sm:$0xff] 0.0
  %273 = vst [vmem:[#allocation2 + $0x750] sm:$0xff] 0.0
  %274 = vst [vmem:[#allocation2 + $0x758] sm:$0xff] 0.0
  %275 = vst [vmem:[#allocation2 + $0x760] sm:$0xff] 0.0
  %276 = vst [vmem:[#allocation2 + $0x768] sm:$0xff] 0.0
  %277 = vst [vmem:[#allocation2 + $0x770] sm:$0xff] 0.0
  %278 = vst.msk [vmem:[#allocation2 + $0x778] sm:$0xff] %vm49, 0.0
  %279 = vst [vmem:[#allocation2 + $0x780] sm:$0xff] 0.0
  %280 = vst [vmem:[#allocation2 + $0x788] sm:$0xff] 0.0
  %281 = vst [vmem:[#allocation2 + $0x790] sm:$0xff] 0.0
  %282 = vst [vmem:[#allocation2 + $0x798] sm:$0xff] 0.0
  %283 = vst [vmem:[#allocation2 + $0x7a0] sm:$0xff] 0.0
  %284 = vst [vmem:[#allocation2 + $0x7a8] sm:$0xff] 0.0
  %285 = vst [vmem:[#allocation2 + $0x7b0] sm:$0xff] 0.0
  %286 = vst [vmem:[#allocation2 + $0x7b8] sm:$0xff] 0.0
  %287 = vst [vmem:[#allocation2 + $0x7c0] sm:$0xff] 0.0
  %288 = vst [vmem:[#allocation2 + $0x7c8] sm:$0xff] 0.0
  %289 = vst [vmem:[#allocation2 + $0x7d0] sm:$0xff] 0.0
  %290 = vst.msk [vmem:[#allocation2 + $0x7d8] sm:$0xff] %vm49, 0.0
  %291 = vst [vmem:[#allocation2 + $0x7e0] sm:$0xff] 0.0
  %292 = vst [vmem:[#allocation2 + $0x7e8] sm:$0xff] 0.0
  %293 = vst [vmem:[#allocation2 + $0x7f0] sm:$0xff] 0.0
  %294 = vst [vmem:[#allocation2 + $0x7f8] sm:$0xff] 0.0
  %295 = vst [vmem:[#allocation2 + $0x800] sm:$0xff] 0.0
  %296 = vst [vmem:[#allocation2 + $0x808] sm:$0xff] 0.0
  %297 = vst [vmem:[#allocation2 + $0x810] sm:$0xff] 0.0
  %298 = vst [vmem:[#allocation2 + $0x818] sm:$0xff] 0.0
  %299 = vst [vmem:[#allocation2 + $0x820] sm:$0xff] 0.0
  %300 = vst [vmem:[#allocation2 + $0x828] sm:$0xff] 0.0
  %301 = vst [vmem:[#allocation2 + $0x830] sm:$0xff] 0.0
  %302 = vst.msk [vmem:[#allocation2 + $0x838] sm:$0xff] %vm49, 0.0
  %303 = vst [vmem:[#allocation2 + $0x840] sm:$0xff] 0.0
  %304 = vst [vmem:[#allocation2 + $0x848] sm:$0xff] 0.0
  %305 = vst [vmem:[#allocation2 + $0x850] sm:$0xff] 0.0
  %306 = vst [vmem:[#allocation2 + $0x858] sm:$0xff] 0.0
  %307 = vst [vmem:[#allocation2 + $0x860] sm:$0xff] 0.0
  %308 = vst [vmem:[#allocation2 + $0x868] sm:$0xff] 0.0
  %309 = vst [vmem:[#allocation2 + $0x870] sm:$0xff] 0.0
  %310 = vst [vmem:[#allocation2 + $0x878] sm:$0xff] 0.0
  %311 = vst [vmem:[#allocation2 + $0x880] sm:$0xff] 0.0
  %312 = vst [vmem:[#allocation2 + $0x888] sm:$0xff] 0.0
  %313 = vst [vmem:[#allocation2 + $0x890] sm:$0xff] 0.0
  %314 = vst.msk [vmem:[#allocation2 + $0x898] sm:$0xff] %vm49, 0.0
  %315 = vst [vmem:[#allocation2 + $0x8a0] sm:$0xff] 0.0
  %316 = vst [vmem:[#allocation2 + $0x8a8] sm:$0xff] 0.0
  %317 = vst [vmem:[#allocation2 + $0x8b0] sm:$0xff] 0.0
  %318 = vst [vmem:[#allocation2 + $0x8b8] sm:$0xff] 0.0
  %319 = vst [vmem:[#allocation2 + $0x8c0] sm:$0xff] 0.0
  %320 = vst [vmem:[#allocation2 + $0x8c8] sm:$0xff] 0.0
  %321 = vst [vmem:[#allocation2 + $0x8d0] sm:$0xff] 0.0
  %322 = vst [vmem:[#allocation2 + $0x8d8] sm:$0xff] 0.0
  %323 = vst [vmem:[#allocation2 + $0x8e0] sm:$0xff] 0.0
  %324 = vst [vmem:[#allocation2 + $0x8e8] sm:$0xff] 0.0
  %325 = vst [vmem:[#allocation2 + $0x8f0] sm:$0xff] 0.0
  %326 = vst.msk [vmem:[#allocation2 + $0x8f8] sm:$0xff] %vm49, 0.0
  %327 = vst [vmem:[#allocation2 + $0x900] sm:$0xff] 0.0
  %328 = vst [vmem:[#allocation2 + $0x908] sm:$0xff] 0.0
  %329 = vst [vmem:[#allocation2 + $0x910] sm:$0xff] 0.0
  %330 = vst [vmem:[#allocation2 + $0x918] sm:$0xff] 0.0
  %331 = vst [vmem:[#allocation2 + $0x920] sm:$0xff] 0.0
  %332 = vst [vmem:[#allocation2 + $0x928] sm:$0xff] 0.0
  %333 = vst [vmem:[#allocation2 + $0x930] sm:$0xff] 0.0
  %334 = vst [vmem:[#allocation2 + $0x938] sm:$0xff] 0.0
  %335 = vst [vmem:[#allocation2 + $0x940] sm:$0xff] 0.0
  %336 = vst [vmem:[#allocation2 + $0x948] sm:$0xff] 0.0
  %337 = vst [vmem:[#allocation2 + $0x950] sm:$0xff] 0.0
  %338 = vst.msk [vmem:[#allocation2 + $0x958] sm:$0xff] %vm49, 0.0
  %339 = vst [vmem:[#allocation3] sm:$0xff] 0.0
  %340 = vst [vmem:[#allocation3 + $0x8] sm:$0xff] 0.0
  %341 = vst [vmem:[#allocation3 + $0x10] sm:$0xff] 0.0
  %342 = vst [vmem:[#allocation3 + $0x18] sm:$0xff] 0.0
  %343 = vst [vmem:[#allocation3 + $0x20] sm:$0xff] 0.0
  %344 = vst [vmem:[#allocation3 + $0x28] sm:$0xff] 0.0
  %345 = vst [vmem:[#allocation3 + $0x30] sm:$0xff] 0.0
  %346 = vst [vmem:[#allocation3 + $0x38] sm:$0xff] 0.0
  %347 = vst [vmem:[#allocation3 + $0x40] sm:$0xff] 0.0
  %vm348 = vcmask 318464
  %349 = vst.msk [vmem:[#allocation3 + $0x48] sm:$0xff] %vm348, 0.0
  %350 = vst [vmem:[#allocation3 + $0x50] sm:$0xff] 0.0
  %351 = vst [vmem:[#allocation3 + $0x58] sm:$0xff] 0.0
  %352 = vst [vmem:[#allocation3 + $0x60] sm:$0xff] 0.0
  %353 = vst [vmem:[#allocation3 + $0x68] sm:$0xff] 0.0
  %354 = vst [vmem:[#allocation3 + $0x70] sm:$0xff] 0.0
  %355 = vst [vmem:[#allocation3 + $0x78] sm:$0xff] 0.0
  %356 = vst [vmem:[#allocation3 + $0x80] sm:$0xff] 0.0
  %357 = vst [vmem:[#allocation3 + $0x88] sm:$0xff] 0.0
  %358 = vst [vmem:[#allocation3 + $0x90] sm:$0xff] 0.0
  %359 = vst.msk [vmem:[#allocation3 + $0x98] sm:$0xff] %vm348, 0.0
  %360 = vst [vmem:[#allocation3 + $0xa0] sm:$0xff] 0.0
  %361 = vst [vmem:[#allocation3 + $0xa8] sm:$0xff] 0.0
  %362 = vst [vmem:[#allocation3 + $0xb0] sm:$0xff] 0.0
  %363 = vst [vmem:[#allocation3 + $0xb8] sm:$0xff] 0.0
  %364 = vst [vmem:[#allocation3 + $0xc0] sm:$0xff] 0.0
  %365 = vst [vmem:[#allocation3 + $0xc8] sm:$0xff] 0.0
  %366 = vst [vmem:[#allocation3 + $0xd0] sm:$0xff] 0.0
  %367 = vst [vmem:[#allocation3 + $0xd8] sm:$0xff] 0.0
  %368 = vst [vmem:[#allocation3 + $0xe0] sm:$0xff] 0.0
  %369 = vst.msk [vmem:[#allocation3 + $0xe8] sm:$0xff] %vm348, 0.0
  %370 = vst [vmem:[#allocation3 + $0xf0] sm:$0xff] 0.0
  %371 = vst [vmem:[#allocation3 + $0xf8] sm:$0xff] 0.0
  %372 = vst [vmem:[#allocation3 + $0x100] sm:$0xff] 0.0
  %373 = vst [vmem:[#allocation3 + $0x108] sm:$0xff] 0.0
  %374 = vst [vmem:[#allocation3 + $0x110] sm:$0xff] 0.0
  %375 = vst [vmem:[#allocation3 + $0x118] sm:$0xff] 0.0
  %376 = vst [vmem:[#allocation3 + $0x120] sm:$0xff] 0.0
  %377 = vst [vmem:[#allocation3 + $0x128] sm:$0xff] 0.0
  %378 = vst [vmem:[#allocation3 + $0x130] sm:$0xff] 0.0
  %379 = vst.msk [vmem:[#allocation3 + $0x138] sm:$0xff] %vm348, 0.0
  %380 = vst [vmem:[#allocation3 + $0x140] sm:$0xff] 0.0
  %381 = vst [vmem:[#allocation3 + $0x148] sm:$0xff] 0.0
  %382 = vst [vmem:[#allocation3 + $0x150] sm:$0xff] 0.0
  %383 = vst [vmem:[#allocation3 + $0x158] sm:$0xff] 0.0
  %384 = vst [vmem:[#allocation3 + $0x160] sm:$0xff] 0.0
  %385 = vst [vmem:[#allocation3 + $0x168] sm:$0xff] 0.0
  %386 = vst [vmem:[#allocation3 + $0x170] sm:$0xff] 0.0
  %387 = vst [vmem:[#allocation3 + $0x178] sm:$0xff] 0.0
  %388 = vst [vmem:[#allocation3 + $0x180] sm:$0xff] 0.0
  %389 = vst.msk [vmem:[#allocation3 + $0x188] sm:$0xff] %vm348, 0.0
  %390 = vst [vmem:[#allocation3 + $0x190] sm:$0xff] 0.0
  %391 = vst [vmem:[#allocation3 + $0x198] sm:$0xff] 0.0
  %392 = vst [vmem:[#allocation3 + $0x1a0] sm:$0xff] 0.0
  %393 = vst [vmem:[#allocation3 + $0x1a8] sm:$0xff] 0.0
  %394 = vst [vmem:[#allocation3 + $0x1b0] sm:$0xff] 0.0
  %395 = vst [vmem:[#allocation3 + $0x1b8] sm:$0xff] 0.0
  %396 = vst [vmem:[#allocation3 + $0x1c0] sm:$0xff] 0.0
  %397 = vst [vmem:[#allocation3 + $0x1c8] sm:$0xff] 0.0
  %398 = vst [vmem:[#allocation3 + $0x1d0] sm:$0xff] 0.0
  %399 = vst.msk [vmem:[#allocation3 + $0x1d8] sm:$0xff] %vm348, 0.0
  %400 = vst [vmem:[#allocation3 + $0x1e0] sm:$0xff] 0.0
  %401 = vst [vmem:[#allocation3 + $0x1e8] sm:$0xff] 0.0
  %402 = vst [vmem:[#allocation3 + $0x1f0] sm:$0xff] 0.0
  %403 = vst [vmem:[#allocation3 + $0x1f8] sm:$0xff] 0.0
  %404 = vst [vmem:[#allocation3 + $0x200] sm:$0xff] 0.0
  %405 = vst [vmem:[#allocation3 + $0x208] sm:$0xff] 0.0
  %406 = vst [vmem:[#allocation3 + $0x210] sm:$0xff] 0.0
  %407 = vst [vmem:[#allocation3 + $0x218] sm:$0xff] 0.0
  %408 = vst [vmem:[#allocation3 + $0x220] sm:$0xff] 0.0
  %409 = vst.msk [vmem:[#allocation3 + $0x228] sm:$0xff] %vm348, 0.0
  %410 = vst [vmem:[#allocation3 + $0x230] sm:$0xff] 0.0
  %411 = vst [vmem:[#allocation3 + $0x238] sm:$0xff] 0.0
  %412 = vst [vmem:[#allocation3 + $0x240] sm:$0xff] 0.0
  %413 = vst [vmem:[#allocation3 + $0x248] sm:$0xff] 0.0
  %414 = vst [vmem:[#allocation3 + $0x250] sm:$0xff] 0.0
  %415 = vst [vmem:[#allocation3 + $0x258] sm:$0xff] 0.0
  %416 = vst [vmem:[#allocation3 + $0x260] sm:$0xff] 0.0
  %417 = vst [vmem:[#allocation3 + $0x268] sm:$0xff] 0.0
  %418 = vst [vmem:[#allocation3 + $0x270] sm:$0xff] 0.0
  %419 = vst.msk [vmem:[#allocation3 + $0x278] sm:$0xff] %vm348, 0.0
  %420 = vst [vmem:[#allocation3 + $0x280] sm:$0xff] 0.0
  %421 = vst [vmem:[#allocation3 + $0x288] sm:$0xff] 0.0
  %422 = vst [vmem:[#allocation3 + $0x290] sm:$0xff] 0.0
  %423 = vst [vmem:[#allocation3 + $0x298] sm:$0xff] 0.0
  %424 = vst [vmem:[#allocation3 + $0x2a0] sm:$0xff] 0.0
  %425 = vst [vmem:[#allocation3 + $0x2a8] sm:$0xff] 0.0
  %426 = vst [vmem:[#allocation3 + $0x2b0] sm:$0xff] 0.0
  %427 = vst [vmem:[#allocation3 + $0x2b8] sm:$0xff] 0.0
  %428 = vst [vmem:[#allocation3 + $0x2c0] sm:$0xff] 0.0
  %429 = vst.msk [vmem:[#allocation3 + $0x2c8] sm:$0xff] %vm348, 0.0
  %430 = vst [vmem:[#allocation3 + $0x2d0] sm:$0xff] 0.0
  %431 = vst [vmem:[#allocation3 + $0x2d8] sm:$0xff] 0.0
  %432 = vst [vmem:[#allocation3 + $0x2e0] sm:$0xff] 0.0
  %433 = vst [vmem:[#allocation3 + $0x2e8] sm:$0xff] 0.0
  %434 = vst [vmem:[#allocation3 + $0x2f0] sm:$0xff] 0.0
  %435 = vst [vmem:[#allocation3 + $0x2f8] sm:$0xff] 0.0
  %436 = vst [vmem:[#allocation3 + $0x300] sm:$0xff] 0.0
  %437 = vst [vmem:[#allocation3 + $0x308] sm:$0xff] 0.0
  %438 = vst [vmem:[#allocation3 + $0x310] sm:$0xff] 0.0
  %439 = vst.msk [vmem:[#allocation3 + $0x318] sm:$0xff] %vm348, 0.0
  %440 = vst [vmem:[#allocation3 + $0x320] sm:$0xff] 0.0
  %441 = vst [vmem:[#allocation3 + $0x328] sm:$0xff] 0.0
  %442 = vst [vmem:[#allocation3 + $0x330] sm:$0xff] 0.0
  %443 = vst [vmem:[#allocation3 + $0x338] sm:$0xff] 0.0
  %444 = vst [vmem:[#allocation3 + $0x340] sm:$0xff] 0.0
  %445 = vst [vmem:[#allocation3 + $0x348] sm:$0xff] 0.0
  %446 = vst [vmem:[#allocation3 + $0x350] sm:$0xff] 0.0
  %447 = vst [vmem:[#allocation3 + $0x358] sm:$0xff] 0.0
  %448 = vst [vmem:[#allocation3 + $0x360] sm:$0xff] 0.0
  %449 = vst.msk [vmem:[#allocation3 + $0x368] sm:$0xff] %vm348, 0.0
  %450 = vst [vmem:[#allocation3 + $0x370] sm:$0xff] 0.0
  %451 = vst [vmem:[#allocation3 + $0x378] sm:$0xff] 0.0
  %452 = vst [vmem:[#allocation3 + $0x380] sm:$0xff] 0.0
  %453 = vst [vmem:[#allocation3 + $0x388] sm:$0xff] 0.0
  %454 = vst [vmem:[#allocation3 + $0x390] sm:$0xff] 0.0
  %455 = vst [vmem:[#allocation3 + $0x398] sm:$0xff] 0.0
  %456 = vst [vmem:[#allocation3 + $0x3a0] sm:$0xff] 0.0
  %457 = vst [vmem:[#allocation3 + $0x3a8] sm:$0xff] 0.0
  %458 = vst [vmem:[#allocation3 + $0x3b0] sm:$0xff] 0.0
  %459 = vst.msk [vmem:[#allocation3 + $0x3b8] sm:$0xff] %vm348, 0.0
  %460 = vst [vmem:[#allocation3 + $0x3c0] sm:$0xff] 0.0
  %461 = vst [vmem:[#allocation3 + $0x3c8] sm:$0xff] 0.0
  %462 = vst [vmem:[#allocation3 + $0x3d0] sm:$0xff] 0.0
  %463 = vst [vmem:[#allocation3 + $0x3d8] sm:$0xff] 0.0
  %464 = vst [vmem:[#allocation3 + $0x3e0] sm:$0xff] 0.0
  %465 = vst [vmem:[#allocation3 + $0x3e8] sm:$0xff] 0.0
  %466 = vst [vmem:[#allocation3 + $0x3f0] sm:$0xff] 0.0
  %467 = vst [vmem:[#allocation3 + $0x3f8] sm:$0xff] 0.0
  %468 = vst [vmem:[#allocation3 + $0x400] sm:$0xff] 0.0
  %469 = vst.msk [vmem:[#allocation3 + $0x408] sm:$0xff] %vm348, 0.0
  %470 = vst [vmem:[#allocation3 + $0x410] sm:$0xff] 0.0
  %471 = vst [vmem:[#allocation3 + $0x418] sm:$0xff] 0.0
  %472 = vst [vmem:[#allocation3 + $0x420] sm:$0xff] 0.0
  %473 = vst [vmem:[#allocation3 + $0x428] sm:$0xff] 0.0
  %474 = vst [vmem:[#allocation3 + $0x430] sm:$0xff] 0.0
  %475 = vst [vmem:[#allocation3 + $0x438] sm:$0xff] 0.0
  %476 = vst [vmem:[#allocation3 + $0x440] sm:$0xff] 0.0
  %477 = vst [vmem:[#allocation3 + $0x448] sm:$0xff] 0.0
  %478 = vst [vmem:[#allocation3 + $0x450] sm:$0xff] 0.0
  %479 = vst.msk [vmem:[#allocation3 + $0x458] sm:$0xff] %vm348, 0.0
  %480 = vst [vmem:[#allocation3 + $0x460] sm:$0xff] 0.0
  %481 = vst [vmem:[#allocation3 + $0x468] sm:$0xff] 0.0
  %482 = vst [vmem:[#allocation3 + $0x470] sm:$0xff] 0.0
  %483 = vst [vmem:[#allocation3 + $0x478] sm:$0xff] 0.0
  %484 = vst [vmem:[#allocation3 + $0x480] sm:$0xff] 0.0
  %485 = vst [vmem:[#allocation3 + $0x488] sm:$0xff] 0.0
  %486 = vst [vmem:[#allocation3 + $0x490] sm:$0xff] 0.0
  %487 = vst [vmem:[#allocation3 + $0x498] sm:$0xff] 0.0
  %488 = vst [vmem:[#allocation3 + $0x4a0] sm:$0xff] 0.0
  %489 = vst.msk [vmem:[#allocation3 + $0x4a8] sm:$0xff] %vm348, 0.0
  %490 = vst [vmem:[#allocation3 + $0x4b0] sm:$0xff] 0.0
  %491 = vst [vmem:[#allocation3 + $0x4b8] sm:$0xff] 0.0
  %492 = vst [vmem:[#allocation3 + $0x4c0] sm:$0xff] 0.0
  %493 = vst [vmem:[#allocation3 + $0x4c8] sm:$0xff] 0.0
  %494 = vst [vmem:[#allocation3 + $0x4d0] sm:$0xff] 0.0
  %495 = vst [vmem:[#allocation3 + $0x4d8] sm:$0xff] 0.0
  %496 = vst [vmem:[#allocation3 + $0x4e0] sm:$0xff] 0.0
  %497 = vst [vmem:[#allocation3 + $0x4e8] sm:$0xff] 0.0
  %498 = vst [vmem:[#allocation3 + $0x4f0] sm:$0xff] 0.0
  %499 = vst.msk [vmem:[#allocation3 + $0x4f8] sm:$0xff] %vm348, 0.0
  %500 = vst [vmem:[#allocation3 + $0x500] sm:$0xff] 0.0
  %501 = vst [vmem:[#allocation3 + $0x508] sm:$0xff] 0.0
  %502 = vst [vmem:[#allocation3 + $0x510] sm:$0xff] 0.0
  %503 = vst [vmem:[#allocation3 + $0x518] sm:$0xff] 0.0
  %504 = vst [vmem:[#allocation3 + $0x520] sm:$0xff] 0.0
  %505 = vst [vmem:[#allocation3 + $0x528] sm:$0xff] 0.0
  %506 = vst [vmem:[#allocation3 + $0x530] sm:$0xff] 0.0
  %507 = vst [vmem:[#allocation3 + $0x538] sm:$0xff] 0.0
  %508 = vst [vmem:[#allocation3 + $0x540] sm:$0xff] 0.0
  %509 = vst.msk [vmem:[#allocation3 + $0x548] sm:$0xff] %vm348, 0.0
  %510 = vst [vmem:[#allocation3 + $0x550] sm:$0xff] 0.0
  %511 = vst [vmem:[#allocation3 + $0x558] sm:$0xff] 0.0
  %512 = vst [vmem:[#allocation3 + $0x560] sm:$0xff] 0.0
  %513 = vst [vmem:[#allocation3 + $0x568] sm:$0xff] 0.0
  %514 = vst [vmem:[#allocation3 + $0x570] sm:$0xff] 0.0
  %515 = vst [vmem:[#allocation3 + $0x578] sm:$0xff] 0.0
  %516 = vst [vmem:[#allocation3 + $0x580] sm:$0xff] 0.0
  %517 = vst [vmem:[#allocation3 + $0x588] sm:$0xff] 0.0
  %518 = vst [vmem:[#allocation3 + $0x590] sm:$0xff] 0.0
  %519 = vst.msk [vmem:[#allocation3 + $0x598] sm:$0xff] %vm348, 0.0
  %520 = vst [vmem:[#allocation3 + $0x5a0] sm:$0xff] 0.0
  %521 = vst [vmem:[#allocation3 + $0x5a8] sm:$0xff] 0.0
  %522 = vst [vmem:[#allocation3 + $0x5b0] sm:$0xff] 0.0
  %523 = vst [vmem:[#allocation3 + $0x5b8] sm:$0xff] 0.0
  %524 = vst [vmem:[#allocation3 + $0x5c0] sm:$0xff] 0.0
  %525 = vst [vmem:[#allocation3 + $0x5c8] sm:$0xff] 0.0
  %526 = vst [vmem:[#allocation3 + $0x5d0] sm:$0xff] 0.0
  %527 = vst [vmem:[#allocation3 + $0x5d8] sm:$0xff] 0.0
  %528 = vst [vmem:[#allocation3 + $0x5e0] sm:$0xff] 0.0
  %529 = vst.msk [vmem:[#allocation3 + $0x5e8] sm:$0xff] %vm348, 0.0
  %530 = vst [vmem:[#allocation3 + $0x5f0] sm:$0xff] 0.0
  %531 = vst [vmem:[#allocation3 + $0x5f8] sm:$0xff] 0.0
  %532 = vst [vmem:[#allocation3 + $0x600] sm:$0xff] 0.0
  %533 = vst [vmem:[#allocation3 + $0x608] sm:$0xff] 0.0
  %534 = vst [vmem:[#allocation3 + $0x610] sm:$0xff] 0.0
  %535 = vst [vmem:[#allocation3 + $0x618] sm:$0xff] 0.0
  %536 = vst [vmem:[#allocation3 + $0x620] sm:$0xff] 0.0
  %537 = vst [vmem:[#allocation3 + $0x628] sm:$0xff] 0.0
  %538 = vst [vmem:[#allocation3 + $0x630] sm:$0xff] 0.0
  %539 = vst.msk [vmem:[#allocation3 + $0x638] sm:$0xff] %vm348, 0.0
  %540 = vst [vmem:[#allocation3 + $0x640] sm:$0xff] 0.0
  %541 = vst [vmem:[#allocation3 + $0x648] sm:$0xff] 0.0
  %542 = vst [vmem:[#allocation3 + $0x650] sm:$0xff] 0.0
  %543 = vst [vmem:[#allocation3 + $0x658] sm:$0xff] 0.0
  %544 = vst [vmem:[#allocation3 + $0x660] sm:$0xff] 0.0
  %545 = vst [vmem:[#allocation3 + $0x668] sm:$0xff] 0.0
  %546 = vst [vmem:[#allocation3 + $0x670] sm:$0xff] 0.0
  %547 = vst [vmem:[#allocation3 + $0x678] sm:$0xff] 0.0
  %548 = vst [vmem:[#allocation3 + $0x680] sm:$0xff] 0.0
  %549 = vst.msk [vmem:[#allocation3 + $0x688] sm:$0xff] %vm348, 0.0
  %550 = vst [vmem:[#allocation3 + $0x690] sm:$0xff] 0.0
  %551 = vst [vmem:[#allocation3 + $0x698] sm:$0xff] 0.0
  %552 = vst [vmem:[#allocation3 + $0x6a0] sm:$0xff] 0.0
  %553 = vst [vmem:[#allocation3 + $0x6a8] sm:$0xff] 0.0
  %554 = vst [vmem:[#allocation3 + $0x6b0] sm:$0xff] 0.0
  %555 = vst [vmem:[#allocation3 + $0x6b8] sm:$0xff] 0.0
  %556 = vst [vmem:[#allocation3 + $0x6c0] sm:$0xff] 0.0
  %557 = vst [vmem:[#allocation3 + $0x6c8] sm:$0xff] 0.0
  %558 = vst [vmem:[#allocation3 + $0x6d0] sm:$0xff] 0.0
  %559 = vst.msk [vmem:[#allocation3 + $0x6d8] sm:$0xff] %vm348, 0.0
  %560 = vst [vmem:[#allocation3 + $0x6e0] sm:$0xff] 0.0
  %561 = vst [vmem:[#allocation3 + $0x6e8] sm:$0xff] 0.0
  %562 = vst [vmem:[#allocation3 + $0x6f0] sm:$0xff] 0.0
  %563 = vst [vmem:[#allocation3 + $0x6f8] sm:$0xff] 0.0
  %564 = vst [vmem:[#allocation3 + $0x700] sm:$0xff] 0.0
  %565 = vst [vmem:[#allocation3 + $0x708] sm:$0xff] 0.0
  %566 = vst [vmem:[#allocation3 + $0x710] sm:$0xff] 0.0
  %567 = vst [vmem:[#allocation3 + $0x718] sm:$0xff] 0.0
  %568 = vst [vmem:[#allocation3 + $0x720] sm:$0xff] 0.0
  %569 = vst.msk [vmem:[#allocation3 + $0x728] sm:$0xff] %vm348, 0.0
  %570 = vst [vmem:[#allocation3 + $0x730] sm:$0xff] 0.0
  %571 = vst [vmem:[#allocation3 + $0x738] sm:$0xff] 0.0
  %572 = vst [vmem:[#allocation3 + $0x740] sm:$0xff] 0.0
  %573 = vst [vmem:[#allocation3 + $0x748] sm:$0xff] 0.0
  %574 = vst [vmem:[#allocation3 + $0x750] sm:$0xff] 0.0
  %575 = vst [vmem:[#allocation3 + $0x758] sm:$0xff] 0.0
  %576 = vst [vmem:[#allocation3 + $0x760] sm:$0xff] 0.0
  %577 = vst [vmem:[#allocation3 + $0x768] sm:$0xff] 0.0
  %578 = vst [vmem:[#allocation3 + $0x770] sm:$0xff] 0.0
  %579 = vst.msk [vmem:[#allocation3 + $0x778] sm:$0xff] %vm348, 0.0
  %580 = vst [vmem:[#allocation3 + $0x780] sm:$0xff] 0.0
  %581 = vst [vmem:[#allocation3 + $0x788] sm:$0xff] 0.0
  %582 = vst [vmem:[#allocation3 + $0x790] sm:$0xff] 0.0
  %583 = vst [vmem:[#allocation3 + $0x798] sm:$0xff] 0.0
  %584 = vst [vmem:[#allocation3 + $0x7a0] sm:$0xff] 0.0
  %585 = vst [vmem:[#allocation3 + $0x7a8] sm:$0xff] 0.0
  %586 = vst [vmem:[#allocation3 + $0x7b0] sm:$0xff] 0.0
  %587 = vst [vmem:[#allocation3 + $0x7b8] sm:$0xff] 0.0
  %588 = vst [vmem:[#allocation3 + $0x7c0] sm:$0xff] 0.0
  %589 = vst.msk [vmem:[#allocation3 + $0x7c8] sm:$0xff] %vm348, 0.0
  %590 = vst [vmem:[#allocation4] sm:$0xff] 0.0
  %591 = vst [vmem:[#allocation4 + $0x8] sm:$0xff] 0.0
  %592 = vst [vmem:[#allocation4 + $0x10] sm:$0xff] 0.0
  %593 = vst [vmem:[#allocation4 + $0x18] sm:$0xff] 0.0
  %594 = vst [vmem:[#allocation4 + $0x20] sm:$0xff] 0.0
  %595 = vst [vmem:[#allocation4 + $0x28] sm:$0xff] 0.0
  %vm596 = vcmask 138240
  %597 = vst.msk [vmem:[#allocation4 + $0x30] sm:$0xff] %vm596, 0.0
  %598 = vst [vmem:[#allocation4 + $0x38] sm:$0xff] 0.0
  %599 = vst [vmem:[#allocation4 + $0x40] sm:$0xff] 0.0
  %600 = vst [vmem:[#allocation4 + $0x48] sm:$0xff] 0.0
  %601 = vst [vmem:[#allocation4 + $0x50] sm:$0xff] 0.0
  %602 = vst [vmem:[#allocation4 + $0x58] sm:$0xff] 0.0
  %603 = vst [vmem:[#allocation4 + $0x60] sm:$0xff] 0.0
  %604 = vst.msk [vmem:[#allocation4 + $0x68] sm:$0xff] %vm596, 0.0
  %605 = vst [vmem:[#allocation4 + $0x70] sm:$0xff] 0.0
  %606 = vst [vmem:[#allocation4 + $0x78] sm:$0xff] 0.0
  %607 = vst [vmem:[#allocation4 + $0x80] sm:$0xff] 0.0
  %608 = vst [vmem:[#allocation4 + $0x88] sm:$0xff] 0.0
  %609 = vst [vmem:[#allocation4 + $0x90] sm:$0xff] 0.0
  %610 = vst [vmem:[#allocation4 + $0x98] sm:$0xff] 0.0
  %611 = vst.msk [vmem:[#allocation4 + $0xa0] sm:$0xff] %vm596, 0.0
  %612 = vst [vmem:[#allocation4 + $0xa8] sm:$0xff] 0.0
  %613 = vst [vmem:[#allocation4 + $0xb0] sm:$0xff] 0.0
  %614 = vst [vmem:[#allocation4 + $0xb8] sm:$0xff] 0.0
  %615 = vst [vmem:[#allocation4 + $0xc0] sm:$0xff] 0.0
  %616 = vst [vmem:[#allocation4 + $0xc8] sm:$0xff] 0.0
  %617 = vst [vmem:[#allocation4 + $0xd0] sm:$0xff] 0.0
  %618 = vst.msk [vmem:[#allocation4 + $0xd8] sm:$0xff] %vm596, 0.0
  %619 = vst [vmem:[#allocation4 + $0xe0] sm:$0xff] 0.0
  %620 = vst [vmem:[#allocation4 + $0xe8] sm:$0xff] 0.0
  %621 = vst [vmem:[#allocation4 + $0xf0] sm:$0xff] 0.0
  %622 = vst [vmem:[#allocation4 + $0xf8] sm:$0xff] 0.0
  %623 = vst [vmem:[#allocation4 + $0x100] sm:$0xff] 0.0
  %624 = vst [vmem:[#allocation4 + $0x108] sm:$0xff] 0.0
  %625 = vst.msk [vmem:[#allocation4 + $0x110] sm:$0xff] %vm596, 0.0
  %626 = vst [vmem:[#allocation4 + $0x118] sm:$0xff] 0.0
  %627 = vst [vmem:[#allocation4 + $0x120] sm:$0xff] 0.0
  %628 = vst [vmem:[#allocation4 + $0x128] sm:$0xff] 0.0
  %629 = vst [vmem:[#allocation4 + $0x130] sm:$0xff] 0.0
  %630 = vst [vmem:[#allocation4 + $0x138] sm:$0xff] 0.0
  %631 = vst [vmem:[#allocation4 + $0x140] sm:$0xff] 0.0
  %632 = vst.msk [vmem:[#allocation4 + $0x148] sm:$0xff] %vm596, 0.0
  %633 = vst [vmem:[#allocation4 + $0x150] sm:$0xff] 0.0
  %634 = vst [vmem:[#allocation4 + $0x158] sm:$0xff] 0.0
  %635 = vst [vmem:[#allocation4 + $0x160] sm:$0xff] 0.0
  %636 = vst [vmem:[#allocation4 + $0x168] sm:$0xff] 0.0
  %637 = vst [vmem:[#allocation4 + $0x170] sm:$0xff] 0.0
  %638 = vst [vmem:[#allocation4 + $0x178] sm:$0xff] 0.0
  %639 = vst.msk [vmem:[#allocation4 + $0x180] sm:$0xff] %vm596, 0.0
  %640 = vst [vmem:[#allocation4 + $0x188] sm:$0xff] 0.0
  %641 = vst [vmem:[#allocation4 + $0x190] sm:$0xff] 0.0
  %642 = vst [vmem:[#allocation4 + $0x198] sm:$0xff] 0.0
  %643 = vst [vmem:[#allocation4 + $0x1a0] sm:$0xff] 0.0
  %644 = vst [vmem:[#allocation4 + $0x1a8] sm:$0xff] 0.0
  %645 = vst [vmem:[#allocation4 + $0x1b0] sm:$0xff] 0.0
  %646 = vst.msk [vmem:[#allocation4 + $0x1b8] sm:$0xff] %vm596, 0.0
  %647 = vst [vmem:[#allocation4 + $0x1c0] sm:$0xff] 0.0
  %648 = vst [vmem:[#allocation4 + $0x1c8] sm:$0xff] 0.0
  %649 = vst [vmem:[#allocation4 + $0x1d0] sm:$0xff] 0.0
  %650 = vst [vmem:[#allocation4 + $0x1d8] sm:$0xff] 0.0
  %651 = vst [vmem:[#allocation4 + $0x1e0] sm:$0xff] 0.0
  %652 = vst [vmem:[#allocation4 + $0x1e8] sm:$0xff] 0.0
  %653 = vst.msk [vmem:[#allocation4 + $0x1f0] sm:$0xff] %vm596, 0.0
  %654 = vst [vmem:[#allocation4 + $0x1f8] sm:$0xff] 0.0
  %655 = vst [vmem:[#allocation4 + $0x200] sm:$0xff] 0.0
  %656 = vst [vmem:[#allocation4 + $0x208] sm:$0xff] 0.0
  %657 = vst [vmem:[#allocation4 + $0x210] sm:$0xff] 0.0
  %658 = vst [vmem:[#allocation4 + $0x218] sm:$0xff] 0.0
  %659 = vst [vmem:[#allocation4 + $0x220] sm:$0xff] 0.0
  %660 = vst.msk [vmem:[#allocation4 + $0x228] sm:$0xff] %vm596, 0.0
  %661 = vst [vmem:[#allocation4 + $0x230] sm:$0xff] 0.0
  %662 = vst [vmem:[#allocation4 + $0x238] sm:$0xff] 0.0
  %663 = vst [vmem:[#allocation4 + $0x240] sm:$0xff] 0.0
  %664 = vst [vmem:[#allocation4 + $0x248] sm:$0xff] 0.0
  %665 = vst [vmem:[#allocation4 + $0x250] sm:$0xff] 0.0
  %666 = vst [vmem:[#allocation4 + $0x258] sm:$0xff] 0.0
  %667 = vst.msk [vmem:[#allocation4 + $0x260] sm:$0xff] %vm596, 0.0
  %668 = vst [vmem:[#allocation4 + $0x268] sm:$0xff] 0.0
  %669 = vst [vmem:[#allocation4 + $0x270] sm:$0xff] 0.0
  %670 = vst [vmem:[#allocation4 + $0x278] sm:$0xff] 0.0
  %671 = vst [vmem:[#allocation4 + $0x280] sm:$0xff] 0.0
  %672 = vst [vmem:[#allocation4 + $0x288] sm:$0xff] 0.0
  %673 = vst [vmem:[#allocation4 + $0x290] sm:$0xff] 0.0
  %674 = vst.msk [vmem:[#allocation4 + $0x298] sm:$0xff] %vm596, 0.0
  %675 = vst [vmem:[#allocation4 + $0x2a0] sm:$0xff] 0.0
  %676 = vst [vmem:[#allocation4 + $0x2a8] sm:$0xff] 0.0
  %677 = vst [vmem:[#allocation4 + $0x2b0] sm:$0xff] 0.0
  %678 = vst [vmem:[#allocation4 + $0x2b8] sm:$0xff] 0.0
  %679 = vst [vmem:[#allocation4 + $0x2c0] sm:$0xff] 0.0
  %680 = vst [vmem:[#allocation4 + $0x2c8] sm:$0xff] 0.0
  %681 = vst.msk [vmem:[#allocation4 + $0x2d0] sm:$0xff] %vm596, 0.0
  %682 = vst [vmem:[#allocation4 + $0x2d8] sm:$0xff] 0.0
  %683 = vst [vmem:[#allocation4 + $0x2e0] sm:$0xff] 0.0
  %684 = vst [vmem:[#allocation4 + $0x2e8] sm:$0xff] 0.0
  %685 = vst [vmem:[#allocation4 + $0x2f0] sm:$0xff] 0.0
  %686 = vst [vmem:[#allocation4 + $0x2f8] sm:$0xff] 0.0
  %687 = vst [vmem:[#allocation4 + $0x300] sm:$0xff] 0.0
  %688 = vst.msk [vmem:[#allocation4 + $0x308] sm:$0xff] %vm596, 0.0
  %689 = vst [vmem:[#allocation4 + $0x310] sm:$0xff] 0.0
  %690 = vst [vmem:[#allocation4 + $0x318] sm:$0xff] 0.0
  %691 = vst [vmem:[#allocation4 + $0x320] sm:$0xff] 0.0
  %692 = vst [vmem:[#allocation4 + $0x328] sm:$0xff] 0.0
  %693 = vst [vmem:[#allocation4 + $0x330] sm:$0xff] 0.0
  %694 = vst [vmem:[#allocation4 + $0x338] sm:$0xff] 0.0
  %695 = vst.msk [vmem:[#allocation4 + $0x340] sm:$0xff] %vm596, 0.0
  %696 = vst [vmem:[#allocation4 + $0x348] sm:$0xff] 0.0
  %697 = vst [vmem:[#allocation4 + $0x350] sm:$0xff] 0.0
  %698 = vst [vmem:[#allocation4 + $0x358] sm:$0xff] 0.0
  %699 = vst [vmem:[#allocation4 + $0x360] sm:$0xff] 0.0
  %700 = vst [vmem:[#allocation4 + $0x368] sm:$0xff] 0.0
  %701 = vst [vmem:[#allocation4 + $0x370] sm:$0xff] 0.0
  %702 = vst.msk [vmem:[#allocation4 + $0x378] sm:$0xff] %vm596, 0.0
  %703 = vst [vmem:[#allocation4 + $0x380] sm:$0xff] 0.0
  %704 = vst [vmem:[#allocation4 + $0x388] sm:$0xff] 0.0
  %705 = vst [vmem:[#allocation4 + $0x390] sm:$0xff] 0.0
  %706 = vst [vmem:[#allocation4 + $0x398] sm:$0xff] 0.0
  %707 = vst [vmem:[#allocation4 + $0x3a0] sm:$0xff] 0.0
  %708 = vst [vmem:[#allocation4 + $0x3a8] sm:$0xff] 0.0
  %709 = vst.msk [vmem:[#allocation4 + $0x3b0] sm:$0xff] %vm596, 0.0
  %710 = vst [vmem:[#allocation4 + $0x3b8] sm:$0xff] 0.0
  %711 = vst [vmem:[#allocation4 + $0x3c0] sm:$0xff] 0.0
  %712 = vst [vmem:[#allocation4 + $0x3c8] sm:$0xff] 0.0
  %713 = vst [vmem:[#allocation4 + $0x3d0] sm:$0xff] 0.0
  %714 = vst [vmem:[#allocation4 + $0x3d8] sm:$0xff] 0.0
  %715 = vst [vmem:[#allocation4 + $0x3e0] sm:$0xff] 0.0
  %716 = vst.msk [vmem:[#allocation4 + $0x3e8] sm:$0xff] %vm596, 0.0
  %717 = vst [vmem:[#allocation4 + $0x3f0] sm:$0xff] 0.0
  %718 = vst [vmem:[#allocation4 + $0x3f8] sm:$0xff] 0.0
  %719 = vst [vmem:[#allocation4 + $0x400] sm:$0xff] 0.0
  %720 = vst [vmem:[#allocation4 + $0x408] sm:$0xff] 0.0
  %721 = vst [vmem:[#allocation4 + $0x410] sm:$0xff] 0.0
  %722 = vst [vmem:[#allocation4 + $0x418] sm:$0xff] 0.0
  %723 = vst.msk [vmem:[#allocation4 + $0x420] sm:$0xff] %vm596, 0.0
  %724 = vst [vmem:[#allocation4 + $0x428] sm:$0xff] 0.0
  %725 = vst [vmem:[#allocation4 + $0x430] sm:$0xff] 0.0
  %726 = vst [vmem:[#allocation4 + $0x438] sm:$0xff] 0.0
  %727 = vst [vmem:[#allocation4 + $0x440] sm:$0xff] 0.0
  %728 = vst [vmem:[#allocation4 + $0x448] sm:$0xff] 0.0
  %729 = vst [vmem:[#allocation4 + $0x450] sm:$0xff] 0.0
  %730 = vst.msk [vmem:[#allocation4 + $0x458] sm:$0xff] %vm596, 0.0
  %731 = vst [vmem:[#allocation4 + $0x460] sm:$0xff] 0.0
  %732 = vst [vmem:[#allocation4 + $0x468] sm:$0xff] 0.0
  %733 = vst [vmem:[#allocation4 + $0x470] sm:$0xff] 0.0
  %734 = vst [vmem:[#allocation4 + $0x478] sm:$0xff] 0.0
  %735 = vst [vmem:[#allocation4 + $0x480] sm:$0xff] 0.0
  %736 = vst [vmem:[#allocation4 + $0x488] sm:$0xff] 0.0
  %737 = vst.msk [vmem:[#allocation4 + $0x490] sm:$0xff] %vm596, 0.0
  %738 = vst [vmem:[#allocation4 + $0x498] sm:$0xff] 0.0
  %739 = vst [vmem:[#allocation4 + $0x4a0] sm:$0xff] 0.0
  %740 = vst [vmem:[#allocation4 + $0x4a8] sm:$0xff] 0.0
  %741 = vst [vmem:[#allocation4 + $0x4b0] sm:$0xff] 0.0
  %742 = vst [vmem:[#allocation4 + $0x4b8] sm:$0xff] 0.0
  %743 = vst [vmem:[#allocation4 + $0x4c0] sm:$0xff] 0.0
  %744 = vst.msk [vmem:[#allocation4 + $0x4c8] sm:$0xff] %vm596, 0.0
  %745 = vst [vmem:[#allocation4 + $0x4d0] sm:$0xff] 0.0
  %746 = vst [vmem:[#allocation4 + $0x4d8] sm:$0xff] 0.0
  %747 = vst [vmem:[#allocation4 + $0x4e0] sm:$0xff] 0.0
  %748 = vst [vmem:[#allocation4 + $0x4e8] sm:$0xff] 0.0
  %749 = vst [vmem:[#allocation4 + $0x4f0] sm:$0xff] 0.0
  %750 = vst [vmem:[#allocation4 + $0x4f8] sm:$0xff] 0.0
  %751 = vst.msk [vmem:[#allocation4 + $0x500] sm:$0xff] %vm596, 0.0
  %752 = vst [vmem:[#allocation4 + $0x508] sm:$0xff] 0.0
  %753 = vst [vmem:[#allocation4 + $0x510] sm:$0xff] 0.0
  %754 = vst [vmem:[#allocation4 + $0x518] sm:$0xff] 0.0
  %755 = vst [vmem:[#allocation4 + $0x520] sm:$0xff] 0.0
  %756 = vst [vmem:[#allocation4 + $0x528] sm:$0xff] 0.0
  %757 = vst [vmem:[#allocation4 + $0x530] sm:$0xff] 0.0
  %758 = vst.msk [vmem:[#allocation4 + $0x538] sm:$0xff] %vm596, 0.0
  %759 = vst [vmem:[#allocation4 + $0x540] sm:$0xff] 0.0
  %760 = vst [vmem:[#allocation4 + $0x548] sm:$0xff] 0.0
  %761 = vst [vmem:[#allocation4 + $0x550] sm:$0xff] 0.0
  %762 = vst [vmem:[#allocation4 + $0x558] sm:$0xff] 0.0
  %763 = vst [vmem:[#allocation4 + $0x560] sm:$0xff] 0.0
  %764 = vst [vmem:[#allocation4 + $0x568] sm:$0xff] 0.0
  %765 = vst.msk [vmem:[#allocation4 + $0x570] sm:$0xff] %vm596, 0.0
  %766 = vst [vmem:[#allocation4 + $0x578] sm:$0xff] 0.0
  %767 = vst [vmem:[#allocation4 + $0x580] sm:$0xff] 0.0
  %768 = vst [vmem:[#allocation4 + $0x588] sm:$0xff] 0.0
  %769 = vst [vmem:[#allocation4 + $0x590] sm:$0xff] 0.0
  %770 = vst [vmem:[#allocation4 + $0x598] sm:$0xff] 0.0
  %771 = vst [vmem:[#allocation4 + $0x5a0] sm:$0xff] 0.0
  %772 = vst.msk [vmem:[#allocation4 + $0x5a8] sm:$0xff] %vm596, 0.0
  %773 = vst [vmem:[#allocation4 + $0x5b0] sm:$0xff] 0.0
  %774 = vst [vmem:[#allocation4 + $0x5b8] sm:$0xff] 0.0
  %775 = vst [vmem:[#allocation4 + $0x5c0] sm:$0xff] 0.0
  %776 = vst [vmem:[#allocation4 + $0x5c8] sm:$0xff] 0.0
  %777 = vst [vmem:[#allocation4 + $0x5d0] sm:$0xff] 0.0
  %778 = vst [vmem:[#allocation4 + $0x5d8] sm:$0xff] 0.0
  %779 = vst.msk [vmem:[#allocation4 + $0x5e0] sm:$0xff] %vm596, 0.0
  %780 = vst [vmem:[#allocation4 + $0x5e8] sm:$0xff] 0.0
  %781 = vst [vmem:[#allocation4 + $0x5f0] sm:$0xff] 0.0
  %782 = vst [vmem:[#allocation4 + $0x5f8] sm:$0xff] 0.0
  %783 = vst [vmem:[#allocation4 + $0x600] sm:$0xff] 0.0
  %784 = vst [vmem:[#allocation4 + $0x608] sm:$0xff] 0.0
  %785 = vst [vmem:[#allocation4 + $0x610] sm:$0xff] 0.0
  %786 = vst.msk [vmem:[#allocation4 + $0x618] sm:$0xff] %vm596, 0.0
  %787 = vst [vmem:[#allocation4 + $0x620] sm:$0xff] 0.0
  %788 = vst [vmem:[#allocation4 + $0x628] sm:$0xff] 0.0
  %789 = vst [vmem:[#allocation4 + $0x630] sm:$0xff] 0.0
  %790 = vst [vmem:[#allocation4 + $0x638] sm:$0xff] 0.0
  %791 = vst [vmem:[#allocation4 + $0x640] sm:$0xff] 0.0
  %792 = vst [vmem:[#allocation4 + $0x648] sm:$0xff] 0.0
  %793 = vst.msk [vmem:[#allocation4 + $0x650] sm:$0xff] %vm596, 0.0
  %794 = vst [vmem:[#allocation4 + $0x658] sm:$0xff] 0.0
  %795 = vst [vmem:[#allocation4 + $0x660] sm:$0xff] 0.0
  %796 = vst [vmem:[#allocation4 + $0x668] sm:$0xff] 0.0
  %797 = vst [vmem:[#allocation4 + $0x670] sm:$0xff] 0.0
  %798 = vst [vmem:[#allocation4 + $0x678] sm:$0xff] 0.0
  %799 = vst [vmem:[#allocation4 + $0x680] sm:$0xff] 0.0
  %800 = vst.msk [vmem:[#allocation4 + $0x688] sm:$0xff] %vm596, 0.0
  %801 = vst [vmem:[#allocation4 + $0x690] sm:$0xff] 0.0
  %802 = vst [vmem:[#allocation4 + $0x698] sm:$0xff] 0.0
  %803 = vst [vmem:[#allocation4 + $0x6a0] sm:$0xff] 0.0
  %804 = vst [vmem:[#allocation4 + $0x6a8] sm:$0xff] 0.0
  %805 = vst [vmem:[#allocation4 + $0x6b0] sm:$0xff] 0.0
  %806 = vst [vmem:[#allocation4 + $0x6b8] sm:$0xff] 0.0
  %807 = vst.msk [vmem:[#allocation4 + $0x6c0] sm:$0xff] %vm596, 0.0
  %808 = vst [vmem:[#allocation4 + $0x6c8] sm:$0xff] 0.0
  %809 = vst [vmem:[#allocation4 + $0x6d0] sm:$0xff] 0.0
  %810 = vst [vmem:[#allocation4 + $0x6d8] sm:$0xff] 0.0
  %811 = vst [vmem:[#allocation4 + $0x6e0] sm:$0xff] 0.0
  %812 = vst [vmem:[#allocation4 + $0x6e8] sm:$0xff] 0.0
  %813 = vst [vmem:[#allocation4 + $0x6f0] sm:$0xff] 0.0
  %814 = vst.msk [vmem:[#allocation4 + $0x6f8] sm:$0xff] %vm596, 0.0
  %v815 = vld [vmem:[%s0] sm:$0xff]
  %v816 = vld [vmem:[%s0 + $0x8] sm:$0x1f]
  %817 = vst [vmem:[#allocation2] ss:$8 sm:$0xf] %v815
  %818 = vst [vmem:[#allocation2] ss:$8 sm:$0xf0] %v815
  %v819 = vlaneseq
  %vm820 = vcmp.ge.s32.totalorder %v819, 0
  %vm821 = vcmp.lt.s32.totalorder %v819, 428
  %vm822 = vmand %vm820, %vm821
  %s823 = scalar_lea.vmem [#allocation2], 64
  %824 = vst.msk [vmem:[%s823] ss:$8 sm:$0xf] %vm822, %v816
  %825 = vst.msk [vmem:[%s823] ss:$8 sm:$0x0] %vm822, %v816
  %828 = vrot.lane.b32.xlu0 %v815, 127
  %v829 = vpop.permute.xlu0 %828
  %830 = vrot.lane.b32.xlu0 %v816, 127
  %v831 = vpop.permute.xlu0 %830
  %v832 = vrot.slane %v829, 1
  %v833 = vrot.slane %v831, 1
  %vm834 = vcmask 1046528
  %v835 = vsel %vm834, %v832, %v833
  %vm836 = vcmask 1039360
  %v837 = vsel %vm836, %v829, %v835
  %v838 = vsel %vm836, %v831, %v833
  %s841 = scalar_lea.vmem [#allocation2], 96
  %842 = vst [vmem:[%s841] ss:$8 sm:$0xf] %v837
  %843 = vst [vmem:[%s841] ss:$8 sm:$0xf0] %v837
  %s844 = scalar_lea.vmem [#allocation2], 160
  %845 = vst.msk [vmem:[%s844] ss:$8 sm:$0xf] %vm822, %v838
  %846 = vst.msk [vmem:[%s844] ss:$8 sm:$0x0] %vm822, %v838
  %847 = vrot.lane.b32.xlu0 %v815, 126
  %v848 = vpop.permute.xlu0 %847
  %849 = vrot.lane.b32.xlu0 %v816, 126
  %v850 = vpop.permute.xlu0 %849
  %v851 = vrot.slane %v848, 1
  %v852 = vrot.slane %v850, 1
  %v853 = vsel %vm834, %v851, %v852
  %vm854 = vcmask 1031168
  %v855 = vsel %vm854, %v848, %v853
  %v856 = vsel %vm854, %v850, %v852
  %s859 = scalar_lea.vmem [#allocation2], 192
  %860 = vst [vmem:[%s859] ss:$8 sm:$0xf] %v855
  %861 = vst [vmem:[%s859] ss:$8 sm:$0xf0] %v855
  %s862 = scalar_lea.vmem [#allocation2], 256
  %863 = vst.msk [vmem:[%s862] ss:$8 sm:$0xf] %vm822, %v856
  %864 = vst.msk [vmem:[%s862] ss:$8 sm:$0x0] %vm822, %v856
  %865 = vrot.lane.b32.xlu0 %v815, 125
  %v866 = vpop.permute.xlu0 %865
  %867 = vrot.lane.b32.xlu0 %v816, 125
  %v868 = vpop.permute.xlu0 %867
  %v869 = vrot.slane %v866, 1
  %v870 = vrot.slane %v868, 1
  %v871 = vsel %vm834, %v869, %v870
  %vm872 = vcmask 1022976
  %v873 = vsel %vm872, %v866, %v871
  %v874 = vsel %vm872, %v868, %v870
  %s877 = scalar_lea.vmem [#allocation2], 288
  %878 = vst [vmem:[%s877] ss:$8 sm:$0xf] %v873
  %879 = vst [vmem:[%s877] ss:$8 sm:$0xf0] %v873
  %s880 = scalar_lea.vmem [#allocation2], 352
  %881 = vst.msk [vmem:[%s880] ss:$8 sm:$0xf] %vm822, %v874
  %882 = vst.msk [vmem:[%s880] ss:$8 sm:$0x0] %vm822, %v874
  %883 = vrot.lane.b32.xlu0 %v815, 124
  %v884 = vpop.permute.xlu0 %883
  %885 = vrot.lane.b32.xlu0 %v816, 124
  %v886 = vpop.permute.xlu0 %885
  %v887 = vrot.slane %v884, 1
  %v888 = vrot.slane %v886, 1
  %v889 = vsel %vm834, %v887, %v888
  %vm890 = vcmask 1014784
  %v891 = vsel %vm890, %v884, %v889
  %v892 = vsel %vm890, %v886, %v888
  %s895 = scalar_lea.vmem [#allocation2], 384
  %896 = vst [vmem:[%s895] ss:$8 sm:$0xf] %v891
  %897 = vst [vmem:[%s895] ss:$8 sm:$0xf0] %v891
  %s898 = scalar_lea.vmem [#allocation2], 448
  %899 = vst.msk [vmem:[%s898] ss:$8 sm:$0xf] %vm822, %v892
  %900 = vst.msk [vmem:[%s898] ss:$8 sm:$0x0] %vm822, %v892
  %901 = vrot.lane.b32.xlu0 %v815, 100
  %v902 = vpop.permute.xlu0 %901
  %903 = vrot.lane.b32.xlu0 %v816, 100
  %v904 = vpop.permute.xlu0 %903
  %v905 = vrot.slane %v902, 1
  %v906 = vrot.slane %v904, 1
  %v907 = vsel %vm834, %v905, %v906
  %vm908 = vcmask 818176
  %v909 = vsel %vm908, %v902, %v907
  %v910 = vsel %vm908, %v904, %v906
  %s913 = scalar_lea.vmem [#allocation2], 480
  %914 = vst [vmem:[%s913] ss:$8 sm:$0xf] %v909
  %915 = vst [vmem:[%s913] ss:$8 sm:$0xf0] %v909
  %s916 = scalar_lea.vmem [#allocation2], 544
  %917 = vst.msk [vmem:[%s916] ss:$8 sm:$0xf] %vm822, %v910
  %918 = vst.msk [vmem:[%s916] ss:$8 sm:$0x0] %vm822, %v910
  %919 = vrot.lane.b32.xlu0 %v815, 99
  %v920 = vpop.permute.xlu0 %919
  %921 = vrot.lane.b32.xlu0 %v816, 99
  %v922 = vpop.permute.xlu0 %921
  %v923 = vrot.slane %v920, 1
  %v924 = vrot.slane %v922, 1
  %v925 = vsel %vm834, %v923, %v924
  %vm926 = vcmask 809984
  %v927 = vsel %vm926, %v920, %v925
  %v928 = vsel %vm926, %v922, %v924
  %s931 = scalar_lea.vmem [#allocation2], 576
  %932 = vst [vmem:[%s931] ss:$8 sm:$0xf] %v927
  %933 = vst [vmem:[%s931] ss:$8 sm:$0xf0] %v927
  %s934 = scalar_lea.vmem [#allocation2], 640
  %935 = vst.msk [vmem:[%s934] ss:$8 sm:$0xf] %vm822, %v928
  %936 = vst.msk [vmem:[%s934] ss:$8 sm:$0x0] %vm822, %v928
  %937 = vrot.lane.b32.xlu0 %v815, 98
  %v938 = vpop.permute.xlu0 %937
  %939 = vrot.lane.b32.xlu0 %v816, 98
  %v940 = vpop.permute.xlu0 %939
  %v941 = vrot.slane %v938, 1
  %v942 = vrot.slane %v940, 1
  %v943 = vsel %vm834, %v941, %v942
  %vm944 = vcmask 801792
  %v945 = vsel %vm944, %v938, %v943
  %v946 = vsel %vm944, %v940, %v942
  %s949 = scalar_lea.vmem [#allocation2], 672
  %950 = vst [vmem:[%s949] ss:$8 sm:$0xf] %v945
  %951 = vst [vmem:[%s949] ss:$8 sm:$0xf0] %v945
  %s952 = scalar_lea.vmem [#allocation2], 736
  %953 = vst.msk [vmem:[%s952] ss:$8 sm:$0xf] %vm822, %v946
  %954 = vst.msk [vmem:[%s952] ss:$8 sm:$0x0] %vm822, %v946
  %955 = vrot.lane.b32.xlu0 %v815, 97
  %v956 = vpop.permute.xlu0 %955
  %957 = vrot.lane.b32.xlu0 %v816, 97
  %v958 = vpop.permute.xlu0 %957
  %v959 = vrot.slane %v956, 1
  %v960 = vrot.slane %v958, 1
  %v961 = vsel %vm834, %v959, %v960
  %vm962 = vcmask 793600
  %v963 = vsel %vm962, %v956, %v961
  %v964 = vsel %vm962, %v958, %v960
  %s967 = scalar_lea.vmem [#allocation2], 768
  %968 = vst [vmem:[%s967] ss:$8 sm:$0xf] %v963
  %969 = vst [vmem:[%s967] ss:$8 sm:$0xf0] %v963
  %s970 = scalar_lea.vmem [#allocation2], 832
  %971 = vst.msk [vmem:[%s970] ss:$8 sm:$0xf] %vm822, %v964
  %972 = vst.msk [vmem:[%s970] ss:$8 sm:$0x0] %vm822, %v964
  %973 = vrot.lane.b32.xlu0 %v815, 96
  %v974 = vpop.permute.xlu0 %973
  %975 = vrot.lane.b32.xlu0 %v816, 96
  %v976 = vpop.permute.xlu0 %975
  %v977 = vrot.slane %v974, 1
  %v978 = vrot.slane %v976, 1
  %v979 = vsel %vm834, %v977, %v978
  %vm980 = vcmask 785408
  %v981 = vsel %vm980, %v974, %v979
  %v982 = vsel %vm980, %v976, %v978
  %s985 = scalar_lea.vmem [#allocation2], 864
  %986 = vst [vmem:[%s985] ss:$8 sm:$0xf] %v981
  %987 = vst [vmem:[%s985] ss:$8 sm:$0xf0] %v981
  %s988 = scalar_lea.vmem [#allocation2], 928
  %989 = vst.msk [vmem:[%s988] ss:$8 sm:$0xf] %vm822, %v982
  %990 = vst.msk [vmem:[%s988] ss:$8 sm:$0x0] %vm822, %v982
  %991 = vrot.lane.b32.xlu0 %v815, 72
  %v992 = vpop.permute.xlu0 %991
  %993 = vrot.lane.b32.xlu0 %v816, 72
  %v994 = vpop.permute.xlu0 %993
  %v995 = vrot.slane %v992, 1
  %v996 = vrot.slane %v994, 1
  %v997 = vsel %vm834, %v995, %v996
  %vm998 = vcmask 588800
  %v999 = vsel %vm998, %v992, %v997
  %v1000 = vsel %vm998, %v994, %v996
  %s1003 = scalar_lea.vmem [#allocation2], 960
  %1004 = vst [vmem:[%s1003] ss:$8 sm:$0xf] %v999
  %1005 = vst [vmem:[%s1003] ss:$8 sm:$0xf0] %v999
  %s1006 = scalar_lea.vmem [#allocation2], 1024
  %1007 = vst.msk [vmem:[%s1006] ss:$8 sm:$0xf] %vm822, %v1000
  %1008 = vst.msk [vmem:[%s1006] ss:$8 sm:$0x0] %vm822, %v1000
  %1009 = vrot.lane.b32.xlu0 %v815, 71
  %v1010 = vpop.permute.xlu0 %1009
  %1011 = vrot.lane.b32.xlu0 %v816, 71
  %v1012 = vpop.permute.xlu0 %1011
  %v1013 = vrot.slane %v1010, 1
  %v1014 = vrot.slane %v1012, 1
  %v1015 = vsel %vm834, %v1013, %v1014
  %vm1016 = vcmask 580608
  %v1017 = vsel %vm1016, %v1010, %v1015
  %v1018 = vsel %vm1016, %v1012, %v1014
  %s1021 = scalar_lea.vmem [#allocation2], 1056
  %1022 = vst [vmem:[%s1021] ss:$8 sm:$0xf] %v1017
  %1023 = vst [vmem:[%s1021] ss:$8 sm:$0xf0] %v1017
  %s1024 = scalar_lea.vmem [#allocation2], 1120
  %1025 = vst.msk [vmem:[%s1024] ss:$8 sm:$0xf] %vm822, %v1018
  %1026 = vst.msk [vmem:[%s1024] ss:$8 sm:$0x0] %vm822, %v1018
  %1027 = vrot.lane.b32.xlu0 %v815, 70
  %v1028 = vpop.permute.xlu0 %1027
  %1029 = vrot.lane.b32.xlu0 %v816, 70
  %v1030 = vpop.permute.xlu0 %1029
  %v1031 = vrot.slane %v1028, 1
  %v1032 = vrot.slane %v1030, 1
  %v1033 = vsel %vm834, %v1031, %v1032
  %vm1034 = vcmask 572416
  %v1035 = vsel %vm1034, %v1028, %v1033
  %v1036 = vsel %vm1034, %v1030, %v1032
  %s1039 = scalar_lea.vmem [#allocation2], 1152
  %1040 = vst [vmem:[%s1039] ss:$8 sm:$0xf] %v1035
  %1041 = vst [vmem:[%s1039] ss:$8 sm:$0xf0] %v1035
  %s1042 = scalar_lea.vmem [#allocation2], 1216
  %1043 = vst.msk [vmem:[%s1042] ss:$8 sm:$0xf] %vm822, %v1036
  %1044 = vst.msk [vmem:[%s1042] ss:$8 sm:$0x0] %vm822, %v1036
  %1045 = vrot.lane.b32.xlu0 %v815, 69
  %v1046 = vpop.permute.xlu0 %1045
  %1047 = vrot.lane.b32.xlu0 %v816, 69
  %v1048 = vpop.permute.xlu0 %1047
  %v1049 = vrot.slane %v1046, 1
  %v1050 = vrot.slane %v1048, 1
  %v1051 = vsel %vm834, %v1049, %v1050
  %vm1052 = vcmask 564224
  %v1053 = vsel %vm1052, %v1046, %v1051
  %v1054 = vsel %vm1052, %v1048, %v1050
  %s1057 = scalar_lea.vmem [#allocation2], 1248
  %1058 = vst [vmem:[%s1057] ss:$8 sm:$0xf] %v1053
  %1059 = vst [vmem:[%s1057] ss:$8 sm:$0xf0] %v1053
  %s1060 = scalar_lea.vmem [#allocation2], 1312
  %1061 = vst.msk [vmem:[%s1060] ss:$8 sm:$0xf] %vm822, %v1054
  %1062 = vst.msk [vmem:[%s1060] ss:$8 sm:$0x0] %vm822, %v1054
  %1063 = vrot.lane.b32.xlu0 %v815, 68
  %v1064 = vpop.permute.xlu0 %1063
  %1065 = vrot.lane.b32.xlu0 %v816, 68
  %v1066 = vpop.permute.xlu0 %1065
  %v1067 = vrot.slane %v1064, 1
  %v1068 = vrot.slane %v1066, 1
  %v1069 = vsel %vm834, %v1067, %v1068
  %vm1070 = vcmask 556032
  %v1071 = vsel %vm1070, %v1064, %v1069
  %v1072 = vsel %vm1070, %v1066, %v1068
  %s1075 = scalar_lea.vmem [#allocation2], 1344
  %1076 = vst [vmem:[%s1075] ss:$8 sm:$0xf] %v1071
  %1077 = vst [vmem:[%s1075] ss:$8 sm:$0xf0] %v1071
  %s1078 = scalar_lea.vmem [#allocation2], 1408
  %1079 = vst.msk [vmem:[%s1078] ss:$8 sm:$0xf] %vm822, %v1072
  %1080 = vst.msk [vmem:[%s1078] ss:$8 sm:$0x0] %vm822, %v1072
  %1081 = vrot.lane.b32.xlu0 %v815, 44
  %v1082 = vpop.permute.xlu0 %1081
  %1083 = vrot.lane.b32.xlu0 %v816, 44
  %v1084 = vpop.permute.xlu0 %1083
  %v1085 = vrot.slane %v1082, 1
  %v1086 = vrot.slane %v1084, 1
  %v1087 = vsel %vm834, %v1085, %v1086
  %v1088 = vsel %vm49, %v1082, %v1087
  %v1089 = vsel %vm49, %v1084, %v1086
  %s1092 = scalar_lea.vmem [#allocation2], 1440
  %1093 = vst [vmem:[%s1092] ss:$8 sm:$0xf] %v1088
  %1094 = vst [vmem:[%s1092] ss:$8 sm:$0xf0] %v1088
  %s1095 = scalar_lea.vmem [#allocation2], 1504
  %1096 = vst.msk [vmem:[%s1095] ss:$8 sm:$0xf] %vm822, %v1089
  %1097 = vst.msk [vmem:[%s1095] ss:$8 sm:$0x0] %vm822, %v1089
  %1098 = vrot.lane.b32.xlu0 %v815, 43
  %v1099 = vpop.permute.xlu0 %1098
  %1100 = vrot.lane.b32.xlu0 %v816, 43
  %v1101 = vpop.permute.xlu0 %1100
  %v1102 = vrot.slane %v1099, 1
  %v1103 = vrot.slane %v1101, 1
  %v1104 = vsel %vm834, %v1102, %v1103
  %vm1105 = vcmask 351232
  %v1106 = vsel %vm1105, %v1099, %v1104
  %v1107 = vsel %vm1105, %v1101, %v1103
  %s1110 = scalar_lea.vmem [#allocation2], 1536
  %1111 = vst [vmem:[%s1110] ss:$8 sm:$0xf] %v1106
  %1112 = vst [vmem:[%s1110] ss:$8 sm:$0xf0] %v1106
  %s1113 = scalar_lea.vmem [#allocation2], 1600
  %1114 = vst.msk [vmem:[%s1113] ss:$8 sm:$0xf] %vm822, %v1107
  %1115 = vst.msk [vmem:[%s1113] ss:$8 sm:$0x0] %vm822, %v1107
  %1116 = vrot.lane.b32.xlu0 %v815, 42
  %v1117 = vpop.permute.xlu0 %1116
  %1118 = vrot.lane.b32.xlu0 %v816, 42
  %v1119 = vpop.permute.xlu0 %1118
  %v1120 = vrot.slane %v1117, 1
  %v1121 = vrot.slane %v1119, 1
  %v1122 = vsel %vm834, %v1120, %v1121
  %vm1123 = vcmask 343040
  %v1124 = vsel %vm1123, %v1117, %v1122
  %v1125 = vsel %vm1123, %v1119, %v1121
  %s1128 = scalar_lea.vmem [#allocation2], 1632
  %1129 = vst [vmem:[%s1128] ss:$8 sm:$0xf] %v1124
  %1130 = vst [vmem:[%s1128] ss:$8 sm:$0xf0] %v1124
  %s1131 = scalar_lea.vmem [#allocation2], 1696
  %1132 = vst.msk [vmem:[%s1131] ss:$8 sm:$0xf] %vm822, %v1125
  %1133 = vst.msk [vmem:[%s1131] ss:$8 sm:$0x0] %vm822, %v1125
  %1134 = vrot.lane.b32.xlu0 %v815, 41
  %v1135 = vpop.permute.xlu0 %1134
  %1136 = vrot.lane.b32.xlu0 %v816, 41
  %v1137 = vpop.permute.xlu0 %1136
  %v1138 = vrot.slane %v1135, 1
  %v1139 = vrot.slane %v1137, 1
  %v1140 = vsel %vm834, %v1138, %v1139
  %vm1141 = vcmask 334848
  %v1142 = vsel %vm1141, %v1135, %v1140
  %v1143 = vsel %vm1141, %v1137, %v1139
  %s1146 = scalar_lea.vmem [#allocation2], 1728
  %1147 = vst [vmem:[%s1146] ss:$8 sm:$0xf] %v1142
  %1148 = vst [vmem:[%s1146] ss:$8 sm:$0xf0] %v1142
  %s1149 = scalar_lea.vmem [#allocation2], 1792
  %1150 = vst.msk [vmem:[%s1149] ss:$8 sm:$0xf] %vm822, %v1143
  %1151 = vst.msk [vmem:[%s1149] ss:$8 sm:$0x0] %vm822, %v1143
  %1152 = vrot.lane.b32.xlu0 %v815, 40
  %v1153 = vpop.permute.xlu0 %1152
  %1154 = vrot.lane.b32.xlu0 %v816, 40
  %v1155 = vpop.permute.xlu0 %1154
  %v1156 = vrot.slane %v1153, 1
  %v1157 = vrot.slane %v1155, 1
  %v1158 = vsel %vm834, %v1156, %v1157
  %vm1159 = vcmask 326656
  %v1160 = vsel %vm1159, %v1153, %v1158
  %v1161 = vsel %vm1159, %v1155, %v1157
  %s1164 = scalar_lea.vmem [#allocation2], 1824
  %1165 = vst [vmem:[%s1164] ss:$8 sm:$0xf] %v1160
  %1166 = vst [vmem:[%s1164] ss:$8 sm:$0xf0] %v1160
  %s1167 = scalar_lea.vmem [#allocation2], 1888
  %1168 = vst.msk [vmem:[%s1167] ss:$8 sm:$0xf] %vm822, %v1161
  %1169 = vst.msk [vmem:[%s1167] ss:$8 sm:$0x0] %vm822, %v1161
  %1170 = vrot.lane.b32.xlu0 %v815, 16
  %v1171 = vpop.permute.xlu0 %1170
  %1172 = vrot.lane.b32.xlu0 %v816, 16
  %v1173 = vpop.permute.xlu0 %1172
  %v1174 = vrot.slane %v1171, 1
  %v1175 = vrot.slane %v1173, 1
  %v1176 = vsel %vm834, %v1174, %v1175
  %vm1177 = vcmask 130048
  %v1178 = vsel %vm1177, %v1171, %v1176
  %v1179 = vsel %vm1177, %v1173, %v1175
  %s1182 = scalar_lea.vmem [#allocation2], 1920
  %1183 = vst [vmem:[%s1182] ss:$8 sm:$0xf] %v1178
  %1184 = vst [vmem:[%s1182] ss:$8 sm:$0xf0] %v1178
  %s1185 = scalar_lea.vmem [#allocation2], 1984
  %1186 = vst.msk [vmem:[%s1185] ss:$8 sm:$0xf] %vm822, %v1179
  %1187 = vst.msk [vmem:[%s1185] ss:$8 sm:$0x0] %vm822, %v1179
  %1188 = vrot.lane.b32.xlu0 %v815, 15
  %v1189 = vpop.permute.xlu0 %1188
  %1190 = vrot.lane.b32.xlu0 %v816, 15
  %v1191 = vpop.permute.xlu0 %1190
  %v1192 = vrot.slane %v1189, 1
  %v1193 = vrot.slane %v1191, 1
  %v1194 = vsel %vm834, %v1192, %v1193
  %vm1195 = vcmask 121856
  %v1196 = vsel %vm1195, %v1189, %v1194
  %v1197 = vsel %vm1195, %v1191, %v1193
  %s1200 = scalar_lea.vmem [#allocation2], 2016
  %1201 = vst [vmem:[%s1200] ss:$8 sm:$0xf] %v1196
  %1202 = vst [vmem:[%s1200] ss:$8 sm:$0xf0] %v1196
  %s1203 = scalar_lea.vmem [#allocation2], 2080
  %1204 = vst.msk [vmem:[%s1203] ss:$8 sm:$0xf] %vm822, %v1197
  %1205 = vst.msk [vmem:[%s1203] ss:$8 sm:$0x0] %vm822, %v1197
  %1206 = vrot.lane.b32.xlu0 %v815, 14
  %v1207 = vpop.permute.xlu0 %1206
  %1208 = vrot.lane.b32.xlu0 %v816, 14
  %v1209 = vpop.permute.xlu0 %1208
  %v1210 = vrot.slane %v1207, 1
  %v1211 = vrot.slane %v1209, 1
  %v1212 = vsel %vm834, %v1210, %v1211
  %vm1213 = vcmask 113664
  %v1214 = vsel %vm1213, %v1207, %v1212
  %v1215 = vsel %vm1213, %v1209, %v1211
  %s1218 = scalar_lea.vmem [#allocation2], 2112
  %1219 = vst [vmem:[%s1218] ss:$8 sm:$0xf] %v1214
  %1220 = vst [vmem:[%s1218] ss:$8 sm:$0xf0] %v1214
  %s1221 = scalar_lea.vmem [#allocation2], 2176
  %1222 = vst.msk [vmem:[%s1221] ss:$8 sm:$0xf] %vm822, %v1215
  %1223 = vst.msk [vmem:[%s1221] ss:$8 sm:$0x0] %vm822, %v1215
  %1224 = vrot.lane.b32.xlu0 %v815, 13
  %v1225 = vpop.permute.xlu0 %1224
  %1226 = vrot.lane.b32.xlu0 %v816, 13
  %v1227 = vpop.permute.xlu0 %1226
  %v1228 = vrot.slane %v1225, 1
  %v1229 = vrot.slane %v1227, 1
  %v1230 = vsel %vm834, %v1228, %v1229
  %vm1231 = vcmask 105472
  %v1232 = vsel %vm1231, %v1225, %v1230
  %v1233 = vsel %vm1231, %v1227, %v1229
  %s1236 = scalar_lea.vmem [#allocation2], 2208
  %1237 = vst [vmem:[%s1236] ss:$8 sm:$0xf] %v1232
  %1238 = vst [vmem:[%s1236] ss:$8 sm:$0xf0] %v1232
  %s1239 = scalar_lea.vmem [#allocation2], 2272
  %1240 = vst.msk [vmem:[%s1239] ss:$8 sm:$0xf] %vm822, %v1233
  %1241 = vst.msk [vmem:[%s1239] ss:$8 sm:$0x0] %vm822, %v1233
  %1242 = vrot.lane.b32.xlu0 %v815, 12
  %v1243 = vpop.permute.xlu0 %1242
  %1244 = vrot.lane.b32.xlu0 %v816, 12
  %v1245 = vpop.permute.xlu0 %1244
  %v1246 = vrot.slane %v1243, 1
  %v1247 = vrot.slane %v1245, 1
  %v1248 = vsel %vm834, %v1246, %v1247
  %vm1249 = vcmask 97280
  %v1250 = vsel %vm1249, %v1243, %v1248
  %v1251 = vsel %vm1249, %v1245, %v1247
  %s1254 = scalar_lea.vmem [#allocation2], 2304
  %1255 = vst [vmem:[%s1254] ss:$8 sm:$0xf] %v1250
  %1256 = vst [vmem:[%s1254] ss:$8 sm:$0xf0] %v1250
  %s1257 = scalar_lea.vmem [#allocation2], 2368
  %1258 = vst.msk [vmem:[%s1257] ss:$8 sm:$0xf] %vm822, %v1251
  %1259 = vst.msk [vmem:[%s1257] ss:$8 sm:$0x0] %vm822, %v1251
  %v1260 = vld [vmem:[%s1] sm:$0x3f]
  %v1261 = vld [vmem:[%s1 + $0x8] sm:$0x3f]
  %v1262 = vld [vmem:[#allocation2] sm:$0xff]
  %v1263 = vld [vmem:[#allocation2 + $0x8] sm:$0xff]
  %v1264 = vld [vmem:[#allocation2 + $0x10] sm:$0xff]
  %v1265 = vld [vmem:[#allocation2 + $0x18] sm:$0xff]
  %v1266 = vld [vmem:[#allocation2 + $0x20] sm:$0xff]
  %v1267 = vld [vmem:[#allocation2 + $0x28] sm:$0xff]
  %v1268 = vld [vmem:[#allocation2 + $0x30] sm:$0xff]
  %v1269 = vld [vmem:[#allocation2 + $0x38] sm:$0xff]
  %v1270 = vld [vmem:[#allocation2 + $0x40] sm:$0xff]
  %v1271 = vld [vmem:[#allocation2 + $0x48] sm:$0xff]
  %v1272 = vld [vmem:[#allocation2 + $0x50] sm:$0xff]
  %v1273 = vld [vmem:[#allocation2 + $0x58] sm:$0xff]
  %v1274 = vld [vmem:[#allocation2 + $0x60] sm:$0xff]
  %v1275 = vld [vmem:[#allocation2 + $0x68] sm:$0xff]
  %v1276 = vld [vmem:[#allocation2 + $0x70] sm:$0xff]
  %v1277 = vld [vmem:[#allocation2 + $0x78] sm:$0xff]
  %v1278 = vld [vmem:[#allocation2 + $0x80] sm:$0xff]
  %v1279 = vld [vmem:[#allocation2 + $0x88] sm:$0xff]
  %v1280 = vld [vmem:[#allocation2 + $0x90] sm:$0xff]
  %v1281 = vld [vmem:[#allocation2 + $0x98] sm:$0xff]
  %v1282 = vld [vmem:[#allocation2 + $0xa0] sm:$0xff]
  %v1283 = vld [vmem:[#allocation2 + $0xa8] sm:$0xff]
  %v1284 = vld [vmem:[#allocation2 + $0xb0] sm:$0xff]
  %v1285 = vld [vmem:[#allocation2 + $0xb8] sm:$0xff]
  %v1286 = vld [vmem:[#allocation2 + $0xc0] sm:$0xff]
  %v1287 = vld [vmem:[#allocation2 + $0xc8] sm:$0xff]
  %v1288 = vld [vmem:[#allocation2 + $0xd0] sm:$0xff]
  %v1289 = vld [vmem:[#allocation2 + $0xd8] sm:$0xff]
  %v1290 = vld [vmem:[#allocation2 + $0xe0] sm:$0xff]
  %v1291 = vld [vmem:[#allocation2 + $0xe8] sm:$0xff]
  %v1292 = vld [vmem:[#allocation2 + $0xf0] sm:$0xff]
  %v1293 = vld [vmem:[#allocation2 + $0xf8] sm:$0xff]
  %v1294 = vld [vmem:[#allocation2 + $0x100] sm:$0xff]
  %v1295 = vld [vmem:[#allocation2 + $0x108] sm:$0xff]
  %v1296 = vld [vmem:[#allocation2 + $0x110] sm:$0xff]
  %v1297 = vld [vmem:[#allocation2 + $0x118] sm:$0xff]
  %v1298 = vld [vmem:[#allocation2 + $0x120] sm:$0xff]
  %v1299 = vld [vmem:[#allocation2 + $0x128] sm:$0xff]
  %v1300 = vld [vmem:[#allocation2 + $0x130] sm:$0xff]
  %v1301 = vld [vmem:[#allocation2 + $0x138] sm:$0xff]
  %v1302 = vld [vmem:[#allocation2 + $0x140] sm:$0xff]
  %v1303 = vld [vmem:[#allocation2 + $0x148] sm:$0xff]
  %v1304 = vld [vmem:[#allocation2 + $0x150] sm:$0xff]
  %v1305 = vld [vmem:[#allocation2 + $0x158] sm:$0xff]
  %v1306 = vld [vmem:[#allocation2 + $0x160] sm:$0xff]
  %v1307 = vld [vmem:[#allocation2 + $0x168] sm:$0xff]
  %v1308 = vld [vmem:[#allocation2 + $0x170] sm:$0xff]
  %v1309 = vld [vmem:[#allocation2 + $0x178] sm:$0xff]
  %v1310 = vld [vmem:[#allocation2 + $0x180] sm:$0xff]
  %v1311 = vld [vmem:[#allocation2 + $0x188] sm:$0xff]
  %v1312 = vld [vmem:[#allocation2 + $0x190] sm:$0xff]
  %v1313 = vld [vmem:[#allocation2 + $0x198] sm:$0xff]
  %v1314 = vld [vmem:[#allocation2 + $0x1a0] sm:$0xff]
  %v1315 = vld [vmem:[#allocation2 + $0x1a8] sm:$0xff]
  %v1316 = vld [vmem:[#allocation2 + $0x1b0] sm:$0xff]
  %v1317 = vld [vmem:[#allocation2 + $0x1b8] sm:$0xff]
  %v1318 = vld [vmem:[#allocation2 + $0x1c0] sm:$0xff]
  %v1319 = vld [vmem:[#allocation2 + $0x1c8] sm:$0xff]
  %v1320 = vld [vmem:[#allocation2 + $0x1d0] sm:$0xff]
  %v1321 = vld [vmem:[#allocation2 + $0x1d8] sm:$0xff]
  %v1322 = vld [vmem:[#allocation2 + $0x1e0] sm:$0xff]
  %v1323 = vld [vmem:[#allocation2 + $0x1e8] sm:$0xff]
  %v1324 = vld [vmem:[#allocation2 + $0x1f0] sm:$0xff]
  %v1325 = vld [vmem:[#allocation2 + $0x1f8] sm:$0xff]
  %v1326 = vld [vmem:[#allocation2 + $0x200] sm:$0xff]
  %v1327 = vld [vmem:[#allocation2 + $0x208] sm:$0xff]
  %v1328 = vld [vmem:[#allocation2 + $0x210] sm:$0xff]
  %v1329 = vld [vmem:[#allocation2 + $0x218] sm:$0xff]
  %v1330 = vld [vmem:[#allocation2 + $0x220] sm:$0xff]
  %v1331 = vld [vmem:[#allocation2 + $0x228] sm:$0xff]
  %v1332 = vld [vmem:[#allocation2 + $0x230] sm:$0xff]
  %v1333 = vld [vmem:[#allocation2 + $0x238] sm:$0xff]
  %v1334 = vld [vmem:[#allocation2 + $0x240] sm:$0xff]
  %v1335 = vld [vmem:[#allocation2 + $0x248] sm:$0xff]
  %v1336 = vld [vmem:[#allocation2 + $0x250] sm:$0xff]
  %v1337 = vld [vmem:[#allocation2 + $0x258] sm:$0xff]
  %v1338 = vld [vmem:[#allocation2 + $0x260] sm:$0xff]
  %v1339 = vld [vmem:[#allocation2 + $0x268] sm:$0xff]
  %v1340 = vld [vmem:[#allocation2 + $0x270] sm:$0xff]
  %v1341 = vld [vmem:[#allocation2 + $0x278] sm:$0xff]
  %v1342 = vld [vmem:[#allocation2 + $0x280] sm:$0xff]
  %v1343 = vld [vmem:[#allocation2 + $0x288] sm:$0xff]
  %v1344 = vld [vmem:[#allocation2 + $0x290] sm:$0xff]
  %v1345 = vld [vmem:[#allocation2 + $0x298] sm:$0xff]
  %v1346 = vld [vmem:[#allocation2 + $0x2a0] sm:$0xff]
  %v1347 = vld [vmem:[#allocation2 + $0x2a8] sm:$0xff]
  %v1348 = vld [vmem:[#allocation2 + $0x2b0] sm:$0xff]
  %v1349 = vld [vmem:[#allocation2 + $0x2b8] sm:$0xff]
  %v1350 = vld [vmem:[#allocation2 + $0x2c0] sm:$0xff]
  %v1351 = vld [vmem:[#allocation2 + $0x2c8] sm:$0xff]
  %v1352 = vld [vmem:[#allocation2 + $0x2d0] sm:$0xff]
  %v1353 = vld [vmem:[#allocation2 + $0x2d8] sm:$0xff]
  %v1354 = vld [vmem:[#allocation2 + $0x2e0] sm:$0xff]
  %v1355 = vld [vmem:[#allocation2 + $0x2e8] sm:$0xff]
  %v1356 = vld [vmem:[#allocation2 + $0x2f0] sm:$0xff]
  %v1357 = vld [vmem:[#allocation2 + $0x2f8] sm:$0xff]
  %v1358 = vld [vmem:[#allocation2 + $0x300] sm:$0xff]
  %v1359 = vld [vmem:[#allocation2 + $0x308] sm:$0xff]
  %v1360 = vld [vmem:[#allocation2 + $0x310] sm:$0xff]
  %v1361 = vld [vmem:[#allocation2 + $0x318] sm:$0xff]
  %v1362 = vld [vmem:[#allocation2 + $0x320] sm:$0xff]
  %v1363 = vld [vmem:[#allocation2 + $0x328] sm:$0xff]
  %v1364 = vld [vmem:[#allocation2 + $0x330] sm:$0xff]
  %v1365 = vld [vmem:[#allocation2 + $0x338] sm:$0xff]
  %v1366 = vld [vmem:[#allocation2 + $0x340] sm:$0xff]
  %v1367 = vld [vmem:[#allocation2 + $0x348] sm:$0xff]
  %v1368 = vld [vmem:[#allocation2 + $0x350] sm:$0xff]
  %v1369 = vld [vmem:[#allocation2 + $0x358] sm:$0xff]
  %v1370 = vld [vmem:[#allocation2 + $0x360] sm:$0xff]
  %v1371 = vld [vmem:[#allocation2 + $0x368] sm:$0xff]
  %v1372 = vld [vmem:[#allocation2 + $0x370] sm:$0xff]
  %v1373 = vld [vmem:[#allocation2 + $0x378] sm:$0xff]
  %v1374 = vld [vmem:[#allocation2 + $0x380] sm:$0xff]
  %v1375 = vld [vmem:[#allocation2 + $0x388] sm:$0xff]
  %v1376 = vld [vmem:[#allocation2 + $0x390] sm:$0xff]
  %v1377 = vld [vmem:[#allocation2 + $0x398] sm:$0xff]
  %v1378 = vld [vmem:[#allocation2 + $0x3a0] sm:$0xff]
  %v1379 = vld [vmem:[#allocation2 + $0x3a8] sm:$0xff]
  %v1380 = vld [vmem:[#allocation2 + $0x3b0] sm:$0xff]
  %v1381 = vld [vmem:[#allocation2 + $0x3b8] sm:$0xff]
  %v1382 = vld [vmem:[#allocation2 + $0x3c0] sm:$0xff]
  %v1383 = vld [vmem:[#allocation2 + $0x3c8] sm:$0xff]
  %v1384 = vld [vmem:[#allocation2 + $0x3d0] sm:$0xff]
  %v1385 = vld [vmem:[#allocation2 + $0x3d8] sm:$0xff]
  %v1386 = vld [vmem:[#allocation2 + $0x3e0] sm:$0xff]
  %v1387 = vld [vmem:[#allocation2 + $0x3e8] sm:$0xff]
  %v1388 = vld [vmem:[#allocation2 + $0x3f0] sm:$0xff]
  %v1389 = vld [vmem:[#allocation2 + $0x3f8] sm:$0xff]
  %v1390 = vld [vmem:[#allocation2 + $0x400] sm:$0xff]
  %v1391 = vld [vmem:[#allocation2 + $0x408] sm:$0xff]
  %v1392 = vld [vmem:[#allocation2 + $0x410] sm:$0xff]
  %v1393 = vld [vmem:[#allocation2 + $0x418] sm:$0xff]
  %v1394 = vld [vmem:[#allocation2 + $0x420] sm:$0xff]
  %v1395 = vld [vmem:[#allocation2 + $0x428] sm:$0xff]
  %v1396 = vld [vmem:[#allocation2 + $0x430] sm:$0xff]
  %v1397 = vld [vmem:[#allocation2 + $0x438] sm:$0xff]
  %v1398 = vld [vmem:[#allocation2 + $0x440] sm:$0xff]
  %v1399 = vld [vmem:[#allocation2 + $0x448] sm:$0xff]
  %v1400 = vld [vmem:[#allocation2 + $0x450] sm:$0xff]
  %v1401 = vld [vmem:[#allocation2 + $0x458] sm:$0xff]
  %v1402 = vld [vmem:[#allocation2 + $0x460] sm:$0xff]
  %v1403 = vld [vmem:[#allocation2 + $0x468] sm:$0xff]
  %v1404 = vld [vmem:[#allocation2 + $0x470] sm:$0xff]
  %v1405 = vld [vmem:[#allocation2 + $0x478] sm:$0xff]
  %v1406 = vld [vmem:[#allocation2 + $0x480] sm:$0xff]
  %v1407 = vld [vmem:[#allocation2 + $0x488] sm:$0xff]
  %v1408 = vld [vmem:[#allocation2 + $0x490] sm:$0xff]
  %v1409 = vld [vmem:[#allocation2 + $0x498] sm:$0xff]
  %v1410 = vld [vmem:[#allocation2 + $0x4a0] sm:$0xff]
  %v1411 = vld [vmem:[#allocation2 + $0x4a8] sm:$0xff]
  %v1412 = vld [vmem:[#allocation2 + $0x4b0] sm:$0xff]
  %v1413 = vld [vmem:[#allocation2 + $0x4b8] sm:$0xff]
  %v1414 = vld [vmem:[#allocation2 + $0x4c0] sm:$0xff]
  %v1415 = vld [vmem:[#allocation2 + $0x4c8] sm:$0xff]
  %v1416 = vld [vmem:[#allocation2 + $0x4d0] sm:$0xff]
  %v1417 = vld [vmem:[#allocation2 + $0x4d8] sm:$0xff]
  %v1418 = vld [vmem:[#allocation2 + $0x4e0] sm:$0xff]
  %v1419 = vld [vmem:[#allocation2 + $0x4e8] sm:$0xff]
  %v1420 = vld [vmem:[#allocation2 + $0x4f0] sm:$0xff]
  %v1421 = vld [vmem:[#allocation2 + $0x4f8] sm:$0xff]
  %v1422 = vld [vmem:[#allocation2 + $0x500] sm:$0xff]
  %v1423 = vld [vmem:[#allocation2 + $0x508] sm:$0xff]
  %v1424 = vld [vmem:[#allocation2 + $0x510] sm:$0xff]
  %v1425 = vld [vmem:[#allocation2 + $0x518] sm:$0xff]
  %v1426 = vld [vmem:[#allocation2 + $0x520] sm:$0xff]
  %v1427 = vld [vmem:[#allocation2 + $0x528] sm:$0xff]
  %v1428 = vld [vmem:[#allocation2 + $0x530] sm:$0xff]
  %v1429 = vld [vmem:[#allocation2 + $0x538] sm:$0xff]
  %v1430 = vld [vmem:[#allocation2 + $0x540] sm:$0xff]
  %v1431 = vld [vmem:[#allocation2 + $0x548] sm:$0xff]
  %v1432 = vld [vmem:[#allocation2 + $0x550] sm:$0xff]
  %v1433 = vld [vmem:[#allocation2 + $0x558] sm:$0xff]
  %v1434 = vld [vmem:[#allocation2 + $0x560] sm:$0xff]
  %v1435 = vld [vmem:[#allocation2 + $0x568] sm:$0xff]
  %v1436 = vld [vmem:[#allocation2 + $0x570] sm:$0xff]
  %v1437 = vld [vmem:[#allocation2 + $0x578] sm:$0xff]
  %v1438 = vld [vmem:[#allocation2 + $0x580] sm:$0xff]
  %v1439 = vld [vmem:[#allocation2 + $0x588] sm:$0xff]
  %v1440 = vld [vmem:[#allocation2 + $0x590] sm:$0xff]
  %v1441 = vld [vmem:[#allocation2 + $0x598] sm:$0xff]
  %v1442 = vld [vmem:[#allocation2 + $0x5a0] sm:$0xff]
  %v1443 = vld [vmem:[#allocation2 + $0x5a8] sm:$0xff]
  %v1444 = vld [vmem:[#allocation2 + $0x5b0] sm:$0xff]
  %v1445 = vld [vmem:[#allocation2 + $0x5b8] sm:$0xff]
  %v1446 = vld [vmem:[#allocation2 + $0x5c0] sm:$0xff]
  %v1447 = vld [vmem:[#allocation2 + $0x5c8] sm:$0xff]
  %v1448 = vld [vmem:[#allocation2 + $0x5d0] sm:$0xff]
  %v1449 = vld [vmem:[#allocation2 + $0x5d8] sm:$0xff]
  %v1450 = vld [vmem:[#allocation2 + $0x5e0] sm:$0xff]
  %v1451 = vld [vmem:[#allocation2 + $0x5e8] sm:$0xff]
  %v1452 = vld [vmem:[#allocation2 + $0x5f0] sm:$0xff]
  %v1453 = vld [vmem:[#allocation2 + $0x5f8] sm:$0xff]
  %v1454 = vld [vmem:[#allocation2 + $0x600] sm:$0xff]
  %v1455 = vld [vmem:[#allocation2 + $0x608] sm:$0xff]
  %v1456 = vld [vmem:[#allocation2 + $0x610] sm:$0xff]
  %v1457 = vld [vmem:[#allocation2 + $0x618] sm:$0xff]
  %v1458 = vld [vmem:[#allocation2 + $0x620] sm:$0xff]
  %v1459 = vld [vmem:[#allocation2 + $0x628] sm:$0xff]
  %v1460 = vld [vmem:[#allocation2 + $0x630] sm:$0xff]
  %v1461 = vld [vmem:[#allocation2 + $0x638] sm:$0xff]
  %v1462 = vld [vmem:[#allocation2 + $0x640] sm:$0xff]
  %v1463 = vld [vmem:[#allocation2 + $0x648] sm:$0xff]
  %v1464 = vld [vmem:[#allocation2 + $0x650] sm:$0xff]
  %v1465 = vld [vmem:[#allocation2 + $0x658] sm:$0xff]
  %v1466 = vld [vmem:[#allocation2 + $0x660] sm:$0xff]
  %v1467 = vld [vmem:[#allocation2 + $0x668] sm:$0xff]
  %v1468 = vld [vmem:[#allocation2 + $0x670] sm:$0xff]
  %v1469 = vld [vmem:[#allocation2 + $0x678] sm:$0xff]
  %v1470 = vld [vmem:[#allocation2 + $0x680] sm:$0xff]
  %v1471 = vld [vmem:[#allocation2 + $0x688] sm:$0xff]
  %v1472 = vld [vmem:[#allocation2 + $0x690] sm:$0xff]
  %v1473 = vld [vmem:[#allocation2 + $0x698] sm:$0xff]
  %v1474 = vld [vmem:[#allocation2 + $0x6a0] sm:$0xff]
  %v1475 = vld [vmem:[#allocation2 + $0x6a8] sm:$0xff]
  %v1476 = vld [vmem:[#allocation2 + $0x6b0] sm:$0xff]
  %v1477 = vld [vmem:[#allocation2 + $0x6b8] sm:$0xff]
  %v1478 = vld [vmem:[#allocation2 + $0x6c0] sm:$0xff]
  %v1479 = vld [vmem:[#allocation2 + $0x6c8] sm:$0xff]
  %v1480 = vld [vmem:[#allocation2 + $0x6d0] sm:$0xff]
  %v1481 = vld [vmem:[#allocation2 + $0x6d8] sm:$0xff]
  %v1482 = vld [vmem:[#allocation2 + $0x6e0] sm:$0xff]
  %v1483 = vld [vmem:[#allocation2 + $0x6e8] sm:$0xff]
  %v1484 = vld [vmem:[#allocation2 + $0x6f0] sm:$0xff]
  %v1485 = vld [vmem:[#allocation2 + $0x6f8] sm:$0xff]
  %v1486 = vld [vmem:[#allocation2 + $0x700] sm:$0xff]
  %v1487 = vld [vmem:[#allocation2 + $0x708] sm:$0xff]
  %v1488 = vld [vmem:[#allocation2 + $0x710] sm:$0xff]
  %v1489 = vld [vmem:[#allocation2 + $0x718] sm:$0xff]
  %v1490 = vld [vmem:[#allocation2 + $0x720] sm:$0xff]
  %v1491 = vld [vmem:[#allocation2 + $0x728] sm:$0xff]
  %v1492 = vld [vmem:[#allocation2 + $0x730] sm:$0xff]
  %v1493 = vld [vmem:[#allocation2 + $0x738] sm:$0xff]
  %v1494 = vld [vmem:[#allocation2 + $0x740] sm:$0xff]
  %v1495 = vld [vmem:[#allocation2 + $0x748] sm:$0xff]
  %v1496 = vld [vmem:[#allocation2 + $0x750] sm:$0xff]
  %v1497 = vld [vmem:[#allocation2 + $0x758] sm:$0xff]
  %v1498 = vld [vmem:[#allocation2 + $0x760] sm:$0xff]
  %v1499 = vld [vmem:[#allocation2 + $0x768] sm:$0xff]
  %v1500 = vld [vmem:[#allocation2 + $0x770] sm:$0xff]
  %v1501 = vld [vmem:[#allocation2 + $0x778] sm:$0xff]
  %v1502 = vld [vmem:[#allocation2 + $0x780] sm:$0xff]
  %v1503 = vld [vmem:[#allocation2 + $0x788] sm:$0xff]
  %v1504 = vld [vmem:[#allocation2 + $0x790] sm:$0xff]
  %v1505 = vld [vmem:[#allocation2 + $0x798] sm:$0xff]
  %v1506 = vld [vmem:[#allocation2 + $0x7a0] sm:$0xff]
  %v1507 = vld [vmem:[#allocation2 + $0x7a8] sm:$0xff]
  %v1508 = vld [vmem:[#allocation2 + $0x7b0] sm:$0xff]
  %v1509 = vld [vmem:[#allocation2 + $0x7b8] sm:$0xff]
  %v1510 = vld [vmem:[#allocation2 + $0x7c0] sm:$0xff]
  %v1511 = vld [vmem:[#allocation2 + $0x7c8] sm:$0xff]
  %v1512 = vld [vmem:[#allocation2 + $0x7d0] sm:$0xff]
  %v1513 = vld [vmem:[#allocation2 + $0x7d8] sm:$0xff]
  %v1514 = vld [vmem:[#allocation2 + $0x7e0] sm:$0xff]
  %v1515 = vld [vmem:[#allocation2 + $0x7e8] sm:$0xff]
  %v1516 = vld [vmem:[#allocation2 + $0x7f0] sm:$0xff]
  %v1517 = vld [vmem:[#allocation2 + $0x7f8] sm:$0xff]
  %v1518 = vld [vmem:[#allocation2 + $0x800] sm:$0xff]
  %v1519 = vld [vmem:[#allocation2 + $0x808] sm:$0xff]
  %v1520 = vld [vmem:[#allocation2 + $0x810] sm:$0xff]
  %v1521 = vld [vmem:[#allocation2 + $0x818] sm:$0xff]
  %v1522 = vld [vmem:[#allocation2 + $0x820] sm:$0xff]
  %v1523 = vld [vmem:[#allocation2 + $0x828] sm:$0xff]
  %v1524 = vld [vmem:[#allocation2 + $0x830] sm:$0xff]
  %v1525 = vld [vmem:[#allocation2 + $0x838] sm:$0xff]
  %v1526 = vld [vmem:[#allocation2 + $0x840] sm:$0xff]
  %v1527 = vld [vmem:[#allocation2 + $0x848] sm:$0xff]
  %v1528 = vld [vmem:[#allocation2 + $0x850] sm:$0xff]
  %v1529 = vld [vmem:[#allocation2 + $0x858] sm:$0xff]
  %v1530 = vld [vmem:[#allocation2 + $0x860] sm:$0xff]
  %v1531 = vld [vmem:[#allocation2 + $0x868] sm:$0xff]
  %v1532 = vld [vmem:[#allocation2 + $0x870] sm:$0xff]
  %v1533 = vld [vmem:[#allocation2 + $0x878] sm:$0xff]
  %v1534 = vld [vmem:[#allocation2 + $0x880] sm:$0xff]
  %v1535 = vld [vmem:[#allocation2 + $0x888] sm:$0xff]
  %v1536 = vld [vmem:[#allocation2 + $0x890] sm:$0xff]
  %v1537 = vld [vmem:[#allocation2 + $0x898] sm:$0xff]
  %v1538 = vld [vmem:[#allocation2 + $0x8a0] sm:$0xff]
  %v1539 = vld [vmem:[#allocation2 + $0x8a8] sm:$0xff]
  %v1540 = vld [vmem:[#allocation2 + $0x8b0] sm:$0xff]
  %v1541 = vld [vmem:[#allocation2 + $0x8b8] sm:$0xff]
  %v1542 = vld [vmem:[#allocation2 + $0x8c0] sm:$0xff]
  %v1543 = vld [vmem:[#allocation2 + $0x8c8] sm:$0xff]
  %v1544 = vld [vmem:[#allocation2 + $0x8d0] sm:$0xff]
  %v1545 = vld [vmem:[#allocation2 + $0x8d8] sm:$0xff]
  %v1546 = vld [vmem:[#allocation2 + $0x8e0] sm:$0xff]
  %v1547 = vld [vmem:[#allocation2 + $0x8e8] sm:$0xff]
  %v1548 = vld [vmem:[#allocation2 + $0x8f0] sm:$0xff]
  %v1549 = vld [vmem:[#allocation2 + $0x8f8] sm:$0xff]
  %v1550 = vld [vmem:[#allocation2 + $0x900] sm:$0xff]
  %v1551 = vld [vmem:[#allocation2 + $0x908] sm:$0xff]
  %v1552 = vld [vmem:[#allocation2 + $0x910] sm:$0xff]
  %v1553 = vld [vmem:[#allocation2 + $0x918] sm:$0xff]
  %v1554 = vld [vmem:[#allocation2 + $0x920] sm:$0xff]
  %v1555 = vld [vmem:[#allocation2 + $0x928] sm:$0xff]
  %v1556 = vld [vmem:[#allocation2 + $0x930] sm:$0xff]
  %v1557 = vld [vmem:[#allocation2 + $0x938] sm:$0xff]
  %v1558 = vld [vmem:[#allocation2 + $0x940] sm:$0xff]
  %v1559 = vld [vmem:[#allocation2 + $0x948] sm:$0xff]
  %v1560 = vld [vmem:[#allocation2 + $0x950] sm:$0xff]
  %v1561 = vld [vmem:[#allocation2 + $0x958] sm:$0xff]
  %v1562 = vld [vmem:[%s2] sm:$0x3f]
  %1564 = vset.pattern.permute.xlu0 0
  %1565 = vperm.xlu0 %1564, %v1562
  %v1566 = vpop.permute.xlu0 %1565
  %v1569 = vsel %vm998, %v1261, 0
  %1571 = vmatprep.subr.mxu0 %v1443
  %1572 = vmatpush1.msra.mxu0 %v1442
  %1573 = vmatprep.subr.mxu0 %v1431
  %1574 = vmatpush1.msra.mxu0 %v1430
  %1575 = vmatprep.subr.mxu0 %v1419
  %1576 = vmatpush1.msra.mxu0 %v1418
  %1577 = vmatprep.subr.mxu0 %v1407
  %1578 = vmatpush1.msra.mxu0 %v1406
  %1579 = vmatprep.subr.mxu0 %v1395
  %1580 = vmatpush1.msra.mxu0 %v1394
  %1581 = vmatprep.subr.mxu0 %v1383
  %1582 = vmatpush1.msra.mxu0 %v1382
  %1583 = vmatprep.subr.mxu0 %v1371
  %1584 = vmatpush1.msra.mxu0 %v1370
  %1585 = vmatprep.subr.mxu0 %v1359
  %1586 = vmatpush1.msra.mxu0 %v1358
  %1587 = vmatprep.subr.mxu0 %v1347
  %1588 = vmatpush1.msra.mxu0 %v1346
  %1589 = vmatprep.subr.mxu0 %v1335
  %1590 = vmatpush1.msra.mxu0 %v1334
  %1591 = vmatprep.subr.mxu0 %v1323
  %1592 = vmatpush1.msra.mxu0 %v1322
  %1593 = vmatprep.subr.mxu0 %v1311
  %1594 = vmatpush1.msra.mxu0 %v1310
  %1595 = vmatprep.subr.mxu0 %v1299
  %1596 = vmatpush1.msra.mxu0 %v1298
  %1597 = vmatprep.subr.mxu0 %v1287
  %1598 = vmatpush1.msra.mxu0 %v1286
  %1599 = vmatprep.subr.mxu0 %v1275
  %1600 = vmatpush1.msra.mxu0 %v1274
  %1601 = vmatprep.subr.mxu0 %v1263
  %1602 = vmatpush1.msra.mxu0 %v1262
  %1603 = vmatprep.subr.mxu0 0.0
  %1604 = vmatpush2.msra.mxu0 0.0
  %1605 = vmatprep.subr.mxu0 0.0
  %1606 = vmatpush2.msra.mxu0 0.0
  %1607 = vmatprep.subr.mxu0 0.0
  %1608 = vmatpush2.msra.mxu0 0.0
  %1609 = vmatprep.subr.mxu0 0.0
  %1610 = vmatpush2.msra.mxu0 0.0
  %1611 = vmatprep.subr.mxu0 0.0
  %1612 = vmatpush2.msra.mxu0 0.0
  %1613 = vmatprep.subr.mxu0 0.0
  %1614 = vmatpush2.msra.mxu0 0.0
  %1615 = vmatprep.subr.mxu0 0.0
  %1616 = vmatpush2.msra.mxu0 0.0
  %1617 = vmatprep.subr.mxu0 %v1551
  %1618 = vmatpush2.msra.mxu0 %v1550
  %1619 = vmatprep.subr.mxu0 %v1539
  %1620 = vmatpush2.msra.mxu0 %v1538
  %1621 = vmatprep.subr.mxu0 %v1527
  %1622 = vmatpush2.msra.mxu0 %v1526
  %1623 = vmatprep.subr.mxu0 %v1515
  %1624 = vmatpush2.msra.mxu0 %v1514
  %1625 = vmatprep.subr.mxu0 %v1503
  %1626 = vmatpush2.msra.mxu0 %v1502
  %1627 = vmatprep.subr.mxu0 %v1491
  %1628 = vmatpush2.msra.mxu0 %v1490
  %1629 = vmatprep.subr.mxu0 %v1479
  %1630 = vmatpush2.msra.mxu0 %v1478
  %1631 = vmatprep.subr.mxu0 %v1467
  %1632 = vmatpush2.msra.mxu0 %v1466
  %1633 = vmatprep.subr.mxu0 %v1455
  %1634 = vmatpush2.msra.mxu0 %v1454
  %1635 = vmatprep.mubr.f32.mxu0 %v1569
  %1636 = vmatmul.mubr.f32.gmra.mxu0 %v1260
  %v1637 = vpop.f32.mrf.mxu0
  %v1638 = vadd.f32 %v1566, %v1637
  %v1639 = vpop.f32.mrf.mxu0
  %v1640 = vadd.f32 %v1566, %v1639
  %1641 = vdwg.mxu0
  %1642 = vmatprep.subr.mxu0 %v1445
  %1643 = vmatpush1.msra.mxu0 %v1444
  %1644 = vmatprep.subr.mxu0 %v1433
  %1645 = vmatpush1.msra.mxu0 %v1432
  %1646 = vmatprep.subr.mxu0 %v1421
  %1647 = vmatpush1.msra.mxu0 %v1420
  %1648 = vmatprep.subr.mxu0 %v1409
  %1649 = vmatpush1.msra.mxu0 %v1408
  %1650 = vmatprep.subr.mxu0 %v1397
  %1651 = vmatpush1.msra.mxu0 %v1396
  %1652 = vmatprep.subr.mxu0 %v1385
  %1653 = vmatpush1.msra.mxu0 %v1384
  %1654 = vmatprep.subr.mxu0 %v1373
  %1655 = vmatpush1.msra.mxu0 %v1372
  %1656 = vmatprep.subr.mxu0 %v1361
  %1657 = vmatpush1.msra.mxu0 %v1360
  %1658 = vmatprep.subr.mxu0 %v1349
  %1659 = vmatpush1.msra.mxu0 %v1348
  %1660 = vmatprep.subr.mxu0 %v1337
  %1661 = vmatpush1.msra.mxu0 %v1336
  %1662 = vmatprep.subr.mxu0 %v1325
  %1663 = vmatpush1.msra.mxu0 %v1324
  %1664 = vmatprep.subr.mxu0 %v1313
  %1665 = vmatpush1.msra.mxu0 %v1312
  %1666 = vmatprep.subr.mxu0 %v1301
  %1667 = vmatpush1.msra.mxu0 %v1300
  %1668 = vmatprep.subr.mxu0 %v1289
  %1669 = vmatpush1.msra.mxu0 %v1288
  %1670 = vmatprep.subr.mxu0 %v1277
  %1671 = vmatpush1.msra.mxu0 %v1276
  %1672 = vmatprep.subr.mxu0 %v1265
  %1673 = vmatpush1.msra.mxu0 %v1264
  %1674 = vmatprep.subr.mxu0 0.0
  %1675 = vmatpush2.msra.mxu0 0.0
  %1676 = vmatprep.subr.mxu0 0.0
  %1677 = vmatpush2.msra.mxu0 0.0
  %1678 = vmatprep.subr.mxu0 0.0
  %1679 = vmatpush2.msra.mxu0 0.0
  %1680 = vmatprep.subr.mxu0 0.0
  %1681 = vmatpush2.msra.mxu0 0.0
  %1682 = vmatprep.subr.mxu0 0.0
  %1683 = vmatpush2.msra.mxu0 0.0
  %1684 = vmatprep.subr.mxu0 0.0
  %1685 = vmatpush2.msra.mxu0 0.0
  %1686 = vmatprep.subr.mxu0 0.0
  %1687 = vmatpush2.msra.mxu0 0.0
  %1688 = vmatprep.subr.mxu0 %v1553
  %1689 = vmatpush2.msra.mxu0 %v1552
  %1690 = vmatprep.subr.mxu0 %v1541
  %1691 = vmatpush2.msra.mxu0 %v1540
  %1692 = vmatprep.subr.mxu0 %v1529
  %1693 = vmatpush2.msra.mxu0 %v1528
  %1694 = vmatprep.subr.mxu0 %v1517
  %1695 = vmatpush2.msra.mxu0 %v1516
  %1696 = vmatprep.subr.mxu0 %v1505
  %1697 = vmatpush2.msra.mxu0 %v1504
  %1698 = vmatprep.subr.mxu0 %v1493
  %1699 = vmatpush2.msra.mxu0 %v1492
  %1700 = vmatprep.subr.mxu0 %v1481
  %1701 = vmatpush2.msra.mxu0 %v1480
  %1702 = vmatprep.subr.mxu0 %v1469
  %1703 = vmatpush2.msra.mxu0 %v1468
  %1704 = vmatprep.subr.mxu0 %v1457
  %1705 = vmatpush2.msra.mxu0 %v1456
  %1706 = vmatprep.mubr.f32.mxu0 %v1569
  %1707 = vmatmul.mubr.f32.gmra.mxu0 %v1260
  %v1708 = vpop.f32.mrf.mxu0
  %v1709 = vadd.f32 %v1566, %v1708
  %v1710 = vpop.f32.mrf.mxu0
  %v1711 = vadd.f32 %v1566, %v1710
  %1712 = vdwg.mxu0
  %1713 = vmatprep.subr.mxu0 %v1447
  %1714 = vmatpush1.msra.mxu0 %v1446
  %1715 = vmatprep.subr.mxu0 %v1435
  %1716 = vmatpush1.msra.mxu0 %v1434
  %1717 = vmatprep.subr.mxu0 %v1423
  %1718 = vmatpush1.msra.mxu0 %v1422
  %1719 = vmatprep.subr.mxu0 %v1411
  %1720 = vmatpush1.msra.mxu0 %v1410
  %1721 = vmatprep.subr.mxu0 %v1399
  %1722 = vmatpush1.msra.mxu0 %v1398
  %1723 = vmatprep.subr.mxu0 %v1387
  %1724 = vmatpush1.msra.mxu0 %v1386
  %1725 = vmatprep.subr.mxu0 %v1375
  %1726 = vmatpush1.msra.mxu0 %v1374
  %1727 = vmatprep.subr.mxu0 %v1363
  %1728 = vmatpush1.msra.mxu0 %v1362
  %1729 = vmatprep.subr.mxu0 %v1351
  %1730 = vmatpush1.msra.mxu0 %v1350
  %1731 = vmatprep.subr.mxu0 %v1339
  %1732 = vmatpush1.msra.mxu0 %v1338
  %1733 = vmatprep.subr.mxu0 %v1327
  %1734 = vmatpush1.msra.mxu0 %v1326
  %1735 = vmatprep.subr.mxu0 %v1315
  %1736 = vmatpush1.msra.mxu0 %v1314
  %1737 = vmatprep.subr.mxu0 %v1303
  %1738 = vmatpush1.msra.mxu0 %v1302
  %1739 = vmatprep.subr.mxu0 %v1291
  %1740 = vmatpush1.msra.mxu0 %v1290
  %1741 = vmatprep.subr.mxu0 %v1279
  %1742 = vmatpush1.msra.mxu0 %v1278
  %1743 = vmatprep.subr.mxu0 %v1267
  %1744 = vmatpush1.msra.mxu0 %v1266
  %1745 = vmatprep.subr.mxu0 0.0
  %1746 = vmatpush2.msra.mxu0 0.0
  %1747 = vmatprep.subr.mxu0 0.0
  %1748 = vmatpush2.msra.mxu0 0.0
  %1749 = vmatprep.subr.mxu0 0.0
  %1750 = vmatpush2.msra.mxu0 0.0
  %1751 = vmatprep.subr.mxu0 0.0
  %1752 = vmatpush2.msra.mxu0 0.0
  %1753 = vmatprep.subr.mxu0 0.0
  %1754 = vmatpush2.msra.mxu0 0.0
  %1755 = vmatprep.subr.mxu0 0.0
  %1756 = vmatpush2.msra.mxu0 0.0
  %1757 = vmatprep.subr.mxu0 0.0
  %1758 = vmatpush2.msra.mxu0 0.0
  %1759 = vmatprep.subr.mxu0 %v1555
  %1760 = vmatpush2.msra.mxu0 %v1554
  %1761 = vmatprep.subr.mxu0 %v1543
  %1762 = vmatpush2.msra.mxu0 %v1542
  %1763 = vmatprep.subr.mxu0 %v1531
  %1764 = vmatpush2.msra.mxu0 %v1530
  %1765 = vmatprep.subr.mxu0 %v1519
  %1766 = vmatpush2.msra.mxu0 %v1518
  %1767 = vmatprep.subr.mxu0 %v1507
  %1768 = vmatpush2.msra.mxu0 %v1506
  %1769 = vmatprep.subr.mxu0 %v1495
  %1770 = vmatpush2.msra.mxu0 %v1494
  %1771 = vmatprep.subr.mxu0 %v1483
  %1772 = vmatpush2.msra.mxu0 %v1482
  %1773 = vmatprep.subr.mxu0 %v1471
  %1774 = vmatpush2.msra.mxu0 %v1470
  %1775 = vmatprep.subr.mxu0 %v1459
  %1776 = vmatpush2.msra.mxu0 %v1458
  %1777 = vmatprep.mubr.f32.mxu0 %v1569
  %1778 = vmatmul.mubr.f32.gmra.mxu0 %v1260
  %v1779 = vpop.f32.mrf.mxu0
  %v1780 = vadd.f32 %v1566, %v1779
  %v1781 = vpop.f32.mrf.mxu0
  %v1782 = vadd.f32 %v1566, %v1781
  %1783 = vdwg.mxu0
  %1784 = vmatprep.subr.mxu0 %v1449
  %1785 = vmatpush1.msra.mxu0 %v1448
  %1786 = vmatprep.subr.mxu0 %v1437
  %1787 = vmatpush1.msra.mxu0 %v1436
  %1788 = vmatprep.subr.mxu0 %v1425
  %1789 = vmatpush1.msra.mxu0 %v1424
  %1790 = vmatprep.subr.mxu0 %v1413
  %1791 = vmatpush1.msra.mxu0 %v1412
  %1792 = vmatprep.subr.mxu0 %v1401
  %1793 = vmatpush1.msra.mxu0 %v1400
  %1794 = vmatprep.subr.mxu0 %v1389
  %1795 = vmatpush1.msra.mxu0 %v1388
  %1796 = vmatprep.subr.mxu0 %v1377
  %1797 = vmatpush1.msra.mxu0 %v1376
  %1798 = vmatprep.subr.mxu0 %v1365
  %1799 = vmatpush1.msra.mxu0 %v1364
  %1800 = vmatprep.subr.mxu0 %v1353
  %1801 = vmatpush1.msra.mxu0 %v1352
  %1802 = vmatprep.subr.mxu0 %v1341
  %1803 = vmatpush1.msra.mxu0 %v1340
  %1804 = vmatprep.subr.mxu0 %v1329
  %1805 = vmatpush1.msra.mxu0 %v1328
  %1806 = vmatprep.subr.mxu0 %v1317
  %1807 = vmatpush1.msra.mxu0 %v1316
  %1808 = vmatprep.subr.mxu0 %v1305
  %1809 = vmatpush1.msra.mxu0 %v1304
  %1810 = vmatprep.subr.mxu0 %v1293
  %1811 = vmatpush1.msra.mxu0 %v1292
  %1812 = vmatprep.subr.mxu0 %v1281
  %1813 = vmatpush1.msra.mxu0 %v1280
  %1814 = vmatprep.subr.mxu0 %v1269
  %1815 = vmatpush1.msra.mxu0 %v1268
  %1816 = vmatprep.subr.mxu0 0.0
  %1817 = vmatpush2.msra.mxu0 0.0
  %1818 = vmatprep.subr.mxu0 0.0
  %1819 = vmatpush2.msra.mxu0 0.0
  %1820 = vmatprep.subr.mxu0 0.0
  %1821 = vmatpush2.msra.mxu0 0.0
  %1822 = vmatprep.subr.mxu0 0.0
  %1823 = vmatpush2.msra.mxu0 0.0
  %1824 = vmatprep.subr.mxu0 0.0
  %1825 = vmatpush2.msra.mxu0 0.0
  %1826 = vmatprep.subr.mxu0 0.0
  %1827 = vmatpush2.msra.mxu0 0.0
  %1828 = vmatprep.subr.mxu0 0.0
  %1829 = vmatpush2.msra.mxu0 0.0
  %1830 = vmatprep.subr.mxu0 %v1557
  %1831 = vmatpush2.msra.mxu0 %v1556
  %1832 = vmatprep.subr.mxu0 %v1545
  %1833 = vmatpush2.msra.mxu0 %v1544
  %1834 = vmatprep.subr.mxu0 %v1533
  %1835 = vmatpush2.msra.mxu0 %v1532
  %1836 = vmatprep.subr.mxu0 %v1521
  %1837 = vmatpush2.msra.mxu0 %v1520
  %1838 = vmatprep.subr.mxu0 %v1509
  %1839 = vmatpush2.msra.mxu0 %v1508
  %1840 = vmatprep.subr.mxu0 %v1497
  %1841 = vmatpush2.msra.mxu0 %v1496
  %1842 = vmatprep.subr.mxu0 %v1485
  %1843 = vmatpush2.msra.mxu0 %v1484
  %1844 = vmatprep.subr.mxu0 %v1473
  %1845 = vmatpush2.msra.mxu0 %v1472
  %1846 = vmatprep.subr.mxu0 %v1461
  %1847 = vmatpush2.msra.mxu0 %v1460
  %1848 = vmatprep.mubr.f32.mxu0 %v1569
  %1849 = vmatmul.mubr.f32.gmra.mxu0 %v1260
  %v1850 = vpop.f32.mrf.mxu0
  %v1851 = vadd.f32 %v1566, %v1850
  %v1852 = vpop.f32.mrf.mxu0
  %v1853 = vadd.f32 %v1566, %v1852
  %1854 = vdwg.mxu0
  %1855 = vmatprep.subr.mxu0 %v1451
  %1856 = vmatpush1.msra.mxu0 %v1450
  %1857 = vmatprep.subr.mxu0 %v1439
  %1858 = vmatpush1.msra.mxu0 %v1438
  %1859 = vmatprep.subr.mxu0 %v1427
  %1860 = vmatpush1.msra.mxu0 %v1426
  %1861 = vmatprep.subr.mxu0 %v1415
  %1862 = vmatpush1.msra.mxu0 %v1414
  %1863 = vmatprep.subr.mxu0 %v1403
  %1864 = vmatpush1.msra.mxu0 %v1402
  %1865 = vmatprep.subr.mxu0 %v1391
  %1866 = vmatpush1.msra.mxu0 %v1390
  %1867 = vmatprep.subr.mxu0 %v1379
  %1868 = vmatpush1.msra.mxu0 %v1378
  %1869 = vmatprep.subr.mxu0 %v1367
  %1870 = vmatpush1.msra.mxu0 %v1366
  %1871 = vmatprep.subr.mxu0 %v1355
  %1872 = vmatpush1.msra.mxu0 %v1354
  %1873 = vmatprep.subr.mxu0 %v1343
  %1874 = vmatpush1.msra.mxu0 %v1342
  %1875 = vmatprep.subr.mxu0 %v1331
  %1876 = vmatpush1.msra.mxu0 %v1330
  %1877 = vmatprep.subr.mxu0 %v1319
  %1878 = vmatpush1.msra.mxu0 %v1318
  %1879 = vmatprep.subr.mxu0 %v1307
  %1880 = vmatpush1.msra.mxu0 %v1306
  %1881 = vmatprep.subr.mxu0 %v1295
  %1882 = vmatpush1.msra.mxu0 %v1294
  %1883 = vmatprep.subr.mxu0 %v1283
  %1884 = vmatpush1.msra.mxu0 %v1282
  %1885 = vmatprep.subr.mxu0 %v1271
  %1886 = vmatpush1.msra.mxu0 %v1270
  %1887 = vmatprep.subr.mxu0 0.0
  %1888 = vmatpush2.msra.mxu0 0.0
  %1889 = vmatprep.subr.mxu0 0.0
  %1890 = vmatpush2.msra.mxu0 0.0
  %1891 = vmatprep.subr.mxu0 0.0
  %1892 = vmatpush2.msra.mxu0 0.0
  %1893 = vmatprep.subr.mxu0 0.0
  %1894 = vmatpush2.msra.mxu0 0.0
  %1895 = vmatprep.subr.mxu0 0.0
  %1896 = vmatpush2.msra.mxu0 0.0
  %1897 = vmatprep.subr.mxu0 0.0
  %1898 = vmatpush2.msra.mxu0 0.0
  %1899 = vmatprep.subr.mxu0 0.0
  %1900 = vmatpush2.msra.mxu0 0.0
  %1901 = vmatprep.subr.mxu0 %v1559
  %1902 = vmatpush2.msra.mxu0 %v1558
  %1903 = vmatprep.subr.mxu0 %v1547
  %1904 = vmatpush2.msra.mxu0 %v1546
  %1905 = vmatprep.subr.mxu0 %v1535
  %1906 = vmatpush2.msra.mxu0 %v1534
  %1907 = vmatprep.subr.mxu0 %v1523
  %1908 = vmatpush2.msra.mxu0 %v1522
  %1909 = vmatprep.subr.mxu0 %v1511
  %1910 = vmatpush2.msra.mxu0 %v1510
  %1911 = vmatprep.subr.mxu0 %v1499
  %1912 = vmatpush2.msra.mxu0 %v1498
  %1913 = vmatprep.subr.mxu0 %v1487
  %1914 = vmatpush2.msra.mxu0 %v1486
  %1915 = vmatprep.subr.mxu0 %v1475
  %1916 = vmatpush2.msra.mxu0 %v1474
  %1917 = vmatprep.subr.mxu0 %v1463
  %1918 = vmatpush2.msra.mxu0 %v1462
  %1919 = vmatprep.mubr.f32.mxu0 %v1569
  %1920 = vmatmul.mubr.f32.gmra.mxu0 %v1260
  %v1921 = vpop.f32.mrf.mxu0
  %v1922 = vadd.f32 %v1566, %v1921
  %v1923 = vpop.f32.mrf.mxu0
  %v1924 = vadd.f32 %v1566, %v1923
  %1925 = vdwg.mxu0
  %1926 = vmatprep.subr.mxu0 %v1453
  %1927 = vmatpush1.msra.mxu0 %v1452
  %1928 = vmatprep.subr.mxu0 %v1441
  %1929 = vmatpush1.msra.mxu0 %v1440
  %1930 = vmatprep.subr.mxu0 %v1429
  %1931 = vmatpush1.msra.mxu0 %v1428
  %1932 = vmatprep.subr.mxu0 %v1417
  %1933 = vmatpush1.msra.mxu0 %v1416
  %1934 = vmatprep.subr.mxu0 %v1405
  %1935 = vmatpush1.msra.mxu0 %v1404
  %1936 = vmatprep.subr.mxu0 %v1393
  %1937 = vmatpush1.msra.mxu0 %v1392
  %1938 = vmatprep.subr.mxu0 %v1381
  %1939 = vmatpush1.msra.mxu0 %v1380
  %1940 = vmatprep.subr.mxu0 %v1369
  %1941 = vmatpush1.msra.mxu0 %v1368
  %1942 = vmatprep.subr.mxu0 %v1357
  %1943 = vmatpush1.msra.mxu0 %v1356
  %1944 = vmatprep.subr.mxu0 %v1345
  %1945 = vmatpush1.msra.mxu0 %v1344
  %1946 = vmatprep.subr.mxu0 %v1333
  %1947 = vmatpush1.msra.mxu0 %v1332
  %1948 = vmatprep.subr.mxu0 %v1321
  %1949 = vmatpush1.msra.mxu0 %v1320
  %1950 = vmatprep.subr.mxu0 %v1309
  %1951 = vmatpush1.msra.mxu0 %v1308
  %1952 = vmatprep.subr.mxu0 %v1297
  %1953 = vmatpush1.msra.mxu0 %v1296
  %1954 = vmatprep.subr.mxu0 %v1285
  %1955 = vmatpush1.msra.mxu0 %v1284
  %1956 = vmatprep.subr.mxu0 %v1273
  %1957 = vmatpush1.msra.mxu0 %v1272
  %1958 = vmatprep.subr.mxu0 0.0
  %1959 = vmatpush2.msra.mxu0 0.0
  %1960 = vmatprep.subr.mxu0 0.0
  %1961 = vmatpush2.msra.mxu0 0.0
  %1962 = vmatprep.subr.mxu0 0.0
  %1963 = vmatpush2.msra.mxu0 0.0
  %1964 = vmatprep.subr.mxu0 0.0
  %1965 = vmatpush2.msra.mxu0 0.0
  %1966 = vmatprep.subr.mxu0 0.0
  %1967 = vmatpush2.msra.mxu0 0.0
  %1968 = vmatprep.subr.mxu0 0.0
  %1969 = vmatpush2.msra.mxu0 0.0
  %1970 = vmatprep.subr.mxu0 0.0
  %1971 = vmatpush2.msra.mxu0 0.0
  %1972 = vmatprep.subr.mxu0 %v1561
  %1973 = vmatpush2.msra.mxu0 %v1560
  %1974 = vmatprep.subr.mxu0 %v1549
  %1975 = vmatpush2.msra.mxu0 %v1548
  %1976 = vmatprep.subr.mxu0 %v1537
  %1977 = vmatpush2.msra.mxu0 %v1536
  %1978 = vmatprep.subr.mxu0 %v1525
  %1979 = vmatpush2.msra.mxu0 %v1524
  %1980 = vmatprep.subr.mxu0 %v1513
  %1981 = vmatpush2.msra.mxu0 %v1512
  %1982 = vmatprep.subr.mxu0 %v1501
  %1983 = vmatpush2.msra.mxu0 %v1500
  %1984 = vmatprep.subr.mxu0 %v1489
  %1985 = vmatpush2.msra.mxu0 %v1488
  %1986 = vmatprep.subr.mxu0 %v1477
  %1987 = vmatpush2.msra.mxu0 %v1476
  %1988 = vmatprep.subr.mxu0 %v1465
  %1989 = vmatpush2.msra.mxu0 %v1464
  %1990 = vmatprep.mubr.f32.mxu0 %v1569
  %1991 = vmatmul.mubr.f32.gmra.mxu0 %v1260
  %v1992 = vpop.f32.mrf.mxu0
  %v1993 = vadd.f32 %v1566, %v1992
  %v1994 = vpop.f32.mrf.mxu0
  %v1995 = vadd.f32 %v1566, %v1994
  %1996 = vdwg.mxu0
  %2009 = vrot.lane.b32.xlu0 %v1638, 127
  %v2010 = vpop.permute.xlu0 %2009
  %2011 = vrot.lane.b32.xlu0 %v1640, 127
  %v2012 = vpop.permute.xlu0 %2011
  %2013 = vrot.lane.b32.xlu0 %v1709, 127
  %v2014 = vpop.permute.xlu0 %2013
  %2015 = vrot.lane.b32.xlu0 %v1711, 127
  %v2016 = vpop.permute.xlu0 %2015
  %2017 = vrot.lane.b32.xlu0 %v1780, 127
  %v2018 = vpop.permute.xlu0 %2017
  %2019 = vrot.lane.b32.xlu0 %v1782, 127
  %v2020 = vpop.permute.xlu0 %2019
  %2021 = vrot.lane.b32.xlu0 %v1851, 127
  %v2022 = vpop.permute.xlu0 %2021
  %2023 = vrot.lane.b32.xlu0 %v1853, 127
  %v2024 = vpop.permute.xlu0 %2023
  %2025 = vrot.lane.b32.xlu0 %v1922, 127
  %v2026 = vpop.permute.xlu0 %2025
  %2027 = vrot.lane.b32.xlu0 %v1924, 127
  %v2028 = vpop.permute.xlu0 %2027
  %2029 = vrot.lane.b32.xlu0 %v1993, 127
  %v2030 = vpop.permute.xlu0 %2029
  %2031 = vrot.lane.b32.xlu0 %v1995, 127
  %v2032 = vpop.permute.xlu0 %2031
  %v2033 = vsel %vm836, %v2010, %v2012
  %v2034 = vsel %vm836, %v2012, %v2014
  %v2035 = vsel %vm836, %v2014, %v2016
  %v2036 = vsel %vm836, %v2016, %v2018
  %v2037 = vsel %vm836, %v2018, %v2020
  %v2038 = vsel %vm836, %v2020, %v2022
  %v2039 = vsel %vm836, %v2022, %v2024
  %v2040 = vsel %vm836, %v2024, %v2026
  %v2041 = vsel %vm836, %v2026, %v2028
  %v2042 = vsel %vm836, %v2028, %v2030
  %v2043 = vsel %vm836, %v2030, %v2032
  %v2056 = vmax.f32 %v1638, %v2033
  %v2057 = vmax.f32 %v1640, %v2034
  %v2058 = vmax.f32 %v1709, %v2035
  %v2059 = vmax.f32 %v1711, %v2036
  %v2060 = vmax.f32 %v1780, %v2037
  %v2061 = vmax.f32 %v1782, %v2038
  %v2062 = vmax.f32 %v1851, %v2039
  %v2063 = vmax.f32 %v1853, %v2040
  %v2064 = vmax.f32 %v1922, %v2041
  %v2065 = vmax.f32 %v1924, %v2042
  %v2066 = vmax.f32 %v1993, %v2043
  %v2067 = vmax.f32 %v1995, %v2032
  %2080 = vrot.lane.b32.xlu0 %v2056, 100
  %v2081 = vpop.permute.xlu0 %2080
  %2082 = vrot.lane.b32.xlu0 %v2057, 100
  %v2083 = vpop.permute.xlu0 %2082
  %2084 = vrot.lane.b32.xlu0 %v2058, 100
  %v2085 = vpop.permute.xlu0 %2084
  %2086 = vrot.lane.b32.xlu0 %v2059, 100
  %v2087 = vpop.permute.xlu0 %2086
  %2088 = vrot.lane.b32.xlu0 %v2060, 100
  %v2089 = vpop.permute.xlu0 %2088
  %2090 = vrot.lane.b32.xlu0 %v2061, 100
  %v2091 = vpop.permute.xlu0 %2090
  %2092 = vrot.lane.b32.xlu0 %v2062, 100
  %v2093 = vpop.permute.xlu0 %2092
  %2094 = vrot.lane.b32.xlu0 %v2063, 100
  %v2095 = vpop.permute.xlu0 %2094
  %2096 = vrot.lane.b32.xlu0 %v2064, 100
  %v2097 = vpop.permute.xlu0 %2096
  %2098 = vrot.lane.b32.xlu0 %v2065, 100
  %v2099 = vpop.permute.xlu0 %2098
  %2100 = vrot.lane.b32.xlu0 %v2066, 100
  %v2101 = vpop.permute.xlu0 %2100
  %2102 = vrot.lane.b32.xlu0 %v2067, 100
  %v2103 = vpop.permute.xlu0 %2102
  %v2104 = vsel %vm908, %v2081, %v2083
  %v2105 = vsel %vm908, %v2083, %v2085
  %v2106 = vsel %vm908, %v2085, %v2087
  %v2107 = vsel %vm908, %v2087, %v2089
  %v2108 = vsel %vm908, %v2089, %v2091
  %v2109 = vsel %vm908, %v2091, %v2093
  %v2110 = vsel %vm908, %v2093, %v2095
  %v2111 = vsel %vm908, %v2095, %v2097
  %v2112 = vsel %vm908, %v2097, %v2099
  %v2113 = vsel %vm908, %v2099, %v2101
  %v2114 = vsel %vm908, %v2101, %v2103
  %v2127 = vmax.f32 %v2056, %v2104
  %v2128 = vmax.f32 %v2057, %v2105
  %v2129 = vmax.f32 %v2058, %v2106
  %v2130 = vmax.f32 %v2059, %v2107
  %v2131 = vmax.f32 %v2060, %v2108
  %v2132 = vmax.f32 %v2061, %v2109
  %v2133 = vmax.f32 %v2062, %v2110
  %v2134 = vmax.f32 %v2063, %v2111
  %v2135 = vmax.f32 %v2064, %v2112
  %v2136 = vmax.f32 %v2065, %v2113
  %v2137 = vmax.f32 %v2066, %v2114
  %v2138 = vmax.f32 %v2067, %v2103
  %v2139 = vmax.f32 %v2127, 0.0
  %v2140 = vmax.f32 %v2128, 0.0
  %v2141 = vmax.f32 %v2129, 0.0
  %v2142 = vmax.f32 %v2130, 0.0
  %v2143 = vmax.f32 %v2131, 0.0
  %v2144 = vmax.f32 %v2132, 0.0
  %v2145 = vmax.f32 %v2133, 0.0
  %v2146 = vmax.f32 %v2134, 0.0
  %v2147 = vmax.f32 %v2135, 0.0
  %v2148 = vmax.f32 %v2136, 0.0
  %v2149 = vmax.f32 %v2137, 0.0
  %v2150 = vmax.f32 %v2138, 0.0
  %2151 = vst [vmem:[#allocation3] sm:$0x3f] %v2139
  %2152 = vst [vmem:[#allocation3 + $0x8] sm:$0x3f] %v2140
  %2153 = vst [vmem:[#allocation3 + $0x10] sm:$0x3f] %v2141
  %2154 = vst [vmem:[#allocation3 + $0x18] sm:$0x3f] %v2142
  %2155 = vst [vmem:[#allocation3 + $0x20] sm:$0x3f] %v2143
  %2156 = vst [vmem:[#allocation3 + $0x28] sm:$0x3f] %v2144
  %2157 = vst [vmem:[#allocation3 + $0x30] sm:$0x3f] %v2145
  %2158 = vst [vmem:[#allocation3 + $0x38] sm:$0x3f] %v2146
  %2159 = vst [vmem:[#allocation3 + $0x40] sm:$0x3f] %v2147
  %vm2160 = vcmask 316416
  %2161 = vst.msk [vmem:[#allocation3 + $0x48] sm:$0x3f] %vm2160, %v2148
  %2172 = vrot.lane.b32.xlu0 %v2139, 126
  %v2173 = vpop.permute.xlu0 %2172
  %2174 = vrot.lane.b32.xlu0 %v2140, 126
  %v2175 = vpop.permute.xlu0 %2174
  %2176 = vrot.lane.b32.xlu0 %v2141, 126
  %v2177 = vpop.permute.xlu0 %2176
  %2178 = vrot.lane.b32.xlu0 %v2142, 126
  %v2179 = vpop.permute.xlu0 %2178
  %2180 = vrot.lane.b32.xlu0 %v2143, 126
  %v2181 = vpop.permute.xlu0 %2180
  %2182 = vrot.lane.b32.xlu0 %v2144, 126
  %v2183 = vpop.permute.xlu0 %2182
  %2184 = vrot.lane.b32.xlu0 %v2145, 126
  %v2185 = vpop.permute.xlu0 %2184
  %2186 = vrot.lane.b32.xlu0 %v2146, 126
  %v2187 = vpop.permute.xlu0 %2186
  %2188 = vrot.lane.b32.xlu0 %v2147, 126
  %v2189 = vpop.permute.xlu0 %2188
  %2190 = vrot.lane.b32.xlu0 %v2148, 126
  %v2191 = vpop.permute.xlu0 %2190
  %v2192 = vsel %vm854, %v2173, %v2175
  %v2193 = vsel %vm854, %v2175, %v2177
  %v2194 = vsel %vm854, %v2177, %v2179
  %v2195 = vsel %vm854, %v2179, %v2181
  %v2196 = vsel %vm854, %v2181, %v2183
  %v2197 = vsel %vm854, %v2183, %v2185
  %v2198 = vsel %vm854, %v2185, %v2187
  %v2199 = vsel %vm854, %v2187, %v2189
  %v2200 = vsel %vm854, %v2189, %v2191
  %2211 = vst [vmem:[#allocation3 + $0x50] sm:$0x3f] %v2192
  %2212 = vst [vmem:[#allocation3 + $0x58] sm:$0x3f] %v2193
  %2213 = vst [vmem:[#allocation3 + $0x60] sm:$0x3f] %v2194
  %2214 = vst [vmem:[#allocation3 + $0x68] sm:$0x3f] %v2195
  %2215 = vst [vmem:[#allocation3 + $0x70] sm:$0x3f] %v2196
  %2216 = vst [vmem:[#allocation3 + $0x78] sm:$0x3f] %v2197
  %2217 = vst [vmem:[#allocation3 + $0x80] sm:$0x3f] %v2198
  %2218 = vst [vmem:[#allocation3 + $0x88] sm:$0x3f] %v2199
  %2219 = vst [vmem:[#allocation3 + $0x90] sm:$0x3f] %v2200
  %2220 = vst.msk [vmem:[#allocation3 + $0x98] sm:$0x3f] %vm2160, %v2191
  %2221 = vrot.lane.b32.xlu0 %v2139, 124
  %v2222 = vpop.permute.xlu0 %2221
  %2223 = vrot.lane.b32.xlu0 %v2140, 124
  %v2224 = vpop.permute.xlu0 %2223
  %2225 = vrot.lane.b32.xlu0 %v2141, 124
  %v2226 = vpop.permute.xlu0 %2225
  %2227 = vrot.lane.b32.xlu0 %v2142, 124
  %v2228 = vpop.permute.xlu0 %2227
  %2229 = vrot.lane.b32.xlu0 %v2143, 124
  %v2230 = vpop.permute.xlu0 %2229
  %2231 = vrot.lane.b32.xlu0 %v2144, 124
  %v2232 = vpop.permute.xlu0 %2231
  %2233 = vrot.lane.b32.xlu0 %v2145, 124
  %v2234 = vpop.permute.xlu0 %2233
  %2235 = vrot.lane.b32.xlu0 %v2146, 124
  %v2236 = vpop.permute.xlu0 %2235
  %2237 = vrot.lane.b32.xlu0 %v2147, 124
  %v2238 = vpop.permute.xlu0 %2237
  %2239 = vrot.lane.b32.xlu0 %v2148, 124
  %v2240 = vpop.permute.xlu0 %2239
  %v2241 = vsel %vm890, %v2222, %v2224
  %v2242 = vsel %vm890, %v2224, %v2226
  %v2243 = vsel %vm890, %v2226, %v2228
  %v2244 = vsel %vm890, %v2228, %v2230
  %v2245 = vsel %vm890, %v2230, %v2232
  %v2246 = vsel %vm890, %v2232, %v2234
  %v2247 = vsel %vm890, %v2234, %v2236
  %v2248 = vsel %vm890, %v2236, %v2238
  %v2249 = vsel %vm890, %v2238, %v2240
  %2260 = vst [vmem:[#allocation3 + $0xa0] sm:$0x3f] %v2241
  %2261 = vst [vmem:[#allocation3 + $0xa8] sm:$0x3f] %v2242
  %2262 = vst [vmem:[#allocation3 + $0xb0] sm:$0x3f] %v2243
  %2263 = vst [vmem:[#allocation3 + $0xb8] sm:$0x3f] %v2244
  %2264 = vst [vmem:[#allocation3 + $0xc0] sm:$0x3f] %v2245
  %2265 = vst [vmem:[#allocation3 + $0xc8] sm:$0x3f] %v2246
  %2266 = vst [vmem:[#allocation3 + $0xd0] sm:$0x3f] %v2247
  %2267 = vst [vmem:[#allocation3 + $0xd8] sm:$0x3f] %v2248
  %2268 = vst [vmem:[#allocation3 + $0xe0] sm:$0x3f] %v2249
  %2269 = vst.msk [vmem:[#allocation3 + $0xe8] sm:$0x3f] %vm2160, %v2240
  %2270 = vrot.lane.b32.xlu0 %v2139, 122
  %v2271 = vpop.permute.xlu0 %2270
  %2272 = vrot.lane.b32.xlu0 %v2140, 122
  %v2273 = vpop.permute.xlu0 %2272
  %2274 = vrot.lane.b32.xlu0 %v2141, 122
  %v2275 = vpop.permute.xlu0 %2274
  %2276 = vrot.lane.b32.xlu0 %v2142, 122
  %v2277 = vpop.permute.xlu0 %2276
  %2278 = vrot.lane.b32.xlu0 %v2143, 122
  %v2279 = vpop.permute.xlu0 %2278
  %2280 = vrot.lane.b32.xlu0 %v2144, 122
  %v2281 = vpop.permute.xlu0 %2280
  %2282 = vrot.lane.b32.xlu0 %v2145, 122
  %v2283 = vpop.permute.xlu0 %2282
  %2284 = vrot.lane.b32.xlu0 %v2146, 122
  %v2285 = vpop.permute.xlu0 %2284
  %2286 = vrot.lane.b32.xlu0 %v2147, 122
  %v2287 = vpop.permute.xlu0 %2286
  %2288 = vrot.lane.b32.xlu0 %v2148, 122
  %v2289 = vpop.permute.xlu0 %2288
  %vm2290 = vcmask 998400
  %v2291 = vsel %vm2290, %v2271, %v2273
  %v2292 = vsel %vm2290, %v2273, %v2275
  %v2293 = vsel %vm2290, %v2275, %v2277
  %v2294 = vsel %vm2290, %v2277, %v2279
  %v2295 = vsel %vm2290, %v2279, %v2281
  %v2296 = vsel %vm2290, %v2281, %v2283
  %v2297 = vsel %vm2290, %v2283, %v2285
  %v2298 = vsel %vm2290, %v2285, %v2287
  %v2299 = vsel %vm2290, %v2287, %v2289
  %2310 = vst [vmem:[#allocation3 + $0xf0] sm:$0x3f] %v2291
  %2311 = vst [vmem:[#allocation3 + $0xf8] sm:$0x3f] %v2292
  %2312 = vst [vmem:[#allocation3 + $0x100] sm:$0x3f] %v2293
  %2313 = vst [vmem:[#allocation3 + $0x108] sm:$0x3f] %v2294
  %2314 = vst [vmem:[#allocation3 + $0x110] sm:$0x3f] %v2295
  %2315 = vst [vmem:[#allocation3 + $0x118] sm:$0x3f] %v2296
  %2316 = vst [vmem:[#allocation3 + $0x120] sm:$0x3f] %v2297
  %2317 = vst [vmem:[#allocation3 + $0x128] sm:$0x3f] %v2298
  %2318 = vst [vmem:[#allocation3 + $0x130] sm:$0x3f] %v2299
  %2319 = vst.msk [vmem:[#allocation3 + $0x138] sm:$0x3f] %vm2160, %v2289
  %2320 = vrot.lane.b32.xlu0 %v2139, 120
  %v2321 = vpop.permute.xlu0 %2320
  %2322 = vrot.lane.b32.xlu0 %v2140, 120
  %v2323 = vpop.permute.xlu0 %2322
  %2324 = vrot.lane.b32.xlu0 %v2141, 120
  %v2325 = vpop.permute.xlu0 %2324
  %2326 = vrot.lane.b32.xlu0 %v2142, 120
  %v2327 = vpop.permute.xlu0 %2326
  %2328 = vrot.lane.b32.xlu0 %v2143, 120
  %v2329 = vpop.permute.xlu0 %2328
  %2330 = vrot.lane.b32.xlu0 %v2144, 120
  %v2331 = vpop.permute.xlu0 %2330
  %2332 = vrot.lane.b32.xlu0 %v2145, 120
  %v2333 = vpop.permute.xlu0 %2332
  %2334 = vrot.lane.b32.xlu0 %v2146, 120
  %v2335 = vpop.permute.xlu0 %2334
  %2336 = vrot.lane.b32.xlu0 %v2147, 120
  %v2337 = vpop.permute.xlu0 %2336
  %2338 = vrot.lane.b32.xlu0 %v2148, 120
  %v2339 = vpop.permute.xlu0 %2338
  %vm2340 = vcmask 982016
  %v2341 = vsel %vm2340, %v2321, %v2323
  %v2342 = vsel %vm2340, %v2323, %v2325
  %v2343 = vsel %vm2340, %v2325, %v2327
  %v2344 = vsel %vm2340, %v2327, %v2329
  %v2345 = vsel %vm2340, %v2329, %v2331
  %v2346 = vsel %vm2340, %v2331, %v2333
  %v2347 = vsel %vm2340, %v2333, %v2335
  %v2348 = vsel %vm2340, %v2335, %v2337
  %v2349 = vsel %vm2340, %v2337, %v2339
  %2360 = vst [vmem:[#allocation3 + $0x140] sm:$0x3f] %v2341
  %2361 = vst [vmem:[#allocation3 + $0x148] sm:$0x3f] %v2342
  %2362 = vst [vmem:[#allocation3 + $0x150] sm:$0x3f] %v2343
  %2363 = vst [vmem:[#allocation3 + $0x158] sm:$0x3f] %v2344
  %2364 = vst [vmem:[#allocation3 + $0x160] sm:$0x3f] %v2345
  %2365 = vst [vmem:[#allocation3 + $0x168] sm:$0x3f] %v2346
  %2366 = vst [vmem:[#allocation3 + $0x170] sm:$0x3f] %v2347
  %2367 = vst [vmem:[#allocation3 + $0x178] sm:$0x3f] %v2348
  %2368 = vst [vmem:[#allocation3 + $0x180] sm:$0x3f] %v2349
  %2369 = vst.msk [vmem:[#allocation3 + $0x188] sm:$0x3f] %vm2160, %v2339
  %2370 = vrot.lane.b32.xlu0 %v2139, 72
  %v2371 = vpop.permute.xlu0 %2370
  %2372 = vrot.lane.b32.xlu0 %v2140, 72
  %v2373 = vpop.permute.xlu0 %2372
  %2374 = vrot.lane.b32.xlu0 %v2141, 72
  %v2375 = vpop.permute.xlu0 %2374
  %2376 = vrot.lane.b32.xlu0 %v2142, 72
  %v2377 = vpop.permute.xlu0 %2376
  %2378 = vrot.lane.b32.xlu0 %v2143, 72
  %v2379 = vpop.permute.xlu0 %2378
  %2380 = vrot.lane.b32.xlu0 %v2144, 72
  %v2381 = vpop.permute.xlu0 %2380
  %2382 = vrot.lane.b32.xlu0 %v2145, 72
  %v2383 = vpop.permute.xlu0 %2382
  %2384 = vrot.lane.b32.xlu0 %v2146, 72
  %v2385 = vpop.permute.xlu0 %2384
  %2386 = vrot.lane.b32.xlu0 %v2147, 72
  %v2387 = vpop.permute.xlu0 %2386
  %2388 = vrot.lane.b32.xlu0 %v2148, 72
  %v2389 = vpop.permute.xlu0 %2388
  %v2390 = vsel %vm998, %v2371, %v2373
  %v2391 = vsel %vm998, %v2373, %v2375
  %v2392 = vsel %vm998, %v2375, %v2377
  %v2393 = vsel %vm998, %v2377, %v2379
  %v2394 = vsel %vm998, %v2379, %v2381
  %v2395 = vsel %vm998, %v2381, %v2383
  %v2396 = vsel %vm998, %v2383, %v2385
  %v2397 = vsel %vm998, %v2385, %v2387
  %v2398 = vsel %vm998, %v2387, %v2389
  %2409 = vst [vmem:[#allocation3 + $0x190] sm:$0x3f] %v2390
  %2410 = vst [vmem:[#allocation3 + $0x198] sm:$0x3f] %v2391
  %2411 = vst [vmem:[#allocation3 + $0x1a0] sm:$0x3f] %v2392
  %2412 = vst [vmem:[#allocation3 + $0x1a8] sm:$0x3f] %v2393
  %2413 = vst [vmem:[#allocation3 + $0x1b0] sm:$0x3f] %v2394
  %2414 = vst [vmem:[#allocation3 + $0x1b8] sm:$0x3f] %v2395
  %2415 = vst [vmem:[#allocation3 + $0x1c0] sm:$0x3f] %v2396
  %2416 = vst [vmem:[#allocation3 + $0x1c8] sm:$0x3f] %v2397
  %2417 = vst [vmem:[#allocation3 + $0x1d0] sm:$0x3f] %v2398
  %2418 = vst.msk [vmem:[#allocation3 + $0x1d8] sm:$0x3f] %vm2160, %v2389
  %2419 = vrot.lane.b32.xlu0 %v2139, 70
  %v2420 = vpop.permute.xlu0 %2419
  %2421 = vrot.lane.b32.xlu0 %v2140, 70
  %v2422 = vpop.permute.xlu0 %2421
  %2423 = vrot.lane.b32.xlu0 %v2141, 70
  %v2424 = vpop.permute.xlu0 %2423
  %2425 = vrot.lane.b32.xlu0 %v2142, 70
  %v2426 = vpop.permute.xlu0 %2425
  %2427 = vrot.lane.b32.xlu0 %v2143, 70
  %v2428 = vpop.permute.xlu0 %2427
  %2429 = vrot.lane.b32.xlu0 %v2144, 70
  %v2430 = vpop.permute.xlu0 %2429
  %2431 = vrot.lane.b32.xlu0 %v2145, 70
  %v2432 = vpop.permute.xlu0 %2431
  %2433 = vrot.lane.b32.xlu0 %v2146, 70
  %v2434 = vpop.permute.xlu0 %2433
  %2435 = vrot.lane.b32.xlu0 %v2147, 70
  %v2436 = vpop.permute.xlu0 %2435
  %2437 = vrot.lane.b32.xlu0 %v2148, 70
  %v2438 = vpop.permute.xlu0 %2437
  %v2439 = vsel %vm1034, %v2420, %v2422
  %v2440 = vsel %vm1034, %v2422, %v2424
  %v2441 = vsel %vm1034, %v2424, %v2426
  %v2442 = vsel %vm1034, %v2426, %v2428
  %v2443 = vsel %vm1034, %v2428, %v2430
  %v2444 = vsel %vm1034, %v2430, %v2432
  %v2445 = vsel %vm1034, %v2432, %v2434
  %v2446 = vsel %vm1034, %v2434, %v2436
  %v2447 = vsel %vm1034, %v2436, %v2438
  %2458 = vst [vmem:[#allocation3 + $0x1e0] sm:$0x3f] %v2439
  %2459 = vst [vmem:[#allocation3 + $0x1e8] sm:$0x3f] %v2440
  %2460 = vst [vmem:[#allocation3 + $0x1f0] sm:$0x3f] %v2441
  %2461 = vst [vmem:[#allocation3 + $0x1f8] sm:$0x3f] %v2442
  %2462 = vst [vmem:[#allocation3 + $0x200] sm:$0x3f] %v2443
  %2463 = vst [vmem:[#allocation3 + $0x208] sm:$0x3f] %v2444
  %2464 = vst [vmem:[#allocation3 + $0x210] sm:$0x3f] %v2445
  %2465 = vst [vmem:[#allocation3 + $0x218] sm:$0x3f] %v2446
  %2466 = vst [vmem:[#allocation3 + $0x220] sm:$0x3f] %v2447
  %2467 = vst.msk [vmem:[#allocation3 + $0x228] sm:$0x3f] %vm2160, %v2438
  %2468 = vrot.lane.b32.xlu0 %v2139, 68
  %v2469 = vpop.permute.xlu0 %2468
  %2470 = vrot.lane.b32.xlu0 %v2140, 68
  %v2471 = vpop.permute.xlu0 %2470
  %2472 = vrot.lane.b32.xlu0 %v2141, 68
  %v2473 = vpop.permute.xlu0 %2472
  %2474 = vrot.lane.b32.xlu0 %v2142, 68
  %v2475 = vpop.permute.xlu0 %2474
  %2476 = vrot.lane.b32.xlu0 %v2143, 68
  %v2477 = vpop.permute.xlu0 %2476
  %2478 = vrot.lane.b32.xlu0 %v2144, 68
  %v2479 = vpop.permute.xlu0 %2478
  %2480 = vrot.lane.b32.xlu0 %v2145, 68
  %v2481 = vpop.permute.xlu0 %2480
  %2482 = vrot.lane.b32.xlu0 %v2146, 68
  %v2483 = vpop.permute.xlu0 %2482
  %2484 = vrot.lane.b32.xlu0 %v2147, 68
  %v2485 = vpop.permute.xlu0 %2484
  %2486 = vrot.lane.b32.xlu0 %v2148, 68
  %v2487 = vpop.permute.xlu0 %2486
  %v2488 = vsel %vm1070, %v2469, %v2471
  %v2489 = vsel %vm1070, %v2471, %v2473
  %v2490 = vsel %vm1070, %v2473, %v2475
  %v2491 = vsel %vm1070, %v2475, %v2477
  %v2492 = vsel %vm1070, %v2477, %v2479
  %v2493 = vsel %vm1070, %v2479, %v2481
  %v2494 = vsel %vm1070, %v2481, %v2483
  %v2495 = vsel %vm1070, %v2483, %v2485
  %v2496 = vsel %vm1070, %v2485, %v2487
  %2507 = vst [vmem:[#allocation3 + $0x230] sm:$0x3f] %v2488
  %2508 = vst [vmem:[#allocation3 + $0x238] sm:$0x3f] %v2489
  %2509 = vst [vmem:[#allocation3 + $0x240] sm:$0x3f] %v2490
  %2510 = vst [vmem:[#allocation3 + $0x248] sm:$0x3f] %v2491
  %2511 = vst [vmem:[#allocation3 + $0x250] sm:$0x3f] %v2492
  %2512 = vst [vmem:[#allocation3 + $0x258] sm:$0x3f] %v2493
  %2513 = vst [vmem:[#allocation3 + $0x260] sm:$0x3f] %v2494
  %2514 = vst [vmem:[#allocation3 + $0x268] sm:$0x3f] %v2495
  %2515 = vst [vmem:[#allocation3 + $0x270] sm:$0x3f] %v2496
  %2516 = vst.msk [vmem:[#allocation3 + $0x278] sm:$0x3f] %vm2160, %v2487
  %2517 = vrot.lane.b32.xlu0 %v2139, 66
  %v2518 = vpop.permute.xlu0 %2517
  %2519 = vrot.lane.b32.xlu0 %v2140, 66
  %v2520 = vpop.permute.xlu0 %2519
  %2521 = vrot.lane.b32.xlu0 %v2141, 66
  %v2522 = vpop.permute.xlu0 %2521
  %2523 = vrot.lane.b32.xlu0 %v2142, 66
  %v2524 = vpop.permute.xlu0 %2523
  %2525 = vrot.lane.b32.xlu0 %v2143, 66
  %v2526 = vpop.permute.xlu0 %2525
  %2527 = vrot.lane.b32.xlu0 %v2144, 66
  %v2528 = vpop.permute.xlu0 %2527
  %2529 = vrot.lane.b32.xlu0 %v2145, 66
  %v2530 = vpop.permute.xlu0 %2529
  %2531 = vrot.lane.b32.xlu0 %v2146, 66
  %v2532 = vpop.permute.xlu0 %2531
  %2533 = vrot.lane.b32.xlu0 %v2147, 66
  %v2534 = vpop.permute.xlu0 %2533
  %2535 = vrot.lane.b32.xlu0 %v2148, 66
  %v2536 = vpop.permute.xlu0 %2535
  %vm2537 = vcmask 539648
  %v2538 = vsel %vm2537, %v2518, %v2520
  %v2539 = vsel %vm2537, %v2520, %v2522
  %v2540 = vsel %vm2537, %v2522, %v2524
  %v2541 = vsel %vm2537, %v2524, %v2526
  %v2542 = vsel %vm2537, %v2526, %v2528
  %v2543 = vsel %vm2537, %v2528, %v2530
  %v2544 = vsel %vm2537, %v2530, %v2532
  %v2545 = vsel %vm2537, %v2532, %v2534
  %v2546 = vsel %vm2537, %v2534, %v2536
  %2557 = vst [vmem:[#allocation3 + $0x280] sm:$0x3f] %v2538
  %2558 = vst [vmem:[#allocation3 + $0x288] sm:$0x3f] %v2539
  %2559 = vst [vmem:[#allocation3 + $0x290] sm:$0x3f] %v2540
  %2560 = vst [vmem:[#allocation3 + $0x298] sm:$0x3f] %v2541
  %2561 = vst [vmem:[#allocation3 + $0x2a0] sm:$0x3f] %v2542
  %2562 = vst [vmem:[#allocation3 + $0x2a8] sm:$0x3f] %v2543
  %2563 = vst [vmem:[#allocation3 + $0x2b0] sm:$0x3f] %v2544
  %2564 = vst [vmem:[#allocation3 + $0x2b8] sm:$0x3f] %v2545
  %2565 = vst [vmem:[#allocation3 + $0x2c0] sm:$0x3f] %v2546
  %2566 = vst.msk [vmem:[#allocation3 + $0x2c8] sm:$0x3f] %vm2160, %v2536
  %2567 = vrot.lane.b32.xlu0 %v2139, 64
  %v2568 = vpop.permute.xlu0 %2567
  %2569 = vrot.lane.b32.xlu0 %v2140, 64
  %v2570 = vpop.permute.xlu0 %2569
  %2571 = vrot.lane.b32.xlu0 %v2141, 64
  %v2572 = vpop.permute.xlu0 %2571
  %2573 = vrot.lane.b32.xlu0 %v2142, 64
  %v2574 = vpop.permute.xlu0 %2573
  %2575 = vrot.lane.b32.xlu0 %v2143, 64
  %v2576 = vpop.permute.xlu0 %2575
  %2577 = vrot.lane.b32.xlu0 %v2144, 64
  %v2578 = vpop.permute.xlu0 %2577
  %2579 = vrot.lane.b32.xlu0 %v2145, 64
  %v2580 = vpop.permute.xlu0 %2579
  %2581 = vrot.lane.b32.xlu0 %v2146, 64
  %v2582 = vpop.permute.xlu0 %2581
  %2583 = vrot.lane.b32.xlu0 %v2147, 64
  %v2584 = vpop.permute.xlu0 %2583
  %2585 = vrot.lane.b32.xlu0 %v2148, 64
  %v2586 = vpop.permute.xlu0 %2585
  %vm2587 = vcmask 523264
  %v2588 = vsel %vm2587, %v2568, %v2570
  %v2589 = vsel %vm2587, %v2570, %v2572
  %v2590 = vsel %vm2587, %v2572, %v2574
  %v2591 = vsel %vm2587, %v2574, %v2576
  %v2592 = vsel %vm2587, %v2576, %v2578
  %v2593 = vsel %vm2587, %v2578, %v2580
  %v2594 = vsel %vm2587, %v2580, %v2582
  %v2595 = vsel %vm2587, %v2582, %v2584
  %v2596 = vsel %vm2587, %v2584, %v2586
  %2607 = vst [vmem:[#allocation3 + $0x2d0] sm:$0x3f] %v2588
  %2608 = vst [vmem:[#allocation3 + $0x2d8] sm:$0x3f] %v2589
  %2609 = vst [vmem:[#allocation3 + $0x2e0] sm:$0x3f] %v2590
  %2610 = vst [vmem:[#allocation3 + $0x2e8] sm:$0x3f] %v2591
  %2611 = vst [vmem:[#allocation3 + $0x2f0] sm:$0x3f] %v2592
  %2612 = vst [vmem:[#allocation3 + $0x2f8] sm:$0x3f] %v2593
  %2613 = vst [vmem:[#allocation3 + $0x300] sm:$0x3f] %v2594
  %2614 = vst [vmem:[#allocation3 + $0x308] sm:$0x3f] %v2595
  %2615 = vst [vmem:[#allocation3 + $0x310] sm:$0x3f] %v2596
  %2616 = vst.msk [vmem:[#allocation3 + $0x318] sm:$0x3f] %vm2160, %v2586
  %2618 = vrot.lane.b32.xlu0 %v2139, 16
  %v2619 = vpop.permute.xlu0 %2618
  %2620 = vrot.lane.b32.xlu0 %v2140, 16
  %v2621 = vpop.permute.xlu0 %2620
  %2622 = vrot.lane.b32.xlu0 %v2141, 16
  %v2623 = vpop.permute.xlu0 %2622
  %2624 = vrot.lane.b32.xlu0 %v2142, 16
  %v2625 = vpop.permute.xlu0 %2624
  %2626 = vrot.lane.b32.xlu0 %v2143, 16
  %v2627 = vpop.permute.xlu0 %2626
  %2628 = vrot.lane.b32.xlu0 %v2144, 16
  %v2629 = vpop.permute.xlu0 %2628
  %2630 = vrot.lane.b32.xlu0 %v2145, 16
  %v2631 = vpop.permute.xlu0 %2630
  %2632 = vrot.lane.b32.xlu0 %v2146, 16
  %v2633 = vpop.permute.xlu0 %2632
  %2634 = vrot.lane.b32.xlu0 %v2147, 16
  %v2635 = vpop.permute.xlu0 %2634
  %2636 = vrot.lane.b32.xlu0 %v2148, 16
  %v2637 = vpop.permute.xlu0 %2636
  %2638 = vrot.lane.b32.xlu0 %v2149, 16
  %v2639 = vpop.permute.xlu0 %2638
  %v2640 = vsel %vm1177, %v2619, %v2621
  %v2641 = vsel %vm1177, %v2621, %v2623
  %v2642 = vsel %vm1177, %v2623, %v2625
  %v2643 = vsel %vm1177, %v2625, %v2627
  %v2644 = vsel %vm1177, %v2627, %v2629
  %v2645 = vsel %vm1177, %v2629, %v2631
  %v2646 = vsel %vm1177, %v2631, %v2633
  %v2647 = vsel %vm1177, %v2633, %v2635
  %v2648 = vsel %vm1177, %v2635, %v2637
  %v2649 = vsel %vm1177, %v2637, %v2639
  %2660 = vst [vmem:[#allocation3 + $0x320] sm:$0x3f] %v2640
  %2661 = vst [vmem:[#allocation3 + $0x328] sm:$0x3f] %v2641
  %2662 = vst [vmem:[#allocation3 + $0x330] sm:$0x3f] %v2642
  %2663 = vst [vmem:[#allocation3 + $0x338] sm:$0x3f] %v2643
  %2664 = vst [vmem:[#allocation3 + $0x340] sm:$0x3f] %v2644
  %2665 = vst [vmem:[#allocation3 + $0x348] sm:$0x3f] %v2645
  %2666 = vst [vmem:[#allocation3 + $0x350] sm:$0x3f] %v2646
  %2667 = vst [vmem:[#allocation3 + $0x358] sm:$0x3f] %v2647
  %2668 = vst [vmem:[#allocation3 + $0x360] sm:$0x3f] %v2648
  %2669 = vst.msk [vmem:[#allocation3 + $0x368] sm:$0x3f] %vm2160, %v2649
  %2670 = vrot.lane.b32.xlu0 %v2139, 14
  %v2671 = vpop.permute.xlu0 %2670
  %2672 = vrot.lane.b32.xlu0 %v2140, 14
  %v2673 = vpop.permute.xlu0 %2672
  %2674 = vrot.lane.b32.xlu0 %v2141, 14
  %v2675 = vpop.permute.xlu0 %2674
  %2676 = vrot.lane.b32.xlu0 %v2142, 14
  %v2677 = vpop.permute.xlu0 %2676
  %2678 = vrot.lane.b32.xlu0 %v2143, 14
  %v2679 = vpop.permute.xlu0 %2678
  %2680 = vrot.lane.b32.xlu0 %v2144, 14
  %v2681 = vpop.permute.xlu0 %2680
  %2682 = vrot.lane.b32.xlu0 %v2145, 14
  %v2683 = vpop.permute.xlu0 %2682
  %2684 = vrot.lane.b32.xlu0 %v2146, 14
  %v2685 = vpop.permute.xlu0 %2684
  %2686 = vrot.lane.b32.xlu0 %v2147, 14
  %v2687 = vpop.permute.xlu0 %2686
  %2688 = vrot.lane.b32.xlu0 %v2148, 14
  %v2689 = vpop.permute.xlu0 %2688
  %2690 = vrot.lane.b32.xlu0 %v2149, 14
  %v2691 = vpop.permute.xlu0 %2690
  %v2692 = vsel %vm1213, %v2671, %v2673
  %v2693 = vsel %vm1213, %v2673, %v2675
  %v2694 = vsel %vm1213, %v2675, %v2677
  %v2695 = vsel %vm1213, %v2677, %v2679
  %v2696 = vsel %vm1213, %v2679, %v2681
  %v2697 = vsel %vm1213, %v2681, %v2683
  %v2698 = vsel %vm1213, %v2683, %v2685
  %v2699 = vsel %vm1213, %v2685, %v2687
  %v2700 = vsel %vm1213, %v2687, %v2689
  %v2701 = vsel %vm1213, %v2689, %v2691
  %2712 = vst [vmem:[#allocation3 + $0x370] sm:$0x3f] %v2692
  %2713 = vst [vmem:[#allocation3 + $0x378] sm:$0x3f] %v2693
  %2714 = vst [vmem:[#allocation3 + $0x380] sm:$0x3f] %v2694
  %2715 = vst [vmem:[#allocation3 + $0x388] sm:$0x3f] %v2695
  %2716 = vst [vmem:[#allocation3 + $0x390] sm:$0x3f] %v2696
  %2717 = vst [vmem:[#allocation3 + $0x398] sm:$0x3f] %v2697
  %2718 = vst [vmem:[#allocation3 + $0x3a0] sm:$0x3f] %v2698
  %2719 = vst [vmem:[#allocation3 + $0x3a8] sm:$0x3f] %v2699
  %2720 = vst [vmem:[#allocation3 + $0x3b0] sm:$0x3f] %v2700
  %2721 = vst.msk [vmem:[#allocation3 + $0x3b8] sm:$0x3f] %vm2160, %v2701
  %2722 = vrot.lane.b32.xlu0 %v2139, 12
  %v2723 = vpop.permute.xlu0 %2722
  %2724 = vrot.lane.b32.xlu0 %v2140, 12
  %v2725 = vpop.permute.xlu0 %2724
  %2726 = vrot.lane.b32.xlu0 %v2141, 12
  %v2727 = vpop.permute.xlu0 %2726
  %2728 = vrot.lane.b32.xlu0 %v2142, 12
  %v2729 = vpop.permute.xlu0 %2728
  %2730 = vrot.lane.b32.xlu0 %v2143, 12
  %v2731 = vpop.permute.xlu0 %2730
  %2732 = vrot.lane.b32.xlu0 %v2144, 12
  %v2733 = vpop.permute.xlu0 %2732
  %2734 = vrot.lane.b32.xlu0 %v2145, 12
  %v2735 = vpop.permute.xlu0 %2734
  %2736 = vrot.lane.b32.xlu0 %v2146, 12
  %v2737 = vpop.permute.xlu0 %2736
  %2738 = vrot.lane.b32.xlu0 %v2147, 12
  %v2739 = vpop.permute.xlu0 %2738
  %2740 = vrot.lane.b32.xlu0 %v2148, 12
  %v2741 = vpop.permute.xlu0 %2740
  %2742 = vrot.lane.b32.xlu0 %v2149, 12
  %v2743 = vpop.permute.xlu0 %2742
  %v2744 = vsel %vm1249, %v2723, %v2725
  %v2745 = vsel %vm1249, %v2725, %v2727
  %v2746 = vsel %vm1249, %v2727, %v2729
  %v2747 = vsel %vm1249, %v2729, %v2731
  %v2748 = vsel %vm1249, %v2731, %v2733
  %v2749 = vsel %vm1249, %v2733, %v2735
  %v2750 = vsel %vm1249, %v2735, %v2737
  %v2751 = vsel %vm1249, %v2737, %v2739
  %v2752 = vsel %vm1249, %v2739, %v2741
  %v2753 = vsel %vm1249, %v2741, %v2743
  %2764 = vst [vmem:[#allocation3 + $0x3c0] sm:$0x3f] %v2744
  %2765 = vst [vmem:[#allocation3 + $0x3c8] sm:$0x3f] %v2745
  %2766 = vst [vmem:[#allocation3 + $0x3d0] sm:$0x3f] %v2746
  %2767 = vst [vmem:[#allocation3 + $0x3d8] sm:$0x3f] %v2747
  %2768 = vst [vmem:[#allocation3 + $0x3e0] sm:$0x3f] %v2748
  %2769 = vst [vmem:[#allocation3 + $0x3e8] sm:$0x3f] %v2749
  %2770 = vst [vmem:[#allocation3 + $0x3f0] sm:$0x3f] %v2750
  %2771 = vst [vmem:[#allocation3 + $0x3f8] sm:$0x3f] %v2751
  %2772 = vst [vmem:[#allocation3 + $0x400] sm:$0x3f] %v2752
  %2773 = vst.msk [vmem:[#allocation3 + $0x408] sm:$0x3f] %vm2160, %v2753
  %2774 = vrot.lane.b32.xlu0 %v2139, 10
  %v2775 = vpop.permute.xlu0 %2774
  %2776 = vrot.lane.b32.xlu0 %v2140, 10
  %v2777 = vpop.permute.xlu0 %2776
  %2778 = vrot.lane.b32.xlu0 %v2141, 10
  %v2779 = vpop.permute.xlu0 %2778
  %2780 = vrot.lane.b32.xlu0 %v2142, 10
  %v2781 = vpop.permute.xlu0 %2780
  %2782 = vrot.lane.b32.xlu0 %v2143, 10
  %v2783 = vpop.permute.xlu0 %2782
  %2784 = vrot.lane.b32.xlu0 %v2144, 10
  %v2785 = vpop.permute.xlu0 %2784
  %2786 = vrot.lane.b32.xlu0 %v2145, 10
  %v2787 = vpop.permute.xlu0 %2786
  %2788 = vrot.lane.b32.xlu0 %v2146, 10
  %v2789 = vpop.permute.xlu0 %2788
  %2790 = vrot.lane.b32.xlu0 %v2147, 10
  %v2791 = vpop.permute.xlu0 %2790
  %2792 = vrot.lane.b32.xlu0 %v2148, 10
  %v2793 = vpop.permute.xlu0 %2792
  %2794 = vrot.lane.b32.xlu0 %v2149, 10
  %v2795 = vpop.permute.xlu0 %2794
  %vm2796 = vcmask 80896
  %v2797 = vsel %vm2796, %v2775, %v2777
  %v2798 = vsel %vm2796, %v2777, %v2779
  %v2799 = vsel %vm2796, %v2779, %v2781
  %v2800 = vsel %vm2796, %v2781, %v2783
  %v2801 = vsel %vm2796, %v2783, %v2785
  %v2802 = vsel %vm2796, %v2785, %v2787
  %v2803 = vsel %vm2796, %v2787, %v2789
  %v2804 = vsel %vm2796, %v2789, %v2791
  %v2805 = vsel %vm2796, %v2791, %v2793
  %v2806 = vsel %vm2796, %v2793, %v2795
  %2817 = vst [vmem:[#allocation3 + $0x410] sm:$0x3f] %v2797
  %2818 = vst [vmem:[#allocation3 + $0x418] sm:$0x3f] %v2798
  %2819 = vst [vmem:[#allocation3 + $0x420] sm:$0x3f] %v2799
  %2820 = vst [vmem:[#allocation3 + $0x428] sm:$0x3f] %v2800
  %2821 = vst [vmem:[#allocation3 + $0x430] sm:$0x3f] %v2801
  %2822 = vst [vmem:[#allocation3 + $0x438] sm:$0x3f] %v2802
  %2823 = vst [vmem:[#allocation3 + $0x440] sm:$0x3f] %v2803
  %2824 = vst [vmem:[#allocation3 + $0x448] sm:$0x3f] %v2804
  %2825 = vst [vmem:[#allocation3 + $0x450] sm:$0x3f] %v2805
  %2826 = vst.msk [vmem:[#allocation3 + $0x458] sm:$0x3f] %vm2160, %v2806
  %2827 = vrot.lane.b32.xlu0 %v2139, 8
  %v2828 = vpop.permute.xlu0 %2827
  %2829 = vrot.lane.b32.xlu0 %v2140, 8
  %v2830 = vpop.permute.xlu0 %2829
  %2831 = vrot.lane.b32.xlu0 %v2141, 8
  %v2832 = vpop.permute.xlu0 %2831
  %2833 = vrot.lane.b32.xlu0 %v2142, 8
  %v2834 = vpop.permute.xlu0 %2833
  %2835 = vrot.lane.b32.xlu0 %v2143, 8
  %v2836 = vpop.permute.xlu0 %2835
  %2837 = vrot.lane.b32.xlu0 %v2144, 8
  %v2838 = vpop.permute.xlu0 %2837
  %2839 = vrot.lane.b32.xlu0 %v2145, 8
  %v2840 = vpop.permute.xlu0 %2839
  %2841 = vrot.lane.b32.xlu0 %v2146, 8
  %v2842 = vpop.permute.xlu0 %2841
  %2843 = vrot.lane.b32.xlu0 %v2147, 8
  %v2844 = vpop.permute.xlu0 %2843
  %2845 = vrot.lane.b32.xlu0 %v2148, 8
  %v2846 = vpop.permute.xlu0 %2845
  %2847 = vrot.lane.b32.xlu0 %v2149, 8
  %v2848 = vpop.permute.xlu0 %2847
  %vm2849 = vcmask 64512
  %v2850 = vsel %vm2849, %v2828, %v2830
  %v2851 = vsel %vm2849, %v2830, %v2832
  %v2852 = vsel %vm2849, %v2832, %v2834
  %v2853 = vsel %vm2849, %v2834, %v2836
  %v2854 = vsel %vm2849, %v2836, %v2838
  %v2855 = vsel %vm2849, %v2838, %v2840
  %v2856 = vsel %vm2849, %v2840, %v2842
  %v2857 = vsel %vm2849, %v2842, %v2844
  %v2858 = vsel %vm2849, %v2844, %v2846
  %v2859 = vsel %vm2849, %v2846, %v2848
  %2870 = vst [vmem:[#allocation3 + $0x460] sm:$0x3f] %v2850
  %2871 = vst [vmem:[#allocation3 + $0x468] sm:$0x3f] %v2851
  %2872 = vst [vmem:[#allocation3 + $0x470] sm:$0x3f] %v2852
  %2873 = vst [vmem:[#allocation3 + $0x478] sm:$0x3f] %v2853
  %2874 = vst [vmem:[#allocation3 + $0x480] sm:$0x3f] %v2854
  %2875 = vst [vmem:[#allocation3 + $0x488] sm:$0x3f] %v2855
  %2876 = vst [vmem:[#allocation3 + $0x490] sm:$0x3f] %v2856
  %2877 = vst [vmem:[#allocation3 + $0x498] sm:$0x3f] %v2857
  %2878 = vst [vmem:[#allocation3 + $0x4a0] sm:$0x3f] %v2858
  %2879 = vst.msk [vmem:[#allocation3 + $0x4a8] sm:$0x3f] %vm2160, %v2859
  %2880 = vrot.lane.b32.xlu0 %v2140, 88
  %v2881 = vpop.permute.xlu0 %2880
  %2882 = vrot.lane.b32.xlu0 %v2141, 88
  %v2883 = vpop.permute.xlu0 %2882
  %2884 = vrot.lane.b32.xlu0 %v2142, 88
  %v2885 = vpop.permute.xlu0 %2884
  %2886 = vrot.lane.b32.xlu0 %v2143, 88
  %v2887 = vpop.permute.xlu0 %2886
  %2888 = vrot.lane.b32.xlu0 %v2144, 88
  %v2889 = vpop.permute.xlu0 %2888
  %2890 = vrot.lane.b32.xlu0 %v2145, 88
  %v2891 = vpop.permute.xlu0 %2890
  %2892 = vrot.lane.b32.xlu0 %v2146, 88
  %v2893 = vpop.permute.xlu0 %2892
  %2894 = vrot.lane.b32.xlu0 %v2147, 88
  %v2895 = vpop.permute.xlu0 %2894
  %2896 = vrot.lane.b32.xlu0 %v2148, 88
  %v2897 = vpop.permute.xlu0 %2896
  %2898 = vrot.lane.b32.xlu0 %v2149, 88
  %v2899 = vpop.permute.xlu0 %2898
  %vm2900 = vcmask 719872
  %v2901 = vsel %vm2900, %v2881, %v2883
  %v2902 = vsel %vm2900, %v2883, %v2885
  %v2903 = vsel %vm2900, %v2885, %v2887
  %v2904 = vsel %vm2900, %v2887, %v2889
  %v2905 = vsel %vm2900, %v2889, %v2891
  %v2906 = vsel %vm2900, %v2891, %v2893
  %v2907 = vsel %vm2900, %v2893, %v2895
  %v2908 = vsel %vm2900, %v2895, %v2897
  %v2909 = vsel %vm2900, %v2897, %v2899
  %2920 = vst [vmem:[#allocation3 + $0x4b0] sm:$0x3f] %v2901
  %2921 = vst [vmem:[#allocation3 + $0x4b8] sm:$0x3f] %v2902
  %2922 = vst [vmem:[#allocation3 + $0x4c0] sm:$0x3f] %v2903
  %2923 = vst [vmem:[#allocation3 + $0x4c8] sm:$0x3f] %v2904
  %2924 = vst [vmem:[#allocation3 + $0x4d0] sm:$0x3f] %v2905
  %2925 = vst [vmem:[#allocation3 + $0x4d8] sm:$0x3f] %v2906
  %2926 = vst [vmem:[#allocation3 + $0x4e0] sm:$0x3f] %v2907
  %2927 = vst [vmem:[#allocation3 + $0x4e8] sm:$0x3f] %v2908
  %2928 = vst [vmem:[#allocation3 + $0x4f0] sm:$0x3f] %v2909
  %2929 = vst.msk [vmem:[#allocation3 + $0x4f8] sm:$0x3f] %vm2160, %v2899
  %2930 = vrot.lane.b32.xlu0 %v2140, 86
  %v2931 = vpop.permute.xlu0 %2930
  %2932 = vrot.lane.b32.xlu0 %v2141, 86
  %v2933 = vpop.permute.xlu0 %2932
  %2934 = vrot.lane.b32.xlu0 %v2142, 86
  %v2935 = vpop.permute.xlu0 %2934
  %2936 = vrot.lane.b32.xlu0 %v2143, 86
  %v2937 = vpop.permute.xlu0 %2936
  %2938 = vrot.lane.b32.xlu0 %v2144, 86
  %v2939 = vpop.permute.xlu0 %2938
  %2940 = vrot.lane.b32.xlu0 %v2145, 86
  %v2941 = vpop.permute.xlu0 %2940
  %2942 = vrot.lane.b32.xlu0 %v2146, 86
  %v2943 = vpop.permute.xlu0 %2942
  %2944 = vrot.lane.b32.xlu0 %v2147, 86
  %v2945 = vpop.permute.xlu0 %2944
  %2946 = vrot.lane.b32.xlu0 %v2148, 86
  %v2947 = vpop.permute.xlu0 %2946
  %2948 = vrot.lane.b32.xlu0 %v2149, 86
  %v2949 = vpop.permute.xlu0 %2948
  %vm2950 = vcmask 703488
  %v2951 = vsel %vm2950, %v2931, %v2933
  %v2952 = vsel %vm2950, %v2933, %v2935
  %v2953 = vsel %vm2950, %v2935, %v2937
  %v2954 = vsel %vm2950, %v2937, %v2939
  %v2955 = vsel %vm2950, %v2939, %v2941
  %v2956 = vsel %vm2950, %v2941, %v2943
  %v2957 = vsel %vm2950, %v2943, %v2945
  %v2958 = vsel %vm2950, %v2945, %v2947
  %v2959 = vsel %vm2950, %v2947, %v2949
  %2970 = vst [vmem:[#allocation3 + $0x500] sm:$0x3f] %v2951
  %2971 = vst [vmem:[#allocation3 + $0x508] sm:$0x3f] %v2952
  %2972 = vst [vmem:[#allocation3 + $0x510] sm:$0x3f] %v2953
  %2973 = vst [vmem:[#allocation3 + $0x518] sm:$0x3f] %v2954
  %2974 = vst [vmem:[#allocation3 + $0x520] sm:$0x3f] %v2955
  %2975 = vst [vmem:[#allocation3 + $0x528] sm:$0x3f] %v2956
  %2976 = vst [vmem:[#allocation3 + $0x530] sm:$0x3f] %v2957
  %2977 = vst [vmem:[#allocation3 + $0x538] sm:$0x3f] %v2958
  %2978 = vst [vmem:[#allocation3 + $0x540] sm:$0x3f] %v2959
  %2979 = vst.msk [vmem:[#allocation3 + $0x548] sm:$0x3f] %vm2160, %v2949
  %2980 = vrot.lane.b32.xlu0 %v2140, 84
  %v2981 = vpop.permute.xlu0 %2980
  %2982 = vrot.lane.b32.xlu0 %v2141, 84
  %v2983 = vpop.permute.xlu0 %2982
  %2984 = vrot.lane.b32.xlu0 %v2142, 84
  %v2985 = vpop.permute.xlu0 %2984
  %2986 = vrot.lane.b32.xlu0 %v2143, 84
  %v2987 = vpop.permute.xlu0 %2986
  %2988 = vrot.lane.b32.xlu0 %v2144, 84
  %v2989 = vpop.permute.xlu0 %2988
  %2990 = vrot.lane.b32.xlu0 %v2145, 84
  %v2991 = vpop.permute.xlu0 %2990
  %2992 = vrot.lane.b32.xlu0 %v2146, 84
  %v2993 = vpop.permute.xlu0 %2992
  %2994 = vrot.lane.b32.xlu0 %v2147, 84
  %v2995 = vpop.permute.xlu0 %2994
  %2996 = vrot.lane.b32.xlu0 %v2148, 84
  %v2997 = vpop.permute.xlu0 %2996
  %2998 = vrot.lane.b32.xlu0 %v2149, 84
  %v2999 = vpop.permute.xlu0 %2998
  %vm3000 = vcmask 687104
  %v3001 = vsel %vm3000, %v2981, %v2983
  %v3002 = vsel %vm3000, %v2983, %v2985
  %v3003 = vsel %vm3000, %v2985, %v2987
  %v3004 = vsel %vm3000, %v2987, %v2989
  %v3005 = vsel %vm3000, %v2989, %v2991
  %v3006 = vsel %vm3000, %v2991, %v2993
  %v3007 = vsel %vm3000, %v2993, %v2995
  %v3008 = vsel %vm3000, %v2995, %v2997
  %v3009 = vsel %vm3000, %v2997, %v2999
  %3020 = vst [vmem:[#allocation3 + $0x550] sm:$0x3f] %v3001
  %3021 = vst [vmem:[#allocation3 + $0x558] sm:$0x3f] %v3002
  %3022 = vst [vmem:[#allocation3 + $0x560] sm:$0x3f] %v3003
  %3023 = vst [vmem:[#allocation3 + $0x568] sm:$0x3f] %v3004
  %3024 = vst [vmem:[#allocation3 + $0x570] sm:$0x3f] %v3005
  %3025 = vst [vmem:[#allocation3 + $0x578] sm:$0x3f] %v3006
  %3026 = vst [vmem:[#allocation3 + $0x580] sm:$0x3f] %v3007
  %3027 = vst [vmem:[#allocation3 + $0x588] sm:$0x3f] %v3008
  %3028 = vst [vmem:[#allocation3 + $0x590] sm:$0x3f] %v3009
  %3029 = vst.msk [vmem:[#allocation3 + $0x598] sm:$0x3f] %vm2160, %v2999
  %3030 = vrot.lane.b32.xlu0 %v2140, 82
  %v3031 = vpop.permute.xlu0 %3030
  %3032 = vrot.lane.b32.xlu0 %v2141, 82
  %v3033 = vpop.permute.xlu0 %3032
  %3034 = vrot.lane.b32.xlu0 %v2142, 82
  %v3035 = vpop.permute.xlu0 %3034
  %3036 = vrot.lane.b32.xlu0 %v2143, 82
  %v3037 = vpop.permute.xlu0 %3036
  %3038 = vrot.lane.b32.xlu0 %v2144, 82
  %v3039 = vpop.permute.xlu0 %3038
  %3040 = vrot.lane.b32.xlu0 %v2145, 82
  %v3041 = vpop.permute.xlu0 %3040
  %3042 = vrot.lane.b32.xlu0 %v2146, 82
  %v3043 = vpop.permute.xlu0 %3042
  %3044 = vrot.lane.b32.xlu0 %v2147, 82
  %v3045 = vpop.permute.xlu0 %3044
  %3046 = vrot.lane.b32.xlu0 %v2148, 82
  %v3047 = vpop.permute.xlu0 %3046
  %3048 = vrot.lane.b32.xlu0 %v2149, 82
  %v3049 = vpop.permute.xlu0 %3048
  %vm3050 = vcmask 670720
  %v3051 = vsel %vm3050, %v3031, %v3033
  %v3052 = vsel %vm3050, %v3033, %v3035
  %v3053 = vsel %vm3050, %v3035, %v3037
  %v3054 = vsel %vm3050, %v3037, %v3039
  %v3055 = vsel %vm3050, %v3039, %v3041
  %v3056 = vsel %vm3050, %v3041, %v3043
  %v3057 = vsel %vm3050, %v3043, %v3045
  %v3058 = vsel %vm3050, %v3045, %v3047
  %v3059 = vsel %vm3050, %v3047, %v3049
  %3070 = vst [vmem:[#allocation3 + $0x5a0] sm:$0x3f] %v3051
  %3071 = vst [vmem:[#allocation3 + $0x5a8] sm:$0x3f] %v3052
  %3072 = vst [vmem:[#allocation3 + $0x5b0] sm:$0x3f] %v3053
  %3073 = vst [vmem:[#allocation3 + $0x5b8] sm:$0x3f] %v3054
  %3074 = vst [vmem:[#allocation3 + $0x5c0] sm:$0x3f] %v3055
  %3075 = vst [vmem:[#allocation3 + $0x5c8] sm:$0x3f] %v3056
  %3076 = vst [vmem:[#allocation3 + $0x5d0] sm:$0x3f] %v3057
  %3077 = vst [vmem:[#allocation3 + $0x5d8] sm:$0x3f] %v3058
  %3078 = vst [vmem:[#allocation3 + $0x5e0] sm:$0x3f] %v3059
  %3079 = vst.msk [vmem:[#allocation3 + $0x5e8] sm:$0x3f] %vm2160, %v3049
  %3080 = vrot.lane.b32.xlu0 %v2140, 80
  %v3081 = vpop.permute.xlu0 %3080
  %3082 = vrot.lane.b32.xlu0 %v2141, 80
  %v3083 = vpop.permute.xlu0 %3082
  %3084 = vrot.lane.b32.xlu0 %v2142, 80
  %v3085 = vpop.permute.xlu0 %3084
  %3086 = vrot.lane.b32.xlu0 %v2143, 80
  %v3087 = vpop.permute.xlu0 %3086
  %3088 = vrot.lane.b32.xlu0 %v2144, 80
  %v3089 = vpop.permute.xlu0 %3088
  %3090 = vrot.lane.b32.xlu0 %v2145, 80
  %v3091 = vpop.permute.xlu0 %3090
  %3092 = vrot.lane.b32.xlu0 %v2146, 80
  %v3093 = vpop.permute.xlu0 %3092
  %3094 = vrot.lane.b32.xlu0 %v2147, 80
  %v3095 = vpop.permute.xlu0 %3094
  %3096 = vrot.lane.b32.xlu0 %v2148, 80
  %v3097 = vpop.permute.xlu0 %3096
  %3098 = vrot.lane.b32.xlu0 %v2149, 80
  %v3099 = vpop.permute.xlu0 %3098
  %vm3100 = vcmask 654336
  %v3101 = vsel %vm3100, %v3081, %v3083
  %v3102 = vsel %vm3100, %v3083, %v3085
  %v3103 = vsel %vm3100, %v3085, %v3087
  %v3104 = vsel %vm3100, %v3087, %v3089
  %v3105 = vsel %vm3100, %v3089, %v3091
  %v3106 = vsel %vm3100, %v3091, %v3093
  %v3107 = vsel %vm3100, %v3093, %v3095
  %v3108 = vsel %vm3100, %v3095, %v3097
  %v3109 = vsel %vm3100, %v3097, %v3099
  %3120 = vst [vmem:[#allocation3 + $0x5f0] sm:$0x3f] %v3101
  %3121 = vst [vmem:[#allocation3 + $0x5f8] sm:$0x3f] %v3102
  %3122 = vst [vmem:[#allocation3 + $0x600] sm:$0x3f] %v3103
  %3123 = vst [vmem:[#allocation3 + $0x608] sm:$0x3f] %v3104
  %3124 = vst [vmem:[#allocation3 + $0x610] sm:$0x3f] %v3105
  %3125 = vst [vmem:[#allocation3 + $0x618] sm:$0x3f] %v3106
  %3126 = vst [vmem:[#allocation3 + $0x620] sm:$0x3f] %v3107
  %3127 = vst [vmem:[#allocation3 + $0x628] sm:$0x3f] %v3108
  %3128 = vst [vmem:[#allocation3 + $0x630] sm:$0x3f] %v3109
  %3129 = vst.msk [vmem:[#allocation3 + $0x638] sm:$0x3f] %vm2160, %v3099
  %3131 = vrot.lane.b32.xlu0 %v2140, 32
  %v3132 = vpop.permute.xlu0 %3131
  %3133 = vrot.lane.b32.xlu0 %v2141, 32
  %v3134 = vpop.permute.xlu0 %3133
  %3135 = vrot.lane.b32.xlu0 %v2142, 32
  %v3136 = vpop.permute.xlu0 %3135
  %3137 = vrot.lane.b32.xlu0 %v2143, 32
  %v3138 = vpop.permute.xlu0 %3137
  %3139 = vrot.lane.b32.xlu0 %v2144, 32
  %v3140 = vpop.permute.xlu0 %3139
  %3141 = vrot.lane.b32.xlu0 %v2145, 32
  %v3142 = vpop.permute.xlu0 %3141
  %3143 = vrot.lane.b32.xlu0 %v2146, 32
  %v3144 = vpop.permute.xlu0 %3143
  %3145 = vrot.lane.b32.xlu0 %v2147, 32
  %v3146 = vpop.permute.xlu0 %3145
  %3147 = vrot.lane.b32.xlu0 %v2148, 32
  %v3148 = vpop.permute.xlu0 %3147
  %3149 = vrot.lane.b32.xlu0 %v2149, 32
  %v3150 = vpop.permute.xlu0 %3149
  %3151 = vrot.lane.b32.xlu0 %v2150, 32
  %v3152 = vpop.permute.xlu0 %3151
  %vm3153 = vcmask 261120
  %v3154 = vsel %vm3153, %v3132, %v3134
  %v3155 = vsel %vm3153, %v3134, %v3136
  %v3156 = vsel %vm3153, %v3136, %v3138
  %v3157 = vsel %vm3153, %v3138, %v3140
  %v3158 = vsel %vm3153, %v3140, %v3142
  %v3159 = vsel %vm3153, %v3142, %v3144
  %v3160 = vsel %vm3153, %v3144, %v3146
  %v3161 = vsel %vm3153, %v3146, %v3148
  %v3162 = vsel %vm3153, %v3148, %v3150
  %v3163 = vsel %vm3153, %v3150, %v3152
  %3174 = vst [vmem:[#allocation3 + $0x640] sm:$0x3f] %v3154
  %3175 = vst [vmem:[#allocation3 + $0x648] sm:$0x3f] %v3155
  %3176 = vst [vmem:[#allocation3 + $0x650] sm:$0x3f] %v3156
  %3177 = vst [vmem:[#allocation3 + $0x658] sm:$0x3f] %v3157
  %3178 = vst [vmem:[#allocation3 + $0x660] sm:$0x3f] %v3158
  %3179 = vst [vmem:[#allocation3 + $0x668] sm:$0x3f] %v3159
  %3180 = vst [vmem:[#allocation3 + $0x670] sm:$0x3f] %v3160
  %3181 = vst [vmem:[#allocation3 + $0x678] sm:$0x3f] %v3161
  %3182 = vst [vmem:[#allocation3 + $0x680] sm:$0x3f] %v3162
  %3183 = vst.msk [vmem:[#allocation3 + $0x688] sm:$0x3f] %vm2160, %v3163
  %3184 = vrot.lane.b32.xlu0 %v2140, 30
  %v3185 = vpop.permute.xlu0 %3184
  %3186 = vrot.lane.b32.xlu0 %v2141, 30
  %v3187 = vpop.permute.xlu0 %3186
  %3188 = vrot.lane.b32.xlu0 %v2142, 30
  %v3189 = vpop.permute.xlu0 %3188
  %3190 = vrot.lane.b32.xlu0 %v2143, 30
  %v3191 = vpop.permute.xlu0 %3190
  %3192 = vrot.lane.b32.xlu0 %v2144, 30
  %v3193 = vpop.permute.xlu0 %3192
  %3194 = vrot.lane.b32.xlu0 %v2145, 30
  %v3195 = vpop.permute.xlu0 %3194
  %3196 = vrot.lane.b32.xlu0 %v2146, 30
  %v3197 = vpop.permute.xlu0 %3196
  %3198 = vrot.lane.b32.xlu0 %v2147, 30
  %v3199 = vpop.permute.xlu0 %3198
  %3200 = vrot.lane.b32.xlu0 %v2148, 30
  %v3201 = vpop.permute.xlu0 %3200
  %3202 = vrot.lane.b32.xlu0 %v2149, 30
  %v3203 = vpop.permute.xlu0 %3202
  %3204 = vrot.lane.b32.xlu0 %v2150, 30
  %v3205 = vpop.permute.xlu0 %3204
  %vm3206 = vcmask 244736
  %v3207 = vsel %vm3206, %v3185, %v3187
  %v3208 = vsel %vm3206, %v3187, %v3189
  %v3209 = vsel %vm3206, %v3189, %v3191
  %v3210 = vsel %vm3206, %v3191, %v3193
  %v3211 = vsel %vm3206, %v3193, %v3195
  %v3212 = vsel %vm3206, %v3195, %v3197
  %v3213 = vsel %vm3206, %v3197, %v3199
  %v3214 = vsel %vm3206, %v3199, %v3201
  %v3215 = vsel %vm3206, %v3201, %v3203
  %v3216 = vsel %vm3206, %v3203, %v3205
  %3227 = vst [vmem:[#allocation3 + $0x690] sm:$0x3f] %v3207
  %3228 = vst [vmem:[#allocation3 + $0x698] sm:$0x3f] %v3208
  %3229 = vst [vmem:[#allocation3 + $0x6a0] sm:$0x3f] %v3209
  %3230 = vst [vmem:[#allocation3 + $0x6a8] sm:$0x3f] %v3210
  %3231 = vst [vmem:[#allocation3 + $0x6b0] sm:$0x3f] %v3211
  %3232 = vst [vmem:[#allocation3 + $0x6b8] sm:$0x3f] %v3212
  %3233 = vst [vmem:[#allocation3 + $0x6c0] sm:$0x3f] %v3213
  %3234 = vst [vmem:[#allocation3 + $0x6c8] sm:$0x3f] %v3214
  %3235 = vst [vmem:[#allocation3 + $0x6d0] sm:$0x3f] %v3215
  %3236 = vst.msk [vmem:[#allocation3 + $0x6d8] sm:$0x3f] %vm2160, %v3216
  %3237 = vrot.lane.b32.xlu0 %v2140, 28
  %v3238 = vpop.permute.xlu0 %3237
  %3239 = vrot.lane.b32.xlu0 %v2141, 28
  %v3240 = vpop.permute.xlu0 %3239
  %3241 = vrot.lane.b32.xlu0 %v2142, 28
  %v3242 = vpop.permute.xlu0 %3241
  %3243 = vrot.lane.b32.xlu0 %v2143, 28
  %v3244 = vpop.permute.xlu0 %3243
  %3245 = vrot.lane.b32.xlu0 %v2144, 28
  %v3246 = vpop.permute.xlu0 %3245
  %3247 = vrot.lane.b32.xlu0 %v2145, 28
  %v3248 = vpop.permute.xlu0 %3247
  %3249 = vrot.lane.b32.xlu0 %v2146, 28
  %v3250 = vpop.permute.xlu0 %3249
  %3251 = vrot.lane.b32.xlu0 %v2147, 28
  %v3252 = vpop.permute.xlu0 %3251
  %3253 = vrot.lane.b32.xlu0 %v2148, 28
  %v3254 = vpop.permute.xlu0 %3253
  %3255 = vrot.lane.b32.xlu0 %v2149, 28
  %v3256 = vpop.permute.xlu0 %3255
  %3257 = vrot.lane.b32.xlu0 %v2150, 28
  %v3258 = vpop.permute.xlu0 %3257
  %vm3259 = vcmask 228352
  %v3260 = vsel %vm3259, %v3238, %v3240
  %v3261 = vsel %vm3259, %v3240, %v3242
  %v3262 = vsel %vm3259, %v3242, %v3244
  %v3263 = vsel %vm3259, %v3244, %v3246
  %v3264 = vsel %vm3259, %v3246, %v3248
  %v3265 = vsel %vm3259, %v3248, %v3250
  %v3266 = vsel %vm3259, %v3250, %v3252
  %v3267 = vsel %vm3259, %v3252, %v3254
  %v3268 = vsel %vm3259, %v3254, %v3256
  %v3269 = vsel %vm3259, %v3256, %v3258
  %3280 = vst [vmem:[#allocation3 + $0x6e0] sm:$0x3f] %v3260
  %3281 = vst [vmem:[#allocation3 + $0x6e8] sm:$0x3f] %v3261
  %3282 = vst [vmem:[#allocation3 + $0x6f0] sm:$0x3f] %v3262
  %3283 = vst [vmem:[#allocation3 + $0x6f8] sm:$0x3f] %v3263
  %3284 = vst [vmem:[#allocation3 + $0x700] sm:$0x3f] %v3264
  %3285 = vst [vmem:[#allocation3 + $0x708] sm:$0x3f] %v3265
  %3286 = vst [vmem:[#allocation3 + $0x710] sm:$0x3f] %v3266
  %3287 = vst [vmem:[#allocation3 + $0x718] sm:$0x3f] %v3267
  %3288 = vst [vmem:[#allocation3 + $0x720] sm:$0x3f] %v3268
  %3289 = vst.msk [vmem:[#allocation3 + $0x728] sm:$0x3f] %vm2160, %v3269
  %3290 = vrot.lane.b32.xlu0 %v2140, 26
  %v3291 = vpop.permute.xlu0 %3290
  %3292 = vrot.lane.b32.xlu0 %v2141, 26
  %v3293 = vpop.permute.xlu0 %3292
  %3294 = vrot.lane.b32.xlu0 %v2142, 26
  %v3295 = vpop.permute.xlu0 %3294
  %3296 = vrot.lane.b32.xlu0 %v2143, 26
  %v3297 = vpop.permute.xlu0 %3296
  %3298 = vrot.lane.b32.xlu0 %v2144, 26
  %v3299 = vpop.permute.xlu0 %3298
  %3300 = vrot.lane.b32.xlu0 %v2145, 26
  %v3301 = vpop.permute.xlu0 %3300
  %3302 = vrot.lane.b32.xlu0 %v2146, 26
  %v3303 = vpop.permute.xlu0 %3302
  %3304 = vrot.lane.b32.xlu0 %v2147, 26
  %v3305 = vpop.permute.xlu0 %3304
  %3306 = vrot.lane.b32.xlu0 %v2148, 26
  %v3307 = vpop.permute.xlu0 %3306
  %3308 = vrot.lane.b32.xlu0 %v2149, 26
  %v3309 = vpop.permute.xlu0 %3308
  %3310 = vrot.lane.b32.xlu0 %v2150, 26
  %v3311 = vpop.permute.xlu0 %3310
  %vm3312 = vcmask 211968
  %v3313 = vsel %vm3312, %v3291, %v3293
  %v3314 = vsel %vm3312, %v3293, %v3295
  %v3315 = vsel %vm3312, %v3295, %v3297
  %v3316 = vsel %vm3312, %v3297, %v3299
  %v3317 = vsel %vm3312, %v3299, %v3301
  %v3318 = vsel %vm3312, %v3301, %v3303
  %v3319 = vsel %vm3312, %v3303, %v3305
  %v3320 = vsel %vm3312, %v3305, %v3307
  %v3321 = vsel %vm3312, %v3307, %v3309
  %v3322 = vsel %vm3312, %v3309, %v3311
  %3333 = vst [vmem:[#allocation3 + $0x730] sm:$0x3f] %v3313
  %3334 = vst [vmem:[#allocation3 + $0x738] sm:$0x3f] %v3314
  %3335 = vst [vmem:[#allocation3 + $0x740] sm:$0x3f] %v3315
  %3336 = vst [vmem:[#allocation3 + $0x748] sm:$0x3f] %v3316
  %3337 = vst [vmem:[#allocation3 + $0x750] sm:$0x3f] %v3317
  %3338 = vst [vmem:[#allocation3 + $0x758] sm:$0x3f] %v3318
  %3339 = vst [vmem:[#allocation3 + $0x760] sm:$0x3f] %v3319
  %3340 = vst [vmem:[#allocation3 + $0x768] sm:$0x3f] %v3320
  %3341 = vst [vmem:[#allocation3 + $0x770] sm:$0x3f] %v3321
  %3342 = vst.msk [vmem:[#allocation3 + $0x778] sm:$0x3f] %vm2160, %v3322
  %3343 = vrot.lane.b32.xlu0 %v2140, 24
  %v3344 = vpop.permute.xlu0 %3343
  %3345 = vrot.lane.b32.xlu0 %v2141, 24
  %v3346 = vpop.permute.xlu0 %3345
  %3347 = vrot.lane.b32.xlu0 %v2142, 24
  %v3348 = vpop.permute.xlu0 %3347
  %3349 = vrot.lane.b32.xlu0 %v2143, 24
  %v3350 = vpop.permute.xlu0 %3349
  %3351 = vrot.lane.b32.xlu0 %v2144, 24
  %v3352 = vpop.permute.xlu0 %3351
  %3353 = vrot.lane.b32.xlu0 %v2145, 24
  %v3354 = vpop.permute.xlu0 %3353
  %3355 = vrot.lane.b32.xlu0 %v2146, 24
  %v3356 = vpop.permute.xlu0 %3355
  %3357 = vrot.lane.b32.xlu0 %v2147, 24
  %v3358 = vpop.permute.xlu0 %3357
  %3359 = vrot.lane.b32.xlu0 %v2148, 24
  %v3360 = vpop.permute.xlu0 %3359
  %3361 = vrot.lane.b32.xlu0 %v2149, 24
  %v3362 = vpop.permute.xlu0 %3361
  %3363 = vrot.lane.b32.xlu0 %v2150, 24
  %v3364 = vpop.permute.xlu0 %3363
  %vm3365 = vcmask 195584
  %v3366 = vsel %vm3365, %v3344, %v3346
  %v3367 = vsel %vm3365, %v3346, %v3348
  %v3368 = vsel %vm3365, %v3348, %v3350
  %v3369 = vsel %vm3365, %v3350, %v3352
  %v3370 = vsel %vm3365, %v3352, %v3354
  %v3371 = vsel %vm3365, %v3354, %v3356
  %v3372 = vsel %vm3365, %v3356, %v3358
  %v3373 = vsel %vm3365, %v3358, %v3360
  %v3374 = vsel %vm3365, %v3360, %v3362
  %v3375 = vsel %vm3365, %v3362, %v3364
  %3386 = vst [vmem:[#allocation3 + $0x780] sm:$0x3f] %v3366
  %3387 = vst [vmem:[#allocation3 + $0x788] sm:$0x3f] %v3367
  %3388 = vst [vmem:[#allocation3 + $0x790] sm:$0x3f] %v3368
  %3389 = vst [vmem:[#allocation3 + $0x798] sm:$0x3f] %v3369
  %3390 = vst [vmem:[#allocation3 + $0x7a0] sm:$0x3f] %v3370
  %3391 = vst [vmem:[#allocation3 + $0x7a8] sm:$0x3f] %v3371
  %3392 = vst [vmem:[#allocation3 + $0x7b0] sm:$0x3f] %v3372
  %3393 = vst [vmem:[#allocation3 + $0x7b8] sm:$0x3f] %v3373
  %3394 = vst [vmem:[#allocation3 + $0x7c0] sm:$0x3f] %v3374
  %3395 = vst.msk [vmem:[#allocation3 + $0x7c8] sm:$0x3f] %vm2160, %v3375
  %v3396 = vld [vmem:[%s3] sm:$0xff]
  %v3397 = vld [vmem:[%s3 + $0x8] sm:$0xff]
  %v3398 = vld [vmem:[%s3 + $0x10] sm:$0xf]
  %v3399 = vld [vmem:[%s3 + $0x18] sm:$0xf]
  %v3400 = vld [vmem:[#allocation3] sm:$0xff]
  %v3401 = vld [vmem:[#allocation3 + $0x8] sm:$0xff]
  %v3402 = vld [vmem:[#allocation3 + $0x10] sm:$0xff]
  %v3403 = vld [vmem:[#allocation3 + $0x18] sm:$0xff]
  %v3404 = vld [vmem:[#allocation3 + $0x20] sm:$0xff]
  %v3405 = vld [vmem:[#allocation3 + $0x28] sm:$0xff]
  %v3406 = vld [vmem:[#allocation3 + $0x30] sm:$0xff]
  %v3407 = vld [vmem:[#allocation3 + $0x38] sm:$0xff]
  %v3408 = vld [vmem:[#allocation3 + $0x40] sm:$0xff]
  %v3409 = vld [vmem:[#allocation3 + $0x48] sm:$0xff]
  %v3410 = vld [vmem:[#allocation3 + $0x50] sm:$0xff]
  %v3411 = vld [vmem:[#allocation3 + $0x58] sm:$0xff]
  %v3412 = vld [vmem:[#allocation3 + $0x60] sm:$0xff]
  %v3413 = vld [vmem:[#allocation3 + $0x68] sm:$0xff]
  %v3414 = vld [vmem:[#allocation3 + $0x70] sm:$0xff]
  %v3415 = vld [vmem:[#allocation3 + $0x78] sm:$0xff]
  %v3416 = vld [vmem:[#allocation3 + $0x80] sm:$0xff]
  %v3417 = vld [vmem:[#allocation3 + $0x88] sm:$0xff]
  %v3418 = vld [vmem:[#allocation3 + $0x90] sm:$0xff]
  %v3419 = vld [vmem:[#allocation3 + $0x98] sm:$0xff]
  %v3420 = vld [vmem:[#allocation3 + $0xa0] sm:$0xff]
  %v3421 = vld [vmem:[#allocation3 + $0xa8] sm:$0xff]
  %v3422 = vld [vmem:[#allocation3 + $0xb0] sm:$0xff]
  %v3423 = vld [vmem:[#allocation3 + $0xb8] sm:$0xff]
  %v3424 = vld [vmem:[#allocation3 + $0xc0] sm:$0xff]
  %v3425 = vld [vmem:[#allocation3 + $0xc8] sm:$0xff]
  %v3426 = vld [vmem:[#allocation3 + $0xd0] sm:$0xff]
  %v3427 = vld [vmem:[#allocation3 + $0xd8] sm:$0xff]
  %v3428 = vld [vmem:[#allocation3 + $0xe0] sm:$0xff]
  %v3429 = vld [vmem:[#allocation3 + $0xe8] sm:$0xff]
  %v3430 = vld [vmem:[#allocation3 + $0xf0] sm:$0xff]
  %v3431 = vld [vmem:[#allocation3 + $0xf8] sm:$0xff]
  %v3432 = vld [vmem:[#allocation3 + $0x100] sm:$0xff]
  %v3433 = vld [vmem:[#allocation3 + $0x108] sm:$0xff]
  %v3434 = vld [vmem:[#allocation3 + $0x110] sm:$0xff]
  %v3435 = vld [vmem:[#allocation3 + $0x118] sm:$0xff]
  %v3436 = vld [vmem:[#allocation3 + $0x120] sm:$0xff]
  %v3437 = vld [vmem:[#allocation3 + $0x128] sm:$0xff]
  %v3438 = vld [vmem:[#allocation3 + $0x130] sm:$0xff]
  %v3439 = vld [vmem:[#allocation3 + $0x138] sm:$0xff]
  %v3440 = vld [vmem:[#allocation3 + $0x140] sm:$0xff]
  %v3441 = vld [vmem:[#allocation3 + $0x148] sm:$0xff]
  %v3442 = vld [vmem:[#allocation3 + $0x150] sm:$0xff]
  %v3443 = vld [vmem:[#allocation3 + $0x158] sm:$0xff]
  %v3444 = vld [vmem:[#allocation3 + $0x160] sm:$0xff]
  %v3445 = vld [vmem:[#allocation3 + $0x168] sm:$0xff]
  %v3446 = vld [vmem:[#allocation3 + $0x170] sm:$0xff]
  %v3447 = vld [vmem:[#allocation3 + $0x178] sm:$0xff]
  %v3448 = vld [vmem:[#allocation3 + $0x180] sm:$0xff]
  %v3449 = vld [vmem:[#allocation3 + $0x188] sm:$0xff]
  %v3450 = vld [vmem:[#allocation3 + $0x190] sm:$0xff]
  %v3451 = vld [vmem:[#allocation3 + $0x198] sm:$0xff]
  %v3452 = vld [vmem:[#allocation3 + $0x1a0] sm:$0xff]
  %v3453 = vld [vmem:[#allocation3 + $0x1a8] sm:$0xff]
  %v3454 = vld [vmem:[#allocation3 + $0x1b0] sm:$0xff]
  %v3455 = vld [vmem:[#allocation3 + $0x1b8] sm:$0xff]
  %v3456 = vld [vmem:[#allocation3 + $0x1c0] sm:$0xff]
  %v3457 = vld [vmem:[#allocation3 + $0x1c8] sm:$0xff]
  %v3458 = vld [vmem:[#allocation3 + $0x1d0] sm:$0xff]
  %v3459 = vld [vmem:[#allocation3 + $0x1d8] sm:$0xff]
  %v3460 = vld [vmem:[#allocation3 + $0x1e0] sm:$0xff]
  %v3461 = vld [vmem:[#allocation3 + $0x1e8] sm:$0xff]
  %v3462 = vld [vmem:[#allocation3 + $0x1f0] sm:$0xff]
  %v3463 = vld [vmem:[#allocation3 + $0x1f8] sm:$0xff]
  %v3464 = vld [vmem:[#allocation3 + $0x200] sm:$0xff]
  %v3465 = vld [vmem:[#allocation3 + $0x208] sm:$0xff]
  %v3466 = vld [vmem:[#allocation3 + $0x210] sm:$0xff]
  %v3467 = vld [vmem:[#allocation3 + $0x218] sm:$0xff]
  %v3468 = vld [vmem:[#allocation3 + $0x220] sm:$0xff]
  %v3469 = vld [vmem:[#allocation3 + $0x228] sm:$0xff]
  %v3470 = vld [vmem:[#allocation3 + $0x230] sm:$0xff]
  %v3471 = vld [vmem:[#allocation3 + $0x238] sm:$0xff]
  %v3472 = vld [vmem:[#allocation3 + $0x240] sm:$0xff]
  %v3473 = vld [vmem:[#allocation3 + $0x248] sm:$0xff]
  %v3474 = vld [vmem:[#allocation3 + $0x250] sm:$0xff]
  %v3475 = vld [vmem:[#allocation3 + $0x258] sm:$0xff]
  %v3476 = vld [vmem:[#allocation3 + $0x260] sm:$0xff]
  %v3477 = vld [vmem:[#allocation3 + $0x268] sm:$0xff]
  %v3478 = vld [vmem:[#allocation3 + $0x270] sm:$0xff]
  %v3479 = vld [vmem:[#allocation3 + $0x278] sm:$0xff]
  %v3480 = vld [vmem:[#allocation3 + $0x280] sm:$0xff]
  %v3481 = vld [vmem:[#allocation3 + $0x288] sm:$0xff]
  %v3482 = vld [vmem:[#allocation3 + $0x290] sm:$0xff]
  %v3483 = vld [vmem:[#allocation3 + $0x298] sm:$0xff]
  %v3484 = vld [vmem:[#allocation3 + $0x2a0] sm:$0xff]
  %v3485 = vld [vmem:[#allocation3 + $0x2a8] sm:$0xff]
  %v3486 = vld [vmem:[#allocation3 + $0x2b0] sm:$0xff]
  %v3487 = vld [vmem:[#allocation3 + $0x2b8] sm:$0xff]
  %v3488 = vld [vmem:[#allocation3 + $0x2c0] sm:$0xff]
  %v3489 = vld [vmem:[#allocation3 + $0x2c8] sm:$0xff]
  %v3490 = vld [vmem:[#allocation3 + $0x2d0] sm:$0xff]
  %v3491 = vld [vmem:[#allocation3 + $0x2d8] sm:$0xff]
  %v3492 = vld [vmem:[#allocation3 + $0x2e0] sm:$0xff]
  %v3493 = vld [vmem:[#allocation3 + $0x2e8] sm:$0xff]
  %v3494 = vld [vmem:[#allocation3 + $0x2f0] sm:$0xff]
  %v3495 = vld [vmem:[#allocation3 + $0x2f8] sm:$0xff]
  %v3496 = vld [vmem:[#allocation3 + $0x300] sm:$0xff]
  %v3497 = vld [vmem:[#allocation3 + $0x308] sm:$0xff]
  %v3498 = vld [vmem:[#allocation3 + $0x310] sm:$0xff]
  %v3499 = vld [vmem:[#allocation3 + $0x318] sm:$0xff]
  %v3500 = vld [vmem:[#allocation3 + $0x320] sm:$0xff]
  %v3501 = vld [vmem:[#allocation3 + $0x328] sm:$0xff]
  %v3502 = vld [vmem:[#allocation3 + $0x330] sm:$0xff]
  %v3503 = vld [vmem:[#allocation3 + $0x338] sm:$0xff]
  %v3504 = vld [vmem:[#allocation3 + $0x340] sm:$0xff]
  %v3505 = vld [vmem:[#allocation3 + $0x348] sm:$0xff]
  %v3506 = vld [vmem:[#allocation3 + $0x350] sm:$0xff]
  %v3507 = vld [vmem:[#allocation3 + $0x358] sm:$0xff]
  %v3508 = vld [vmem:[#allocation3 + $0x360] sm:$0xff]
  %v3509 = vld [vmem:[#allocation3 + $0x368] sm:$0xff]
  %v3510 = vld [vmem:[#allocation3 + $0x370] sm:$0xff]
  %v3511 = vld [vmem:[#allocation3 + $0x378] sm:$0xff]
  %v3512 = vld [vmem:[#allocation3 + $0x380] sm:$0xff]
  %v3513 = vld [vmem:[#allocation3 + $0x388] sm:$0xff]
  %v3514 = vld [vmem:[#allocation3 + $0x390] sm:$0xff]
  %v3515 = vld [vmem:[#allocation3 + $0x398] sm:$0xff]
  %v3516 = vld [vmem:[#allocation3 + $0x3a0] sm:$0xff]
  %v3517 = vld [vmem:[#allocation3 + $0x3a8] sm:$0xff]
  %v3518 = vld [vmem:[#allocation3 + $0x3b0] sm:$0xff]
  %v3519 = vld [vmem:[#allocation3 + $0x3b8] sm:$0xff]
  %v3520 = vld [vmem:[#allocation3 + $0x3c0] sm:$0xff]
  %v3521 = vld [vmem:[#allocation3 + $0x3c8] sm:$0xff]
  %v3522 = vld [vmem:[#allocation3 + $0x3d0] sm:$0xff]
  %v3523 = vld [vmem:[#allocation3 + $0x3d8] sm:$0xff]
  %v3524 = vld [vmem:[#allocation3 + $0x3e0] sm:$0xff]
  %v3525 = vld [vmem:[#allocation3 + $0x3e8] sm:$0xff]
  %v3526 = vld [vmem:[#allocation3 + $0x3f0] sm:$0xff]
  %v3527 = vld [vmem:[#allocation3 + $0x3f8] sm:$0xff]
  %v3528 = vld [vmem:[#allocation3 + $0x400] sm:$0xff]
  %v3529 = vld [vmem:[#allocation3 + $0x408] sm:$0xff]
  %v3530 = vld [vmem:[#allocation3 + $0x410] sm:$0xff]
  %v3531 = vld [vmem:[#allocation3 + $0x418] sm:$0xff]
  %v3532 = vld [vmem:[#allocation3 + $0x420] sm:$0xff]
  %v3533 = vld [vmem:[#allocation3 + $0x428] sm:$0xff]
  %v3534 = vld [vmem:[#allocation3 + $0x430] sm:$0xff]
  %v3535 = vld [vmem:[#allocation3 + $0x438] sm:$0xff]
  %v3536 = vld [vmem:[#allocation3 + $0x440] sm:$0xff]
  %v3537 = vld [vmem:[#allocation3 + $0x448] sm:$0xff]
  %v3538 = vld [vmem:[#allocation3 + $0x450] sm:$0xff]
  %v3539 = vld [vmem:[#allocation3 + $0x458] sm:$0xff]
  %v3540 = vld [vmem:[#allocation3 + $0x460] sm:$0xff]
  %v3541 = vld [vmem:[#allocation3 + $0x468] sm:$0xff]
  %v3542 = vld [vmem:[#allocation3 + $0x470] sm:$0xff]
  %v3543 = vld [vmem:[#allocation3 + $0x478] sm:$0xff]
  %v3544 = vld [vmem:[#allocation3 + $0x480] sm:$0xff]
  %v3545 = vld [vmem:[#allocation3 + $0x488] sm:$0xff]
  %v3546 = vld [vmem:[#allocation3 + $0x490] sm:$0xff]
  %v3547 = vld [vmem:[#allocation3 + $0x498] sm:$0xff]
  %v3548 = vld [vmem:[#allocation3 + $0x4a0] sm:$0xff]
  %v3549 = vld [vmem:[#allocation3 + $0x4a8] sm:$0xff]
  %v3550 = vld [vmem:[#allocation3 + $0x4b0] sm:$0xff]
  %v3551 = vld [vmem:[#allocation3 + $0x4b8] sm:$0xff]
  %v3552 = vld [vmem:[#allocation3 + $0x4c0] sm:$0xff]
  %v3553 = vld [vmem:[#allocation3 + $0x4c8] sm:$0xff]
  %v3554 = vld [vmem:[#allocation3 + $0x4d0] sm:$0xff]
  %v3555 = vld [vmem:[#allocation3 + $0x4d8] sm:$0xff]
  %v3556 = vld [vmem:[#allocation3 + $0x4e0] sm:$0xff]
  %v3557 = vld [vmem:[#allocation3 + $0x4e8] sm:$0xff]
  %v3558 = vld [vmem:[#allocation3 + $0x4f0] sm:$0xff]
  %v3559 = vld [vmem:[#allocation3 + $0x4f8] sm:$0xff]
  %v3560 = vld [vmem:[#allocation3 + $0x500] sm:$0xff]
  %v3561 = vld [vmem:[#allocation3 + $0x508] sm:$0xff]
  %v3562 = vld [vmem:[#allocation3 + $0x510] sm:$0xff]
  %v3563 = vld [vmem:[#allocation3 + $0x518] sm:$0xff]
  %v3564 = vld [vmem:[#allocation3 + $0x520] sm:$0xff]
  %v3565 = vld [vmem:[#allocation3 + $0x528] sm:$0xff]
  %v3566 = vld [vmem:[#allocation3 + $0x530] sm:$0xff]
  %v3567 = vld [vmem:[#allocation3 + $0x538] sm:$0xff]
  %v3568 = vld [vmem:[#allocation3 + $0x540] sm:$0xff]
  %v3569 = vld [vmem:[#allocation3 + $0x548] sm:$0xff]
  %v3570 = vld [vmem:[#allocation3 + $0x550] sm:$0xff]
  %v3571 = vld [vmem:[#allocation3 + $0x558] sm:$0xff]
  %v3572 = vld [vmem:[#allocation3 + $0x560] sm:$0xff]
  %v3573 = vld [vmem:[#allocation3 + $0x568] sm:$0xff]
  %v3574 = vld [vmem:[#allocation3 + $0x570] sm:$0xff]
  %v3575 = vld [vmem:[#allocation3 + $0x578] sm:$0xff]
  %v3576 = vld [vmem:[#allocation3 + $0x580] sm:$0xff]
  %v3577 = vld [vmem:[#allocation3 + $0x588] sm:$0xff]
  %v3578 = vld [vmem:[#allocation3 + $0x590] sm:$0xff]
  %v3579 = vld [vmem:[#allocation3 + $0x598] sm:$0xff]
  %v3580 = vld [vmem:[#allocation3 + $0x5a0] sm:$0xff]
  %v3581 = vld [vmem:[#allocation3 + $0x5a8] sm:$0xff]
  %v3582 = vld [vmem:[#allocation3 + $0x5b0] sm:$0xff]
  %v3583 = vld [vmem:[#allocation3 + $0x5b8] sm:$0xff]
  %v3584 = vld [vmem:[#allocation3 + $0x5c0] sm:$0xff]
  %v3585 = vld [vmem:[#allocation3 + $0x5c8] sm:$0xff]
  %v3586 = vld [vmem:[#allocation3 + $0x5d0] sm:$0xff]
  %v3587 = vld [vmem:[#allocation3 + $0x5d8] sm:$0xff]
  %v3588 = vld [vmem:[#allocation3 + $0x5e0] sm:$0xff]
  %v3589 = vld [vmem:[#allocation3 + $0x5e8] sm:$0xff]
  %v3590 = vld [vmem:[#allocation3 + $0x5f0] sm:$0xff]
  %v3591 = vld [vmem:[#allocation3 + $0x5f8] sm:$0xff]
  %v3592 = vld [vmem:[#allocation3 + $0x600] sm:$0xff]
  %v3593 = vld [vmem:[#allocation3 + $0x608] sm:$0xff]
  %v3594 = vld [vmem:[#allocation3 + $0x610] sm:$0xff]
  %v3595 = vld [vmem:[#allocation3 + $0x618] sm:$0xff]
  %v3596 = vld [vmem:[#allocation3 + $0x620] sm:$0xff]
  %v3597 = vld [vmem:[#allocation3 + $0x628] sm:$0xff]
  %v3598 = vld [vmem:[#allocation3 + $0x630] sm:$0xff]
  %v3599 = vld [vmem:[#allocation3 + $0x638] sm:$0xff]
  %v3600 = vld [vmem:[#allocation3 + $0x640] sm:$0xff]
  %v3601 = vld [vmem:[#allocation3 + $0x648] sm:$0xff]
  %v3602 = vld [vmem:[#allocation3 + $0x650] sm:$0xff]
  %v3603 = vld [vmem:[#allocation3 + $0x658] sm:$0xff]
  %v3604 = vld [vmem:[#allocation3 + $0x660] sm:$0xff]
  %v3605 = vld [vmem:[#allocation3 + $0x668] sm:$0xff]
  %v3606 = vld [vmem:[#allocation3 + $0x670] sm:$0xff]
  %v3607 = vld [vmem:[#allocation3 + $0x678] sm:$0xff]
  %v3608 = vld [vmem:[#allocation3 + $0x680] sm:$0xff]
  %v3609 = vld [vmem:[#allocation3 + $0x688] sm:$0xff]
  %v3610 = vld [vmem:[#allocation3 + $0x690] sm:$0xff]
  %v3611 = vld [vmem:[#allocation3 + $0x698] sm:$0xff]
  %v3612 = vld [vmem:[#allocation3 + $0x6a0] sm:$0xff]
  %v3613 = vld [vmem:[#allocation3 + $0x6a8] sm:$0xff]
  %v3614 = vld [vmem:[#allocation3 + $0x6b0] sm:$0xff]
  %v3615 = vld [vmem:[#allocation3 + $0x6b8] sm:$0xff]
  %v3616 = vld [vmem:[#allocation3 + $0x6c0] sm:$0xff]
  %v3617 = vld [vmem:[#allocation3 + $0x6c8] sm:$0xff]
  %v3618 = vld [vmem:[#allocation3 + $0x6d0] sm:$0xff]
  %v3619 = vld [vmem:[#allocation3 + $0x6d8] sm:$0xff]
  %v3620 = vld [vmem:[#allocation3 + $0x6e0] sm:$0xff]
  %v3621 = vld [vmem:[#allocation3 + $0x6e8] sm:$0xff]
  %v3622 = vld [vmem:[#allocation3 + $0x6f0] sm:$0xff]
  %v3623 = vld [vmem:[#allocation3 + $0x6f8] sm:$0xff]
  %v3624 = vld [vmem:[#allocation3 + $0x700] sm:$0xff]
  %v3625 = vld [vmem:[#allocation3 + $0x708] sm:$0xff]
  %v3626 = vld [vmem:[#allocation3 + $0x710] sm:$0xff]
  %v3627 = vld [vmem:[#allocation3 + $0x718] sm:$0xff]
  %v3628 = vld [vmem:[#allocation3 + $0x720] sm:$0xff]
  %v3629 = vld [vmem:[#allocation3 + $0x728] sm:$0xff]
  %v3630 = vld [vmem:[#allocation3 + $0x730] sm:$0xff]
  %v3631 = vld [vmem:[#allocation3 + $0x738] sm:$0xff]
  %v3632 = vld [vmem:[#allocation3 + $0x740] sm:$0xff]
  %v3633 = vld [vmem:[#allocation3 + $0x748] sm:$0xff]
  %v3634 = vld [vmem:[#allocation3 + $0x750] sm:$0xff]
  %v3635 = vld [vmem:[#allocation3 + $0x758] sm:$0xff]
  %v3636 = vld [vmem:[#allocation3 + $0x760] sm:$0xff]
  %v3637 = vld [vmem:[#allocation3 + $0x768] sm:$0xff]
  %v3638 = vld [vmem:[#allocation3 + $0x770] sm:$0xff]
  %v3639 = vld [vmem:[#allocation3 + $0x778] sm:$0xff]
  %v3640 = vld [vmem:[#allocation3 + $0x780] sm:$0xff]
  %v3641 = vld [vmem:[#allocation3 + $0x788] sm:$0xff]
  %v3642 = vld [vmem:[#allocation3 + $0x790] sm:$0xff]
  %v3643 = vld [vmem:[#allocation3 + $0x798] sm:$0xff]
  %v3644 = vld [vmem:[#allocation3 + $0x7a0] sm:$0xff]
  %v3645 = vld [vmem:[#allocation3 + $0x7a8] sm:$0xff]
  %v3646 = vld [vmem:[#allocation3 + $0x7b0] sm:$0xff]
  %v3647 = vld [vmem:[#allocation3 + $0x7b8] sm:$0xff]
  %v3648 = vld [vmem:[#allocation3 + $0x7c0] sm:$0xff]
  %v3649 = vld [vmem:[#allocation3 + $0x7c8] sm:$0xff]
  %v3650 = vld [vmem:[%s4] sm:$0xff]
  %v3651 = vld [vmem:[%s4 + $0x8] sm:$0xf]
  %3653 = vset.pattern.permute.xlu0 0
  %3654 = vperm.xlu0 %3653, %v3650
  %v3655 = vpop.permute.xlu0 %3654
  %3658 = vset.pattern.permute.xlu0 0
  %3659 = vperm.xlu0 %3658, %v3651
  %v3660 = vpop.permute.xlu0 %3659
  %v3663 = vsel %vm998, %v3397, 0
  %v3666 = vsel %vm998, %v3399, 0
  %3668 = vmatprep.subr.mxu0 %v3551
  %3669 = vmatpush1.msra.mxu0 %v3550
  %3670 = vmatprep.subr.mxu0 %v3541
  %3671 = vmatpush1.msra.mxu0 %v3540
  %3672 = vmatprep.subr.mxu0 %v3531
  %3673 = vmatpush1.msra.mxu0 %v3530
  %3674 = vmatprep.subr.mxu0 %v3521
  %3675 = vmatpush1.msra.mxu0 %v3520
  %3676 = vmatprep.subr.mxu0 %v3511
  %3677 = vmatpush1.msra.mxu0 %v3510
  %3678 = vmatprep.subr.mxu0 %v3501
  %3679 = vmatpush1.msra.mxu0 %v3500
  %3680 = vmatprep.subr.mxu0 %v3491
  %3681 = vmatpush1.msra.mxu0 %v3490
  %3682 = vmatprep.subr.mxu0 %v3481
  %3683 = vmatpush1.msra.mxu0 %v3480
  %3684 = vmatprep.subr.mxu0 %v3471
  %3685 = vmatpush1.msra.mxu0 %v3470
  %3686 = vmatprep.subr.mxu0 %v3461
  %3687 = vmatpush1.msra.mxu0 %v3460
  %3688 = vmatprep.subr.mxu0 %v3451
  %3689 = vmatpush1.msra.mxu0 %v3450
  %3690 = vmatprep.subr.mxu0 %v3441
  %3691 = vmatpush1.msra.mxu0 %v3440
  %3692 = vmatprep.subr.mxu0 %v3431
  %3693 = vmatpush1.msra.mxu0 %v3430
  %3694 = vmatprep.subr.mxu0 %v3421
  %3695 = vmatpush1.msra.mxu0 %v3420
  %3696 = vmatprep.subr.mxu0 %v3411
  %3697 = vmatpush1.msra.mxu0 %v3410
  %3698 = vmatprep.subr.mxu0 %v3401
  %3699 = vmatpush1.msra.mxu0 %v3400
  %3700 = vmatprep.subr.mxu0 0.0
  %3701 = vmatpush2.msra.mxu0 0.0
  %3702 = vmatprep.subr.mxu0 0.0
  %3703 = vmatpush2.msra.mxu0 0.0
  %3704 = vmatprep.subr.mxu0 0.0
  %3705 = vmatpush2.msra.mxu0 0.0
  %3706 = vmatprep.subr.mxu0 0.0
  %3707 = vmatpush2.msra.mxu0 0.0
  %3708 = vmatprep.subr.mxu0 0.0
  %3709 = vmatpush2.msra.mxu0 0.0
  %3710 = vmatprep.subr.mxu0 0.0
  %3711 = vmatpush2.msra.mxu0 0.0
  %3712 = vmatprep.subr.mxu0 0.0
  %3713 = vmatpush2.msra.mxu0 0.0
  %3714 = vmatprep.subr.mxu0 %v3641
  %3715 = vmatpush2.msra.mxu0 %v3640
  %3716 = vmatprep.subr.mxu0 %v3631
  %3717 = vmatpush2.msra.mxu0 %v3630
  %3718 = vmatprep.subr.mxu0 %v3621
  %3719 = vmatpush2.msra.mxu0 %v3620
  %3720 = vmatprep.subr.mxu0 %v3611
  %3721 = vmatpush2.msra.mxu0 %v3610
  %3722 = vmatprep.subr.mxu0 %v3601
  %3723 = vmatpush2.msra.mxu0 %v3600
  %3724 = vmatprep.subr.mxu0 %v3591
  %3725 = vmatpush2.msra.mxu0 %v3590
  %3726 = vmatprep.subr.mxu0 %v3581
  %3727 = vmatpush2.msra.mxu0 %v3580
  %3728 = vmatprep.subr.mxu0 %v3571
  %3729 = vmatpush2.msra.mxu0 %v3570
  %3730 = vmatprep.subr.mxu0 %v3561
  %3731 = vmatpush2.msra.mxu0 %v3560
  %3732 = vmatprep.mubr.f32.mxu0 %v3663
  %3733 = vmatmul.mubr.f32.gmra.mxu0 %v3396
  %v3734 = vpop.f32.mrf.mxu0
  %v3735 = vadd.f32 %v3655, %v3734
  %v3736 = vpop.f32.mrf.mxu0
  %v3737 = vadd.f32 %v3655, %v3736
  %3738 = vmatprep.mubr.f32.mxu0 %v3666
  %3739 = vmatmul.mubr.f32.gmra.mxu0 %v3398
  %v3740 = vpop.f32.mrf.mxu0
  %v3741 = vadd.f32 %v3660, %v3740
  %v3742 = vpop.f32.mrf.mxu0
  %v3743 = vadd.f32 %v3660, %v3742
  %3744 = vdwg.mxu0
  %3745 = vmatprep.subr.mxu0 %v3553
  %3746 = vmatpush1.msra.mxu0 %v3552
  %3747 = vmatprep.subr.mxu0 %v3543
  %3748 = vmatpush1.msra.mxu0 %v3542
  %3749 = vmatprep.subr.mxu0 %v3533
  %3750 = vmatpush1.msra.mxu0 %v3532
  %3751 = vmatprep.subr.mxu0 %v3523
  %3752 = vmatpush1.msra.mxu0 %v3522
  %3753 = vmatprep.subr.mxu0 %v3513
  %3754 = vmatpush1.msra.mxu0 %v3512
  %3755 = vmatprep.subr.mxu0 %v3503
  %3756 = vmatpush1.msra.mxu0 %v3502
  %3757 = vmatprep.subr.mxu0 %v3493
  %3758 = vmatpush1.msra.mxu0 %v3492
  %3759 = vmatprep.subr.mxu0 %v3483
  %3760 = vmatpush1.msra.mxu0 %v3482
  %3761 = vmatprep.subr.mxu0 %v3473
  %3762 = vmatpush1.msra.mxu0 %v3472
  %3763 = vmatprep.subr.mxu0 %v3463
  %3764 = vmatpush1.msra.mxu0 %v3462
  %3765 = vmatprep.subr.mxu0 %v3453
  %3766 = vmatpush1.msra.mxu0 %v3452
  %3767 = vmatprep.subr.mxu0 %v3443
  %3768 = vmatpush1.msra.mxu0 %v3442
  %3769 = vmatprep.subr.mxu0 %v3433
  %3770 = vmatpush1.msra.mxu0 %v3432
  %3771 = vmatprep.subr.mxu0 %v3423
  %3772 = vmatpush1.msra.mxu0 %v3422
  %3773 = vmatprep.subr.mxu0 %v3413
  %3774 = vmatpush1.msra.mxu0 %v3412
  %3775 = vmatprep.subr.mxu0 %v3403
  %3776 = vmatpush1.msra.mxu0 %v3402
  %3777 = vmatprep.subr.mxu0 0.0
  %3778 = vmatpush2.msra.mxu0 0.0
  %3779 = vmatprep.subr.mxu0 0.0
  %3780 = vmatpush2.msra.mxu0 0.0
  %3781 = vmatprep.subr.mxu0 0.0
  %3782 = vmatpush2.msra.mxu0 0.0
  %3783 = vmatprep.subr.mxu0 0.0
  %3784 = vmatpush2.msra.mxu0 0.0
  %3785 = vmatprep.subr.mxu0 0.0
  %3786 = vmatpush2.msra.mxu0 0.0
  %3787 = vmatprep.subr.mxu0 0.0
  %3788 = vmatpush2.msra.mxu0 0.0
  %3789 = vmatprep.subr.mxu0 0.0
  %3790 = vmatpush2.msra.mxu0 0.0
  %3791 = vmatprep.subr.mxu0 %v3643
  %3792 = vmatpush2.msra.mxu0 %v3642
  %3793 = vmatprep.subr.mxu0 %v3633
  %3794 = vmatpush2.msra.mxu0 %v3632
  %3795 = vmatprep.subr.mxu0 %v3623
  %3796 = vmatpush2.msra.mxu0 %v3622
  %3797 = vmatprep.subr.mxu0 %v3613
  %3798 = vmatpush2.msra.mxu0 %v3612
  %3799 = vmatprep.subr.mxu0 %v3603
  %3800 = vmatpush2.msra.mxu0 %v3602
  %3801 = vmatprep.subr.mxu0 %v3593
  %3802 = vmatpush2.msra.mxu0 %v3592
  %3803 = vmatprep.subr.mxu0 %v3583
  %3804 = vmatpush2.msra.mxu0 %v3582
  %3805 = vmatprep.subr.mxu0 %v3573
  %3806 = vmatpush2.msra.mxu0 %v3572
  %3807 = vmatprep.subr.mxu0 %v3563
  %3808 = vmatpush2.msra.mxu0 %v3562
  %3809 = vmatprep.mubr.f32.mxu0 %v3663
  %3810 = vmatmul.mubr.f32.gmra.mxu0 %v3396
  %v3811 = vpop.f32.mrf.mxu0
  %v3812 = vadd.f32 %v3655, %v3811
  %v3813 = vpop.f32.mrf.mxu0
  %v3814 = vadd.f32 %v3655, %v3813
  %3815 = vmatprep.mubr.f32.mxu0 %v3666
  %3816 = vmatmul.mubr.f32.gmra.mxu0 %v3398
  %v3817 = vpop.f32.mrf.mxu0
  %v3818 = vadd.f32 %v3660, %v3817
  %v3819 = vpop.f32.mrf.mxu0
  %v3820 = vadd.f32 %v3660, %v3819
  %3821 = vdwg.mxu0
  %3822 = vmatprep.subr.mxu0 %v3555
  %3823 = vmatpush1.msra.mxu0 %v3554
  %3824 = vmatprep.subr.mxu0 %v3545
  %3825 = vmatpush1.msra.mxu0 %v3544
  %3826 = vmatprep.subr.mxu0 %v3535
  %3827 = vmatpush1.msra.mxu0 %v3534
  %3828 = vmatprep.subr.mxu0 %v3525
  %3829 = vmatpush1.msra.mxu0 %v3524
  %3830 = vmatprep.subr.mxu0 %v3515
  %3831 = vmatpush1.msra.mxu0 %v3514
  %3832 = vmatprep.subr.mxu0 %v3505
  %3833 = vmatpush1.msra.mxu0 %v3504
  %3834 = vmatprep.subr.mxu0 %v3495
  %3835 = vmatpush1.msra.mxu0 %v3494
  %3836 = vmatprep.subr.mxu0 %v3485
  %3837 = vmatpush1.msra.mxu0 %v3484
  %3838 = vmatprep.subr.mxu0 %v3475
  %3839 = vmatpush1.msra.mxu0 %v3474
  %3840 = vmatprep.subr.mxu0 %v3465
  %3841 = vmatpush1.msra.mxu0 %v3464
  %3842 = vmatprep.subr.mxu0 %v3455
  %3843 = vmatpush1.msra.mxu0 %v3454
  %3844 = vmatprep.subr.mxu0 %v3445
  %3845 = vmatpush1.msra.mxu0 %v3444
  %3846 = vmatprep.subr.mxu0 %v3435
  %3847 = vmatpush1.msra.mxu0 %v3434
  %3848 = vmatprep.subr.mxu0 %v3425
  %3849 = vmatpush1.msra.mxu0 %v3424
  %3850 = vmatprep.subr.mxu0 %v3415
  %3851 = vmatpush1.msra.mxu0 %v3414
  %3852 = vmatprep.subr.mxu0 %v3405
  %3853 = vmatpush1.msra.mxu0 %v3404
  %3854 = vmatprep.subr.mxu0 0.0
  %3855 = vmatpush2.msra.mxu0 0.0
  %3856 = vmatprep.subr.mxu0 0.0
  %3857 = vmatpush2.msra.mxu0 0.0
  %3858 = vmatprep.subr.mxu0 0.0
  %3859 = vmatpush2.msra.mxu0 0.0
  %3860 = vmatprep.subr.mxu0 0.0
  %3861 = vmatpush2.msra.mxu0 0.0
  %3862 = vmatprep.subr.mxu0 0.0
  %3863 = vmatpush2.msra.mxu0 0.0
  %3864 = vmatprep.subr.mxu0 0.0
  %3865 = vmatpush2.msra.mxu0 0.0
  %3866 = vmatprep.subr.mxu0 0.0
  %3867 = vmatpush2.msra.mxu0 0.0
  %3868 = vmatprep.subr.mxu0 %v3645
  %3869 = vmatpush2.msra.mxu0 %v3644
  %3870 = vmatprep.subr.mxu0 %v3635
  %3871 = vmatpush2.msra.mxu0 %v3634
  %3872 = vmatprep.subr.mxu0 %v3625
  %3873 = vmatpush2.msra.mxu0 %v3624
  %3874 = vmatprep.subr.mxu0 %v3615
  %3875 = vmatpush2.msra.mxu0 %v3614
  %3876 = vmatprep.subr.mxu0 %v3605
  %3877 = vmatpush2.msra.mxu0 %v3604
  %3878 = vmatprep.subr.mxu0 %v3595
  %3879 = vmatpush2.msra.mxu0 %v3594
  %3880 = vmatprep.subr.mxu0 %v3585
  %3881 = vmatpush2.msra.mxu0 %v3584
  %3882 = vmatprep.subr.mxu0 %v3575
  %3883 = vmatpush2.msra.mxu0 %v3574
  %3884 = vmatprep.subr.mxu0 %v3565
  %3885 = vmatpush2.msra.mxu0 %v3564
  %3886 = vmatprep.mubr.f32.mxu0 %v3663
  %3887 = vmatmul.mubr.f32.gmra.mxu0 %v3396
  %v3888 = vpop.f32.mrf.mxu0
  %v3889 = vadd.f32 %v3655, %v3888
  %v3890 = vpop.f32.mrf.mxu0
  %v3891 = vadd.f32 %v3655, %v3890
  %3892 = vmatprep.mubr.f32.mxu0 %v3666
  %3893 = vmatmul.mubr.f32.gmra.mxu0 %v3398
  %v3894 = vpop.f32.mrf.mxu0
  %v3895 = vadd.f32 %v3660, %v3894
  %v3896 = vpop.f32.mrf.mxu0
  %v3897 = vadd.f32 %v3660, %v3896
  %3898 = vdwg.mxu0
  %3899 = vmatprep.subr.mxu0 %v3557
  %3900 = vmatpush1.msra.mxu0 %v3556
  %3901 = vmatprep.subr.mxu0 %v3547
  %3902 = vmatpush1.msra.mxu0 %v3546
  %3903 = vmatprep.subr.mxu0 %v3537
  %3904 = vmatpush1.msra.mxu0 %v3536
  %3905 = vmatprep.subr.mxu0 %v3527
  %3906 = vmatpush1.msra.mxu0 %v3526
  %3907 = vmatprep.subr.mxu0 %v3517
  %3908 = vmatpush1.msra.mxu0 %v3516
  %3909 = vmatprep.subr.mxu0 %v3507
  %3910 = vmatpush1.msra.mxu0 %v3506
  %3911 = vmatprep.subr.mxu0 %v3497
  %3912 = vmatpush1.msra.mxu0 %v3496
  %3913 = vmatprep.subr.mxu0 %v3487
  %3914 = vmatpush1.msra.mxu0 %v3486
  %3915 = vmatprep.subr.mxu0 %v3477
  %3916 = vmatpush1.msra.mxu0 %v3476
  %3917 = vmatprep.subr.mxu0 %v3467
  %3918 = vmatpush1.msra.mxu0 %v3466
  %3919 = vmatprep.subr.mxu0 %v3457
  %3920 = vmatpush1.msra.mxu0 %v3456
  %3921 = vmatprep.subr.mxu0 %v3447
  %3922 = vmatpush1.msra.mxu0 %v3446
  %3923 = vmatprep.subr.mxu0 %v3437
  %3924 = vmatpush1.msra.mxu0 %v3436
  %3925 = vmatprep.subr.mxu0 %v3427
  %3926 = vmatpush1.msra.mxu0 %v3426
  %3927 = vmatprep.subr.mxu0 %v3417
  %3928 = vmatpush1.msra.mxu0 %v3416
  %3929 = vmatprep.subr.mxu0 %v3407
  %3930 = vmatpush1.msra.mxu0 %v3406
  %3931 = vmatprep.subr.mxu0 0.0
  %3932 = vmatpush2.msra.mxu0 0.0
  %3933 = vmatprep.subr.mxu0 0.0
  %3934 = vmatpush2.msra.mxu0 0.0
  %3935 = vmatprep.subr.mxu0 0.0
  %3936 = vmatpush2.msra.mxu0 0.0
  %3937 = vmatprep.subr.mxu0 0.0
  %3938 = vmatpush2.msra.mxu0 0.0
  %3939 = vmatprep.subr.mxu0 0.0
  %3940 = vmatpush2.msra.mxu0 0.0
  %3941 = vmatprep.subr.mxu0 0.0
  %3942 = vmatpush2.msra.mxu0 0.0
  %3943 = vmatprep.subr.mxu0 0.0
  %3944 = vmatpush2.msra.mxu0 0.0
  %3945 = vmatprep.subr.mxu0 %v3647
  %3946 = vmatpush2.msra.mxu0 %v3646
  %3947 = vmatprep.subr.mxu0 %v3637
  %3948 = vmatpush2.msra.mxu0 %v3636
  %3949 = vmatprep.subr.mxu0 %v3627
  %3950 = vmatpush2.msra.mxu0 %v3626
  %3951 = vmatprep.subr.mxu0 %v3617
  %3952 = vmatpush2.msra.mxu0 %v3616
  %3953 = vmatprep.subr.mxu0 %v3607
  %3954 = vmatpush2.msra.mxu0 %v3606
  %3955 = vmatprep.subr.mxu0 %v3597
  %3956 = vmatpush2.msra.mxu0 %v3596
  %3957 = vmatprep.subr.mxu0 %v3587
  %3958 = vmatpush2.msra.mxu0 %v3586
  %3959 = vmatprep.subr.mxu0 %v3577
  %3960 = vmatpush2.msra.mxu0 %v3576
  %3961 = vmatprep.subr.mxu0 %v3567
  %3962 = vmatpush2.msra.mxu0 %v3566
  %3963 = vmatprep.mubr.f32.mxu0 %v3663
  %3964 = vmatmul.mubr.f32.gmra.mxu0 %v3396
  %v3965 = vpop.f32.mrf.mxu0
  %v3966 = vadd.f32 %v3655, %v3965
  %v3967 = vpop.f32.mrf.mxu0
  %v3968 = vadd.f32 %v3655, %v3967
  %3969 = vmatprep.mubr.f32.mxu0 %v3666
  %3970 = vmatmul.mubr.f32.gmra.mxu0 %v3398
  %v3971 = vpop.f32.mrf.mxu0
  %v3972 = vadd.f32 %v3660, %v3971
  %v3973 = vpop.f32.mrf.mxu0
  %v3974 = vadd.f32 %v3660, %v3973
  %3975 = vdwg.mxu0
  %3976 = vmatprep.subr.mxu0 %v3559
  %3977 = vmatpush1.msra.mxu0 %v3558
  %3978 = vmatprep.subr.mxu0 %v3549
  %3979 = vmatpush1.msra.mxu0 %v3548
  %3980 = vmatprep.subr.mxu0 %v3539
  %3981 = vmatpush1.msra.mxu0 %v3538
  %3982 = vmatprep.subr.mxu0 %v3529
  %3983 = vmatpush1.msra.mxu0 %v3528
  %3984 = vmatprep.subr.mxu0 %v3519
  %3985 = vmatpush1.msra.mxu0 %v3518
  %3986 = vmatprep.subr.mxu0 %v3509
  %3987 = vmatpush1.msra.mxu0 %v3508
  %3988 = vmatprep.subr.mxu0 %v3499
  %3989 = vmatpush1.msra.mxu0 %v3498
  %3990 = vmatprep.subr.mxu0 %v3489
  %3991 = vmatpush1.msra.mxu0 %v3488
  %3992 = vmatprep.subr.mxu0 %v3479
  %3993 = vmatpush1.msra.mxu0 %v3478
  %3994 = vmatprep.subr.mxu0 %v3469
  %3995 = vmatpush1.msra.mxu0 %v3468
  %3996 = vmatprep.subr.mxu0 %v3459
  %3997 = vmatpush1.msra.mxu0 %v3458
  %3998 = vmatprep.subr.mxu0 %v3449
  %3999 = vmatpush1.msra.mxu0 %v3448
  %4000 = vmatprep.subr.mxu0 %v3439
  %4001 = vmatpush1.msra.mxu0 %v3438
  %4002 = vmatprep.subr.mxu0 %v3429
  %4003 = vmatpush1.msra.mxu0 %v3428
  %4004 = vmatprep.subr.mxu0 %v3419
  %4005 = vmatpush1.msra.mxu0 %v3418
  %4006 = vmatprep.subr.mxu0 %v3409
  %4007 = vmatpush1.msra.mxu0 %v3408
  %4008 = vmatprep.subr.mxu0 0.0
  %4009 = vmatpush2.msra.mxu0 0.0
  %4010 = vmatprep.subr.mxu0 0.0
  %4011 = vmatpush2.msra.mxu0 0.0
  %4012 = vmatprep.subr.mxu0 0.0
  %4013 = vmatpush2.msra.mxu0 0.0
  %4014 = vmatprep.subr.mxu0 0.0
  %4015 = vmatpush2.msra.mxu0 0.0
  %4016 = vmatprep.subr.mxu0 0.0
  %4017 = vmatpush2.msra.mxu0 0.0
  %4018 = vmatprep.subr.mxu0 0.0
  %4019 = vmatpush2.msra.mxu0 0.0
  %4020 = vmatprep.subr.mxu0 0.0
  %4021 = vmatpush2.msra.mxu0 0.0
  %4022 = vmatprep.subr.mxu0 %v3649
  %4023 = vmatpush2.msra.mxu0 %v3648
  %4024 = vmatprep.subr.mxu0 %v3639
  %4025 = vmatpush2.msra.mxu0 %v3638
  %4026 = vmatprep.subr.mxu0 %v3629
  %4027 = vmatpush2.msra.mxu0 %v3628
  %4028 = vmatprep.subr.mxu0 %v3619
  %4029 = vmatpush2.msra.mxu0 %v3618
  %4030 = vmatprep.subr.mxu0 %v3609
  %4031 = vmatpush2.msra.mxu0 %v3608
  %4032 = vmatprep.subr.mxu0 %v3599
  %4033 = vmatpush2.msra.mxu0 %v3598
  %4034 = vmatprep.subr.mxu0 %v3589
  %4035 = vmatpush2.msra.mxu0 %v3588
  %4036 = vmatprep.subr.mxu0 %v3579
  %4037 = vmatpush2.msra.mxu0 %v3578
  %4038 = vmatprep.subr.mxu0 %v3569
  %4039 = vmatpush2.msra.mxu0 %v3568
  %4040 = vmatprep.mubr.f32.mxu0 %v3663
  %4041 = vmatmul.mubr.f32.gmra.mxu0 %v3396
  %v4042 = vpop.f32.mrf.mxu0
  %v4043 = vadd.f32 %v3655, %v4042
  %v4044 = vpop.f32.mrf.mxu0
  %v4045 = vadd.f32 %v3655, %v4044
  %4046 = vmatprep.mubr.f32.mxu0 %v3666
  %4047 = vmatmul.mubr.f32.gmra.mxu0 %v3398
  %v4048 = vpop.f32.mrf.mxu0
  %v4049 = vadd.f32 %v3660, %v4048
  %v4050 = vpop.f32.mrf.mxu0
  %v4051 = vadd.f32 %v3660, %v4050
  %4052 = vdwg.mxu0
  %4071 = vrot.lane.b32.xlu0 %v3735, 126
  %v4072 = vpop.permute.xlu0 %4071
  %4073 = vrot.lane.b32.xlu0 %v3737, 126
  %v4074 = vpop.permute.xlu0 %4073
  %4075 = vrot.lane.b32.xlu0 %v3812, 126
  %v4076 = vpop.permute.xlu0 %4075
  %4077 = vrot.lane.b32.xlu0 %v3814, 126
  %v4078 = vpop.permute.xlu0 %4077
  %4079 = vrot.lane.b32.xlu0 %v3889, 126
  %v4080 = vpop.permute.xlu0 %4079
  %4081 = vrot.lane.b32.xlu0 %v3891, 126
  %v4082 = vpop.permute.xlu0 %4081
  %4083 = vrot.lane.b32.xlu0 %v3966, 126
  %v4084 = vpop.permute.xlu0 %4083
  %4085 = vrot.lane.b32.xlu0 %v3968, 126
  %v4086 = vpop.permute.xlu0 %4085
  %4087 = vrot.lane.b32.xlu0 %v4043, 126
  %v4088 = vpop.permute.xlu0 %4087
  %4089 = vrot.lane.b32.xlu0 %v3741, 126
  %v4090 = vpop.permute.xlu0 %4089
  %4091 = vrot.lane.b32.xlu0 %v3743, 126
  %v4092 = vpop.permute.xlu0 %4091
  %4093 = vrot.lane.b32.xlu0 %v3818, 126
  %v4094 = vpop.permute.xlu0 %4093
  %4095 = vrot.lane.b32.xlu0 %v3820, 126
  %v4096 = vpop.permute.xlu0 %4095
  %4097 = vrot.lane.b32.xlu0 %v3895, 126
  %v4098 = vpop.permute.xlu0 %4097
  %4099 = vrot.lane.b32.xlu0 %v3897, 126
  %v4100 = vpop.permute.xlu0 %4099
  %4101 = vrot.lane.b32.xlu0 %v3972, 126
  %v4102 = vpop.permute.xlu0 %4101
  %4103 = vrot.lane.b32.xlu0 %v3974, 126
  %v4104 = vpop.permute.xlu0 %4103
  %4105 = vrot.lane.b32.xlu0 %v4049, 126
  %v4106 = vpop.permute.xlu0 %4105
  %v4107 = vsel %vm854, %v4072, %v4074
  %v4108 = vsel %vm854, %v4074, %v4076
  %v4109 = vsel %vm854, %v4076, %v4078
  %v4110 = vsel %vm854, %v4078, %v4080
  %v4111 = vsel %vm854, %v4080, %v4082
  %v4112 = vsel %vm854, %v4082, %v4084
  %v4113 = vsel %vm854, %v4084, %v4086
  %v4114 = vsel %vm854, %v4086, %v4088
  %v4115 = vsel %vm854, %v4090, %v4092
  %v4116 = vsel %vm854, %v4092, %v4094
  %v4117 = vsel %vm854, %v4094, %v4096
  %v4118 = vsel %vm854, %v4096, %v4098
  %v4119 = vsel %vm854, %v4098, %v4100
  %v4120 = vsel %vm854, %v4100, %v4102
  %v4121 = vsel %vm854, %v4102, %v4104
  %v4122 = vsel %vm854, %v4104, %v4106
  %v4141 = vmax.f32 %v3735, %v4107
  %v4142 = vmax.f32 %v3737, %v4108
  %v4143 = vmax.f32 %v3812, %v4109
  %v4144 = vmax.f32 %v3814, %v4110
  %v4145 = vmax.f32 %v3889, %v4111
  %v4146 = vmax.f32 %v3891, %v4112
  %v4147 = vmax.f32 %v3966, %v4113
  %v4148 = vmax.f32 %v3968, %v4114
  %v4149 = vmax.f32 %v4043, %v4088
  %v4150 = vmax.f32 %v3741, %v4115
  %v4151 = vmax.f32 %v3743, %v4116
  %v4152 = vmax.f32 %v3818, %v4117
  %v4153 = vmax.f32 %v3820, %v4118
  %v4154 = vmax.f32 %v3895, %v4119
  %v4155 = vmax.f32 %v3897, %v4120
  %v4156 = vmax.f32 %v3972, %v4121
  %v4157 = vmax.f32 %v3974, %v4122
  %v4158 = vmax.f32 %v4049, %v4106
  %4161 = vrot.lane.b32.xlu0 %v4045, 126
  %v4162 = vpop.permute.xlu0 %4161
  %4163 = vrot.lane.b32.xlu0 %v4051, 126
  %v4164 = vpop.permute.xlu0 %4163
  %v4165 = vsel %vm854, %v4088, %v4162
  %v4166 = vsel %vm854, %v4106, %v4164
  %v4171 = vmax.f32 %v4043, %v4165
  %v4172 = vmax.f32 %v4045, %v4162
  %v4173 = vmax.f32 %v4049, %v4166
  %v4174 = vmax.f32 %v4051, %v4164
  %4195 = vrot.lane.b32.xlu0 %v4141, 72
  %v4196 = vpop.permute.xlu0 %4195
  %4197 = vrot.lane.b32.xlu0 %v4142, 72
  %v4198 = vpop.permute.xlu0 %4197
  %4199 = vrot.lane.b32.xlu0 %v4143, 72
  %v4200 = vpop.permute.xlu0 %4199
  %4201 = vrot.lane.b32.xlu0 %v4144, 72
  %v4202 = vpop.permute.xlu0 %4201
  %4203 = vrot.lane.b32.xlu0 %v4145, 72
  %v4204 = vpop.permute.xlu0 %4203
  %4205 = vrot.lane.b32.xlu0 %v4146, 72
  %v4206 = vpop.permute.xlu0 %4205
  %4207 = vrot.lane.b32.xlu0 %v4147, 72
  %v4208 = vpop.permute.xlu0 %4207
  %4209 = vrot.lane.b32.xlu0 %v4148, 72
  %v4210 = vpop.permute.xlu0 %4209
  %4211 = vrot.lane.b32.xlu0 %v4171, 72
  %v4212 = vpop.permute.xlu0 %4211
  %4213 = vrot.lane.b32.xlu0 %v4172, 72
  %v4214 = vpop.permute.xlu0 %4213
  %4215 = vrot.lane.b32.xlu0 %v4150, 72
  %v4216 = vpop.permute.xlu0 %4215
  %4217 = vrot.lane.b32.xlu0 %v4151, 72
  %v4218 = vpop.permute.xlu0 %4217
  %4219 = vrot.lane.b32.xlu0 %v4152, 72
  %v4220 = vpop.permute.xlu0 %4219
  %4221 = vrot.lane.b32.xlu0 %v4153, 72
  %v4222 = vpop.permute.xlu0 %4221
  %4223 = vrot.lane.b32.xlu0 %v4154, 72
  %v4224 = vpop.permute.xlu0 %4223
  %4225 = vrot.lane.b32.xlu0 %v4155, 72
  %v4226 = vpop.permute.xlu0 %4225
  %4227 = vrot.lane.b32.xlu0 %v4156, 72
  %v4228 = vpop.permute.xlu0 %4227
  %4229 = vrot.lane.b32.xlu0 %v4157, 72
  %v4230 = vpop.permute.xlu0 %4229
  %4231 = vrot.lane.b32.xlu0 %v4173, 72
  %v4232 = vpop.permute.xlu0 %4231
  %4233 = vrot.lane.b32.xlu0 %v4174, 72
  %v4234 = vpop.permute.xlu0 %4233
  %v4235 = vsel %vm998, %v4196, %v4198
  %v4236 = vsel %vm998, %v4198, %v4200
  %v4237 = vsel %vm998, %v4200, %v4202
  %v4238 = vsel %vm998, %v4202, %v4204
  %v4239 = vsel %vm998, %v4204, %v4206
  %v4240 = vsel %vm998, %v4206, %v4208
  %v4241 = vsel %vm998, %v4208, %v4210
  %v4242 = vsel %vm998, %v4210, %v4212
  %v4243 = vsel %vm998, %v4212, %v4214
  %v4244 = vsel %vm998, %v4216, %v4218
  %v4245 = vsel %vm998, %v4218, %v4220
  %v4246 = vsel %vm998, %v4220, %v4222
  %v4247 = vsel %vm998, %v4222, %v4224
  %v4248 = vsel %vm998, %v4224, %v4226
  %v4249 = vsel %vm998, %v4226, %v4228
  %v4250 = vsel %vm998, %v4228, %v4230
  %v4251 = vsel %vm998, %v4230, %v4232
  %v4252 = vsel %vm998, %v4232, %v4234
  %v4271 = vmax.f32 %v4141, %v4235
  %v4272 = vmax.f32 %v4142, %v4236
  %v4273 = vmax.f32 %v4143, %v4237
  %v4274 = vmax.f32 %v4144, %v4238
  %v4275 = vmax.f32 %v4145, %v4239
  %v4276 = vmax.f32 %v4146, %v4240
  %v4277 = vmax.f32 %v4147, %v4241
  %v4278 = vmax.f32 %v4148, %v4242
  %v4279 = vmax.f32 %v4149, %v4243
  %v4280 = vmax.f32 %v4150, %v4244
  %v4281 = vmax.f32 %v4151, %v4245
  %v4282 = vmax.f32 %v4152, %v4246
  %v4283 = vmax.f32 %v4153, %v4247
  %v4284 = vmax.f32 %v4154, %v4248
  %v4285 = vmax.f32 %v4155, %v4249
  %v4286 = vmax.f32 %v4156, %v4250
  %v4287 = vmax.f32 %v4157, %v4251
  %v4288 = vmax.f32 %v4158, %v4252
  %v4289 = vmax.f32 %v4271, 0.0
  %v4290 = vmax.f32 %v4272, 0.0
  %v4291 = vmax.f32 %v4273, 0.0
  %v4292 = vmax.f32 %v4274, 0.0
  %v4293 = vmax.f32 %v4275, 0.0
  %v4294 = vmax.f32 %v4276, 0.0
  %v4295 = vmax.f32 %v4277, 0.0
  %v4296 = vmax.f32 %v4278, 0.0
  %v4297 = vmax.f32 %v4279, 0.0
  %v4298 = vmax.f32 %v4280, 0.0
  %v4299 = vmax.f32 %v4281, 0.0
  %v4300 = vmax.f32 %v4282, 0.0
  %v4301 = vmax.f32 %v4283, 0.0
  %v4302 = vmax.f32 %v4284, 0.0
  %v4303 = vmax.f32 %v4285, 0.0
  %v4304 = vmax.f32 %v4286, 0.0
  %v4305 = vmax.f32 %v4287, 0.0
  %v4306 = vmax.f32 %v4288, 0.0
  %4307 = vst [vmem:[#allocation4] sm:$0xff] %v4289
  %4308 = vst [vmem:[#allocation4 + $0x8] sm:$0xff] %v4290
  %4309 = vst [vmem:[#allocation4 + $0x10] sm:$0xff] %v4291
  %4310 = vst [vmem:[#allocation4 + $0x18] sm:$0xff] %v4292
  %4311 = vst [vmem:[#allocation4 + $0x20] sm:$0xff] %v4293
  %4312 = vst [vmem:[#allocation4 + $0x28] sm:$0xff] %v4294
  %4313 = vst.msk [vmem:[#allocation4 + $0x30] sm:$0xff] %vm596, %v4295
  %4314 = vst [vmem:[#allocation4 + $0x38] sm:$0xf] %v4298
  %4315 = vst [vmem:[#allocation4 + $0x40] sm:$0xf] %v4299
  %4316 = vst [vmem:[#allocation4 + $0x48] sm:$0xf] %v4300
  %4317 = vst [vmem:[#allocation4 + $0x50] sm:$0xf] %v4301
  %4318 = vst [vmem:[#allocation4 + $0x58] sm:$0xf] %v4302
  %4319 = vst [vmem:[#allocation4 + $0x60] sm:$0xf] %v4303
  %vm4320 = vcmask 134144
  %4321 = vst.msk [vmem:[#allocation4 + $0x68] sm:$0xf] %vm4320, %v4304
  %4336 = vrot.lane.b32.xlu0 %v4289, 124
  %v4337 = vpop.permute.xlu0 %4336
  %4338 = vrot.lane.b32.xlu0 %v4290, 124
  %v4339 = vpop.permute.xlu0 %4338
  %4340 = vrot.lane.b32.xlu0 %v4291, 124
  %v4341 = vpop.permute.xlu0 %4340
  %4342 = vrot.lane.b32.xlu0 %v4292, 124
  %v4343 = vpop.permute.xlu0 %4342
  %4344 = vrot.lane.b32.xlu0 %v4293, 124
  %v4345 = vpop.permute.xlu0 %4344
  %4346 = vrot.lane.b32.xlu0 %v4294, 124
  %v4347 = vpop.permute.xlu0 %4346
  %4348 = vrot.lane.b32.xlu0 %v4295, 124
  %v4349 = vpop.permute.xlu0 %4348
  %4350 = vrot.lane.b32.xlu0 %v4298, 124
  %v4351 = vpop.permute.xlu0 %4350
  %4352 = vrot.lane.b32.xlu0 %v4299, 124
  %v4353 = vpop.permute.xlu0 %4352
  %4354 = vrot.lane.b32.xlu0 %v4300, 124
  %v4355 = vpop.permute.xlu0 %4354
  %4356 = vrot.lane.b32.xlu0 %v4301, 124
  %v4357 = vpop.permute.xlu0 %4356
  %4358 = vrot.lane.b32.xlu0 %v4302, 124
  %v4359 = vpop.permute.xlu0 %4358
  %4360 = vrot.lane.b32.xlu0 %v4303, 124
  %v4361 = vpop.permute.xlu0 %4360
  %4362 = vrot.lane.b32.xlu0 %v4304, 124
  %v4363 = vpop.permute.xlu0 %4362
  %v4364 = vsel %vm890, %v4337, %v4339
  %v4365 = vsel %vm890, %v4339, %v4341
  %v4366 = vsel %vm890, %v4341, %v4343
  %v4367 = vsel %vm890, %v4343, %v4345
  %v4368 = vsel %vm890, %v4345, %v4347
  %v4369 = vsel %vm890, %v4347, %v4349
  %v4370 = vsel %vm890, %v4351, %v4353
  %v4371 = vsel %vm890, %v4353, %v4355
  %v4372 = vsel %vm890, %v4355, %v4357
  %v4373 = vsel %vm890, %v4357, %v4359
  %v4374 = vsel %vm890, %v4359, %v4361
  %v4375 = vsel %vm890, %v4361, %v4363
  %4390 = vst [vmem:[#allocation4 + $0x70] sm:$0xff] %v4364
  %4391 = vst [vmem:[#allocation4 + $0x78] sm:$0xff] %v4365
  %4392 = vst [vmem:[#allocation4 + $0x80] sm:$0xff] %v4366
  %4393 = vst [vmem:[#allocation4 + $0x88] sm:$0xff] %v4367
  %4394 = vst [vmem:[#allocation4 + $0x90] sm:$0xff] %v4368
  %4395 = vst [vmem:[#allocation4 + $0x98] sm:$0xff] %v4369
  %4396 = vst.msk [vmem:[#allocation4 + $0xa0] sm:$0xff] %vm596, %v4349
  %4397 = vst [vmem:[#allocation4 + $0xa8] sm:$0xf] %v4370
  %4398 = vst [vmem:[#allocation4 + $0xb0] sm:$0xf] %v4371
  %4399 = vst [vmem:[#allocation4 + $0xb8] sm:$0xf] %v4372
  %4400 = vst [vmem:[#allocation4 + $0xc0] sm:$0xf] %v4373
  %4401 = vst [vmem:[#allocation4 + $0xc8] sm:$0xf] %v4374
  %4402 = vst [vmem:[#allocation4 + $0xd0] sm:$0xf] %v4375
  %4403 = vst.msk [vmem:[#allocation4 + $0xd8] sm:$0xf] %vm4320, %v4363
  %4404 = vrot.lane.b32.xlu0 %v4289, 120
  %v4405 = vpop.permute.xlu0 %4404
  %4406 = vrot.lane.b32.xlu0 %v4290, 120
  %v4407 = vpop.permute.xlu0 %4406
  %4408 = vrot.lane.b32.xlu0 %v4291, 120
  %v4409 = vpop.permute.xlu0 %4408
  %4410 = vrot.lane.b32.xlu0 %v4292, 120
  %v4411 = vpop.permute.xlu0 %4410
  %4412 = vrot.lane.b32.xlu0 %v4293, 120
  %v4413 = vpop.permute.xlu0 %4412
  %4414 = vrot.lane.b32.xlu0 %v4294, 120
  %v4415 = vpop.permute.xlu0 %4414
  %4416 = vrot.lane.b32.xlu0 %v4295, 120
  %v4417 = vpop.permute.xlu0 %4416
  %4418 = vrot.lane.b32.xlu0 %v4298, 120
  %v4419 = vpop.permute.xlu0 %4418
  %4420 = vrot.lane.b32.xlu0 %v4299, 120
  %v4421 = vpop.permute.xlu0 %4420
  %4422 = vrot.lane.b32.xlu0 %v4300, 120
  %v4423 = vpop.permute.xlu0 %4422
  %4424 = vrot.lane.b32.xlu0 %v4301, 120
  %v4425 = vpop.permute.xlu0 %4424
  %4426 = vrot.lane.b32.xlu0 %v4302, 120
  %v4427 = vpop.permute.xlu0 %4426
  %4428 = vrot.lane.b32.xlu0 %v4303, 120
  %v4429 = vpop.permute.xlu0 %4428
  %4430 = vrot.lane.b32.xlu0 %v4304, 120
  %v4431 = vpop.permute.xlu0 %4430
  %v4432 = vsel %vm2340, %v4405, %v4407
  %v4433 = vsel %vm2340, %v4407, %v4409
  %v4434 = vsel %vm2340, %v4409, %v4411
  %v4435 = vsel %vm2340, %v4411, %v4413
  %v4436 = vsel %vm2340, %v4413, %v4415
  %v4437 = vsel %vm2340, %v4415, %v4417
  %v4438 = vsel %vm2340, %v4419, %v4421
  %v4439 = vsel %vm2340, %v4421, %v4423
  %v4440 = vsel %vm2340, %v4423, %v4425
  %v4441 = vsel %vm2340, %v4425, %v4427
  %v4442 = vsel %vm2340, %v4427, %v4429
  %v4443 = vsel %vm2340, %v4429, %v4431
  %4458 = vst [vmem:[#allocation4 + $0xe0] sm:$0xff] %v4432
  %4459 = vst [vmem:[#allocation4 + $0xe8] sm:$0xff] %v4433
  %4460 = vst [vmem:[#allocation4 + $0xf0] sm:$0xff] %v4434
  %4461 = vst [vmem:[#allocation4 + $0xf8] sm:$0xff] %v4435
  %4462 = vst [vmem:[#allocation4 + $0x100] sm:$0xff] %v4436
  %4463 = vst [vmem:[#allocation4 + $0x108] sm:$0xff] %v4437
  %4464 = vst.msk [vmem:[#allocation4 + $0x110] sm:$0xff] %vm596, %v4417
  %4465 = vst [vmem:[#allocation4 + $0x118] sm:$0xf] %v4438
  %4466 = vst [vmem:[#allocation4 + $0x120] sm:$0xf] %v4439
  %4467 = vst [vmem:[#allocation4 + $0x128] sm:$0xf] %v4440
  %4468 = vst [vmem:[#allocation4 + $0x130] sm:$0xf] %v4441
  %4469 = vst [vmem:[#allocation4 + $0x138] sm:$0xf] %v4442
  %4470 = vst [vmem:[#allocation4 + $0x140] sm:$0xf] %v4443
  %4471 = vst.msk [vmem:[#allocation4 + $0x148] sm:$0xf] %vm4320, %v4431
  %4472 = vrot.lane.b32.xlu0 %v4289, 116
  %v4473 = vpop.permute.xlu0 %4472
  %4474 = vrot.lane.b32.xlu0 %v4290, 116
  %v4475 = vpop.permute.xlu0 %4474
  %4476 = vrot.lane.b32.xlu0 %v4291, 116
  %v4477 = vpop.permute.xlu0 %4476
  %4478 = vrot.lane.b32.xlu0 %v4292, 116
  %v4479 = vpop.permute.xlu0 %4478
  %4480 = vrot.lane.b32.xlu0 %v4293, 116
  %v4481 = vpop.permute.xlu0 %4480
  %4482 = vrot.lane.b32.xlu0 %v4294, 116
  %v4483 = vpop.permute.xlu0 %4482
  %4484 = vrot.lane.b32.xlu0 %v4295, 116
  %v4485 = vpop.permute.xlu0 %4484
  %4486 = vrot.lane.b32.xlu0 %v4298, 116
  %v4487 = vpop.permute.xlu0 %4486
  %4488 = vrot.lane.b32.xlu0 %v4299, 116
  %v4489 = vpop.permute.xlu0 %4488
  %4490 = vrot.lane.b32.xlu0 %v4300, 116
  %v4491 = vpop.permute.xlu0 %4490
  %4492 = vrot.lane.b32.xlu0 %v4301, 116
  %v4493 = vpop.permute.xlu0 %4492
  %4494 = vrot.lane.b32.xlu0 %v4302, 116
  %v4495 = vpop.permute.xlu0 %4494
  %4496 = vrot.lane.b32.xlu0 %v4303, 116
  %v4497 = vpop.permute.xlu0 %4496
  %4498 = vrot.lane.b32.xlu0 %v4304, 116
  %v4499 = vpop.permute.xlu0 %4498
  %vm4500 = vcmask 949248
  %v4501 = vsel %vm4500, %v4473, %v4475
  %v4502 = vsel %vm4500, %v4475, %v4477
  %v4503 = vsel %vm4500, %v4477, %v4479
  %v4504 = vsel %vm4500, %v4479, %v4481
  %v4505 = vsel %vm4500, %v4481, %v4483
  %v4506 = vsel %vm4500, %v4483, %v4485
  %v4507 = vsel %vm4500, %v4487, %v4489
  %v4508 = vsel %vm4500, %v4489, %v4491
  %v4509 = vsel %vm4500, %v4491, %v4493
  %v4510 = vsel %vm4500, %v4493, %v4495
  %v4511 = vsel %vm4500, %v4495, %v4497
  %v4512 = vsel %vm4500, %v4497, %v4499
  %4527 = vst [vmem:[#allocation4 + $0x150] sm:$0xff] %v4501
  %4528 = vst [vmem:[#allocation4 + $0x158] sm:$0xff] %v4502
  %4529 = vst [vmem:[#allocation4 + $0x160] sm:$0xff] %v4503
  %4530 = vst [vmem:[#allocation4 + $0x168] sm:$0xff] %v4504
  %4531 = vst [vmem:[#allocation4 + $0x170] sm:$0xff] %v4505
  %4532 = vst [vmem:[#allocation4 + $0x178] sm:$0xff] %v4506
  %4533 = vst.msk [vmem:[#allocation4 + $0x180] sm:$0xff] %vm596, %v4485
  %4534 = vst [vmem:[#allocation4 + $0x188] sm:$0xf] %v4507
  %4535 = vst [vmem:[#allocation4 + $0x190] sm:$0xf] %v4508
  %4536 = vst [vmem:[#allocation4 + $0x198] sm:$0xf] %v4509
  %4537 = vst [vmem:[#allocation4 + $0x1a0] sm:$0xf] %v4510
  %4538 = vst [vmem:[#allocation4 + $0x1a8] sm:$0xf] %v4511
  %4539 = vst [vmem:[#allocation4 + $0x1b0] sm:$0xf] %v4512
  %4540 = vst.msk [vmem:[#allocation4 + $0x1b8] sm:$0xf] %vm4320, %v4499
  %4543 = vrot.lane.b32.xlu0 %v4289, 16
  %v4544 = vpop.permute.xlu0 %4543
  %4545 = vrot.lane.b32.xlu0 %v4290, 16
  %v4546 = vpop.permute.xlu0 %4545
  %4547 = vrot.lane.b32.xlu0 %v4291, 16
  %v4548 = vpop.permute.xlu0 %4547
  %4549 = vrot.lane.b32.xlu0 %v4292, 16
  %v4550 = vpop.permute.xlu0 %4549
  %4551 = vrot.lane.b32.xlu0 %v4293, 16
  %v4552 = vpop.permute.xlu0 %4551
  %4553 = vrot.lane.b32.xlu0 %v4294, 16
  %v4554 = vpop.permute.xlu0 %4553
  %4555 = vrot.lane.b32.xlu0 %v4295, 16
  %v4556 = vpop.permute.xlu0 %4555
  %4557 = vrot.lane.b32.xlu0 %v4296, 16
  %v4558 = vpop.permute.xlu0 %4557
  %4559 = vrot.lane.b32.xlu0 %v4298, 16
  %v4560 = vpop.permute.xlu0 %4559
  %4561 = vrot.lane.b32.xlu0 %v4299, 16
  %v4562 = vpop.permute.xlu0 %4561
  %4563 = vrot.lane.b32.xlu0 %v4300, 16
  %v4564 = vpop.permute.xlu0 %4563
  %4565 = vrot.lane.b32.xlu0 %v4301, 16
  %v4566 = vpop.permute.xlu0 %4565
  %4567 = vrot.lane.b32.xlu0 %v4302, 16
  %v4568 = vpop.permute.xlu0 %4567
  %4569 = vrot.lane.b32.xlu0 %v4303, 16
  %v4570 = vpop.permute.xlu0 %4569
  %4571 = vrot.lane.b32.xlu0 %v4304, 16
  %v4572 = vpop.permute.xlu0 %4571
  %4573 = vrot.lane.b32.xlu0 %v4305, 16
  %v4574 = vpop.permute.xlu0 %4573
  %v4575 = vsel %vm1177, %v4544, %v4546
  %v4576 = vsel %vm1177, %v4546, %v4548
  %v4577 = vsel %vm1177, %v4548, %v4550
  %v4578 = vsel %vm1177, %v4550, %v4552
  %v4579 = vsel %vm1177, %v4552, %v4554
  %v4580 = vsel %vm1177, %v4554, %v4556
  %v4581 = vsel %vm1177, %v4556, %v4558
  %v4582 = vsel %vm1177, %v4560, %v4562
  %v4583 = vsel %vm1177, %v4562, %v4564
  %v4584 = vsel %vm1177, %v4564, %v4566
  %v4585 = vsel %vm1177, %v4566, %v4568
  %v4586 = vsel %vm1177, %v4568, %v4570
  %v4587 = vsel %vm1177, %v4570, %v4572
  %v4588 = vsel %vm1177, %v4572, %v4574
  %4603 = vst [vmem:[#allocation4 + $0x1c0] sm:$0xff] %v4575
  %4604 = vst [vmem:[#allocation4 + $0x1c8] sm:$0xff] %v4576
  %4605 = vst [vmem:[#allocation4 + $0x1d0] sm:$0xff] %v4577
  %4606 = vst [vmem:[#allocation4 + $0x1d8] sm:$0xff] %v4578
  %4607 = vst [vmem:[#allocation4 + $0x1e0] sm:$0xff] %v4579
  %4608 = vst [vmem:[#allocation4 + $0x1e8] sm:$0xff] %v4580
  %4609 = vst.msk [vmem:[#allocation4 + $0x1f0] sm:$0xff] %vm596, %v4581
  %4610 = vst [vmem:[#allocation4 + $0x1f8] sm:$0xf] %v4582
  %4611 = vst [vmem:[#allocation4 + $0x200] sm:$0xf] %v4583
  %4612 = vst [vmem:[#allocation4 + $0x208] sm:$0xf] %v4584
  %4613 = vst [vmem:[#allocation4 + $0x210] sm:$0xf] %v4585
  %4614 = vst [vmem:[#allocation4 + $0x218] sm:$0xf] %v4586
  %4615 = vst [vmem:[#allocation4 + $0x220] sm:$0xf] %v4587
  %4616 = vst.msk [vmem:[#allocation4 + $0x228] sm:$0xf] %vm4320, %v4588
  %4617 = vrot.lane.b32.xlu0 %v4289, 12
  %v4618 = vpop.permute.xlu0 %4617
  %4619 = vrot.lane.b32.xlu0 %v4290, 12
  %v4620 = vpop.permute.xlu0 %4619
  %4621 = vrot.lane.b32.xlu0 %v4291, 12
  %v4622 = vpop.permute.xlu0 %4621
  %4623 = vrot.lane.b32.xlu0 %v4292, 12
  %v4624 = vpop.permute.xlu0 %4623
  %4625 = vrot.lane.b32.xlu0 %v4293, 12
  %v4626 = vpop.permute.xlu0 %4625
  %4627 = vrot.lane.b32.xlu0 %v4294, 12
  %v4628 = vpop.permute.xlu0 %4627
  %4629 = vrot.lane.b32.xlu0 %v4295, 12
  %v4630 = vpop.permute.xlu0 %4629
  %4631 = vrot.lane.b32.xlu0 %v4296, 12
  %v4632 = vpop.permute.xlu0 %4631
  %4633 = vrot.lane.b32.xlu0 %v4298, 12
  %v4634 = vpop.permute.xlu0 %4633
  %4635 = vrot.lane.b32.xlu0 %v4299, 12
  %v4636 = vpop.permute.xlu0 %4635
  %4637 = vrot.lane.b32.xlu0 %v4300, 12
  %v4638 = vpop.permute.xlu0 %4637
  %4639 = vrot.lane.b32.xlu0 %v4301, 12
  %v4640 = vpop.permute.xlu0 %4639
  %4641 = vrot.lane.b32.xlu0 %v4302, 12
  %v4642 = vpop.permute.xlu0 %4641
  %4643 = vrot.lane.b32.xlu0 %v4303, 12
  %v4644 = vpop.permute.xlu0 %4643
  %4645 = vrot.lane.b32.xlu0 %v4304, 12
  %v4646 = vpop.permute.xlu0 %4645
  %4647 = vrot.lane.b32.xlu0 %v4305, 12
  %v4648 = vpop.permute.xlu0 %4647
  %v4649 = vsel %vm1249, %v4618, %v4620
  %v4650 = vsel %vm1249, %v4620, %v4622
  %v4651 = vsel %vm1249, %v4622, %v4624
  %v4652 = vsel %vm1249, %v4624, %v4626
  %v4653 = vsel %vm1249, %v4626, %v4628
  %v4654 = vsel %vm1249, %v4628, %v4630
  %v4655 = vsel %vm1249, %v4630, %v4632
  %v4656 = vsel %vm1249, %v4634, %v4636
  %v4657 = vsel %vm1249, %v4636, %v4638
  %v4658 = vsel %vm1249, %v4638, %v4640
  %v4659 = vsel %vm1249, %v4640, %v4642
  %v4660 = vsel %vm1249, %v4642, %v4644
  %v4661 = vsel %vm1249, %v4644, %v4646
  %v4662 = vsel %vm1249, %v4646, %v4648
  %4677 = vst [vmem:[#allocation4 + $0x230] sm:$0xff] %v4649
  %4678 = vst [vmem:[#allocation4 + $0x238] sm:$0xff] %v4650
  %4679 = vst [vmem:[#allocation4 + $0x240] sm:$0xff] %v4651
  %4680 = vst [vmem:[#allocation4 + $0x248] sm:$0xff] %v4652
  %4681 = vst [vmem:[#allocation4 + $0x250] sm:$0xff] %v4653
  %4682 = vst [vmem:[#allocation4 + $0x258] sm:$0xff] %v4654
  %4683 = vst.msk [vmem:[#allocation4 + $0x260] sm:$0xff] %vm596, %v4655
  %4684 = vst [vmem:[#allocation4 + $0x268] sm:$0xf] %v4656
  %4685 = vst [vmem:[#allocation4 + $0x270] sm:$0xf] %v4657
  %4686 = vst [vmem:[#allocation4 + $0x278] sm:$0xf] %v4658
  %4687 = vst [vmem:[#allocation4 + $0x280] sm:$0xf] %v4659
  %4688 = vst [vmem:[#allocation4 + $0x288] sm:$0xf] %v4660
  %4689 = vst [vmem:[#allocation4 + $0x290] sm:$0xf] %v4661
  %4690 = vst.msk [vmem:[#allocation4 + $0x298] sm:$0xf] %vm4320, %v4662
  %4691 = vrot.lane.b32.xlu0 %v4289, 8
  %v4692 = vpop.permute.xlu0 %4691
  %4693 = vrot.lane.b32.xlu0 %v4290, 8
  %v4694 = vpop.permute.xlu0 %4693
  %4695 = vrot.lane.b32.xlu0 %v4291, 8
  %v4696 = vpop.permute.xlu0 %4695
  %4697 = vrot.lane.b32.xlu0 %v4292, 8
  %v4698 = vpop.permute.xlu0 %4697
  %4699 = vrot.lane.b32.xlu0 %v4293, 8
  %v4700 = vpop.permute.xlu0 %4699
  %4701 = vrot.lane.b32.xlu0 %v4294, 8
  %v4702 = vpop.permute.xlu0 %4701
  %4703 = vrot.lane.b32.xlu0 %v4295, 8
  %v4704 = vpop.permute.xlu0 %4703
  %4705 = vrot.lane.b32.xlu0 %v4296, 8
  %v4706 = vpop.permute.xlu0 %4705
  %4707 = vrot.lane.b32.xlu0 %v4298, 8
  %v4708 = vpop.permute.xlu0 %4707
  %4709 = vrot.lane.b32.xlu0 %v4299, 8
  %v4710 = vpop.permute.xlu0 %4709
  %4711 = vrot.lane.b32.xlu0 %v4300, 8
  %v4712 = vpop.permute.xlu0 %4711
  %4713 = vrot.lane.b32.xlu0 %v4301, 8
  %v4714 = vpop.permute.xlu0 %4713
  %4715 = vrot.lane.b32.xlu0 %v4302, 8
  %v4716 = vpop.permute.xlu0 %4715
  %4717 = vrot.lane.b32.xlu0 %v4303, 8
  %v4718 = vpop.permute.xlu0 %4717
  %4719 = vrot.lane.b32.xlu0 %v4304, 8
  %v4720 = vpop.permute.xlu0 %4719
  %4721 = vrot.lane.b32.xlu0 %v4305, 8
  %v4722 = vpop.permute.xlu0 %4721
  %v4723 = vsel %vm2849, %v4692, %v4694
  %v4724 = vsel %vm2849, %v4694, %v4696
  %v4725 = vsel %vm2849, %v4696, %v4698
  %v4726 = vsel %vm2849, %v4698, %v4700
  %v4727 = vsel %vm2849, %v4700, %v4702
  %v4728 = vsel %vm2849, %v4702, %v4704
  %v4729 = vsel %vm2849, %v4704, %v4706
  %v4730 = vsel %vm2849, %v4708, %v4710
  %v4731 = vsel %vm2849, %v4710, %v4712
  %v4732 = vsel %vm2849, %v4712, %v4714
  %v4733 = vsel %vm2849, %v4714, %v4716
  %v4734 = vsel %vm2849, %v4716, %v4718
  %v4735 = vsel %vm2849, %v4718, %v4720
  %v4736 = vsel %vm2849, %v4720, %v4722
  %4751 = vst [vmem:[#allocation4 + $0x2a0] sm:$0xff] %v4723
  %4752 = vst [vmem:[#allocation4 + $0x2a8] sm:$0xff] %v4724
  %4753 = vst [vmem:[#allocation4 + $0x2b0] sm:$0xff] %v4725
  %4754 = vst [vmem:[#allocation4 + $0x2b8] sm:$0xff] %v4726
  %4755 = vst [vmem:[#allocation4 + $0x2c0] sm:$0xff] %v4727
  %4756 = vst [vmem:[#allocation4 + $0x2c8] sm:$0xff] %v4728
  %4757 = vst.msk [vmem:[#allocation4 + $0x2d0] sm:$0xff] %vm596, %v4729
  %4758 = vst [vmem:[#allocation4 + $0x2d8] sm:$0xf] %v4730
  %4759 = vst [vmem:[#allocation4 + $0x2e0] sm:$0xf] %v4731
  %4760 = vst [vmem:[#allocation4 + $0x2e8] sm:$0xf] %v4732
  %4761 = vst [vmem:[#allocation4 + $0x2f0] sm:$0xf] %v4733
  %4762 = vst [vmem:[#allocation4 + $0x2f8] sm:$0xf] %v4734
  %4763 = vst [vmem:[#allocation4 + $0x300] sm:$0xf] %v4735
  %4764 = vst.msk [vmem:[#allocation4 + $0x308] sm:$0xf] %vm4320, %v4736
  %4765 = vrot.lane.b32.xlu0 %v4289, 4
  %v4766 = vpop.permute.xlu0 %4765
  %4767 = vrot.lane.b32.xlu0 %v4290, 4
  %v4768 = vpop.permute.xlu0 %4767
  %4769 = vrot.lane.b32.xlu0 %v4291, 4
  %v4770 = vpop.permute.xlu0 %4769
  %4771 = vrot.lane.b32.xlu0 %v4292, 4
  %v4772 = vpop.permute.xlu0 %4771
  %4773 = vrot.lane.b32.xlu0 %v4293, 4
  %v4774 = vpop.permute.xlu0 %4773
  %4775 = vrot.lane.b32.xlu0 %v4294, 4
  %v4776 = vpop.permute.xlu0 %4775
  %4777 = vrot.lane.b32.xlu0 %v4295, 4
  %v4778 = vpop.permute.xlu0 %4777
  %4779 = vrot.lane.b32.xlu0 %v4296, 4
  %v4780 = vpop.permute.xlu0 %4779
  %4781 = vrot.lane.b32.xlu0 %v4298, 4
  %v4782 = vpop.permute.xlu0 %4781
  %4783 = vrot.lane.b32.xlu0 %v4299, 4
  %v4784 = vpop.permute.xlu0 %4783
  %4785 = vrot.lane.b32.xlu0 %v4300, 4
  %v4786 = vpop.permute.xlu0 %4785
  %4787 = vrot.lane.b32.xlu0 %v4301, 4
  %v4788 = vpop.permute.xlu0 %4787
  %4789 = vrot.lane.b32.xlu0 %v4302, 4
  %v4790 = vpop.permute.xlu0 %4789
  %4791 = vrot.lane.b32.xlu0 %v4303, 4
  %v4792 = vpop.permute.xlu0 %4791
  %4793 = vrot.lane.b32.xlu0 %v4304, 4
  %v4794 = vpop.permute.xlu0 %4793
  %4795 = vrot.lane.b32.xlu0 %v4305, 4
  %v4796 = vpop.permute.xlu0 %4795
  %vm4797 = vcmask 31744
  %v4798 = vsel %vm4797, %v4766, %v4768
  %v4799 = vsel %vm4797, %v4768, %v4770
  %v4800 = vsel %vm4797, %v4770, %v4772
  %v4801 = vsel %vm4797, %v4772, %v4774
  %v4802 = vsel %vm4797, %v4774, %v4776
  %v4803 = vsel %vm4797, %v4776, %v4778
  %v4804 = vsel %vm4797, %v4778, %v4780
  %v4805 = vsel %vm4797, %v4782, %v4784
  %v4806 = vsel %vm4797, %v4784, %v4786
  %v4807 = vsel %vm4797, %v4786, %v4788
  %v4808 = vsel %vm4797, %v4788, %v4790
  %v4809 = vsel %vm4797, %v4790, %v4792
  %v4810 = vsel %vm4797, %v4792, %v4794
  %v4811 = vsel %vm4797, %v4794, %v4796
  %4826 = vst [vmem:[#allocation4 + $0x310] sm:$0xff] %v4798
  %4827 = vst [vmem:[#allocation4 + $0x318] sm:$0xff] %v4799
  %4828 = vst [vmem:[#allocation4 + $0x320] sm:$0xff] %v4800
  %4829 = vst [vmem:[#allocation4 + $0x328] sm:$0xff] %v4801
  %4830 = vst [vmem:[#allocation4 + $0x330] sm:$0xff] %v4802
  %4831 = vst [vmem:[#allocation4 + $0x338] sm:$0xff] %v4803
  %4832 = vst.msk [vmem:[#allocation4 + $0x340] sm:$0xff] %vm596, %v4804
  %4833 = vst [vmem:[#allocation4 + $0x348] sm:$0xf] %v4805
  %4834 = vst [vmem:[#allocation4 + $0x350] sm:$0xf] %v4806
  %4835 = vst [vmem:[#allocation4 + $0x358] sm:$0xf] %v4807
  %4836 = vst [vmem:[#allocation4 + $0x360] sm:$0xf] %v4808
  %4837 = vst [vmem:[#allocation4 + $0x368] sm:$0xf] %v4809
  %4838 = vst [vmem:[#allocation4 + $0x370] sm:$0xf] %v4810
  %4839 = vst.msk [vmem:[#allocation4 + $0x378] sm:$0xf] %vm4320, %v4811
  %4840 = vrot.lane.b32.xlu0 %v4290, 32
  %v4841 = vpop.permute.xlu0 %4840
  %4842 = vrot.lane.b32.xlu0 %v4291, 32
  %v4843 = vpop.permute.xlu0 %4842
  %4844 = vrot.lane.b32.xlu0 %v4292, 32
  %v4845 = vpop.permute.xlu0 %4844
  %4846 = vrot.lane.b32.xlu0 %v4293, 32
  %v4847 = vpop.permute.xlu0 %4846
  %4848 = vrot.lane.b32.xlu0 %v4294, 32
  %v4849 = vpop.permute.xlu0 %4848
  %4850 = vrot.lane.b32.xlu0 %v4295, 32
  %v4851 = vpop.permute.xlu0 %4850
  %4852 = vrot.lane.b32.xlu0 %v4296, 32
  %v4853 = vpop.permute.xlu0 %4852
  %4854 = vrot.lane.b32.xlu0 %v4299, 32
  %v4855 = vpop.permute.xlu0 %4854
  %4856 = vrot.lane.b32.xlu0 %v4300, 32
  %v4857 = vpop.permute.xlu0 %4856
  %4858 = vrot.lane.b32.xlu0 %v4301, 32
  %v4859 = vpop.permute.xlu0 %4858
  %4860 = vrot.lane.b32.xlu0 %v4302, 32
  %v4861 = vpop.permute.xlu0 %4860
  %4862 = vrot.lane.b32.xlu0 %v4303, 32
  %v4863 = vpop.permute.xlu0 %4862
  %4864 = vrot.lane.b32.xlu0 %v4304, 32
  %v4865 = vpop.permute.xlu0 %4864
  %4866 = vrot.lane.b32.xlu0 %v4305, 32
  %v4867 = vpop.permute.xlu0 %4866
  %v4868 = vsel %vm3153, %v4841, %v4843
  %v4869 = vsel %vm3153, %v4843, %v4845
  %v4870 = vsel %vm3153, %v4845, %v4847
  %v4871 = vsel %vm3153, %v4847, %v4849
  %v4872 = vsel %vm3153, %v4849, %v4851
  %v4873 = vsel %vm3153, %v4851, %v4853
  %v4874 = vsel %vm3153, %v4855, %v4857
  %v4875 = vsel %vm3153, %v4857, %v4859
  %v4876 = vsel %vm3153, %v4859, %v4861
  %v4877 = vsel %vm3153, %v4861, %v4863
  %v4878 = vsel %vm3153, %v4863, %v4865
  %v4879 = vsel %vm3153, %v4865, %v4867
  %4894 = vst [vmem:[#allocation4 + $0x380] sm:$0xff] %v4868
  %4895 = vst [vmem:[#allocation4 + $0x388] sm:$0xff] %v4869
  %4896 = vst [vmem:[#allocation4 + $0x390] sm:$0xff] %v4870
  %4897 = vst [vmem:[#allocation4 + $0x398] sm:$0xff] %v4871
  %4898 = vst [vmem:[#allocation4 + $0x3a0] sm:$0xff] %v4872
  %4899 = vst [vmem:[#allocation4 + $0x3a8] sm:$0xff] %v4873
  %4900 = vst.msk [vmem:[#allocation4 + $0x3b0] sm:$0xff] %vm596, %v4853
  %4901 = vst [vmem:[#allocation4 + $0x3b8] sm:$0xf] %v4874
  %4902 = vst [vmem:[#allocation4 + $0x3c0] sm:$0xf] %v4875
  %4903 = vst [vmem:[#allocation4 + $0x3c8] sm:$0xf] %v4876
  %4904 = vst [vmem:[#allocation4 + $0x3d0] sm:$0xf] %v4877
  %4905 = vst [vmem:[#allocation4 + $0x3d8] sm:$0xf] %v4878
  %4906 = vst [vmem:[#allocation4 + $0x3e0] sm:$0xf] %v4879
  %4907 = vst.msk [vmem:[#allocation4 + $0x3e8] sm:$0xf] %vm4320, %v4867
  %4908 = vrot.lane.b32.xlu0 %v4290, 28
  %v4909 = vpop.permute.xlu0 %4908
  %4910 = vrot.lane.b32.xlu0 %v4291, 28
  %v4911 = vpop.permute.xlu0 %4910
  %4912 = vrot.lane.b32.xlu0 %v4292, 28
  %v4913 = vpop.permute.xlu0 %4912
  %4914 = vrot.lane.b32.xlu0 %v4293, 28
  %v4915 = vpop.permute.xlu0 %4914
  %4916 = vrot.lane.b32.xlu0 %v4294, 28
  %v4917 = vpop.permute.xlu0 %4916
  %4918 = vrot.lane.b32.xlu0 %v4295, 28
  %v4919 = vpop.permute.xlu0 %4918
  %4920 = vrot.lane.b32.xlu0 %v4296, 28
  %v4921 = vpop.permute.xlu0 %4920
  %4922 = vrot.lane.b32.xlu0 %v4299, 28
  %v4923 = vpop.permute.xlu0 %4922
  %4924 = vrot.lane.b32.xlu0 %v4300, 28
  %v4925 = vpop.permute.xlu0 %4924
  %4926 = vrot.lane.b32.xlu0 %v4301, 28
  %v4927 = vpop.permute.xlu0 %4926
  %4928 = vrot.lane.b32.xlu0 %v4302, 28
  %v4929 = vpop.permute.xlu0 %4928
  %4930 = vrot.lane.b32.xlu0 %v4303, 28
  %v4931 = vpop.permute.xlu0 %4930
  %4932 = vrot.lane.b32.xlu0 %v4304, 28
  %v4933 = vpop.permute.xlu0 %4932
  %4934 = vrot.lane.b32.xlu0 %v4305, 28
  %v4935 = vpop.permute.xlu0 %4934
  %v4936 = vsel %vm3259, %v4909, %v4911
  %v4937 = vsel %vm3259, %v4911, %v4913
  %v4938 = vsel %vm3259, %v4913, %v4915
  %v4939 = vsel %vm3259, %v4915, %v4917
  %v4940 = vsel %vm3259, %v4917, %v4919
  %v4941 = vsel %vm3259, %v4919, %v4921
  %v4942 = vsel %vm3259, %v4923, %v4925
  %v4943 = vsel %vm3259, %v4925, %v4927
  %v4944 = vsel %vm3259, %v4927, %v4929
  %v4945 = vsel %vm3259, %v4929, %v4931
  %v4946 = vsel %vm3259, %v4931, %v4933
  %v4947 = vsel %vm3259, %v4933, %v4935
  %4962 = vst [vmem:[#allocation4 + $0x3f0] sm:$0xff] %v4936
  %4963 = vst [vmem:[#allocation4 + $0x3f8] sm:$0xff] %v4937
  %4964 = vst [vmem:[#allocation4 + $0x400] sm:$0xff] %v4938
  %4965 = vst [vmem:[#allocation4 + $0x408] sm:$0xff] %v4939
  %4966 = vst [vmem:[#allocation4 + $0x410] sm:$0xff] %v4940
  %4967 = vst [vmem:[#allocation4 + $0x418] sm:$0xff] %v4941
  %4968 = vst.msk [vmem:[#allocation4 + $0x420] sm:$0xff] %vm596, %v4921
  %4969 = vst [vmem:[#allocation4 + $0x428] sm:$0xf] %v4942
  %4970 = vst [vmem:[#allocation4 + $0x430] sm:$0xf] %v4943
  %4971 = vst [vmem:[#allocation4 + $0x438] sm:$0xf] %v4944
  %4972 = vst [vmem:[#allocation4 + $0x440] sm:$0xf] %v4945
  %4973 = vst [vmem:[#allocation4 + $0x448] sm:$0xf] %v4946
  %4974 = vst [vmem:[#allocation4 + $0x450] sm:$0xf] %v4947
  %4975 = vst.msk [vmem:[#allocation4 + $0x458] sm:$0xf] %vm4320, %v4935
  %4976 = vrot.lane.b32.xlu0 %v4290, 24
  %v4977 = vpop.permute.xlu0 %4976
  %4978 = vrot.lane.b32.xlu0 %v4291, 24
  %v4979 = vpop.permute.xlu0 %4978
  %4980 = vrot.lane.b32.xlu0 %v4292, 24
  %v4981 = vpop.permute.xlu0 %4980
  %4982 = vrot.lane.b32.xlu0 %v4293, 24
  %v4983 = vpop.permute.xlu0 %4982
  %4984 = vrot.lane.b32.xlu0 %v4294, 24
  %v4985 = vpop.permute.xlu0 %4984
  %4986 = vrot.lane.b32.xlu0 %v4295, 24
  %v4987 = vpop.permute.xlu0 %4986
  %4988 = vrot.lane.b32.xlu0 %v4296, 24
  %v4989 = vpop.permute.xlu0 %4988
  %4990 = vrot.lane.b32.xlu0 %v4299, 24
  %v4991 = vpop.permute.xlu0 %4990
  %4992 = vrot.lane.b32.xlu0 %v4300, 24
  %v4993 = vpop.permute.xlu0 %4992
  %4994 = vrot.lane.b32.xlu0 %v4301, 24
  %v4995 = vpop.permute.xlu0 %4994
  %4996 = vrot.lane.b32.xlu0 %v4302, 24
  %v4997 = vpop.permute.xlu0 %4996
  %4998 = vrot.lane.b32.xlu0 %v4303, 24
  %v4999 = vpop.permute.xlu0 %4998
  %5000 = vrot.lane.b32.xlu0 %v4304, 24
  %v5001 = vpop.permute.xlu0 %5000
  %5002 = vrot.lane.b32.xlu0 %v4305, 24
  %v5003 = vpop.permute.xlu0 %5002
  %v5004 = vsel %vm3365, %v4977, %v4979
  %v5005 = vsel %vm3365, %v4979, %v4981
  %v5006 = vsel %vm3365, %v4981, %v4983
  %v5007 = vsel %vm3365, %v4983, %v4985
  %v5008 = vsel %vm3365, %v4985, %v4987
  %v5009 = vsel %vm3365, %v4987, %v4989
  %v5010 = vsel %vm3365, %v4991, %v4993
  %v5011 = vsel %vm3365, %v4993, %v4995
  %v5012 = vsel %vm3365, %v4995, %v4997
  %v5013 = vsel %vm3365, %v4997, %v4999
  %v5014 = vsel %vm3365, %v4999, %v5001
  %v5015 = vsel %vm3365, %v5001, %v5003
  %5030 = vst [vmem:[#allocation4 + $0x460] sm:$0xff] %v5004
  %5031 = vst [vmem:[#allocation4 + $0x468] sm:$0xff] %v5005
  %5032 = vst [vmem:[#allocation4 + $0x470] sm:$0xff] %v5006
  %5033 = vst [vmem:[#allocation4 + $0x478] sm:$0xff] %v5007
  %5034 = vst [vmem:[#allocation4 + $0x480] sm:$0xff] %v5008
  %5035 = vst [vmem:[#allocation4 + $0x488] sm:$0xff] %v5009
  %5036 = vst.msk [vmem:[#allocation4 + $0x490] sm:$0xff] %vm596, %v4989
  %5037 = vst [vmem:[#allocation4 + $0x498] sm:$0xf] %v5010
  %5038 = vst [vmem:[#allocation4 + $0x4a0] sm:$0xf] %v5011
  %5039 = vst [vmem:[#allocation4 + $0x4a8] sm:$0xf] %v5012
  %5040 = vst [vmem:[#allocation4 + $0x4b0] sm:$0xf] %v5013
  %5041 = vst [vmem:[#allocation4 + $0x4b8] sm:$0xf] %v5014
  %5042 = vst [vmem:[#allocation4 + $0x4c0] sm:$0xf] %v5015
  %5043 = vst.msk [vmem:[#allocation4 + $0x4c8] sm:$0xf] %vm4320, %v5003
  %5044 = vrot.lane.b32.xlu0 %v4290, 20
  %v5045 = vpop.permute.xlu0 %5044
  %5046 = vrot.lane.b32.xlu0 %v4291, 20
  %v5047 = vpop.permute.xlu0 %5046
  %5048 = vrot.lane.b32.xlu0 %v4292, 20
  %v5049 = vpop.permute.xlu0 %5048
  %5050 = vrot.lane.b32.xlu0 %v4293, 20
  %v5051 = vpop.permute.xlu0 %5050
  %5052 = vrot.lane.b32.xlu0 %v4294, 20
  %v5053 = vpop.permute.xlu0 %5052
  %5054 = vrot.lane.b32.xlu0 %v4295, 20
  %v5055 = vpop.permute.xlu0 %5054
  %5056 = vrot.lane.b32.xlu0 %v4296, 20
  %v5057 = vpop.permute.xlu0 %5056
  %5058 = vrot.lane.b32.xlu0 %v4299, 20
  %v5059 = vpop.permute.xlu0 %5058
  %5060 = vrot.lane.b32.xlu0 %v4300, 20
  %v5061 = vpop.permute.xlu0 %5060
  %5062 = vrot.lane.b32.xlu0 %v4301, 20
  %v5063 = vpop.permute.xlu0 %5062
  %5064 = vrot.lane.b32.xlu0 %v4302, 20
  %v5065 = vpop.permute.xlu0 %5064
  %5066 = vrot.lane.b32.xlu0 %v4303, 20
  %v5067 = vpop.permute.xlu0 %5066
  %5068 = vrot.lane.b32.xlu0 %v4304, 20
  %v5069 = vpop.permute.xlu0 %5068
  %5070 = vrot.lane.b32.xlu0 %v4305, 20
  %v5071 = vpop.permute.xlu0 %5070
  %vm5072 = vcmask 162816
  %v5073 = vsel %vm5072, %v5045, %v5047
  %v5074 = vsel %vm5072, %v5047, %v5049
  %v5075 = vsel %vm5072, %v5049, %v5051
  %v5076 = vsel %vm5072, %v5051, %v5053
  %v5077 = vsel %vm5072, %v5053, %v5055
  %v5078 = vsel %vm5072, %v5055, %v5057
  %v5079 = vsel %vm5072, %v5059, %v5061
  %v5080 = vsel %vm5072, %v5061, %v5063
  %v5081 = vsel %vm5072, %v5063, %v5065
  %v5082 = vsel %vm5072, %v5065, %v5067
  %v5083 = vsel %vm5072, %v5067, %v5069
  %v5084 = vsel %vm5072, %v5069, %v5071
  %5099 = vst [vmem:[#allocation4 + $0x4d0] sm:$0xff] %v5073
  %5100 = vst [vmem:[#allocation4 + $0x4d8] sm:$0xff] %v5074
  %5101 = vst [vmem:[#allocation4 + $0x4e0] sm:$0xff] %v5075
  %5102 = vst [vmem:[#allocation4 + $0x4e8] sm:$0xff] %v5076
  %5103 = vst [vmem:[#allocation4 + $0x4f0] sm:$0xff] %v5077
  %5104 = vst [vmem:[#allocation4 + $0x4f8] sm:$0xff] %v5078
  %5105 = vst.msk [vmem:[#allocation4 + $0x500] sm:$0xff] %vm596, %v5057
  %5106 = vst [vmem:[#allocation4 + $0x508] sm:$0xf] %v5079
  %5107 = vst [vmem:[#allocation4 + $0x510] sm:$0xf] %v5080
  %5108 = vst [vmem:[#allocation4 + $0x518] sm:$0xf] %v5081
  %5109 = vst [vmem:[#allocation4 + $0x520] sm:$0xf] %v5082
  %5110 = vst [vmem:[#allocation4 + $0x528] sm:$0xf] %v5083
  %5111 = vst [vmem:[#allocation4 + $0x530] sm:$0xf] %v5084
  %5112 = vst.msk [vmem:[#allocation4 + $0x538] sm:$0xf] %vm4320, %v5071
  %5115 = vrot.lane.b32.xlu0 %v4291, 48
  %v5116 = vpop.permute.xlu0 %5115
  %5117 = vrot.lane.b32.xlu0 %v4292, 48
  %v5118 = vpop.permute.xlu0 %5117
  %5119 = vrot.lane.b32.xlu0 %v4293, 48
  %v5120 = vpop.permute.xlu0 %5119
  %5121 = vrot.lane.b32.xlu0 %v4294, 48
  %v5122 = vpop.permute.xlu0 %5121
  %5123 = vrot.lane.b32.xlu0 %v4295, 48
  %v5124 = vpop.permute.xlu0 %5123
  %5125 = vrot.lane.b32.xlu0 %v4296, 48
  %v5126 = vpop.permute.xlu0 %5125
  %5127 = vrot.lane.b32.xlu0 %v4297, 48
  %v5128 = vpop.permute.xlu0 %5127
  %5129 = vrot.lane.b32.xlu0 %v4300, 48
  %v5130 = vpop.permute.xlu0 %5129
  %5131 = vrot.lane.b32.xlu0 %v4301, 48
  %v5132 = vpop.permute.xlu0 %5131
  %5133 = vrot.lane.b32.xlu0 %v4302, 48
  %v5134 = vpop.permute.xlu0 %5133
  %5135 = vrot.lane.b32.xlu0 %v4303, 48
  %v5136 = vpop.permute.xlu0 %5135
  %5137 = vrot.lane.b32.xlu0 %v4304, 48
  %v5138 = vpop.permute.xlu0 %5137
  %5139 = vrot.lane.b32.xlu0 %v4305, 48
  %v5140 = vpop.permute.xlu0 %5139
  %5141 = vrot.lane.b32.xlu0 %v4306, 48
  %v5142 = vpop.permute.xlu0 %5141
  %vm5143 = vcmask 392192
  %v5144 = vsel %vm5143, %v5116, %v5118
  %v5145 = vsel %vm5143, %v5118, %v5120
  %v5146 = vsel %vm5143, %v5120, %v5122
  %v5147 = vsel %vm5143, %v5122, %v5124
  %v5148 = vsel %vm5143, %v5124, %v5126
  %v5149 = vsel %vm5143, %v5126, %v5128
  %v5150 = vsel %vm5143, %v5130, %v5132
  %v5151 = vsel %vm5143, %v5132, %v5134
  %v5152 = vsel %vm5143, %v5134, %v5136
  %v5153 = vsel %vm5143, %v5136, %v5138
  %v5154 = vsel %vm5143, %v5138, %v5140
  %v5155 = vsel %vm5143, %v5140, %v5142
  %5170 = vst [vmem:[#allocation4 + $0x540] sm:$0xff] %v5144
  %5171 = vst [vmem:[#allocation4 + $0x548] sm:$0xff] %v5145
  %5172 = vst [vmem:[#allocation4 + $0x550] sm:$0xff] %v5146
  %5173 = vst [vmem:[#allocation4 + $0x558] sm:$0xff] %v5147
  %5174 = vst [vmem:[#allocation4 + $0x560] sm:$0xff] %v5148
  %5175 = vst [vmem:[#allocation4 + $0x568] sm:$0xff] %v5149
  %5176 = vst.msk [vmem:[#allocation4 + $0x570] sm:$0xff] %vm596, %v5128
  %5177 = vst [vmem:[#allocation4 + $0x578] sm:$0xf] %v5150
  %5178 = vst [vmem:[#allocation4 + $0x580] sm:$0xf] %v5151
  %5179 = vst [vmem:[#allocation4 + $0x588] sm:$0xf] %v5152
  %5180 = vst [vmem:[#allocation4 + $0x590] sm:$0xf] %v5153
  %5181 = vst [vmem:[#allocation4 + $0x598] sm:$0xf] %v5154
  %5182 = vst [vmem:[#allocation4 + $0x5a0] sm:$0xf] %v5155
  %5183 = vst.msk [vmem:[#allocation4 + $0x5a8] sm:$0xf] %vm4320, %v5142
  %5184 = vrot.lane.b32.xlu0 %v4291, 44
  %v5185 = vpop.permute.xlu0 %5184
  %5186 = vrot.lane.b32.xlu0 %v4292, 44
  %v5187 = vpop.permute.xlu0 %5186
  %5188 = vrot.lane.b32.xlu0 %v4293, 44
  %v5189 = vpop.permute.xlu0 %5188
  %5190 = vrot.lane.b32.xlu0 %v4294, 44
  %v5191 = vpop.permute.xlu0 %5190
  %5192 = vrot.lane.b32.xlu0 %v4295, 44
  %v5193 = vpop.permute.xlu0 %5192
  %5194 = vrot.lane.b32.xlu0 %v4296, 44
  %v5195 = vpop.permute.xlu0 %5194
  %5196 = vrot.lane.b32.xlu0 %v4297, 44
  %v5197 = vpop.permute.xlu0 %5196
  %5198 = vrot.lane.b32.xlu0 %v4300, 44
  %v5199 = vpop.permute.xlu0 %5198
  %5200 = vrot.lane.b32.xlu0 %v4301, 44
  %v5201 = vpop.permute.xlu0 %5200
  %5202 = vrot.lane.b32.xlu0 %v4302, 44
  %v5203 = vpop.permute.xlu0 %5202
  %5204 = vrot.lane.b32.xlu0 %v4303, 44
  %v5205 = vpop.permute.xlu0 %5204
  %5206 = vrot.lane.b32.xlu0 %v4304, 44
  %v5207 = vpop.permute.xlu0 %5206
  %5208 = vrot.lane.b32.xlu0 %v4305, 44
  %v5209 = vpop.permute.xlu0 %5208
  %5210 = vrot.lane.b32.xlu0 %v4306, 44
  %v5211 = vpop.permute.xlu0 %5210
  %v5212 = vsel %vm49, %v5185, %v5187
  %v5213 = vsel %vm49, %v5187, %v5189
  %v5214 = vsel %vm49, %v5189, %v5191
  %v5215 = vsel %vm49, %v5191, %v5193
  %v5216 = vsel %vm49, %v5193, %v5195
  %v5217 = vsel %vm49, %v5195, %v5197
  %v5218 = vsel %vm49, %v5199, %v5201
  %v5219 = vsel %vm49, %v5201, %v5203
  %v5220 = vsel %vm49, %v5203, %v5205
  %v5221 = vsel %vm49, %v5205, %v5207
  %v5222 = vsel %vm49, %v5207, %v5209
  %v5223 = vsel %vm49, %v5209, %v5211
  %5238 = vst [vmem:[#allocation4 + $0x5b0] sm:$0xff] %v5212
  %5239 = vst [vmem:[#allocation4 + $0x5b8] sm:$0xff] %v5213
  %5240 = vst [vmem:[#allocation4 + $0x5c0] sm:$0xff] %v5214
  %5241 = vst [vmem:[#allocation4 + $0x5c8] sm:$0xff] %v5215
  %5242 = vst [vmem:[#allocation4 + $0x5d0] sm:$0xff] %v5216
  %5243 = vst [vmem:[#allocation4 + $0x5d8] sm:$0xff] %v5217
  %5244 = vst.msk [vmem:[#allocation4 + $0x5e0] sm:$0xff] %vm596, %v5197
  %5245 = vst [vmem:[#allocation4 + $0x5e8] sm:$0xf] %v5218
  %5246 = vst [vmem:[#allocation4 + $0x5f0] sm:$0xf] %v5219
  %5247 = vst [vmem:[#allocation4 + $0x5f8] sm:$0xf] %v5220
  %5248 = vst [vmem:[#allocation4 + $0x600] sm:$0xf] %v5221
  %5249 = vst [vmem:[#allocation4 + $0x608] sm:$0xf] %v5222
  %5250 = vst [vmem:[#allocation4 + $0x610] sm:$0xf] %v5223
  %5251 = vst.msk [vmem:[#allocation4 + $0x618] sm:$0xf] %vm4320, %v5211
  %5252 = vrot.lane.b32.xlu0 %v4291, 40
  %v5253 = vpop.permute.xlu0 %5252
  %5254 = vrot.lane.b32.xlu0 %v4292, 40
  %v5255 = vpop.permute.xlu0 %5254
  %5256 = vrot.lane.b32.xlu0 %v4293, 40
  %v5257 = vpop.permute.xlu0 %5256
  %5258 = vrot.lane.b32.xlu0 %v4294, 40
  %v5259 = vpop.permute.xlu0 %5258
  %5260 = vrot.lane.b32.xlu0 %v4295, 40
  %v5261 = vpop.permute.xlu0 %5260
  %5262 = vrot.lane.b32.xlu0 %v4296, 40
  %v5263 = vpop.permute.xlu0 %5262
  %5264 = vrot.lane.b32.xlu0 %v4297, 40
  %v5265 = vpop.permute.xlu0 %5264
  %5266 = vrot.lane.b32.xlu0 %v4300, 40
  %v5267 = vpop.permute.xlu0 %5266
  %5268 = vrot.lane.b32.xlu0 %v4301, 40
  %v5269 = vpop.permute.xlu0 %5268
  %5270 = vrot.lane.b32.xlu0 %v4302, 40
  %v5271 = vpop.permute.xlu0 %5270
  %5272 = vrot.lane.b32.xlu0 %v4303, 40
  %v5273 = vpop.permute.xlu0 %5272
  %5274 = vrot.lane.b32.xlu0 %v4304, 40
  %v5275 = vpop.permute.xlu0 %5274
  %5276 = vrot.lane.b32.xlu0 %v4305, 40
  %v5277 = vpop.permute.xlu0 %5276
  %5278 = vrot.lane.b32.xlu0 %v4306, 40
  %v5279 = vpop.permute.xlu0 %5278
  %v5280 = vsel %vm1159, %v5253, %v5255
  %v5281 = vsel %vm1159, %v5255, %v5257
  %v5282 = vsel %vm1159, %v5257, %v5259
  %v5283 = vsel %vm1159, %v5259, %v5261
  %v5284 = vsel %vm1159, %v5261, %v5263
  %v5285 = vsel %vm1159, %v5263, %v5265
  %v5286 = vsel %vm1159, %v5267, %v5269
  %v5287 = vsel %vm1159, %v5269, %v5271
  %v5288 = vsel %vm1159, %v5271, %v5273
  %v5289 = vsel %vm1159, %v5273, %v5275
  %v5290 = vsel %vm1159, %v5275, %v5277
  %v5291 = vsel %vm1159, %v5277, %v5279
  %5306 = vst [vmem:[#allocation4 + $0x620] sm:$0xff] %v5280
  %5307 = vst [vmem:[#allocation4 + $0x628] sm:$0xff] %v5281
  %5308 = vst [vmem:[#allocation4 + $0x630] sm:$0xff] %v5282
  %5309 = vst [vmem:[#allocation4 + $0x638] sm:$0xff] %v5283
  %5310 = vst [vmem:[#allocation4 + $0x640] sm:$0xff] %v5284
  %5311 = vst [vmem:[#allocation4 + $0x648] sm:$0xff] %v5285
  %5312 = vst.msk [vmem:[#allocation4 + $0x650] sm:$0xff] %vm596, %v5265
  %5313 = vst [vmem:[#allocation4 + $0x658] sm:$0xf] %v5286
  %5314 = vst [vmem:[#allocation4 + $0x660] sm:$0xf] %v5287
  %5315 = vst [vmem:[#allocation4 + $0x668] sm:$0xf] %v5288
  %5316 = vst [vmem:[#allocation4 + $0x670] sm:$0xf] %v5289
  %5317 = vst [vmem:[#allocation4 + $0x678] sm:$0xf] %v5290
  %5318 = vst [vmem:[#allocation4 + $0x680] sm:$0xf] %v5291
  %5319 = vst.msk [vmem:[#allocation4 + $0x688] sm:$0xf] %vm4320, %v5279
  %5320 = vrot.lane.b32.xlu0 %v4291, 36
  %v5321 = vpop.permute.xlu0 %5320
  %5322 = vrot.lane.b32.xlu0 %v4292, 36
  %v5323 = vpop.permute.xlu0 %5322
  %5324 = vrot.lane.b32.xlu0 %v4293, 36
  %v5325 = vpop.permute.xlu0 %5324
  %5326 = vrot.lane.b32.xlu0 %v4294, 36
  %v5327 = vpop.permute.xlu0 %5326
  %5328 = vrot.lane.b32.xlu0 %v4295, 36
  %v5329 = vpop.permute.xlu0 %5328
  %5330 = vrot.lane.b32.xlu0 %v4296, 36
  %v5331 = vpop.permute.xlu0 %5330
  %5332 = vrot.lane.b32.xlu0 %v4297, 36
  %v5333 = vpop.permute.xlu0 %5332
  %5334 = vrot.lane.b32.xlu0 %v4300, 36
  %v5335 = vpop.permute.xlu0 %5334
  %5336 = vrot.lane.b32.xlu0 %v4301, 36
  %v5337 = vpop.permute.xlu0 %5336
  %5338 = vrot.lane.b32.xlu0 %v4302, 36
  %v5339 = vpop.permute.xlu0 %5338
  %5340 = vrot.lane.b32.xlu0 %v4303, 36
  %v5341 = vpop.permute.xlu0 %5340
  %5342 = vrot.lane.b32.xlu0 %v4304, 36
  %v5343 = vpop.permute.xlu0 %5342
  %5344 = vrot.lane.b32.xlu0 %v4305, 36
  %v5345 = vpop.permute.xlu0 %5344
  %5346 = vrot.lane.b32.xlu0 %v4306, 36
  %v5347 = vpop.permute.xlu0 %5346
  %vm5348 = vcmask 293888
  %v5349 = vsel %vm5348, %v5321, %v5323
  %v5350 = vsel %vm5348, %v5323, %v5325
  %v5351 = vsel %vm5348, %v5325, %v5327
  %v5352 = vsel %vm5348, %v5327, %v5329
  %v5353 = vsel %vm5348, %v5329, %v5331
  %v5354 = vsel %vm5348, %v5331, %v5333
  %v5355 = vsel %vm5348, %v5335, %v5337
  %v5356 = vsel %vm5348, %v5337, %v5339
  %v5357 = vsel %vm5348, %v5339, %v5341
  %v5358 = vsel %vm5348, %v5341, %v5343
  %v5359 = vsel %vm5348, %v5343, %v5345
  %v5360 = vsel %vm5348, %v5345, %v5347
  %5375 = vst [vmem:[#allocation4 + $0x690] sm:$0xff] %v5349
  %5376 = vst [vmem:[#allocation4 + $0x698] sm:$0xff] %v5350
  %5377 = vst [vmem:[#allocation4 + $0x6a0] sm:$0xff] %v5351
  %5378 = vst [vmem:[#allocation4 + $0x6a8] sm:$0xff] %v5352
  %5379 = vst [vmem:[#allocation4 + $0x6b0] sm:$0xff] %v5353
  %5380 = vst [vmem:[#allocation4 + $0x6b8] sm:$0xff] %v5354
  %5381 = vst.msk [vmem:[#allocation4 + $0x6c0] sm:$0xff] %vm596, %v5333
  %5382 = vst [vmem:[#allocation4 + $0x6c8] sm:$0xf] %v5355
  %5383 = vst [vmem:[#allocation4 + $0x6d0] sm:$0xf] %v5356
  %5384 = vst [vmem:[#allocation4 + $0x6d8] sm:$0xf] %v5357
  %5385 = vst [vmem:[#allocation4 + $0x6e0] sm:$0xf] %v5358
  %5386 = vst [vmem:[#allocation4 + $0x6e8] sm:$0xf] %v5359
  %5387 = vst [vmem:[#allocation4 + $0x6f0] sm:$0xf] %v5360
  %5388 = vst.msk [vmem:[#allocation4 + $0x6f8] sm:$0xf] %vm4320, %v5347
  %v5389 = vld [vmem:[%s5] sm:$0xff]
  %v5390 = vld [vmem:[%s5 + $0x8] sm:$0xff]
  %v5391 = vld [vmem:[%s5 + $0x10] sm:$0xff]
  %v5392 = vld [vmem:[%s5 + $0x18] sm:$0xff]
  %v5393 = vld [vmem:[%s5 + $0x20] sm:$0xff]
  %v5394 = vld [vmem:[%s5 + $0x28] sm:$0xff]
  %v5395 = vld [vmem:[%s5 + $0x30] sm:$0xff]
  %v5396 = vld [vmem:[%s5 + $0x38] sm:$0xff]
  %v5397 = vld [vmem:[%s5 + $0x40] sm:$0xff]
  %v5398 = vld [vmem:[%s5 + $0x48] sm:$0xff]
  %v5399 = vld [vmem:[%s5 + $0x50] sm:$0xff]
  %v5400 = vld [vmem:[%s5 + $0x58] sm:$0xff]
  %v5401 = vld [vmem:[%s5 + $0x60] sm:$0xff]
  %v5402 = vld [vmem:[%s5 + $0x68] sm:$0xff]
  %v5403 = vld [vmem:[%s5 + $0x70] sm:$0xff]
  %v5404 = vld [vmem:[%s5 + $0x78] sm:$0xff]
  %v5405 = vld [vmem:[%s5 + $0x80] sm:$0xff]
  %v5406 = vld [vmem:[%s5 + $0x88] sm:$0xff]
  %v5407 = vld [vmem:[%s5 + $0x90] sm:$0xff]
  %v5408 = vld [vmem:[%s5 + $0x98] sm:$0xff]
  %v5409 = vld [vmem:[%s5 + $0xa0] sm:$0xf]
  %v5410 = vld [vmem:[%s5 + $0xa8] sm:$0xf]
  %v5411 = vld [vmem:[#allocation4] sm:$0xff]
  %v5412 = vld [vmem:[#allocation4 + $0x8] sm:$0xff]
  %v5413 = vld [vmem:[#allocation4 + $0x30] sm:$0xff]
  %v5414 = vld [vmem:[#allocation4 + $0x38] sm:$0xff]
  %v5415 = vld [vmem:[#allocation4 + $0x40] sm:$0xff]
  %v5416 = vld [vmem:[#allocation4 + $0x68] sm:$0xff]
  %v5417 = vld [vmem:[#allocation4 + $0x70] sm:$0xff]
  %v5418 = vld [vmem:[#allocation4 + $0x78] sm:$0xff]
  %v5419 = vld [vmem:[#allocation4 + $0xa0] sm:$0xff]
  %v5420 = vld [vmem:[#allocation4 + $0xa8] sm:$0xff]
  %v5421 = vld [vmem:[#allocation4 + $0xb0] sm:$0xff]
  %v5422 = vld [vmem:[#allocation4 + $0xd8] sm:$0xff]
  %v5423 = vld [vmem:[#allocation4 + $0xe0] sm:$0xff]
  %v5424 = vld [vmem:[#allocation4 + $0xe8] sm:$0xff]
  %v5425 = vld [vmem:[#allocation4 + $0x110] sm:$0xff]
  %v5426 = vld [vmem:[#allocation4 + $0x118] sm:$0xff]
  %v5427 = vld [vmem:[#allocation4 + $0x120] sm:$0xff]
  %v5428 = vld [vmem:[#allocation4 + $0x148] sm:$0xff]
  %v5429 = vld [vmem:[#allocation4 + $0x150] sm:$0xff]
  %v5430 = vld [vmem:[#allocation4 + $0x158] sm:$0xff]
  %v5431 = vld [vmem:[#allocation4 + $0x180] sm:$0xff]
  %v5432 = vld [vmem:[#allocation4 + $0x188] sm:$0xff]
  %v5433 = vld [vmem:[#allocation4 + $0x190] sm:$0xff]
  %v5434 = vld [vmem:[#allocation4 + $0x1b8] sm:$0xff]
  %v5435 = vld [vmem:[#allocation4 + $0x1c0] sm:$0xff]
  %v5436 = vld [vmem:[#allocation4 + $0x1c8] sm:$0xff]
  %v5437 = vld [vmem:[#allocation4 + $0x1f0] sm:$0xff]
  %v5438 = vld [vmem:[#allocation4 + $0x1f8] sm:$0xff]
  %v5439 = vld [vmem:[#allocation4 + $0x200] sm:$0xff]
  %v5440 = vld [vmem:[#allocation4 + $0x228] sm:$0xff]
  %v5441 = vld [vmem:[#allocation4 + $0x230] sm:$0xff]
  %v5442 = vld [vmem:[#allocation4 + $0x238] sm:$0xff]
  %v5443 = vld [vmem:[#allocation4 + $0x260] sm:$0xff]
  %v5444 = vld [vmem:[#allocation4 + $0x268] sm:$0xff]
  %v5445 = vld [vmem:[#allocation4 + $0x270] sm:$0xff]
  %v5446 = vld [vmem:[#allocation4 + $0x298] sm:$0xff]
  %v5447 = vld [vmem:[#allocation4 + $0x2a0] sm:$0xff]
  %v5448 = vld [vmem:[#allocation4 + $0x2a8] sm:$0xff]
  %v5449 = vld [vmem:[#allocation4 + $0x2d0] sm:$0xff]
  %v5450 = vld [vmem:[#allocation4 + $0x2d8] sm:$0xff]
  %v5451 = vld [vmem:[#allocation4 + $0x2e0] sm:$0xff]
  %v5452 = vld [vmem:[#allocation4 + $0x308] sm:$0xff]
  %v5453 = vld [vmem:[#allocation4 + $0x310] sm:$0xff]
  %v5454 = vld [vmem:[#allocation4 + $0x318] sm:$0xff]
  %v5455 = vld [vmem:[#allocation4 + $0x340] sm:$0xff]
  %v5456 = vld [vmem:[#allocation4 + $0x348] sm:$0xff]
  %v5457 = vld [vmem:[#allocation4 + $0x350] sm:$0xff]
  %v5458 = vld [vmem:[#allocation4 + $0x378] sm:$0xff]
  %v5459 = vld [vmem:[#allocation4 + $0x380] sm:$0xff]
  %v5460 = vld [vmem:[#allocation4 + $0x388] sm:$0xff]
  %v5461 = vld [vmem:[#allocation4 + $0x3b0] sm:$0xff]
  %v5462 = vld [vmem:[#allocation4 + $0x3b8] sm:$0xff]
  %v5463 = vld [vmem:[#allocation4 + $0x3c0] sm:$0xff]
  %v5464 = vld [vmem:[#allocation4 + $0x3e8] sm:$0xff]
  %v5465 = vld [vmem:[#allocation4 + $0x3f0] sm:$0xff]
  %v5466 = vld [vmem:[#allocation4 + $0x3f8] sm:$0xff]
  %v5467 = vld [vmem:[#allocation4 + $0x420] sm:$0xff]
  %v5468 = vld [vmem:[#allocation4 + $0x428] sm:$0xff]
  %v5469 = vld [vmem:[#allocation4 + $0x430] sm:$0xff]
  %v5470 = vld [vmem:[#allocation4 + $0x458] sm:$0xff]
  %v5471 = vld [vmem:[#allocation4 + $0x460] sm:$0xff]
  %v5472 = vld [vmem:[#allocation4 + $0x468] sm:$0xff]
  %v5473 = vld [vmem:[#allocation4 + $0x490] sm:$0xff]
  %v5474 = vld [vmem:[#allocation4 + $0x498] sm:$0xff]
  %v5475 = vld [vmem:[#allocation4 + $0x4a0] sm:$0xff]
  %v5476 = vld [vmem:[#allocation4 + $0x4c8] sm:$0xff]
  %v5477 = vld [vmem:[#allocation4 + $0x4d0] sm:$0xff]
  %v5478 = vld [vmem:[#allocation4 + $0x4d8] sm:$0xff]
  %v5479 = vld [vmem:[#allocation4 + $0x500] sm:$0xff]
  %v5480 = vld [vmem:[#allocation4 + $0x508] sm:$0xff]
  %v5481 = vld [vmem:[#allocation4 + $0x510] sm:$0xff]
  %v5482 = vld [vmem:[#allocation4 + $0x538] sm:$0xff]
  %v5483 = vld [vmem:[#allocation4 + $0x540] sm:$0xff]
  %v5484 = vld [vmem:[#allocation4 + $0x548] sm:$0xff]
  %v5485 = vld [vmem:[#allocation4 + $0x570] sm:$0xff]
  %v5486 = vld [vmem:[#allocation4 + $0x578] sm:$0xff]
  %v5487 = vld [vmem:[#allocation4 + $0x580] sm:$0xff]
  %v5488 = vld [vmem:[#allocation4 + $0x5a8] sm:$0xff]
  %v5489 = vld [vmem:[#allocation4 + $0x5b0] sm:$0xff]
  %v5490 = vld [vmem:[#allocation4 + $0x5b8] sm:$0xff]
  %v5491 = vld [vmem:[#allocation4 + $0x5e0] sm:$0xff]
  %v5492 = vld [vmem:[#allocation4 + $0x5e8] sm:$0xff]
  %v5493 = vld [vmem:[#allocation4 + $0x5f0] sm:$0xff]
  %v5494 = vld [vmem:[#allocation4 + $0x618] sm:$0xff]
  %v5495 = vld [vmem:[#allocation4 + $0x620] sm:$0xff]
  %v5496 = vld [vmem:[#allocation4 + $0x628] sm:$0xff]
  %v5497 = vld [vmem:[#allocation4 + $0x650] sm:$0xff]
  %v5498 = vld [vmem:[#allocation4 + $0x658] sm:$0xff]
  %v5499 = vld [vmem:[#allocation4 + $0x660] sm:$0xff]
  %v5500 = vld [vmem:[#allocation4 + $0x688] sm:$0xff]
  %v5501 = vld [vmem:[#allocation4 + $0x690] sm:$0xff]
  %v5502 = vld [vmem:[#allocation4 + $0x698] sm:$0xff]
  %v5503 = vld [vmem:[#allocation4 + $0x6c0] sm:$0xff]
  %v5504 = vld [vmem:[#allocation4 + $0x6c8] sm:$0xff]
  %v5505 = vld [vmem:[#allocation4 + $0x6d0] sm:$0xff]
  %v5506 = vld [vmem:[#allocation4 + $0x6f8] sm:$0xff]
  %v5507 = vld [vmem:[%s6] sm:$0xff]
  %v5508 = vld [vmem:[%s6 + $0x8] sm:$0xff]
  %v5509 = vld [vmem:[%s6 + $0x10] sm:$0xff]
  %v5510 = vld [vmem:[%s6 + $0x18] sm:$0xff]
  %v5511 = vld [vmem:[%s6 + $0x20] sm:$0xff]
  %v5512 = vld [vmem:[%s6 + $0x28] sm:$0xff]
  %v5513 = vld [vmem:[%s6 + $0x30] sm:$0xff]
  %v5514 = vld [vmem:[%s6 + $0x38] sm:$0xff]
  %v5515 = vld [vmem:[%s6 + $0x40] sm:$0xff]
  %v5516 = vld [vmem:[%s6 + $0x48] sm:$0xff]
  %v5517 = vld [vmem:[%s6 + $0x50] sm:$0xf]
  %5519 = vset.pattern.permute.xlu0 0
  %5520 = vperm.xlu0 %5519, %v5507
  %v5521 = vpop.permute.xlu0 %5520
  %5524 = vset.pattern.permute.xlu0 0
  %5525 = vperm.xlu0 %5524, %v5508
  %v5526 = vpop.permute.xlu0 %5525
  %5529 = vset.pattern.permute.xlu0 0
  %5530 = vperm.xlu0 %5529, %v5509
  %v5531 = vpop.permute.xlu0 %5530
  %5534 = vset.pattern.permute.xlu0 0
  %5535 = vperm.xlu0 %5534, %v5510
  %v5536 = vpop.permute.xlu0 %5535
  %5539 = vset.pattern.permute.xlu0 0
  %5540 = vperm.xlu0 %5539, %v5511
  %v5541 = vpop.permute.xlu0 %5540
  %5544 = vset.pattern.permute.xlu0 0
  %5545 = vperm.xlu0 %5544, %v5512
  %v5546 = vpop.permute.xlu0 %5545
  %5549 = vset.pattern.permute.xlu0 0
  %5550 = vperm.xlu0 %5549, %v5513
  %v5551 = vpop.permute.xlu0 %5550
  %5554 = vset.pattern.permute.xlu0 0
  %5555 = vperm.xlu0 %5554, %v5514
  %v5556 = vpop.permute.xlu0 %5555
  %5559 = vset.pattern.permute.xlu0 0
  %5560 = vperm.xlu0 %5559, %v5515
  %v5561 = vpop.permute.xlu0 %5560
  %5564 = vset.pattern.permute.xlu0 0
  %5565 = vperm.xlu0 %5564, %v5516
  %v5566 = vpop.permute.xlu0 %5565
  %5569 = vset.pattern.permute.xlu0 0
  %5570 = vperm.xlu0 %5569, %v5517
  %v5571 = vpop.permute.xlu0 %5570
  %5573 = vmatprep.subr.mxu0 %v5457
  %5574 = vmatpush1.msra.mxu0 %v5456
  %5575 = vmatprep.subr.mxu0 %v5454
  %5576 = vmatpush1.msra.mxu0 %v5453
  %5577 = vmatprep.subr.mxu0 %v5451
  %5578 = vmatpush1.msra.mxu0 %v5450
  %5579 = vmatprep.subr.mxu0 %v5448
  %5580 = vmatpush1.msra.mxu0 %v5447
  %5581 = vmatprep.subr.mxu0 %v5445
  %5582 = vmatpush1.msra.mxu0 %v5444
  %5583 = vmatprep.subr.mxu0 %v5442
  %5584 = vmatpush1.msra.mxu0 %v5441
  %5585 = vmatprep.subr.mxu0 %v5439
  %5586 = vmatpush1.msra.mxu0 %v5438
  %5587 = vmatprep.subr.mxu0 %v5436
  %5588 = vmatpush1.msra.mxu0 %v5435
  %5589 = vmatprep.subr.mxu0 %v5433
  %5590 = vmatpush1.msra.mxu0 %v5432
  %5591 = vmatprep.subr.mxu0 %v5430
  %5592 = vmatpush1.msra.mxu0 %v5429
  %5593 = vmatprep.subr.mxu0 %v5427
  %5594 = vmatpush1.msra.mxu0 %v5426
  %5595 = vmatprep.subr.mxu0 %v5424
  %5596 = vmatpush1.msra.mxu0 %v5423
  %5597 = vmatprep.subr.mxu0 %v5421
  %5598 = vmatpush1.msra.mxu0 %v5420
  %5599 = vmatprep.subr.mxu0 %v5418
  %5600 = vmatpush1.msra.mxu0 %v5417
  %5601 = vmatprep.subr.mxu0 %v5415
  %5602 = vmatpush1.msra.mxu0 %v5414
  %5603 = vmatprep.subr.mxu0 %v5412
  %5604 = vmatpush1.msra.mxu0 %v5411
  %5605 = vmatprep.subr.mxu0 %v5505
  %5606 = vmatpush2.msra.mxu0 %v5504
  %5607 = vmatprep.subr.mxu0 %v5502
  %5608 = vmatpush2.msra.mxu0 %v5501
  %5609 = vmatprep.subr.mxu0 %v5499
  %5610 = vmatpush2.msra.mxu0 %v5498
  %5611 = vmatprep.subr.mxu0 %v5496
  %5612 = vmatpush2.msra.mxu0 %v5495
  %5613 = vmatprep.subr.mxu0 %v5493
  %5614 = vmatpush2.msra.mxu0 %v5492
  %5615 = vmatprep.subr.mxu0 %v5490
  %5616 = vmatpush2.msra.mxu0 %v5489
  %5617 = vmatprep.subr.mxu0 %v5487
  %5618 = vmatpush2.msra.mxu0 %v5486
  %5619 = vmatprep.subr.mxu0 %v5484
  %5620 = vmatpush2.msra.mxu0 %v5483
  %5621 = vmatprep.subr.mxu0 %v5481
  %5622 = vmatpush2.msra.mxu0 %v5480
  %5623 = vmatprep.subr.mxu0 %v5478
  %5624 = vmatpush2.msra.mxu0 %v5477
  %5625 = vmatprep.subr.mxu0 %v5475
  %5626 = vmatpush2.msra.mxu0 %v5474
  %5627 = vmatprep.subr.mxu0 %v5472
  %5628 = vmatpush2.msra.mxu0 %v5471
  %5629 = vmatprep.subr.mxu0 %v5469
  %5630 = vmatpush2.msra.mxu0 %v5468
  %5631 = vmatprep.subr.mxu0 %v5466
  %5632 = vmatpush2.msra.mxu0 %v5465
  %5633 = vmatprep.subr.mxu0 %v5463
  %5634 = vmatpush2.msra.mxu0 %v5462
  %5635 = vmatprep.subr.mxu0 %v5460
  %5636 = vmatpush2.msra.mxu0 %v5459
  %5637 = vmatprep.mubr.f32.mxu0 %v5390
  %5638 = vmatmul.mubr.f32.gmra.mxu0 %v5389
  %v5639 = vpop.f32.mrf.mxu0
  %v5640 = vadd.f32 %v5521, %v5639
  %v5641 = vpop.f32.mrf.mxu0
  %v5642 = vadd.f32 %v5521, %v5641
  %5643 = vmatprep.mubr.f32.mxu0 %v5392
  %5644 = vmatmul.mubr.f32.gmra.mxu0 %v5391
  %v5645 = vpop.f32.mrf.mxu0
  %v5646 = vadd.f32 %v5526, %v5645
  %v5647 = vpop.f32.mrf.mxu0
  %v5648 = vadd.f32 %v5526, %v5647
  %5649 = vmatprep.mubr.f32.mxu0 %v5394
  %5650 = vmatmul.mubr.f32.gmra.mxu0 %v5393
  %v5651 = vpop.f32.mrf.mxu0
  %v5652 = vadd.f32 %v5531, %v5651
  %v5653 = vpop.f32.mrf.mxu0
  %v5654 = vadd.f32 %v5531, %v5653
  %5655 = vmatprep.mubr.f32.mxu0 %v5396
  %5656 = vmatmul.mubr.f32.gmra.mxu0 %v5395
  %v5657 = vpop.f32.mrf.mxu0
  %v5658 = vadd.f32 %v5536, %v5657
  %v5659 = vpop.f32.mrf.mxu0
  %v5660 = vadd.f32 %v5536, %v5659
  %5661 = vmatprep.mubr.f32.mxu0 %v5398
  %5662 = vmatmul.mubr.f32.gmra.mxu0 %v5397
  %v5663 = vpop.f32.mrf.mxu0
  %v5664 = vadd.f32 %v5541, %v5663
  %v5665 = vpop.f32.mrf.mxu0
  %v5666 = vadd.f32 %v5541, %v5665
  %5667 = vmatprep.mubr.f32.mxu0 %v5400
  %5668 = vmatmul.mubr.f32.gmra.mxu0 %v5399
  %v5669 = vpop.f32.mrf.mxu0
  %v5670 = vadd.f32 %v5546, %v5669
  %v5671 = vpop.f32.mrf.mxu0
  %v5672 = vadd.f32 %v5546, %v5671
  %5673 = vmatprep.mubr.f32.mxu0 %v5402
  %5674 = vmatmul.mubr.f32.gmra.mxu0 %v5401
  %v5675 = vpop.f32.mrf.mxu0
  %v5676 = vadd.f32 %v5551, %v5675
  %v5677 = vpop.f32.mrf.mxu0
  %v5678 = vadd.f32 %v5551, %v5677
  %5679 = vmatprep.mubr.f32.mxu0 %v5404
  %5680 = vmatmul.mubr.f32.gmra.mxu0 %v5403
  %v5681 = vpop.f32.mrf.mxu0
  %v5682 = vadd.f32 %v5556, %v5681
  %v5683 = vpop.f32.mrf.mxu0
  %v5684 = vadd.f32 %v5556, %v5683
  %5685 = vmatprep.mubr.f32.mxu0 %v5406
  %5686 = vmatmul.mubr.f32.gmra.mxu0 %v5405
  %v5687 = vpop.f32.mrf.mxu0
  %v5688 = vadd.f32 %v5561, %v5687
  %v5689 = vpop.f32.mrf.mxu0
  %v5690 = vadd.f32 %v5561, %v5689
  %5691 = vmatprep.mubr.f32.mxu0 %v5408
  %5692 = vmatmul.mubr.f32.gmra.mxu0 %v5407
  %v5693 = vpop.f32.mrf.mxu0
  %v5694 = vadd.f32 %v5566, %v5693
  %v5695 = vpop.f32.mrf.mxu0
  %v5696 = vadd.f32 %v5566, %v5695
  %5697 = vmatprep.mubr.f32.mxu0 %v5410
  %5698 = vmatmul.mubr.f32.gmra.mxu0 %v5409
  %v5699 = vpop.f32.mrf.mxu0
  %v5700 = vadd.f32 %v5571, %v5699
  %v5701 = vpop.f32.mrf.mxu0
  %v5702 = vadd.f32 %v5571, %v5701
  %5703 = vdwg.mxu0
  %5704 = vmatprep.subr.mxu0 0.0
  %5705 = vmatpush1.msra.mxu0 %v5458
  %5706 = vmatprep.subr.mxu0 0.0
  %5707 = vmatpush1.msra.mxu0 %v5455
  %5708 = vmatprep.subr.mxu0 0.0
  %5709 = vmatpush1.msra.mxu0 %v5452
  %5710 = vmatprep.subr.mxu0 0.0
  %5711 = vmatpush1.msra.mxu0 %v5449
  %5712 = vmatprep.subr.mxu0 0.0
  %5713 = vmatpush1.msra.mxu0 %v5446
  %5714 = vmatprep.subr.mxu0 0.0
  %5715 = vmatpush1.msra.mxu0 %v5443
  %5716 = vmatprep.subr.mxu0 0.0
  %5717 = vmatpush1.msra.mxu0 %v5440
  %5718 = vmatprep.subr.mxu0 0.0
  %5719 = vmatpush1.msra.mxu0 %v5437
  %5720 = vmatprep.subr.mxu0 0.0
  %5721 = vmatpush1.msra.mxu0 %v5434
  %5722 = vmatprep.subr.mxu0 0.0
  %5723 = vmatpush1.msra.mxu0 %v5431
  %5724 = vmatprep.subr.mxu0 0.0
  %5725 = vmatpush1.msra.mxu0 %v5428
  %5726 = vmatprep.subr.mxu0 0.0
  %5727 = vmatpush1.msra.mxu0 %v5425
  %5728 = vmatprep.subr.mxu0 0.0
  %5729 = vmatpush1.msra.mxu0 %v5422
  %5730 = vmatprep.subr.mxu0 0.0
  %5731 = vmatpush1.msra.mxu0 %v5419
  %5732 = vmatprep.subr.mxu0 0.0
  %5733 = vmatpush1.msra.mxu0 %v5416
  %5734 = vmatprep.subr.mxu0 0.0
  %5735 = vmatpush1.msra.mxu0 %v5413
  %5736 = vmatprep.subr.mxu0 0.0
  %5737 = vmatpush2.msra.mxu0 %v5506
  %5738 = vmatprep.subr.mxu0 0.0
  %5739 = vmatpush2.msra.mxu0 %v5503
  %5740 = vmatprep.subr.mxu0 0.0
  %5741 = vmatpush2.msra.mxu0 %v5500
  %5742 = vmatprep.subr.mxu0 0.0
  %5743 = vmatpush2.msra.mxu0 %v5497
  %5744 = vmatprep.subr.mxu0 0.0
  %5745 = vmatpush2.msra.mxu0 %v5494
  %5746 = vmatprep.subr.mxu0 0.0
  %5747 = vmatpush2.msra.mxu0 %v5491
  %5748 = vmatprep.subr.mxu0 0.0
  %5749 = vmatpush2.msra.mxu0 %v5488
  %5750 = vmatprep.subr.mxu0 0.0
  %5751 = vmatpush2.msra.mxu0 %v5485
  %5752 = vmatprep.subr.mxu0 0.0
  %5753 = vmatpush2.msra.mxu0 %v5482
  %5754 = vmatprep.subr.mxu0 0.0
  %5755 = vmatpush2.msra.mxu0 %v5479
  %5756 = vmatprep.subr.mxu0 0.0
  %5757 = vmatpush2.msra.mxu0 %v5476
  %5758 = vmatprep.subr.mxu0 0.0
  %5759 = vmatpush2.msra.mxu0 %v5473
  %5760 = vmatprep.subr.mxu0 0.0
  %5761 = vmatpush2.msra.mxu0 %v5470
  %5762 = vmatprep.subr.mxu0 0.0
  %5763 = vmatpush2.msra.mxu0 %v5467
  %5764 = vmatprep.subr.mxu0 0.0
  %5765 = vmatpush2.msra.mxu0 %v5464
  %5766 = vmatprep.subr.mxu0 0.0
  %5767 = vmatpush2.msra.mxu0 %v5461
  %5768 = vmatprep.mubr.f32.mxu0 %v5390
  %5769 = vmatmul.mubr.f32.gmra.mxu0 %v5389
  %v5770 = vpop.f32.mrf.mxu0
  %v5771 = vadd.f32 %v5521, %v5770
  %v5772 = vpop.f32.mrf.mxu0
  %5773 = vmatprep.mubr.f32.mxu0 %v5392
  %5774 = vmatmul.mubr.f32.gmra.mxu0 %v5391
  %v5775 = vpop.f32.mrf.mxu0
  %v5776 = vadd.f32 %v5526, %v5775
  %v5777 = vpop.f32.mrf.mxu0
  %5778 = vmatprep.mubr.f32.mxu0 %v5394
  %5779 = vmatmul.mubr.f32.gmra.mxu0 %v5393
  %v5780 = vpop.f32.mrf.mxu0
  %v5781 = vadd.f32 %v5531, %v5780
  %v5782 = vpop.f32.mrf.mxu0
  %5783 = vmatprep.mubr.f32.mxu0 %v5396
  %5784 = vmatmul.mubr.f32.gmra.mxu0 %v5395
  %v5785 = vpop.f32.mrf.mxu0
  %v5786 = vadd.f32 %v5536, %v5785
  %v5787 = vpop.f32.mrf.mxu0
  %5788 = vmatprep.mubr.f32.mxu0 %v5398
  %5789 = vmatmul.mubr.f32.gmra.mxu0 %v5397
  %v5790 = vpop.f32.mrf.mxu0
  %v5791 = vadd.f32 %v5541, %v5790
  %v5792 = vpop.f32.mrf.mxu0
  %5793 = vmatprep.mubr.f32.mxu0 %v5400
  %5794 = vmatmul.mubr.f32.gmra.mxu0 %v5399
  %v5795 = vpop.f32.mrf.mxu0
  %v5796 = vadd.f32 %v5546, %v5795
  %v5797 = vpop.f32.mrf.mxu0
  %5798 = vmatprep.mubr.f32.mxu0 %v5402
  %5799 = vmatmul.mubr.f32.gmra.mxu0 %v5401
  %v5800 = vpop.f32.mrf.mxu0
  %v5801 = vadd.f32 %v5551, %v5800
  %v5802 = vpop.f32.mrf.mxu0
  %5803 = vmatprep.mubr.f32.mxu0 %v5404
  %5804 = vmatmul.mubr.f32.gmra.mxu0 %v5403
  %v5805 = vpop.f32.mrf.mxu0
  %v5806 = vadd.f32 %v5556, %v5805
  %v5807 = vpop.f32.mrf.mxu0
  %5808 = vmatprep.mubr.f32.mxu0 %v5406
  %5809 = vmatmul.mubr.f32.gmra.mxu0 %v5405
  %v5810 = vpop.f32.mrf.mxu0
  %v5811 = vadd.f32 %v5561, %v5810
  %v5812 = vpop.f32.mrf.mxu0
  %5813 = vmatprep.mubr.f32.mxu0 %v5408
  %5814 = vmatmul.mubr.f32.gmra.mxu0 %v5407
  %v5815 = vpop.f32.mrf.mxu0
  %v5816 = vadd.f32 %v5566, %v5815
  %v5817 = vpop.f32.mrf.mxu0
  %5818 = vmatprep.mubr.f32.mxu0 %v5410
  %5819 = vmatmul.mubr.f32.gmra.mxu0 %v5409
  %v5820 = vpop.f32.mrf.mxu0
  %v5821 = vadd.f32 %v5571, %v5820
  %v5822 = vpop.f32.mrf.mxu0
  %5823 = vdwg.mxu0
  %v5824 = vmax.f32 %v5640, 0.0
  %v5825 = vmax.f32 %v5642, 0.0
  %v5826 = vmax.f32 %v5771, 0.0
  %v5827 = vmax.f32 %v5646, 0.0
  %v5828 = vmax.f32 %v5648, 0.0
  %v5829 = vmax.f32 %v5776, 0.0
  %v5830 = vmax.f32 %v5652, 0.0
  %v5831 = vmax.f32 %v5654, 0.0
  %v5832 = vmax.f32 %v5781, 0.0
  %v5833 = vmax.f32 %v5658, 0.0
  %v5834 = vmax.f32 %v5660, 0.0
  %v5835 = vmax.f32 %v5786, 0.0
  %v5836 = vmax.f32 %v5664, 0.0
  %v5837 = vmax.f32 %v5666, 0.0
  %v5838 = vmax.f32 %v5791, 0.0
  %v5839 = vmax.f32 %v5670, 0.0
  %v5840 = vmax.f32 %v5672, 0.0
  %v5841 = vmax.f32 %v5796, 0.0
  %v5842 = vmax.f32 %v5676, 0.0
  %v5843 = vmax.f32 %v5678, 0.0
  %v5844 = vmax.f32 %v5801, 0.0
  %v5845 = vmax.f32 %v5682, 0.0
  %v5846 = vmax.f32 %v5684, 0.0
  %v5847 = vmax.f32 %v5806, 0.0
  %v5848 = vmax.f32 %v5688, 0.0
  %v5849 = vmax.f32 %v5690, 0.0
  %v5850 = vmax.f32 %v5811, 0.0
  %v5851 = vmax.f32 %v5694, 0.0
  %v5852 = vmax.f32 %v5696, 0.0
  %v5853 = vmax.f32 %v5816, 0.0
  %v5854 = vmax.f32 %v5700, 0.0
  %v5855 = vmax.f32 %v5702, 0.0
  %v5856 = vmax.f32 %v5821, 0.0
  %v5857 = vld [vmem:[%s7] sm:$0xff]
  %v5858 = vld [vmem:[%s7 + $0x8] sm:$0xff]
  %v5859 = vld [vmem:[%s7 + $0x10] sm:$0xff]
  %v5860 = vld [vmem:[%s7 + $0x18] sm:$0xff]
  %v5861 = vld [vmem:[%s7 + $0x20] sm:$0xff]
  %v5862 = vld [vmem:[%s7 + $0x28] sm:$0x3]
  %v5863 = vld [vmem:[%s8] sm:$0xff]
  %v5864 = vld [vmem:[%s8 + $0x8] sm:$0xff]
  %v5865 = vld [vmem:[%s8 + $0x10] sm:$0xff]
  %v5866 = vld [vmem:[%s8 + $0x18] sm:$0xff]
  %v5867 = vld [vmem:[%s8 + $0x20] sm:$0xff]
  %v5868 = vld [vmem:[%s8 + $0x28] sm:$0x3]
  %5870 = vset.pattern.permute.xlu0 0
  %5871 = vperm.xlu0 %5870, %v5863
  %v5872 = vpop.permute.xlu0 %5871
  %5875 = vset.pattern.permute.xlu0 0
  %5876 = vperm.xlu0 %5875, %v5864
  %v5877 = vpop.permute.xlu0 %5876
  %5880 = vset.pattern.permute.xlu0 0
  %5881 = vperm.xlu0 %5880, %v5865
  %v5882 = vpop.permute.xlu0 %5881
  %5885 = vset.pattern.permute.xlu0 0
  %5886 = vperm.xlu0 %5885, %v5866
  %v5887 = vpop.permute.xlu0 %5886
  %5890 = vset.pattern.permute.xlu0 0
  %5891 = vperm.xlu0 %5890, %v5867
  %v5892 = vpop.permute.xlu0 %5891
  %5895 = vset.pattern.permute.xlu0 0
  %5896 = vperm.xlu0 %5895, %v5868
  %v5897 = vpop.permute.xlu0 %5896
  %v5900 = vsel %vm3000, %v5857, 0
  %v5903 = vsel %vm3000, %v5858, 0
  %v5906 = vsel %vm3000, %v5859, 0
  %v5909 = vsel %vm3000, %v5860, 0
  %v5912 = vsel %vm3000, %v5861, 0
  %v5915 = vsel %vm3000, %v5862, 0
  %vm5917 = vcmask 1043456
  %v5919 = vsel %vm5917, %v5854, 0
  %v5922 = vsel %vm5917, %v5855, 0
  %v5925 = vsel %vm5917, %v5856, 0
  %5927 = vmatprep.subr.mxu0 0.0
  %5928 = vmatpush1.msra.mxu0 0.0
  %5929 = vmatprep.subr.mxu0 0.0
  %5930 = vmatpush1.msra.mxu0 0.0
  %5931 = vmatprep.subr.mxu0 0.0
  %5932 = vmatpush1.msra.mxu0 0.0
  %5933 = vmatprep.subr.mxu0 0.0
  %5934 = vmatpush1.msra.mxu0 0.0
  %5935 = vmatprep.subr.mxu0 0.0
  %5936 = vmatpush1.msra.mxu0 0.0
  %5937 = vmatprep.subr.mxu0 %v5922
  %5938 = vmatpush1.msra.mxu0 %v5919
  %5939 = vmatprep.subr.mxu0 %v5852
  %5940 = vmatpush1.msra.mxu0 %v5851
  %5941 = vmatprep.subr.mxu0 %v5849
  %5942 = vmatpush1.msra.mxu0 %v5848
  %5943 = vmatprep.subr.mxu0 %v5846
  %5944 = vmatpush1.msra.mxu0 %v5845
  %5945 = vmatprep.subr.mxu0 %v5843
  %5946 = vmatpush1.msra.mxu0 %v5842
  %5947 = vmatprep.subr.mxu0 %v5840
  %5948 = vmatpush1.msra.mxu0 %v5839
  %5949 = vmatprep.subr.mxu0 %v5837
  %5950 = vmatpush1.msra.mxu0 %v5836
  %5951 = vmatprep.subr.mxu0 %v5834
  %5952 = vmatpush1.msra.mxu0 %v5833
  %5953 = vmatprep.subr.mxu0 %v5831
  %5954 = vmatpush1.msra.mxu0 %v5830
  %5955 = vmatprep.subr.mxu0 %v5828
  %5956 = vmatpush1.msra.mxu0 %v5827
  %5957 = vmatprep.subr.mxu0 %v5825
  %5958 = vmatpush1.msra.mxu0 %v5824
  %5959 = vmatprep.subr.mxu0 0.0
  %5960 = vmatpush2.msra.mxu0 0.0
  %5961 = vmatprep.subr.mxu0 0.0
  %5962 = vmatpush2.msra.mxu0 0.0
  %5963 = vmatprep.subr.mxu0 0.0
  %5964 = vmatpush2.msra.mxu0 0.0
  %5965 = vmatprep.subr.mxu0 0.0
  %5966 = vmatpush2.msra.mxu0 0.0
  %5967 = vmatprep.subr.mxu0 0.0
  %5968 = vmatpush2.msra.mxu0 0.0
  %5969 = vmatprep.subr.mxu0 0.0
  %5970 = vmatpush2.msra.mxu0 0.0
  %5971 = vmatprep.subr.mxu0 0.0
  %5972 = vmatpush2.msra.mxu0 0.0
  %5973 = vmatprep.subr.mxu0 0.0
  %5974 = vmatpush2.msra.mxu0 0.0
  %5975 = vmatprep.subr.mxu0 0.0
  %5976 = vmatpush2.msra.mxu0 0.0
  %5977 = vmatprep.subr.mxu0 0.0
  %5978 = vmatpush2.msra.mxu0 0.0
  %5979 = vmatprep.subr.mxu0 0.0
  %5980 = vmatpush2.msra.mxu0 0.0
  %5981 = vmatprep.subr.mxu0 0.0
  %5982 = vmatpush2.msra.mxu0 0.0
  %5983 = vmatprep.subr.mxu0 0.0
  %5984 = vmatpush2.msra.mxu0 0.0
  %5985 = vmatprep.subr.mxu0 0.0
  %5986 = vmatpush2.msra.mxu0 0.0
  %5987 = vmatprep.subr.mxu0 0.0
  %5988 = vmatpush2.msra.mxu0 0.0
  %5989 = vmatprep.subr.mxu0 0.0
  %5990 = vmatpush2.msra.mxu0 0.0
  %5991 = vmatprep.mubr.f32.mxu0 0.0
  %5992 = vmatmul.mubr.f32.gmra.mxu0 %v5900
  %v5993 = vpop.f32.mrf.mxu0
  %v5994 = vadd.f32 %v5872, %v5993
  %v5995 = vpop.f32.mrf.mxu0
  %v5996 = vadd.f32 %v5872, %v5995
  %5997 = vmatprep.mubr.f32.mxu0 0.0
  %5998 = vmatmul.mubr.f32.gmra.mxu0 %v5903
  %v5999 = vpop.f32.mrf.mxu0
  %v6000 = vadd.f32 %v5877, %v5999
  %v6001 = vpop.f32.mrf.mxu0
  %v6002 = vadd.f32 %v5877, %v6001
  %6003 = vmatprep.mubr.f32.mxu0 0.0
  %6004 = vmatmul.mubr.f32.gmra.mxu0 %v5906
  %v6005 = vpop.f32.mrf.mxu0
  %v6006 = vadd.f32 %v5882, %v6005
  %v6007 = vpop.f32.mrf.mxu0
  %v6008 = vadd.f32 %v5882, %v6007
  %6009 = vmatprep.mubr.f32.mxu0 0.0
  %6010 = vmatmul.mubr.f32.gmra.mxu0 %v5909
  %v6011 = vpop.f32.mrf.mxu0
  %v6012 = vadd.f32 %v5887, %v6011
  %v6013 = vpop.f32.mrf.mxu0
  %v6014 = vadd.f32 %v5887, %v6013
  %6015 = vmatprep.mubr.f32.mxu0 0.0
  %6016 = vmatmul.mubr.f32.gmra.mxu0 %v5912
  %v6017 = vpop.f32.mrf.mxu0
  %v6018 = vadd.f32 %v5892, %v6017
  %v6019 = vpop.f32.mrf.mxu0
  %v6020 = vadd.f32 %v5892, %v6019
  %6021 = vmatprep.mubr.f32.mxu0 0.0
  %6022 = vmatmul.mubr.f32.gmra.mxu0 %v5915
  %v6023 = vpop.f32.mrf.mxu0
  %v6024 = vadd.f32 %v5897, %v6023
  %v6025 = vpop.f32.mrf.mxu0
  %v6026 = vadd.f32 %v5897, %v6025
  %6027 = vdwg.mxu0
  %6028 = vmatprep.subr.mxu0 0.0
  %6029 = vmatpush1.msra.mxu0 0.0
  %6030 = vmatprep.subr.mxu0 0.0
  %6031 = vmatpush1.msra.mxu0 0.0
  %6032 = vmatprep.subr.mxu0 0.0
  %6033 = vmatpush1.msra.mxu0 0.0
  %6034 = vmatprep.subr.mxu0 0.0
  %6035 = vmatpush1.msra.mxu0 0.0
  %6036 = vmatprep.subr.mxu0 0.0
  %6037 = vmatpush1.msra.mxu0 0.0
  %6038 = vmatprep.subr.mxu0 0.0
  %6039 = vmatpush1.msra.mxu0 %v5925
  %6040 = vmatprep.subr.mxu0 0.0
  %6041 = vmatpush1.msra.mxu0 %v5853
  %6042 = vmatprep.subr.mxu0 0.0
  %6043 = vmatpush1.msra.mxu0 %v5850
  %6044 = vmatprep.subr.mxu0 0.0
  %6045 = vmatpush1.msra.mxu0 %v5847
  %6046 = vmatprep.subr.mxu0 0.0
  %6047 = vmatpush1.msra.mxu0 %v5844
  %6048 = vmatprep.subr.mxu0 0.0
  %6049 = vmatpush1.msra.mxu0 %v5841
  %6050 = vmatprep.subr.mxu0 0.0
  %6051 = vmatpush1.msra.mxu0 %v5838
  %6052 = vmatprep.subr.mxu0 0.0
  %6053 = vmatpush1.msra.mxu0 %v5835
  %6054 = vmatprep.subr.mxu0 0.0
  %6055 = vmatpush1.msra.mxu0 %v5832
  %6056 = vmatprep.subr.mxu0 0.0
  %6057 = vmatpush1.msra.mxu0 %v5829
  %6058 = vmatprep.subr.mxu0 0.0
  %6059 = vmatpush1.msra.mxu0 %v5826
  %6060 = vmatprep.subr.mxu0 0.0
  %6061 = vmatpush2.msra.mxu0 0.0
  %6062 = vmatprep.subr.mxu0 0.0
  %6063 = vmatpush2.msra.mxu0 0.0
  %6064 = vmatprep.subr.mxu0 0.0
  %6065 = vmatpush2.msra.mxu0 0.0
  %6066 = vmatprep.subr.mxu0 0.0
  %6067 = vmatpush2.msra.mxu0 0.0
  %6068 = vmatprep.subr.mxu0 0.0
  %6069 = vmatpush2.msra.mxu0 0.0
  %6070 = vmatprep.subr.mxu0 0.0
  %6071 = vmatpush2.msra.mxu0 0.0
  %6072 = vmatprep.subr.mxu0 0.0
  %6073 = vmatpush2.msra.mxu0 0.0
  %6074 = vmatprep.subr.mxu0 0.0
  %6075 = vmatpush2.msra.mxu0 0.0
  %6076 = vmatprep.subr.mxu0 0.0
  %6077 = vmatpush2.msra.mxu0 0.0
  %6078 = vmatprep.subr.mxu0 0.0
  %6079 = vmatpush2.msra.mxu0 0.0
  %6080 = vmatprep.subr.mxu0 0.0
  %6081 = vmatpush2.msra.mxu0 0.0
  %6082 = vmatprep.subr.mxu0 0.0
  %6083 = vmatpush2.msra.mxu0 0.0
  %6084 = vmatprep.subr.mxu0 0.0
  %6085 = vmatpush2.msra.mxu0 0.0
  %6086 = vmatprep.subr.mxu0 0.0
  %6087 = vmatpush2.msra.mxu0 0.0
  %6088 = vmatprep.subr.mxu0 0.0
  %6089 = vmatpush2.msra.mxu0 0.0
  %6090 = vmatprep.subr.mxu0 0.0
  %6091 = vmatpush2.msra.mxu0 0.0
  %6092 = vmatprep.mubr.f32.mxu0 0.0
  %6093 = vmatmul.mubr.f32.gmra.mxu0 %v5900
  %v6094 = vpop.f32.mrf.mxu0
  %v6095 = vadd.f32 %v5872, %v6094
  %v6096 = vpop.f32.mrf.mxu0
  %6097 = vmatprep.mubr.f32.mxu0 0.0
  %6098 = vmatmul.mubr.f32.gmra.mxu0 %v5903
  %v6099 = vpop.f32.mrf.mxu0
  %v6100 = vadd.f32 %v5877, %v6099
  %v6101 = vpop.f32.mrf.mxu0
  %6102 = vmatprep.mubr.f32.mxu0 0.0
  %6103 = vmatmul.mubr.f32.gmra.mxu0 %v5906
  %v6104 = vpop.f32.mrf.mxu0
  %v6105 = vadd.f32 %v5882, %v6104
  %v6106 = vpop.f32.mrf.mxu0
  %6107 = vmatprep.mubr.f32.mxu0 0.0
  %6108 = vmatmul.mubr.f32.gmra.mxu0 %v5909
  %v6109 = vpop.f32.mrf.mxu0
  %v6110 = vadd.f32 %v5887, %v6109
  %v6111 = vpop.f32.mrf.mxu0
  %6112 = vmatprep.mubr.f32.mxu0 0.0
  %6113 = vmatmul.mubr.f32.gmra.mxu0 %v5912
  %v6114 = vpop.f32.mrf.mxu0
  %v6115 = vadd.f32 %v5892, %v6114
  %v6116 = vpop.f32.mrf.mxu0
  %6117 = vmatprep.mubr.f32.mxu0 0.0
  %6118 = vmatmul.mubr.f32.gmra.mxu0 %v5915
  %v6119 = vpop.f32.mrf.mxu0
  %v6120 = vadd.f32 %v5897, %v6119
  %v6121 = vpop.f32.mrf.mxu0
  %6122 = vdwg.mxu0
  %v6123 = vmax.f32 %v5994, 0.0
  %v6124 = vmax.f32 %v5996, 0.0
  %v6125 = vmax.f32 %v6095, 0.0
  %v6126 = vmax.f32 %v6000, 0.0
  %v6127 = vmax.f32 %v6002, 0.0
  %v6128 = vmax.f32 %v6100, 0.0
  %v6129 = vmax.f32 %v6006, 0.0
  %v6130 = vmax.f32 %v6008, 0.0
  %v6131 = vmax.f32 %v6105, 0.0
  %v6132 = vmax.f32 %v6012, 0.0
  %v6133 = vmax.f32 %v6014, 0.0
  %v6134 = vmax.f32 %v6110, 0.0
  %v6135 = vmax.f32 %v6018, 0.0
  %v6136 = vmax.f32 %v6020, 0.0
  %v6137 = vmax.f32 %v6115, 0.0
  %v6138 = vmax.f32 %v6024, 0.0
  %v6139 = vmax.f32 %v6026, 0.0
  %v6140 = vmax.f32 %v6120, 0.0
  %v6141 = vld [vmem:[%s9] sm:$0x7]
  %v6142 = vld [vmem:[%s10] sm:$0x7]
  %6144 = vset.pattern.permute.xlu0 0
  %6145 = vperm.xlu0 %6144, %v6142
  %v6146 = vpop.permute.xlu0 %6145
  %v6149 = vsel %vm1123, %v6141, 0
  %vm6151 = vcmask 1041408
  %v6153 = vsel %vm6151, %v6138, 0
  %v6156 = vsel %vm6151, %v6139, 0
  %v6159 = vsel %vm6151, %v6140, 0
  %6161 = vmatprep.subr.mxu0 0.0
  %6162 = vmatpush1.msra.mxu0 0.0
  %6163 = vmatprep.subr.mxu0 0.0
  %6164 = vmatpush1.msra.mxu0 0.0
  %6165 = vmatprep.subr.mxu0 0.0
  %6166 = vmatpush1.msra.mxu0 0.0
  %6167 = vmatprep.subr.mxu0 0.0
  %6168 = vmatpush1.msra.mxu0 0.0
  %6169 = vmatprep.subr.mxu0 0.0
  %6170 = vmatpush1.msra.mxu0 0.0
  %6171 = vmatprep.subr.mxu0 0.0
  %6172 = vmatpush1.msra.mxu0 0.0
  %6173 = vmatprep.subr.mxu0 0.0
  %6174 = vmatpush1.msra.mxu0 0.0
  %6175 = vmatprep.subr.mxu0 0.0
  %6176 = vmatpush1.msra.mxu0 0.0
  %6177 = vmatprep.subr.mxu0 0.0
  %6178 = vmatpush1.msra.mxu0 0.0
  %6179 = vmatprep.subr.mxu0 0.0
  %6180 = vmatpush1.msra.mxu0 0.0
  %6181 = vmatprep.subr.mxu0 %v6156
  %6182 = vmatpush1.msra.mxu0 %v6153
  %6183 = vmatprep.subr.mxu0 %v6136
  %6184 = vmatpush1.msra.mxu0 %v6135
  %6185 = vmatprep.subr.mxu0 %v6133
  %6186 = vmatpush1.msra.mxu0 %v6132
  %6187 = vmatprep.subr.mxu0 %v6130
  %6188 = vmatpush1.msra.mxu0 %v6129
  %6189 = vmatprep.subr.mxu0 %v6127
  %6190 = vmatpush1.msra.mxu0 %v6126
  %6191 = vmatprep.subr.mxu0 %v6124
  %6192 = vmatpush1.msra.mxu0 %v6123
  %6193 = vmatprep.subr.mxu0 0.0
  %6194 = vmatpush2.msra.mxu0 0.0
  %6195 = vmatprep.subr.mxu0 0.0
  %6196 = vmatpush2.msra.mxu0 0.0
  %6197 = vmatprep.subr.mxu0 0.0
  %6198 = vmatpush2.msra.mxu0 0.0
  %6199 = vmatprep.subr.mxu0 0.0
  %6200 = vmatpush2.msra.mxu0 0.0
  %6201 = vmatprep.subr.mxu0 0.0
  %6202 = vmatpush2.msra.mxu0 0.0
  %6203 = vmatprep.subr.mxu0 0.0
  %6204 = vmatpush2.msra.mxu0 0.0
  %6205 = vmatprep.subr.mxu0 0.0
  %6206 = vmatpush2.msra.mxu0 0.0
  %6207 = vmatprep.subr.mxu0 0.0
  %6208 = vmatpush2.msra.mxu0 0.0
  %6209 = vmatprep.subr.mxu0 0.0
  %6210 = vmatpush2.msra.mxu0 0.0
  %6211 = vmatprep.subr.mxu0 0.0
  %6212 = vmatpush2.msra.mxu0 0.0
  %6213 = vmatprep.subr.mxu0 0.0
  %6214 = vmatpush2.msra.mxu0 0.0
  %6215 = vmatprep.subr.mxu0 0.0
  %6216 = vmatpush2.msra.mxu0 0.0
  %6217 = vmatprep.subr.mxu0 0.0
  %6218 = vmatpush2.msra.mxu0 0.0
  %6219 = vmatprep.subr.mxu0 0.0
  %6220 = vmatpush2.msra.mxu0 0.0
  %6221 = vmatprep.subr.mxu0 0.0
  %6222 = vmatpush2.msra.mxu0 0.0
  %6223 = vmatprep.subr.mxu0 0.0
  %6224 = vmatpush2.msra.mxu0 0.0
  %6225 = vmatprep.mubr.f32.mxu0 0.0
  %6226 = vmatmul.mubr.f32.gmra.mxu0 %v6149
  %v6227 = vpop.f32.mrf.mxu0
  %v6228 = vadd.f32 %v6146, %v6227
  %v6229 = vpop.f32.mrf.mxu0
  %6230 = vdwg.mxu0
  %6231 = vmatprep.subr.mxu0 0.0
  %6232 = vmatpush1.msra.mxu0 0.0
  %6233 = vmatprep.subr.mxu0 0.0
  %6234 = vmatpush1.msra.mxu0 0.0
  %6235 = vmatprep.subr.mxu0 0.0
  %6236 = vmatpush1.msra.mxu0 0.0
  %6237 = vmatprep.subr.mxu0 0.0
  %6238 = vmatpush1.msra.mxu0 0.0
  %6239 = vmatprep.subr.mxu0 0.0
  %6240 = vmatpush1.msra.mxu0 0.0
  %6241 = vmatprep.subr.mxu0 0.0
  %6242 = vmatpush1.msra.mxu0 0.0
  %6243 = vmatprep.subr.mxu0 0.0
  %6244 = vmatpush1.msra.mxu0 0.0
  %6245 = vmatprep.subr.mxu0 0.0
  %6246 = vmatpush1.msra.mxu0 0.0
  %6247 = vmatprep.subr.mxu0 0.0
  %6248 = vmatpush1.msra.mxu0 0.0
  %6249 = vmatprep.subr.mxu0 0.0
  %6250 = vmatpush1.msra.mxu0 0.0
  %6251 = vmatprep.subr.mxu0 0.0
  %6252 = vmatpush1.msra.mxu0 %v6159
  %6253 = vmatprep.subr.mxu0 0.0
  %6254 = vmatpush1.msra.mxu0 %v6137
  %6255 = vmatprep.subr.mxu0 0.0
  %6256 = vmatpush1.msra.mxu0 %v6134
  %6257 = vmatprep.subr.mxu0 0.0
  %6258 = vmatpush1.msra.mxu0 %v6131
  %6259 = vmatprep.subr.mxu0 0.0
  %6260 = vmatpush1.msra.mxu0 %v6128
  %6261 = vmatprep.subr.mxu0 0.0
  %6262 = vmatpush1.msra.mxu0 %v6125
  %6263 = vmatprep.subr.mxu0 0.0
  %6264 = vmatpush2.msra.mxu0 0.0
  %6265 = vmatprep.subr.mxu0 0.0
  %6266 = vmatpush2.msra.mxu0 0.0
  %6267 = vmatprep.subr.mxu0 0.0
  %6268 = vmatpush2.msra.mxu0 0.0
  %6269 = vmatprep.subr.mxu0 0.0
  %6270 = vmatpush2.msra.mxu0 0.0
  %6271 = vmatprep.subr.mxu0 0.0
  %6272 = vmatpush2.msra.mxu0 0.0
  %6273 = vmatprep.subr.mxu0 0.0
  %6274 = vmatpush2.msra.mxu0 0.0
  %6275 = vmatprep.subr.mxu0 0.0
  %6276 = vmatpush2.msra.mxu0 0.0
  %6277 = vmatprep.subr.mxu0 0.0
  %6278 = vmatpush2.msra.mxu0 0.0
  %6279 = vmatprep.subr.mxu0 0.0
  %6280 = vmatpush2.msra.mxu0 0.0
  %6281 = vmatprep.subr.mxu0 0.0
  %6282 = vmatpush2.msra.mxu0 0.0
  %6283 = vmatprep.subr.mxu0 0.0
  %6284 = vmatpush2.msra.mxu0 0.0
  %6285 = vmatprep.subr.mxu0 0.0
  %6286 = vmatpush2.msra.mxu0 0.0
  %6287 = vmatprep.subr.mxu0 0.0
  %6288 = vmatpush2.msra.mxu0 0.0
  %6289 = vmatprep.subr.mxu0 0.0
  %6290 = vmatpush2.msra.mxu0 0.0
  %6291 = vmatprep.subr.mxu0 0.0
  %6292 = vmatpush2.msra.mxu0 0.0
  %6293 = vmatprep.subr.mxu0 0.0
  %6294 = vmatpush2.msra.mxu0 0.0
  %6295 = vmatprep.mubr.f32.mxu0 0.0
  %6296 = vmatmul.mubr.f32.gmra.mxu0 %v6149
  %v6297 = vpop.f32.mrf.mxu0
  %v6298 = vadd.f32 %v6146, %v6297
  %v6299 = vpop.f32.mrf.mxu0
  %6300 = vdwg.mxu0
  %v6303 = vrot.slane %v6228, 1
  %v6304 = vrot.slane %v6298, 1
  %v6307 = vmax.f32 %v6228, %v6303
  %v6308 = vmax.f32 %v6298, %v6304
  %v6309 = vrot.slane %v6228, 2
  %v6310 = vrot.slane %v6298, 2
  %v6313 = vmax.f32 %v6307, %v6309
  %v6314 = vmax.f32 %v6308, %v6310
  %v6315 = vlaneseq
  %v6316 = vshrl.u32 %v6315, 7
  %v6317 = vsub.s32 0, %v6316
  %v6318 = vrot.slane %v6313, %v6317
  %v6319 = vlaneseq
  %v6320 = vshrl.u32 %v6319, 7
  %v6321 = vsub.s32 0, %v6320
  %v6322 = vrot.slane %v6314, %v6321
  %v6323 = vsub.f32 %v6228, %v6318
  %v6324 = vsub.f32 %v6298, %v6322
  %v6325 = vmul.f32 %v6323, 1.442695
  %v6326 = vpow.pop %v6325
  %v6327 = vmul.f32 %v6324, 1.442695
  %v6328 = vpow.pop %v6327
  %v6331 = vrot.slane %v6326, 1
  %v6332 = vrot.slane %v6328, 1
  %v6335 = vadd.f32 %v6326, %v6331
  %v6336 = vadd.f32 %v6328, %v6332
  %v6337 = vrot.slane %v6326, 2
  %v6338 = vrot.slane %v6328, 2
  %v6341 = vadd.f32 %v6335, %v6337
  %v6342 = vadd.f32 %v6336, %v6338
  %v6343 = vlaneseq
  %v6344 = vshrl.u32 %v6343, 7
  %v6345 = vsub.s32 0, %v6344
  %v6346 = vrot.slane %v6341, %v6345
  %v6347 = vlaneseq
  %v6348 = vshrl.u32 %v6347, 7
  %v6349 = vsub.s32 0, %v6348
  %v6350 = vrot.slane %v6342, %v6349
  %v6351 = vrcp.pop %v6346
  %v6352 = vmul.f32 %v6326, %v6351
  %v6353 = vrcp.pop %v6350
  %v6354 = vmul.f32 %v6328, %v6353
  %vm6355 = vcmask 2048
  %6356 = vst.msk [vmem:[%s11] sm:$0x7] %vm6355, %v6352
  %6358 = vrot.lane.b32.xlu0 %v6354, 113
  %v6359 = vpop.permute.xlu0 %6358
  %vm6361 = vcmask 10248
  %6362 = vst.msk [vmem:[%s11] sm:$0x7] %vm6361, %v6359
  // Predicated region
  $region46: #{gate_cnn_fashion_softmax.1} parent=0 // pred_check
    _
  $region47: #{gate_cnn_fashion_softmax.1} parent=0 // pred_check_branch
    %6364 = sbr.rel (0) target = $region49
  $region48: #{gate_cnn_fashion_softmax.1} parent=0 // pred_region
    _
  $region49: #{gate_cnn_fashion_softmax.1} parent=0 // pred_fallthru
    _
  // Predicated region
  $region50: #{gate_cnn_fashion_softmax.1} parent=0 // pred_check
    _
  $region51: #{gate_cnn_fashion_softmax.1} parent=0 // pred_check_branch
    %6366 = sbr.rel (0) target = $region53
  $region52: #{gate_cnn_fashion_softmax.1} parent=0 // pred_region
    _
  $region53: #{gate_cnn_fashion_softmax.1} parent=0 // pred_fallthru
    _

</llo_original>
